<compile_context>
chip_gen: v7x
topology: tpu7x:2x2x1
jax: 0.10.0
libtpu: 0.0.40
codegen_flags: <defaults>
</compile_context>

<pallas_src>
import jax
import jax.numpy as jnp
from jax.experimental import pallas as pl
from jax.experimental.pallas import tpu as pltpu


def _round_up(v, m):
    return (v + m - 1) // m * m


# ----------------------------------------------------------------------------
# Kernels
# ----------------------------------------------------------------------------
def _fused_patch_embed_kernel(x_ref, w_ref, b_ref, o_ref, patches_ref):
    """Grid step (b, r): embed HT patch rows of image b.

    x_ref:       (1, C, HT, p, Wn, p)  input patch-grid tile (image b, row tile r)
    w_ref:       (K, E_pad)            reshaped conv weight, K = (c, ph, pw); resident
    b_ref:       (1, E_pad)            f32 bias; resident
    o_ref:       (1, HT*Wn, E_pad)     output rows ordered hn*Wn + wn
    patches_ref: (HT*Wn, K)            VMEM scratch of gathered patch rows
    """
    _, C, HT, p, Wn, _ = x_ref.shape
    K = C * p * p
    # Gather loop: each iteration is a short load -> relayout -> scratch-store
    # chain, so vreg pressure stays flat even though it is statically unrolled.
    # (Offsets stay static so the scratch writes remain plain sublane-sliced
    # stores; the matmul is hoisted out of the loop entirely.)
    for hn in range(HT):
        t = x_ref[0, :, hn]                    # (C, p, Wn, p)   [c, ph, wn, pw]
        t = jnp.swapaxes(t, -2, -1)            # (C, p, p, Wn)   [c, ph, pw, wn]
        t = t.reshape(K, Wn)                   # (K, Wn)
        patches_ref[hn * Wn:(hn + 1) * Wn, :] = (
            jnp.transpose(t).astype(patches_ref.dtype))         # (Wn, K) rows
    # One MXU matmul per grid step: M = HT*Wn rows instead of Wn.
    acc = jnp.dot(patches_ref[...], w_ref[...],
                  preferred_element_type=jnp.float32)            # (M_tile, E_pad)
    o_ref[0] = (acc + b_ref[...]).astype(o_ref.dtype)            # single dense store


def _gemm_patch_embed_kernel(p_ref, w_ref, b_ref, o_ref):
    """Fallback: (TM, K) @ (K, E_pad) + f32 bias, one M tile per grid step."""
    acc = jnp.dot(p_ref[...], w_ref[...], preferred_element_type=jnp.float32)
    o_ref[...] = (acc + b_ref[...]).astype(o_ref.dtype)


# ----------------------------------------------------------------------------
# Wrappers
# ----------------------------------------------------------------------------
def _prep_params(weight, bias, compute_dtype):
    """Conv weight (E, C, p, p) -> (K, E_pad); bias -> (1, E_pad) f32."""
    E, C, p, _ = weight.shape
    K = C * p * p
    E_pad = _round_up(E, 128)                  # lane-dense output tiles
    w2d = weight.reshape(E, K).T.astype(compute_dtype)   # (K, E), K = (c, ph, pw)
    b1d = bias.astype(jnp.float32)
    if E_pad != E:
        w2d = jnp.pad(w2d, ((0, 0), (0, E_pad - E)))
        b1d = jnp.pad(b1d, (0, E_pad - E))
    return w2d, b1d.reshape(1, E_pad), E_pad


def _pick_row_tile(Hn, Wn, target_rows):
    """Smallest divisor HT of Hn with HT*Wn >= target_rows, else the whole image."""
    for d in range(1, Hn + 1):
        if Hn % d == 0 and d * Wn >= target_rows:
            return d
    return Hn


def _patch_embed_fused(x, w2d, b2d, patch_size, out_dtype, compute_dtype,
                       target_rows):
    B, C, H, W = x.shape
    p = patch_size
    Hn, Wn = H // p, W // p
    Np = Hn * Wn
    K, E_pad = w2d.shape
    HT = _pick_row_tile(Hn, Wn, target_rows)
    M_tile = HT * Wn
    n_rt = Hn // HT

    # Copy-free patch-grid view; each block is a dense-per-channel HBM region.
    xr = x.reshape(B, C, Hn, p, Wn, p)

    flops = 2 * B * Np * K * E_pad
    bytes_accessed = (x.size * x.dtype.itemsize
                      + w2d.size * w2d.dtype.itemsize
                      + b2d.size * b2d.dtype.itemsize
                      + B * Np * E_pad * jnp.dtype(out_dtype).itemsize)

    out = pl.pallas_call(
        _fused_patch_embed_kernel,
        out_shape=jax.ShapeDtypeStruct((B, Np, E_pad), out_dtype),
        grid=(B, n_rt),
        in_specs=[
            pl.BlockSpec((1, C, HT, p, Wn, p), lambda b, r: (b, 0, r, 0, 0, 0)),
            pl.BlockSpec((K, E_pad), lambda b, r: (0, 0)),   # resident weight
            pl.BlockSpec((1, E_pad), lambda b, r: (0, 0)),   # resident bias
        ],
        out_specs=pl.BlockSpec((1, M_tile, E_pad), lambda b, r: (b, r, 0)),
        scratch_shapes=[pltpu.VMEM((M_tile, K), compute_dtype)],
        compiler_params=pltpu.CompilerParams(
            # Both axes are independent: megacore sharding + pipelining even at
            # B == 1 when there is more than one row tile.  Default scoped VMEM
            # (32 MiB) is enough; no hard-coded generation-specific limit.
            dimension_semantics=("parallel", "parallel")),
        cost_estimate=pl.CostEstimate(flops=flops, transcendentals=0,
                                      bytes_accessed=bytes_accessed),
    )(xr, w2d, b2d)
    return out


def _patch_embed_gemm(x, w2d, b2d, patch_size, out_dtype, tm_target=256):
    B, C, H, W = x.shape
    p = patch_size
    Hn, Wn = H // p, W // p
    Np = Hn * Wn
    K, E_pad = w2d.shape
    M = B * Np

    # Patchify in plain JAX (one extra HBM pass over x), in the compute dtype.
    patches = x.astype(w2d.dtype).reshape(B, C, Hn, p, Wn, p)
    patches = patches.transpose(0, 2, 4, 1, 3, 5).reshape(M, K)

    # MXU-native M tile: at most 256 rows, multiple of 8; pad M up to a tile
    # multiple (wastes < one tile instead of up to ~2x).
    tm = min(tm_target, _round_up(M, 8))
    m_pad = _round_up(M, tm)
    if m_pad != M:
        patches = jnp.pad(patches, ((0, m_pad - M), (0, 0)))

    flops = 2 * m_pad * K * E_pad
    bytes_accessed = ((m_pad * K + K * E_pad + E_pad) * patches.dtype.itemsize
                      + m_pad * E_pad * jnp.dtype(out_dtype).itemsize)

    out = pl.pallas_call(
        _gemm_patch_embed_kernel,
        out_shape=jax.ShapeDtypeStruct((m_pad, E_pad), out_dtype),
        grid=(m_pad // tm,),
        in_specs=[
            pl.BlockSpec((tm, K), lambda i: (i, 0)),
            pl.BlockSpec((K, E_pad), lambda i: (0, 0)),      # resident weight
            pl.BlockSpec((1, E_pad), lambda i: (0, 0)),      # resident bias
        ],
        out_specs=pl.BlockSpec((tm, E_pad), lambda i: (i, 0)),
        compiler_params=pltpu.CompilerParams(
            dimension_semantics=("parallel",)),
        cost_estimate=pl.CostEstimate(flops=flops, transcendentals=0,
                                      bytes_accessed=bytes_accessed),
    )(patches, w2d, b2d)
    return out[:M].reshape(B, Np, E_pad)


def patch_embedding(x, weight, bias, patch_size, *, compute_dtype=None,
                    impl="fused", target_rows=256):
    """Pallas TPU equivalent of PatchEmbedding.forward.

    x: (B, C, H, W) NCHW.  weight: (E, C, p, p).  bias: (E,).
    Returns (B, (H//p)*(W//p), E) in x.dtype.

    compute_dtype: None -> x.dtype (exact PyTorch semantics).  jnp.bfloat16 is the
      recommended setting on v6e/v7x (bf16 MXU inputs, f32 accumulation + bias) --
      an explicit accuracy/perf trade, not a silent default.
    impl: "fused" (x read from HBM once, patchify done in-kernel) or "gemm"
      (XLA patchify + tiled GEMM; portable fallback).  Explicit flag -- no hidden
      exception-based dispatch.
    target_rows: MXU M-tile target for the fused path (128 is enough on v5e,
      256 on v6e/v7x).
    """
    if impl not in ("fused", "gemm"):
        raise ValueError(f"impl must be 'fused' or 'gemm', got {impl!r}")
    B, C, H, W = x.shape
    E = weight.shape[0]
    p = patch_size
    Hn, Wn = H // p, W // p
    if H != Hn * p or W != Wn * p:             # Conv2d drops the remainder
        x = x[:, :, :Hn * p, :Wn * p]
    out_dtype = x.dtype
    if compute_dtype is None:
        compute_dtype = x.dtype
    w2d, b2d, E_pad = _prep_params(weight, bias, compute_dtype)

    if impl == "fused":
        out = _patch_embed_fused(x, w2d, b2d, p, out_dtype, compute_dtype,
                                 target_rows)
    else:
        out = _patch_embed_gemm(x, w2d, b2d, p, out_dtype)
    if E_pad != E:
        out = out[..., :E]
    return out


# ----------------------------------------------------------------------------
# Self-test
# ----------------------------------------------------------------------------
def _conv_reference(x, weight, bias, p):
    E = weight.shape[0]
    ref = jax.lax.conv_general_dilated(
        x, weight, window_strides=(p, p), padding="VALID",
        dimension_numbers=("NCHW", "OIHW", "NCHW"))
    ref = ref + bias.reshape(1, E, 1, 1)
    B = x.shape[0]
    return ref.reshape(B, E, -1).transpose(0, 2, 1)


if __name__ == "__main__":
    # Small shapes: B=2, C=3, H=W=64, patch=8 -> Hn=Wn=8, Np=64, K=192, E=256.
    B, C, H, W = 2, 3, 64, 64
    patch_size = 8
    embed_dim = 256

    key = jax.random.PRNGKey(0)
    kx, kw, kb = jax.random.split(key, 3)
    x = jax.random.normal(kx, (B, C, H, W), dtype=jnp.float32)
    weight = jax.random.normal(
        kw, (embed_dim, C, patch_size, patch_size), dtype=jnp.float32) * 0.02
    bias = jax.random.normal(kb, (embed_dim,), dtype=jnp.float32) * 0.02

    Np = (H // patch_size) * (W // patch_size)
    ref = _conv_reference(x, weight, bias, patch_size)

    # 1) Fused path, whole-image M tile (grid = (B, 1)).
    out = jax.block_until_ready(patch_embedding(x, weight, bias, patch_size))
    assert out.shape == (B, Np, embed_dim)
    assert jnp.allclose(out, ref, atol=1e-2, rtol=1e-2)

    # 2) Fused path with multiple row tiles (grid = (B, 2)) to exercise the
    #    second grid axis / index maps.
    out_tiled = jax.block_until_ready(
        patch_embedding(x, weight, bias, patch_size, target_rows=32))
    assert jnp.allclose(out_tiled, ref, atol=1e-2, rtol=1e-2)

    # 3) Explicit tiled-GEMM fallback.
    out_gemm = jax.block_until_ready(
        patch_embedding(x, weight, bias, patch_size, impl="gemm"))
    assert jnp.allclose(out_gemm, ref, atol=1e-2, rtol=1e-2)

    # 4) bf16 compute (f32 accumulation), the recommended v6e/v7x setting.
    out_bf16 = jax.block_until_ready(
        patch_embedding(x, weight, bias, patch_size,
                        compute_dtype=jnp.bfloat16))
    assert jnp.allclose(out_bf16, ref, atol=5e-2, rtol=5e-2)

    # 5) Non-multiple-of-128 embed_dim exercises lane padding (E -> 128, sliced).
    embed_small = 64
    w_s = jax.random.normal(
        kw, (embed_small, C, patch_size, patch_size), dtype=jnp.float32) * 0.02
    b_s = jax.random.normal(kb, (embed_small,), dtype=jnp.float32) * 0.02
    out_s = jax.block_until_ready(patch_embedding(x, w_s, b_s, patch_size))
    assert out_s.shape == (B, Np, embed_small)
    assert jnp.allclose(out_s, _conv_reference(x, w_s, b_s, patch_size),
                        atol=1e-2, rtol=1e-2)

    print("KERNEL_OK")
</pallas_src>

<mosaic_0001>
module attributes {stable_mosaic.version = 11 : i64} {
  func.func @_fused_patch_embed_kernel(%arg0: i32, %arg1: i32, %arg2: memref<1x3x8x8x8x8xf32, #tpu.memory_space<vmem>>, %arg3: memref<192x256xf32, #tpu.memory_space<vmem>>, %arg4: memref<1x256xf32, #tpu.memory_space<vmem>>, %arg5: memref<1x64x256xf32, #tpu.memory_space<vmem>>, %arg6: memref<64x192xf32, #tpu.memory_space<vmem>>) attributes {dimension_semantics = [#tpu.dimension_semantics<parallel>, #tpu.dimension_semantics<parallel>], iteration_bounds = array<i64: 2, 1>, scalar_prefetch = 0 : i64, scratch_operands = 1 : i64, tpu.core_type = #tpu.core_type<tc>, window_params = [{transform_indices = @transform_0, window_bounds = array<i64: 1, 3, 8, 8, 8, 8>}, {pipeline_mode = #tpu.pipeline_mode<synchronous>, transform_indices = @transform_1, window_bounds = array<i64: 192, 256>}, {pipeline_mode = #tpu.pipeline_mode<synchronous>, transform_indices = @transform_2, window_bounds = array<i64: 1, 256>}, {transform_indices = @transform_3, window_bounds = array<i64: 1, 64, 256>}]} {
    %c0 = arith.constant 0 : index
    %c0_0 = arith.constant 0 : index
    %c0_1 = arith.constant 0 : index
    %c0_2 = arith.constant 0 : index
    %c0_3 = arith.constant 0 : index
    %c0_4 = arith.constant 0 : index
    %0 = vector.load %arg2[%c0, %c0_0, %c0_1, %c0_2, %c0_3, %c0_4] : memref<1x3x8x8x8x8xf32, #tpu.memory_space<vmem>>, vector<1x3x1x8x8x8xf32>
    %1 = vector.shape_cast %0 : vector<1x3x1x8x8x8xf32> to vector<3x8x8x8xf32>
    %2 = tpu.transpose %1, [0, 1, 3, 2] : vector<3x8x8x8xf32> -> vector<3x8x8x8xf32>
    %3 = vector.shape_cast %2 : vector<3x8x8x8xf32> to vector<192x8xf32>
    %4 = tpu.transpose %3, [1, 0] : vector<192x8xf32> -> vector<8x192xf32>
    %c0_5 = arith.constant 0 : index
    %c0_6 = arith.constant 0 : index
    %5 = vector.load %arg6[%c0_5, %c0_6] : memref<64x192xf32, #tpu.memory_space<vmem>>, vector<8x192xf32>
    tpu.vector_store %arg6[%c0_5, %c0_6], %4 {strides = array<i32>} : memref<64x192xf32, #tpu.memory_space<vmem>>, vector<8x192xf32>,
    %c0_7 = arith.constant 0 : index
    %c0_8 = arith.constant 0 : index
    %c1 = arith.constant 1 : index
    %c0_9 = arith.constant 0 : index
    %c0_10 = arith.constant 0 : index
    %c0_11 = arith.constant 0 : index
    %6 = vector.load %arg2[%c0_7, %c0_8, %c1, %c0_9, %c0_10, %c0_11] : memref<1x3x8x8x8x8xf32, #tpu.memory_space<vmem>>, vector<1x3x1x8x8x8xf32>
    %7 = vector.shape_cast %6 : vector<1x3x1x8x8x8xf32> to vector<3x8x8x8xf32>
    %8 = tpu.transpose %7, [0, 1, 3, 2] : vector<3x8x8x8xf32> -> vector<3x8x8x8xf32>
    %9 = vector.shape_cast %8 : vector<3x8x8x8xf32> to vector<192x8xf32>
    %10 = tpu.transpose %9, [1, 0] : vector<192x8xf32> -> vector<8x192xf32>
    %c8 = arith.constant 8 : index
    %c0_12 = arith.constant 0 : index
    %11 = vector.load %arg6[%c8, %c0_12] : memref<64x192xf32, #tpu.memory_space<vmem>>, vector<8x192xf32>
    tpu.vector_store %arg6[%c8, %c0_12], %10 {strides = array<i32>} : memref<64x192xf32, #tpu.memory_space<vmem>>, vector<8x192xf32>,
    %c0_13 = arith.constant 0 : index
    %c0_14 = arith.constant 0 : index
    %c2 = arith.constant 2 : index
    %c0_15 = arith.constant 0 : index
    %c0_16 = arith.constant 0 : index
    %c0_17 = arith.constant 0 : index
    %12 = vector.load %arg2[%c0_13, %c0_14, %c2, %c0_15, %c0_16, %c0_17] : memref<1x3x8x8x8x8xf32, #tpu.memory_space<vmem>>, vector<1x3x1x8x8x8xf32>
    %13 = vector.shape_cast %12 : vector<1x3x1x8x8x8xf32> to vector<3x8x8x8xf32>
    %14 = tpu.transpose %13, [0, 1, 3, 2] : vector<3x8x8x8xf32> -> vector<3x8x8x8xf32>
    %15 = vector.shape_cast %14 : vector<3x8x8x8xf32> to vector<192x8xf32>
    %16 = tpu.transpose %15, [1, 0] : vector<192x8xf32> -> vector<8x192xf32>
    %c16 = arith.constant 16 : index
    %c0_18 = arith.constant 0 : index
    %17 = vector.load %arg6[%c16, %c0_18] : memref<64x192xf32, #tpu.memory_space<vmem>>, vector<8x192xf32>
    tpu.vector_store %arg6[%c16, %c0_18], %16 {strides = array<i32>} : memref<64x192xf32, #tpu.memory_space<vmem>>, vector<8x192xf32>,
    %c0_19 = arith.constant 0 : index
    %c0_20 = arith.constant 0 : index
    %c3 = arith.constant 3 : index
    %c0_21 = arith.constant 0 : index
    %c0_22 = arith.constant 0 : index
    %c0_23 = arith.constant 0 : index
    %18 = vector.load %arg2[%c0_19, %c0_20, %c3, %c0_21, %c0_22, %c0_23] : memref<1x3x8x8x8x8xf32, #tpu.memory_space<vmem>>, vector<1x3x1x8x8x8xf32>
    %19 = vector.shape_cast %18 : vector<1x3x1x8x8x8xf32> to vector<3x8x8x8xf32>
    %20 = tpu.transpose %19, [0, 1, 3, 2] : vector<3x8x8x8xf32> -> vector<3x8x8x8xf32>
    %21 = vector.shape_cast %20 : vector<3x8x8x8xf32> to vector<192x8xf32>
    %22 = tpu.transpose %21, [1, 0] : vector<192x8xf32> -> vector<8x192xf32>
    %c24 = arith.constant 24 : index
    %c0_24 = arith.constant 0 : index
    %23 = vector.load %arg6[%c24, %c0_24] : memref<64x192xf32, #tpu.memory_space<vmem>>, vector<8x192xf32>
    tpu.vector_store %arg6[%c24, %c0_24], %22 {strides = array<i32>} : memref<64x192xf32, #tpu.memory_space<vmem>>, vector<8x192xf32>,
    %c0_25 = arith.constant 0 : index
    %c0_26 = arith.constant 0 : index
    %c4 = arith.constant 4 : index
    %c0_27 = arith.constant 0 : index
    %c0_28 = arith.constant 0 : index
    %c0_29 = arith.constant 0 : index
    %24 = vector.load %arg2[%c0_25, %c0_26, %c4, %c0_27, %c0_28, %c0_29] : memref<1x3x8x8x8x8xf32, #tpu.memory_space<vmem>>, vector<1x3x1x8x8x8xf32>
    %25 = vector.shape_cast %24 : vector<1x3x1x8x8x8xf32> to vector<3x8x8x8xf32>
    %26 = tpu.transpose %25, [0, 1, 3, 2] : vector<3x8x8x8xf32> -> vector<3x8x8x8xf32>
    %27 = vector.shape_cast %26 : vector<3x8x8x8xf32> to vector<192x8xf32>
    %28 = tpu.transpose %27, [1, 0] : vector<192x8xf32> -> vector<8x192xf32>
    %c32 = arith.constant 32 : index
    %c0_30 = arith.constant 0 : index
    %29 = vector.load %arg6[%c32, %c0_30] : memref<64x192xf32, #tpu.memory_space<vmem>>, vector<8x192xf32>
    tpu.vector_store %arg6[%c32, %c0_30], %28 {strides = array<i32>} : memref<64x192xf32, #tpu.memory_space<vmem>>, vector<8x192xf32>,
    %c0_31 = arith.constant 0 : index
    %c0_32 = arith.constant 0 : index
    %c5 = arith.constant 5 : index
    %c0_33 = arith.constant 0 : index
    %c0_34 = arith.constant 0 : index
    %c0_35 = arith.constant 0 : index
    %30 = vector.load %arg2[%c0_31, %c0_32, %c5, %c0_33, %c0_34, %c0_35] : memref<1x3x8x8x8x8xf32, #tpu.memory_space<vmem>>, vector<1x3x1x8x8x8xf32>
    %31 = vector.shape_cast %30 : vector<1x3x1x8x8x8xf32> to vector<3x8x8x8xf32>
    %32 = tpu.transpose %31, [0, 1, 3, 2] : vector<3x8x8x8xf32> -> vector<3x8x8x8xf32>
    %33 = vector.shape_cast %32 : vector<3x8x8x8xf32> to vector<192x8xf32>
    %34 = tpu.transpose %33, [1, 0] : vector<192x8xf32> -> vector<8x192xf32>
    %c40 = arith.constant 40 : index
    %c0_36 = arith.constant 0 : index
    %35 = vector.load %arg6[%c40, %c0_36] : memref<64x192xf32, #tpu.memory_space<vmem>>, vector<8x192xf32>
    tpu.vector_store %arg6[%c40, %c0_36], %34 {strides = array<i32>} : memref<64x192xf32, #tpu.memory_space<vmem>>, vector<8x192xf32>,
    %c0_37 = arith.constant 0 : index
    %c0_38 = arith.constant 0 : index
    %c6 = arith.constant 6 : index
    %c0_39 = arith.constant 0 : index
    %c0_40 = arith.constant 0 : index
    %c0_41 = arith.constant 0 : index
    %36 = vector.load %arg2[%c0_37, %c0_38, %c6, %c0_39, %c0_40, %c0_41] : memref<1x3x8x8x8x8xf32, #tpu.memory_space<vmem>>, vector<1x3x1x8x8x8xf32>
    %37 = vector.shape_cast %36 : vector<1x3x1x8x8x8xf32> to vector<3x8x8x8xf32>
    %38 = tpu.transpose %37, [0, 1, 3, 2] : vector<3x8x8x8xf32> -> vector<3x8x8x8xf32>
    %39 = vector.shape_cast %38 : vector<3x8x8x8xf32> to vector<192x8xf32>
    %40 = tpu.transpose %39, [1, 0] : vector<192x8xf32> -> vector<8x192xf32>
    %c48 = arith.constant 48 : index
    %c0_42 = arith.constant 0 : index
    %41 = vector.load %arg6[%c48, %c0_42] : memref<64x192xf32, #tpu.memory_space<vmem>>, vector<8x192xf32>
    tpu.vector_store %arg6[%c48, %c0_42], %40 {strides = array<i32>} : memref<64x192xf32, #tpu.memory_space<vmem>>, vector<8x192xf32>,
    %c0_43 = arith.constant 0 : index
    %c0_44 = arith.constant 0 : index
    %c7 = arith.constant 7 : index
    %c0_45 = arith.constant 0 : index
    %c0_46 = arith.constant 0 : index
    %c0_47 = arith.constant 0 : index
    %42 = vector.load %arg2[%c0_43, %c0_44, %c7, %c0_45, %c0_46, %c0_47] : memref<1x3x8x8x8x8xf32, #tpu.memory_space<vmem>>, vector<1x3x1x8x8x8xf32>
    %43 = vector.shape_cast %42 : vector<1x3x1x8x8x8xf32> to vector<3x8x8x8xf32>
    %44 = tpu.transpose %43, [0, 1, 3, 2] : vector<3x8x8x8xf32> -> vector<3x8x8x8xf32>
    %45 = vector.shape_cast %44 : vector<3x8x8x8xf32> to vector<192x8xf32>
    %46 = tpu.transpose %45, [1, 0] : vector<192x8xf32> -> vector<8x192xf32>
    %c56 = arith.constant 56 : index
    %c0_48 = arith.constant 0 : index
    %47 = vector.load %arg6[%c56, %c0_48] : memref<64x192xf32, #tpu.memory_space<vmem>>, vector<8x192xf32>
    tpu.vector_store %arg6[%c56, %c0_48], %46 {strides = array<i32>} : memref<64x192xf32, #tpu.memory_space<vmem>>, vector<8x192xf32>,
    %c0_49 = arith.constant 0 : index
    %c0_50 = arith.constant 0 : index
    %48 = vector.load %arg6[%c0_49, %c0_50] : memref<64x192xf32, #tpu.memory_space<vmem>>, vector<64x192xf32>
    %c0_51 = arith.constant 0 : index
    %c0_52 = arith.constant 0 : index
    %49 = vector.load %arg3[%c0_51, %c0_52] : memref<192x256xf32, #tpu.memory_space<vmem>>, vector<192x256xf32>
    %cst = arith.constant dense<0.000000e+00> : vector<64x256xf32>
    %50 = tpu.matmul %48, %49, %cst {dimension_numbers = #tpu.dot_dimension_numbers<[1], [0], [0], [1], [0, 0, 1, 1], [], []>} : vector<64x192xf32>, vector<192x256xf32>, vector<64x256xf32> -> vector<64x256xf32>
    %c0_53 = arith.constant 0 : index
    %c0_54 = arith.constant 0 : index
    %51 = vector.load %arg4[%c0_53, %c0_54] : memref<1x256xf32, #tpu.memory_space<vmem>>, vector<1x256xf32>
    %52 = vector.broadcast %51 : vector<1x256xf32> to vector<64x256xf32>
    %53 = arith.addf %50, %52 : vector<64x256xf32>
    %c0_55 = arith.constant 0 : index
    %c0_56 = arith.constant 0 : index
    %c0_57 = arith.constant 0 : index
    %54 = vector.load %arg5[%c0_55, %c0_56, %c0_57] : memref<1x64x256xf32, #tpu.memory_space<vmem>>, vector<1x64x256xf32>
    %55 = vector.shape_cast %54 : vector<1x64x256xf32> to vector<64x256xf32>
    %56 = vector.shape_cast %53 : vector<64x256xf32> to vector<1x64x256xf32>
    tpu.vector_store %arg5[%c0_55, %c0_56, %c0_57], %56 {strides = array<i32>} : memref<1x64x256xf32, #tpu.memory_space<vmem>>, vector<1x64x256xf32>,
    return
  }
  func.func @transform_0(%arg0: i32, %arg1: i32) -> (i32, i32, i32, i32, i32, i32) {
    %c0_i32 = arith.constant 0 : i32
    %c0_i32_0 = arith.constant 0 : i32
    %c0_i32_1 = arith.constant 0 : i32
    %c0_i32_2 = arith.constant 0 : i32
    %c0_i32_3 = arith.constant 0 : i32
    return %arg0, %c0_i32, %arg1, %c0_i32_0, %c0_i32_1, %c0_i32_2 : i32, i32, i32, i32, i32, i32
  }
  func.func @transform_1(%arg0: i32, %arg1: i32) -> (i32, i32) {
    %c0_i32 = arith.constant 0 : i32
    %c0_i32_0 = arith.constant 0 : i32
    %c0_i32_1 = arith.constant 0 : i32
    return %c0_i32, %c0_i32_0 : i32, i32
  }
  func.func @transform_2(%arg0: i32, %arg1: i32) -> (i32, i32) {
    %c0_i32 = arith.constant 0 : i32
    %c0_i32_0 = arith.constant 0 : i32
    %c0_i32_1 = arith.constant 0 : i32
    return %c0_i32, %c0_i32_0 : i32, i32
  }
  func.func @transform_3(%arg0: i32, %arg1: i32) -> (i32, i32, i32) {
    %c0_i32 = arith.constant 0 : i32
    %c0_i32_0 = arith.constant 0 : i32
    return %arg0, %arg1, %c0_i32 : i32, i32, i32
  }
}

</mosaic_0001>

<llo_original>
// kernel: tpu_custom_call.1
$region0: #{tpu_custom_call.1}
  #allocation0 [shape = 'u32[]', space=smem, size = 0x4, offset = 0x4, fixed_abs, tag = 'smem constant byte address 0x4 - core index']
  #allocation1 [shape = 'u32[144,128]{1,0:T(1,128)}', space=vmem, size = 0x12000, scoped, tag = 'internal scratch']
  #allocation2 [shape = 'f32[64,192]{1,0:T(8,128)}', space=vmem, size = 0x10000, scoped, tag = 'scratch operand']
  %s0 = inlined_call_operand.hbm [shape: f32[2,3,8,8,8,8], index: 0, kind: input, shape index: {}]
  %s1 = inlined_call_operand.hbm [shape: f32[192,256], index: 1, kind: input, shape index: {}]
  %s2 = inlined_call_operand.hbm [shape: f32[1,256], index: 2, kind: input, shape index: {}]
  %s3 = inlined_call_operand.hbm [shape: f32[2,64,256], index: 3, kind: output, shape index: {}]
  %s4 = sld [smem:[#allocation0]]
  $region57: #{tpu_custom_call.1} parent=0
    _
  %s6 = ssub.s32 1, %s4
  %s7 = scalar_select 0, %s6, %s4
  $region1: #{tpu_custom_call.1} parent=0
    #allocation3 [shape = 'u8[1572864]{0}', space=vmem, size = 0x180000, scoped, tag = 'input window, operand 0']
    #allocation4 [shape = 's32[2]{0}', space=sflag, size = 0x8, scoped, tag = 'scoped memory for tpu_custom_call.1']
    #allocation5 [shape = 's32[2]{0}', space=sflag, size = 0x8, scoped, tag = 'scoped memory for tpu_custom_call.1']
    #allocation6 [shape = 'u8[196608]{0}', space=vmem, size = 0x30000, scoped, tag = 'input window, operand 1, single buffered']
    #allocation7 [shape = 's32[1]{0}', space=sflag, size = 0x4, scoped, tag = 'scoped memory for tpu_custom_call.1']
    #allocation8 [shape = 'u8[1024]{0}', space=vmem, size = 0x400, scoped, tag = 'input window, operand 2, single buffered']
    #allocation9 [shape = 'u8[131072]{0}', space=vmem, size = 0x20000, scoped, tag = 'output window, operand 0']
    %8 = vsyncpa [#allocation4], 0
    %s9 = scalar_lea.sflag [#allocation4], 1
    %10 = vsyncpa %s9, 0
    %11 = vsyncpa [#allocation7], 0
    %12 = vsyncpa [#allocation5], 0
    %s13 = scalar_lea.sflag [#allocation5], 1
    %14 = vsyncpa %s13, 0
    loop: start=0, step=1, limit=4
    $region2: #{tpu_custom_call.1} parent=1 // loop_pre_header
      _
    $region3: #{tpu_custom_call.1} parent=1 // loop_header
      %s16 = sphi 0, %s20
      %p17 = scmp.ge.s32.totalorder %s16, 4
      %s23 = sphi 0, %s35
      %s24 = sphi 0, %s31
      %s25 = sphi 0, %s23
      %s26 = sphi 0, %s24
      %s27 = sphi 0, %s25
      %s28 = sphi 0, %s26
      %s40 = sphi 0, %s42
      %s43 = sphi 0, %s40
      %s44 = sphi 0, %s43
      %s60 = sphi 0, %s44
      %s64 = sphi 0, %s64
      %s66 = sphi 0, %s64
      %s67 = sphi 0, %s66
      %s81 = sphi 0, %s67
      %s85 = sphi 0, %s85
      %s87 = sphi 0, %s85
      %s88 = sphi 0, %s87
      %s102 = sphi 0, %s88
      %s110 = sphi 0, %s112
      %s113 = sphi 0, %s110
      %s114 = sphi 0, %s113
      %s130 = sphi 0, %s114
    $region4: #{tpu_custom_call.1} parent=1 // loop_header_branch
      %19 = sbr.rel (%p17) target = $region8
    $region5: #{tpu_custom_call.1} parent=1 // loop_body
      %s21 = ssub.s32 %s16, 1
      %s22 = ssub.s32 %s16, 2
      %s29 = sadd.s32 1, %s24
      %p30 = scmp.ge.s32.totalorder %s29, 1
      %s31 = scalar_select %p30, 0, %s29
      %s32 = sadd.s32 1, %s23
      %s33 = scalar_select %p30, %s32, %s23
      %p34 = scmp.ge.s32.totalorder %s33, 2
      %s35 = scalar_select %p34, 0, %s33
      %s36 = ssub.s32 %s23, %s35
      %s37 = ssub.s32 %s24, %s31
      %s38 = sor.u32 %s36, %s37
      %p39 = scmp.eq.s32.totalorder %s38, 0
      %s41 = sadd.s32 %s40, 1
      %s42 = scalar_select %p39, %s40, %s41
      %p45 = pneg %p39
      %p46 = scmp.eq.s32.totalorder %s16, 1
      %p47 = por %p45, %p46
      %p48 = scmp.ne.s32.totalorder %s40, %s43
      %p49 = scmp.eq.s32.totalorder %s16, 0
      %p50 = por %p48, %p49
      %p51 = scmp.ne.s32.totalorder %s40, %s43
      %p52 = scmp.eq.s32.totalorder %s21, 1
      %p53 = por %p51, %p52
      %p54 = scmp.ne.s32.totalorder %s43, %s44
      %p55 = scmp.eq.s32.totalorder %s21, 0
      %p56 = por %p54, %p55
      %p57 = scmp.ne.s32.totalorder %s43, %s44
      %p58 = scmp.eq.s32.totalorder %s22, 1
      %p59 = por %p57, %p58
      %p61 = scmp.ne.s32.totalorder %s44, %s60
      %p62 = scmp.eq.s32.totalorder %s22, 0
      %p63 = por %p61, %p62
      %s65 = sadd.s32 %s64, 1
      %p68 = scmp.eq.s32.totalorder %s16, 1
      %p69 = scmp.ne.s32.totalorder %s64, %s66
      %p70 = scmp.eq.s32.totalorder %s16, 0
      %p71 = por %p69, %p70
      %p72 = scmp.ne.s32.totalorder %s64, %s66
      %p73 = scmp.eq.s32.totalorder %s21, 1
      %p74 = por %p72, %p73
      %p75 = scmp.ne.s32.totalorder %s66, %s67
      %p76 = scmp.eq.s32.totalorder %s21, 0
      %p77 = por %p75, %p76
      %p78 = scmp.ne.s32.totalorder %s66, %s67
      %p79 = scmp.eq.s32.totalorder %s22, 1
      %p80 = por %p78, %p79
      %p82 = scmp.ne.s32.totalorder %s67, %s81
      %p83 = scmp.eq.s32.totalorder %s22, 0
      %p84 = por %p82, %p83
      %s86 = sadd.s32 %s85, 1
      %p89 = scmp.eq.s32.totalorder %s16, 1
      %p90 = scmp.ne.s32.totalorder %s85, %s87
      %p91 = scmp.eq.s32.totalorder %s16, 0
      %p92 = por %p90, %p91
      %p93 = scmp.ne.s32.totalorder %s85, %s87
      %p94 = scmp.eq.s32.totalorder %s21, 1
      %p95 = por %p93, %p94
      %p96 = scmp.ne.s32.totalorder %s87, %s88
      %p97 = scmp.eq.s32.totalorder %s21, 0
      %p98 = por %p96, %p97
      %p99 = scmp.ne.s32.totalorder %s87, %s88
      %p100 = scmp.eq.s32.totalorder %s22, 1
      %p101 = por %p99, %p100
      %p103 = scmp.ne.s32.totalorder %s88, %s102
      %p104 = scmp.eq.s32.totalorder %s22, 0
      %p105 = por %p103, %p104
      %s106 = ssub.s32 %s23, %s35
      %s107 = ssub.s32 %s24, %s31
      %s108 = sor.u32 %s106, %s107
      %p109 = scmp.eq.s32.totalorder %s108, 0
      %s111 = sadd.s32 %s110, 1
      %s112 = scalar_select %p109, %s110, %s111
      %p115 = pneg %p109
      %p116 = scmp.eq.s32.totalorder %s16, 1
      %p117 = por %p115, %p116
      %p118 = scmp.ne.s32.totalorder %s110, %s113
      %p119 = scmp.eq.s32.totalorder %s16, 0
      %p120 = por %p118, %p119
      %p121 = scmp.ne.s32.totalorder %s110, %s113
      %p122 = scmp.eq.s32.totalorder %s21, 1
      %p123 = por %p121, %p122
      %p124 = scmp.ne.s32.totalorder %s113, %s114
      %p125 = scmp.eq.s32.totalorder %s21, 0
      %p126 = por %p124, %p125
      %p127 = scmp.ne.s32.totalorder %s113, %s114
      %p128 = scmp.eq.s32.totalorder %s22, 1
      %p129 = por %p127, %p128
      %p131 = scmp.ne.s32.totalorder %s114, %s130
      %p132 = scmp.eq.s32.totalorder %s22, 0
      %p133 = por %p131, %p132
      %p134 = scmp.le.s32.totalorder 1, %s16
      %p135 = scmp.lt.s32.totalorder %s16, 3
      %p136 = pnand %p134, %p135
      %p137 = pneg %p136
      // Predicated region
      $region9: #{tpu_custom_call.1} parent=5 // pred_check
        _
      $region10: #{tpu_custom_call.1} parent=5 // pred_check_branch
        %139 = sbr.rel (%p136) target = $region12
      $region11: #{tpu_custom_call.1} parent=5 // pred_region
        %s140 = ssub.s32 %s16, 1
        // Predicated region
        $region13: #{tpu_custom_call.1} parent=11 // pred_check
          %p141 = pneg %p77
        $region14: #{tpu_custom_call.1} parent=11 // pred_check_branch
          %143 = sbr.rel (%p141) target = $region16
        $region15: #{tpu_custom_call.1} parent=11 // pred_region
          %s145 = ssub.s32 6144, 6144
          %146 = vsyncadd [#allocation7], %s145
          %s147 = sshll.u32 [#allocation6], 4
          %s148 = int_to_ptr.vmem [resolvable:$true] %s147
          %153 = dma.hbm_to_vmem [thread:$0]  %s1, 6144, %s148, [#allocation7], 256, 256, 16
        $region16: #{tpu_custom_call.1} parent=11 // pred_fallthru
          _
        // Predicated region
        $region17: #{tpu_custom_call.1} parent=11 // pred_check
          %p154 = pneg %p98
        $region18: #{tpu_custom_call.1} parent=11 // pred_check_branch
          %156 = sbr.rel (%p154) target = $region20
        $region19: #{tpu_custom_call.1} parent=11 // pred_region
          %s158 = ssub.s32 32, 32
          %159 = vsyncadd [#allocation7], %s158
          %s161 = sshll.u32 [#allocation8], 4
          %s162 = int_to_ptr.vmem [resolvable:$true] %s161
          %164 = dma.hbm_to_vmem [thread:$0]  %s2, 32, %s162, [#allocation7]
        $region20: #{tpu_custom_call.1} parent=11 // pred_fallthru
          _
      $region12: #{tpu_custom_call.1} parent=5 // pred_fallthru
        _
      %p165 = scmp.lt.s32.totalorder %s16, 2
      // Predicated region
      $region21: #{tpu_custom_call.1} parent=5 // pred_check
        %p166 = pneg %p165
      $region22: #{tpu_custom_call.1} parent=5 // pred_check_branch
        %168 = sbr.rel (%p166) target = $region24
      $region23: #{tpu_custom_call.1} parent=5 // pred_region
        // Predicated region
        $region25: #{tpu_custom_call.1} parent=23 // pred_check
          %p169 = pneg %p50
        $region26: #{tpu_custom_call.1} parent=23 // pred_check_branch
          %171 = sbr.rel (%p169) target = $region28
        $region27: #{tpu_custom_call.1} parent=23 // pred_region
          %s172 = sand.u32 %s40, 1
          %s173 = scalar_lea.sflag [#allocation4], %s172
          %s174 = sand.u32 %s40, 1
          %s175 = smul.addr %s174, 1536
          %s176 = scalar_lea.vmem [#allocation3], %s175
          %s177 = smul.u32 8, %s24
          %s179 = ssub.s32 24576, 24576
          %180 = vsyncadd %s173, %s179
          %s181 = smul.addr %s177, 8
          %s182 = smul.addr %s23, 192
          %s183 = sadd.s32 %s181, %s182
          %s184 = smul.addr %s183, 128
          %s185 = scalar_lea.hbm %s0, %s184
          %s186 = sshll.u32 %s176, 4
          %s187 = int_to_ptr.vmem [resolvable:$true] %s186
          %192 = dma.hbm_to_vmem [thread:$0]  %s185, 24576, %s187, %s173, 128, 128, 8
        $region28: #{tpu_custom_call.1} parent=23 // pred_fallthru
          _
      $region24: #{tpu_custom_call.1} parent=5 // pred_fallthru
        _
      %p193 = scmp.le.s32.totalorder 1, %s16
      %p194 = scmp.lt.s32.totalorder %s16, 3
      %p195 = pnand %p193, %p194
      %p196 = pneg %p195
      // Predicated region
      $region29: #{tpu_custom_call.1} parent=5 // pred_check
        _
      $region30: #{tpu_custom_call.1} parent=5 // pred_check_branch
        %198 = sbr.rel (%p195) target = $region32
      $region31: #{tpu_custom_call.1} parent=5 // pred_region
        %s199 = ssub.s32 %s16, 1
        %s200 = sand.u32 %s43, 1
        %s201 = scalar_lea.sflag [#allocation4], %s200
        %s202 = sand.u32 %s43, 1
        %s203 = smul.addr %s202, 1536
        %s204 = scalar_lea.vmem [#allocation3], %s203
        // Predicated region
        $region33: #{tpu_custom_call.1} parent=31 // pred_check
          %p205 = pneg %p56
        $region34: #{tpu_custom_call.1} parent=31 // pred_check_branch
          %207 = sbr.rel (%p205) target = $region36
        $region35: #{tpu_custom_call.1} parent=31 // pred_region
          %208 = dma.done %s201, 24576
        $region36: #{tpu_custom_call.1} parent=31 // pred_fallthru
          _
        // Predicated region
        $region37: #{tpu_custom_call.1} parent=31 // pred_check
          %p209 = pneg %p77
        $region38: #{tpu_custom_call.1} parent=31 // pred_check_branch
          %211 = sbr.rel (%p209) target = $region40
        $region39: #{tpu_custom_call.1} parent=31 // pred_region
          %212 = dma.done [#allocation7], 6144
        $region40: #{tpu_custom_call.1} parent=31 // pred_fallthru
          _
        // Predicated region
        $region41: #{tpu_custom_call.1} parent=31 // pred_check
          %p213 = pneg %p98
        $region42: #{tpu_custom_call.1} parent=31 // pred_check_branch
          %215 = sbr.rel (%p213) target = $region44
        $region43: #{tpu_custom_call.1} parent=31 // pred_region
          %216 = dma.done [#allocation7], 32
        $region44: #{tpu_custom_call.1} parent=31 // pred_fallthru
          _
        %s217 = sand.u32 %s43, 1
        %s218 = scalar_lea.sflag [#allocation4], %s217
        %s219 = sand.u32 %s43, 1
        %s220 = smul.addr %s219, 1536
        %s221 = scalar_lea.vmem [#allocation3], %s220
        %p222 = pneg %p56
        %p223 = pneg %p53
        %p224 = pneg %p77
        %p225 = pneg %p74
        %p226 = pneg %p98
        %p227 = pneg %p95
        %p228 = pneg %p126
        %p229 = pneg %p123
        %s230 = sand.u32 %s113, 1
        %s231 = scalar_lea.sflag [#allocation5], %s230
        %s232 = sand.u32 %s113, 1
        %s233 = smul.addr %s232, 128
        %s234 = scalar_lea.vmem [#allocation9], %s233
        %s235 = smul.u32 8, %s26
        %s236 = smul.u32 8, %s26
        %v237 = vld [vmem:[%s204] sm:$0xff]
        %v238 = vld [vmem:[%s204 + $0x8] sm:$0xff]
        %v239 = vld [vmem:[%s204 + $0x10] sm:$0xff]
        %v240 = vld [vmem:[%s204 + $0x18] sm:$0xff]
        %v241 = vld [vmem:[%s204 + $0x20] sm:$0xff]
        %v242 = vld [vmem:[%s204 + $0x28] sm:$0xff]
        %v243 = vld [vmem:[%s204 + $0x30] sm:$0xff]
        %v244 = vld [vmem:[%s204 + $0x38] sm:$0xff]
        %v245 = vld [vmem:[%s204 + $0x200] sm:$0xff]
        %v246 = vld [vmem:[%s204 + $0x208] sm:$0xff]
        %v247 = vld [vmem:[%s204 + $0x210] sm:$0xff]
        %v248 = vld [vmem:[%s204 + $0x218] sm:$0xff]
        %v249 = vld [vmem:[%s204 + $0x220] sm:$0xff]
        %v250 = vld [vmem:[%s204 + $0x228] sm:$0xff]
        %v251 = vld [vmem:[%s204 + $0x230] sm:$0xff]
        %v252 = vld [vmem:[%s204 + $0x238] sm:$0xff]
        %v253 = vld [vmem:[%s204 + $0x400] sm:$0xff]
        %v254 = vld [vmem:[%s204 + $0x408] sm:$0xff]
        %v255 = vld [vmem:[%s204 + $0x410] sm:$0xff]
        %v256 = vld [vmem:[%s204 + $0x418] sm:$0xff]
        %v257 = vld [vmem:[%s204 + $0x420] sm:$0xff]
        %v258 = vld [vmem:[%s204 + $0x428] sm:$0xff]
        %v259 = vld [vmem:[%s204 + $0x430] sm:$0xff]
        %v260 = vld [vmem:[%s204 + $0x438] sm:$0xff]
        %261 = vxpose.xlu0.b32.start [1/16] %v237, 128
        %262 = vxpose.xlu0.b32.cont [2/16] 0.0, 128
        %263 = vxpose.xlu0.b32.cont [3/16] 0.0, 128
        %264 = vxpose.xlu0.b32.cont [4/16] 0.0, 128
        %265 = vxpose.xlu0.b32.cont [5/16] 0.0, 128
        %266 = vxpose.xlu0.b32.cont [6/16] 0.0, 128
        %267 = vxpose.xlu0.b32.cont [7/16] 0.0, 128
        %268 = vxpose.xlu0.b32.cont [8/16] 0.0, 128
        %269 = vxpose.xlu0.b32.cont [9/16] 0.0, 128
        %270 = vxpose.xlu0.b32.cont [10/16] 0.0, 128
        %271 = vxpose.xlu0.b32.cont [11/16] 0.0, 128
        %272 = vxpose.xlu0.b32.cont [12/16] 0.0, 128
        %273 = vxpose.xlu0.b32.cont [13/16] 0.0, 128
        %274 = vxpose.xlu0.b32.cont [14/16] 0.0, 128
        %275 = vxpose.xlu0.b32.cont [15/16] 0.0, 128
        %276 = vxpose.xlu0.b32.end [16/16] 0.0, 128
        %v277 = vpop.trf.xlu0
        %v278 = vpop.trf.xlu0
        %v279 = vpop.trf.xlu0
        %v280 = vpop.trf.xlu0
        %v281 = vpop.trf.xlu0
        %v282 = vpop.trf.xlu0
        %v283 = vpop.trf.xlu0
        %v284 = vpop.trf.xlu0
        %v285 = vpop.trf.xlu0
        %v286 = vpop.trf.xlu0
        %v287 = vpop.trf.xlu0
        %v288 = vpop.trf.xlu0
        %v289 = vpop.trf.xlu0
        %v290 = vpop.trf.xlu0
        %v291 = vpop.trf.xlu0
        %v292 = vpop.trf.xlu0
        %293 = vxpose.xlu0.b32.start [1/16] %v238, 128
        %294 = vxpose.xlu0.b32.cont [2/16] 0.0, 128
        %295 = vxpose.xlu0.b32.cont [3/16] 0.0, 128
        %296 = vxpose.xlu0.b32.cont [4/16] 0.0, 128
        %297 = vxpose.xlu0.b32.cont [5/16] 0.0, 128
        %298 = vxpose.xlu0.b32.cont [6/16] 0.0, 128
        %299 = vxpose.xlu0.b32.cont [7/16] 0.0, 128
        %300 = vxpose.xlu0.b32.cont [8/16] 0.0, 128
        %301 = vxpose.xlu0.b32.cont [9/16] 0.0, 128
        %302 = vxpose.xlu0.b32.cont [10/16] 0.0, 128
        %303 = vxpose.xlu0.b32.cont [11/16] 0.0, 128
        %304 = vxpose.xlu0.b32.cont [12/16] 0.0, 128
        %305 = vxpose.xlu0.b32.cont [13/16] 0.0, 128
        %306 = vxpose.xlu0.b32.cont [14/16] 0.0, 128
        %307 = vxpose.xlu0.b32.cont [15/16] 0.0, 128
        %308 = vxpose.xlu0.b32.end [16/16] 0.0, 128
        %v309 = vpop.trf.xlu0
        %v310 = vpop.trf.xlu0
        %v311 = vpop.trf.xlu0
        %v312 = vpop.trf.xlu0
        %v313 = vpop.trf.xlu0
        %v314 = vpop.trf.xlu0
        %v315 = vpop.trf.xlu0
        %v316 = vpop.trf.xlu0
        %v317 = vpop.trf.xlu0
        %v318 = vpop.trf.xlu0
        %v319 = vpop.trf.xlu0
        %v320 = vpop.trf.xlu0
        %v321 = vpop.trf.xlu0
        %v322 = vpop.trf.xlu0
        %v323 = vpop.trf.xlu0
        %v324 = vpop.trf.xlu0
        %325 = vxpose.xlu0.b32.start [1/16] %v239, 128
        %326 = vxpose.xlu0.b32.cont [2/16] 0.0, 128
        %327 = vxpose.xlu0.b32.cont [3/16] 0.0, 128
        %328 = vxpose.xlu0.b32.cont [4/16] 0.0, 128
        %329 = vxpose.xlu0.b32.cont [5/16] 0.0, 128
        %330 = vxpose.xlu0.b32.cont [6/16] 0.0, 128
        %331 = vxpose.xlu0.b32.cont [7/16] 0.0, 128
        %332 = vxpose.xlu0.b32.cont [8/16] 0.0, 128
        %333 = vxpose.xlu0.b32.cont [9/16] 0.0, 128
        %334 = vxpose.xlu0.b32.cont [10/16] 0.0, 128
        %335 = vxpose.xlu0.b32.cont [11/16] 0.0, 128
        %336 = vxpose.xlu0.b32.cont [12/16] 0.0, 128
        %337 = vxpose.xlu0.b32.cont [13/16] 0.0, 128
        %338 = vxpose.xlu0.b32.cont [14/16] 0.0, 128
        %339 = vxpose.xlu0.b32.cont [15/16] 0.0, 128
        %340 = vxpose.xlu0.b32.end [16/16] 0.0, 128
        %v341 = vpop.trf.xlu0
        %v342 = vpop.trf.xlu0
        %v343 = vpop.trf.xlu0
        %v344 = vpop.trf.xlu0
        %v345 = vpop.trf.xlu0
        %v346 = vpop.trf.xlu0
        %v347 = vpop.trf.xlu0
        %v348 = vpop.trf.xlu0
        %v349 = vpop.trf.xlu0
        %v350 = vpop.trf.xlu0
        %v351 = vpop.trf.xlu0
        %v352 = vpop.trf.xlu0
        %v353 = vpop.trf.xlu0
        %v354 = vpop.trf.xlu0
        %v355 = vpop.trf.xlu0
        %v356 = vpop.trf.xlu0
        %357 = vxpose.xlu0.b32.start [1/16] %v240, 128
        %358 = vxpose.xlu0.b32.cont [2/16] 0.0, 128
        %359 = vxpose.xlu0.b32.cont [3/16] 0.0, 128
        %360 = vxpose.xlu0.b32.cont [4/16] 0.0, 128
        %361 = vxpose.xlu0.b32.cont [5/16] 0.0, 128
        %362 = vxpose.xlu0.b32.cont [6/16] 0.0, 128
        %363 = vxpose.xlu0.b32.cont [7/16] 0.0, 128
        %364 = vxpose.xlu0.b32.cont [8/16] 0.0, 128
        %365 = vxpose.xlu0.b32.cont [9/16] 0.0, 128
        %366 = vxpose.xlu0.b32.cont [10/16] 0.0, 128
        %367 = vxpose.xlu0.b32.cont [11/16] 0.0, 128
        %368 = vxpose.xlu0.b32.cont [12/16] 0.0, 128
        %369 = vxpose.xlu0.b32.cont [13/16] 0.0, 128
        %370 = vxpose.xlu0.b32.cont [14/16] 0.0, 128
        %371 = vxpose.xlu0.b32.cont [15/16] 0.0, 128
        %372 = vxpose.xlu0.b32.end [16/16] 0.0, 128
        %v373 = vpop.trf.xlu0
        %v374 = vpop.trf.xlu0
        %v375 = vpop.trf.xlu0
        %v376 = vpop.trf.xlu0
        %v377 = vpop.trf.xlu0
        %v378 = vpop.trf.xlu0
        %v379 = vpop.trf.xlu0
        %v380 = vpop.trf.xlu0
        %v381 = vpop.trf.xlu0
        %v382 = vpop.trf.xlu0
        %v383 = vpop.trf.xlu0
        %v384 = vpop.trf.xlu0
        %v385 = vpop.trf.xlu0
        %v386 = vpop.trf.xlu0
        %v387 = vpop.trf.xlu0
        %v388 = vpop.trf.xlu0
        %389 = vxpose.xlu0.b32.start [1/16] %v241, 128
        %390 = vxpose.xlu0.b32.cont [2/16] 0.0, 128
        %391 = vxpose.xlu0.b32.cont [3/16] 0.0, 128
        %392 = vxpose.xlu0.b32.cont [4/16] 0.0, 128
        %393 = vxpose.xlu0.b32.cont [5/16] 0.0, 128
        %394 = vxpose.xlu0.b32.cont [6/16] 0.0, 128
        %395 = vxpose.xlu0.b32.cont [7/16] 0.0, 128
        %396 = vxpose.xlu0.b32.cont [8/16] 0.0, 128
        %397 = vxpose.xlu0.b32.cont [9/16] 0.0, 128
        %398 = vxpose.xlu0.b32.cont [10/16] 0.0, 128
        %399 = vxpose.xlu0.b32.cont [11/16] 0.0, 128
        %400 = vxpose.xlu0.b32.cont [12/16] 0.0, 128
        %401 = vxpose.xlu0.b32.cont [13/16] 0.0, 128
        %402 = vxpose.xlu0.b32.cont [14/16] 0.0, 128
        %403 = vxpose.xlu0.b32.cont [15/16] 0.0, 128
        %404 = vxpose.xlu0.b32.end [16/16] 0.0, 128
        %v405 = vpop.trf.xlu0
        %v406 = vpop.trf.xlu0
        %v407 = vpop.trf.xlu0
        %v408 = vpop.trf.xlu0
        %v409 = vpop.trf.xlu0
        %v410 = vpop.trf.xlu0
        %v411 = vpop.trf.xlu0
        %v412 = vpop.trf.xlu0
        %v413 = vpop.trf.xlu0
        %v414 = vpop.trf.xlu0
        %v415 = vpop.trf.xlu0
        %v416 = vpop.trf.xlu0
        %v417 = vpop.trf.xlu0
        %v418 = vpop.trf.xlu0
        %v419 = vpop.trf.xlu0
        %v420 = vpop.trf.xlu0
        %421 = vxpose.xlu0.b32.start [1/16] %v242, 128
        %422 = vxpose.xlu0.b32.cont [2/16] 0.0, 128
        %423 = vxpose.xlu0.b32.cont [3/16] 0.0, 128
        %424 = vxpose.xlu0.b32.cont [4/16] 0.0, 128
        %425 = vxpose.xlu0.b32.cont [5/16] 0.0, 128
        %426 = vxpose.xlu0.b32.cont [6/16] 0.0, 128
        %427 = vxpose.xlu0.b32.cont [7/16] 0.0, 128
        %428 = vxpose.xlu0.b32.cont [8/16] 0.0, 128
        %429 = vxpose.xlu0.b32.cont [9/16] 0.0, 128
        %430 = vxpose.xlu0.b32.cont [10/16] 0.0, 128
        %431 = vxpose.xlu0.b32.cont [11/16] 0.0, 128
        %432 = vxpose.xlu0.b32.cont [12/16] 0.0, 128
        %433 = vxpose.xlu0.b32.cont [13/16] 0.0, 128
        %434 = vxpose.xlu0.b32.cont [14/16] 0.0, 128
        %435 = vxpose.xlu0.b32.cont [15/16] 0.0, 128
        %436 = vxpose.xlu0.b32.end [16/16] 0.0, 128
        %v437 = vpop.trf.xlu0
        %v438 = vpop.trf.xlu0
        %v439 = vpop.trf.xlu0
        %v440 = vpop.trf.xlu0
        %v441 = vpop.trf.xlu0
        %v442 = vpop.trf.xlu0
        %v443 = vpop.trf.xlu0
        %v444 = vpop.trf.xlu0
        %v445 = vpop.trf.xlu0
        %v446 = vpop.trf.xlu0
        %v447 = vpop.trf.xlu0
        %v448 = vpop.trf.xlu0
        %v449 = vpop.trf.xlu0
        %v450 = vpop.trf.xlu0
        %v451 = vpop.trf.xlu0
        %v452 = vpop.trf.xlu0
        %453 = vxpose.xlu0.b32.start [1/16] %v243, 128
        %454 = vxpose.xlu0.b32.cont [2/16] 0.0, 128
        %455 = vxpose.xlu0.b32.cont [3/16] 0.0, 128
        %456 = vxpose.xlu0.b32.cont [4/16] 0.0, 128
        %457 = vxpose.xlu0.b32.cont [5/16] 0.0, 128
        %458 = vxpose.xlu0.b32.cont [6/16] 0.0, 128
        %459 = vxpose.xlu0.b32.cont [7/16] 0.0, 128
        %460 = vxpose.xlu0.b32.cont [8/16] 0.0, 128
        %461 = vxpose.xlu0.b32.cont [9/16] 0.0, 128
        %462 = vxpose.xlu0.b32.cont [10/16] 0.0, 128
        %463 = vxpose.xlu0.b32.cont [11/16] 0.0, 128
        %464 = vxpose.xlu0.b32.cont [12/16] 0.0, 128
        %465 = vxpose.xlu0.b32.cont [13/16] 0.0, 128
        %466 = vxpose.xlu0.b32.cont [14/16] 0.0, 128
        %467 = vxpose.xlu0.b32.cont [15/16] 0.0, 128
        %468 = vxpose.xlu0.b32.end [16/16] 0.0, 128
        %v469 = vpop.trf.xlu0
        %v470 = vpop.trf.xlu0
        %v471 = vpop.trf.xlu0
        %v472 = vpop.trf.xlu0
        %v473 = vpop.trf.xlu0
        %v474 = vpop.trf.xlu0
        %v475 = vpop.trf.xlu0
        %v476 = vpop.trf.xlu0
        %v477 = vpop.trf.xlu0
        %v478 = vpop.trf.xlu0
        %v479 = vpop.trf.xlu0
        %v480 = vpop.trf.xlu0
        %v481 = vpop.trf.xlu0
        %v482 = vpop.trf.xlu0
        %v483 = vpop.trf.xlu0
        %v484 = vpop.trf.xlu0
        %485 = vxpose.xlu0.b32.start [1/16] %v244, 128
        %486 = vxpose.xlu0.b32.cont [2/16] 0.0, 128
        %487 = vxpose.xlu0.b32.cont [3/16] 0.0, 128
        %488 = vxpose.xlu0.b32.cont [4/16] 0.0, 128
        %489 = vxpose.xlu0.b32.cont [5/16] 0.0, 128
        %490 = vxpose.xlu0.b32.cont [6/16] 0.0, 128
        %491 = vxpose.xlu0.b32.cont [7/16] 0.0, 128
        %492 = vxpose.xlu0.b32.cont [8/16] 0.0, 128
        %493 = vxpose.xlu0.b32.cont [9/16] 0.0, 128
        %494 = vxpose.xlu0.b32.cont [10/16] 0.0, 128
        %495 = vxpose.xlu0.b32.cont [11/16] 0.0, 128
        %496 = vxpose.xlu0.b32.cont [12/16] 0.0, 128
        %497 = vxpose.xlu0.b32.cont [13/16] 0.0, 128
        %498 = vxpose.xlu0.b32.cont [14/16] 0.0, 128
        %499 = vxpose.xlu0.b32.cont [15/16] 0.0, 128
        %500 = vxpose.xlu0.b32.end [16/16] 0.0, 128
        %v501 = vpop.trf.xlu0
        %v502 = vpop.trf.xlu0
        %v503 = vpop.trf.xlu0
        %v504 = vpop.trf.xlu0
        %v505 = vpop.trf.xlu0
        %v506 = vpop.trf.xlu0
        %v507 = vpop.trf.xlu0
        %v508 = vpop.trf.xlu0
        %v509 = vpop.trf.xlu0
        %v510 = vpop.trf.xlu0
        %v511 = vpop.trf.xlu0
        %v512 = vpop.trf.xlu0
        %v513 = vpop.trf.xlu0
        %v514 = vpop.trf.xlu0
        %v515 = vpop.trf.xlu0
        %v516 = vpop.trf.xlu0
        %517 = vxpose.xlu0.b32.start [1/16] %v245, 128
        %518 = vxpose.xlu0.b32.cont [2/16] 0.0, 128
        %519 = vxpose.xlu0.b32.cont [3/16] 0.0, 128
        %520 = vxpose.xlu0.b32.cont [4/16] 0.0, 128
        %521 = vxpose.xlu0.b32.cont [5/16] 0.0, 128
        %522 = vxpose.xlu0.b32.cont [6/16] 0.0, 128
        %523 = vxpose.xlu0.b32.cont [7/16] 0.0, 128
        %524 = vxpose.xlu0.b32.cont [8/16] 0.0, 128
        %525 = vxpose.xlu0.b32.cont [9/16] 0.0, 128
        %526 = vxpose.xlu0.b32.cont [10/16] 0.0, 128
        %527 = vxpose.xlu0.b32.cont [11/16] 0.0, 128
        %528 = vxpose.xlu0.b32.cont [12/16] 0.0, 128
        %529 = vxpose.xlu0.b32.cont [13/16] 0.0, 128
        %530 = vxpose.xlu0.b32.cont [14/16] 0.0, 128
        %531 = vxpose.xlu0.b32.cont [15/16] 0.0, 128
        %532 = vxpose.xlu0.b32.end [16/16] 0.0, 128
        %v533 = vpop.trf.xlu0
        %v534 = vpop.trf.xlu0
        %v535 = vpop.trf.xlu0
        %v536 = vpop.trf.xlu0
        %v537 = vpop.trf.xlu0
        %v538 = vpop.trf.xlu0
        %v539 = vpop.trf.xlu0
        %v540 = vpop.trf.xlu0
        %v541 = vpop.trf.xlu0
        %v542 = vpop.trf.xlu0
        %v543 = vpop.trf.xlu0
        %v544 = vpop.trf.xlu0
        %v545 = vpop.trf.xlu0
        %v546 = vpop.trf.xlu0
        %v547 = vpop.trf.xlu0
        %v548 = vpop.trf.xlu0
        %549 = vxpose.xlu0.b32.start [1/16] %v246, 128
        %550 = vxpose.xlu0.b32.cont [2/16] 0.0, 128
        %551 = vxpose.xlu0.b32.cont [3/16] 0.0, 128
        %552 = vxpose.xlu0.b32.cont [4/16] 0.0, 128
        %553 = vxpose.xlu0.b32.cont [5/16] 0.0, 128
        %554 = vxpose.xlu0.b32.cont [6/16] 0.0, 128
        %555 = vxpose.xlu0.b32.cont [7/16] 0.0, 128
        %556 = vxpose.xlu0.b32.cont [8/16] 0.0, 128
        %557 = vxpose.xlu0.b32.cont [9/16] 0.0, 128
        %558 = vxpose.xlu0.b32.cont [10/16] 0.0, 128
        %559 = vxpose.xlu0.b32.cont [11/16] 0.0, 128
        %560 = vxpose.xlu0.b32.cont [12/16] 0.0, 128
        %561 = vxpose.xlu0.b32.cont [13/16] 0.0, 128
        %562 = vxpose.xlu0.b32.cont [14/16] 0.0, 128
        %563 = vxpose.xlu0.b32.cont [15/16] 0.0, 128
        %564 = vxpose.xlu0.b32.end [16/16] 0.0, 128
        %v565 = vpop.trf.xlu0
        %v566 = vpop.trf.xlu0
        %v567 = vpop.trf.xlu0
        %v568 = vpop.trf.xlu0
        %v569 = vpop.trf.xlu0
        %v570 = vpop.trf.xlu0
        %v571 = vpop.trf.xlu0
        %v572 = vpop.trf.xlu0
        %v573 = vpop.trf.xlu0
        %v574 = vpop.trf.xlu0
        %v575 = vpop.trf.xlu0
        %v576 = vpop.trf.xlu0
        %v577 = vpop.trf.xlu0
        %v578 = vpop.trf.xlu0
        %v579 = vpop.trf.xlu0
        %v580 = vpop.trf.xlu0
        %581 = vxpose.xlu0.b32.start [1/16] %v247, 128
        %582 = vxpose.xlu0.b32.cont [2/16] 0.0, 128
        %583 = vxpose.xlu0.b32.cont [3/16] 0.0, 128
        %584 = vxpose.xlu0.b32.cont [4/16] 0.0, 128
        %585 = vxpose.xlu0.b32.cont [5/16] 0.0, 128
        %586 = vxpose.xlu0.b32.cont [6/16] 0.0, 128
        %587 = vxpose.xlu0.b32.cont [7/16] 0.0, 128
        %588 = vxpose.xlu0.b32.cont [8/16] 0.0, 128
        %589 = vxpose.xlu0.b32.cont [9/16] 0.0, 128
        %590 = vxpose.xlu0.b32.cont [10/16] 0.0, 128
        %591 = vxpose.xlu0.b32.cont [11/16] 0.0, 128
        %592 = vxpose.xlu0.b32.cont [12/16] 0.0, 128
        %593 = vxpose.xlu0.b32.cont [13/16] 0.0, 128
        %594 = vxpose.xlu0.b32.cont [14/16] 0.0, 128
        %595 = vxpose.xlu0.b32.cont [15/16] 0.0, 128
        %596 = vxpose.xlu0.b32.end [16/16] 0.0, 128
        %v597 = vpop.trf.xlu0
        %v598 = vpop.trf.xlu0
        %v599 = vpop.trf.xlu0
        %v600 = vpop.trf.xlu0
        %v601 = vpop.trf.xlu0
        %v602 = vpop.trf.xlu0
        %v603 = vpop.trf.xlu0
        %v604 = vpop.trf.xlu0
        %v605 = vpop.trf.xlu0
        %v606 = vpop.trf.xlu0
        %v607 = vpop.trf.xlu0
        %v608 = vpop.trf.xlu0
        %v609 = vpop.trf.xlu0
        %v610 = vpop.trf.xlu0
        %v611 = vpop.trf.xlu0
        %v612 = vpop.trf.xlu0
        %613 = vxpose.xlu0.b32.start [1/16] %v248, 128
        %614 = vxpose.xlu0.b32.cont [2/16] 0.0, 128
        %615 = vxpose.xlu0.b32.cont [3/16] 0.0, 128
        %616 = vxpose.xlu0.b32.cont [4/16] 0.0, 128
        %617 = vxpose.xlu0.b32.cont [5/16] 0.0, 128
        %618 = vxpose.xlu0.b32.cont [6/16] 0.0, 128
        %619 = vxpose.xlu0.b32.cont [7/16] 0.0, 128
        %620 = vxpose.xlu0.b32.cont [8/16] 0.0, 128
        %621 = vxpose.xlu0.b32.cont [9/16] 0.0, 128
        %622 = vxpose.xlu0.b32.cont [10/16] 0.0, 128
        %623 = vxpose.xlu0.b32.cont [11/16] 0.0, 128
        %624 = vxpose.xlu0.b32.cont [12/16] 0.0, 128
        %625 = vxpose.xlu0.b32.cont [13/16] 0.0, 128
        %626 = vxpose.xlu0.b32.cont [14/16] 0.0, 128
        %627 = vxpose.xlu0.b32.cont [15/16] 0.0, 128
        %628 = vxpose.xlu0.b32.end [16/16] 0.0, 128
        %v629 = vpop.trf.xlu0
        %v630 = vpop.trf.xlu0
        %v631 = vpop.trf.xlu0
        %v632 = vpop.trf.xlu0
        %v633 = vpop.trf.xlu0
        %v634 = vpop.trf.xlu0
        %v635 = vpop.trf.xlu0
        %v636 = vpop.trf.xlu0
        %v637 = vpop.trf.xlu0
        %v638 = vpop.trf.xlu0
        %v639 = vpop.trf.xlu0
        %v640 = vpop.trf.xlu0
        %v641 = vpop.trf.xlu0
        %v642 = vpop.trf.xlu0
        %v643 = vpop.trf.xlu0
        %v644 = vpop.trf.xlu0
        %645 = vxpose.xlu0.b32.start [1/16] %v249, 128
        %646 = vxpose.xlu0.b32.cont [2/16] 0.0, 128
        %647 = vxpose.xlu0.b32.cont [3/16] 0.0, 128
        %648 = vxpose.xlu0.b32.cont [4/16] 0.0, 128
        %649 = vxpose.xlu0.b32.cont [5/16] 0.0, 128
        %650 = vxpose.xlu0.b32.cont [6/16] 0.0, 128
        %651 = vxpose.xlu0.b32.cont [7/16] 0.0, 128
        %652 = vxpose.xlu0.b32.cont [8/16] 0.0, 128
        %653 = vxpose.xlu0.b32.cont [9/16] 0.0, 128
        %654 = vxpose.xlu0.b32.cont [10/16] 0.0, 128
        %655 = vxpose.xlu0.b32.cont [11/16] 0.0, 128
        %656 = vxpose.xlu0.b32.cont [12/16] 0.0, 128
        %657 = vxpose.xlu0.b32.cont [13/16] 0.0, 128
        %658 = vxpose.xlu0.b32.cont [14/16] 0.0, 128
        %659 = vxpose.xlu0.b32.cont [15/16] 0.0, 128
        %660 = vxpose.xlu0.b32.end [16/16] 0.0, 128
        %v661 = vpop.trf.xlu0
        %v662 = vpop.trf.xlu0
        %v663 = vpop.trf.xlu0
        %v664 = vpop.trf.xlu0
        %v665 = vpop.trf.xlu0
        %v666 = vpop.trf.xlu0
        %v667 = vpop.trf.xlu0
        %v668 = vpop.trf.xlu0
        %v669 = vpop.trf.xlu0
        %v670 = vpop.trf.xlu0
        %v671 = vpop.trf.xlu0
        %v672 = vpop.trf.xlu0
        %v673 = vpop.trf.xlu0
        %v674 = vpop.trf.xlu0
        %v675 = vpop.trf.xlu0
        %v676 = vpop.trf.xlu0
        %677 = vxpose.xlu0.b32.start [1/16] %v250, 128
        %678 = vxpose.xlu0.b32.cont [2/16] 0.0, 128
        %679 = vxpose.xlu0.b32.cont [3/16] 0.0, 128
        %680 = vxpose.xlu0.b32.cont [4/16] 0.0, 128
        %681 = vxpose.xlu0.b32.cont [5/16] 0.0, 128
        %682 = vxpose.xlu0.b32.cont [6/16] 0.0, 128
        %683 = vxpose.xlu0.b32.cont [7/16] 0.0, 128
        %684 = vxpose.xlu0.b32.cont [8/16] 0.0, 128
        %685 = vxpose.xlu0.b32.cont [9/16] 0.0, 128
        %686 = vxpose.xlu0.b32.cont [10/16] 0.0, 128
        %687 = vxpose.xlu0.b32.cont [11/16] 0.0, 128
        %688 = vxpose.xlu0.b32.cont [12/16] 0.0, 128
        %689 = vxpose.xlu0.b32.cont [13/16] 0.0, 128
        %690 = vxpose.xlu0.b32.cont [14/16] 0.0, 128
        %691 = vxpose.xlu0.b32.cont [15/16] 0.0, 128
        %692 = vxpose.xlu0.b32.end [16/16] 0.0, 128
        %v693 = vpop.trf.xlu0
        %v694 = vpop.trf.xlu0
        %v695 = vpop.trf.xlu0
        %v696 = vpop.trf.xlu0
        %v697 = vpop.trf.xlu0
        %v698 = vpop.trf.xlu0
        %v699 = vpop.trf.xlu0
        %v700 = vpop.trf.xlu0
        %v701 = vpop.trf.xlu0
        %v702 = vpop.trf.xlu0
        %v703 = vpop.trf.xlu0
        %v704 = vpop.trf.xlu0
        %v705 = vpop.trf.xlu0
        %v706 = vpop.trf.xlu0
        %v707 = vpop.trf.xlu0
        %v708 = vpop.trf.xlu0
        %709 = vxpose.xlu0.b32.start [1/16] %v251, 128
        %710 = vxpose.xlu0.b32.cont [2/16] 0.0, 128
        %711 = vxpose.xlu0.b32.cont [3/16] 0.0, 128
        %712 = vxpose.xlu0.b32.cont [4/16] 0.0, 128
        %713 = vxpose.xlu0.b32.cont [5/16] 0.0, 128
        %714 = vxpose.xlu0.b32.cont [6/16] 0.0, 128
        %715 = vxpose.xlu0.b32.cont [7/16] 0.0, 128
        %716 = vxpose.xlu0.b32.cont [8/16] 0.0, 128
        %717 = vxpose.xlu0.b32.cont [9/16] 0.0, 128
        %718 = vxpose.xlu0.b32.cont [10/16] 0.0, 128
        %719 = vxpose.xlu0.b32.cont [11/16] 0.0, 128
        %720 = vxpose.xlu0.b32.cont [12/16] 0.0, 128
        %721 = vxpose.xlu0.b32.cont [13/16] 0.0, 128
        %722 = vxpose.xlu0.b32.cont [14/16] 0.0, 128
        %723 = vxpose.xlu0.b32.cont [15/16] 0.0, 128
        %724 = vxpose.xlu0.b32.end [16/16] 0.0, 128
        %v725 = vpop.trf.xlu0
        %v726 = vpop.trf.xlu0
        %v727 = vpop.trf.xlu0
        %v728 = vpop.trf.xlu0
        %v729 = vpop.trf.xlu0
        %v730 = vpop.trf.xlu0
        %v731 = vpop.trf.xlu0
        %v732 = vpop.trf.xlu0
        %v733 = vpop.trf.xlu0
        %v734 = vpop.trf.xlu0
        %v735 = vpop.trf.xlu0
        %v736 = vpop.trf.xlu0
        %v737 = vpop.trf.xlu0
        %v738 = vpop.trf.xlu0
        %v739 = vpop.trf.xlu0
        %v740 = vpop.trf.xlu0
        %741 = vxpose.xlu0.b32.start [1/16] %v252, 128
        %742 = vxpose.xlu0.b32.cont [2/16] 0.0, 128
        %743 = vxpose.xlu0.b32.cont [3/16] 0.0, 128
        %744 = vxpose.xlu0.b32.cont [4/16] 0.0, 128
        %745 = vxpose.xlu0.b32.cont [5/16] 0.0, 128
        %746 = vxpose.xlu0.b32.cont [6/16] 0.0, 128
        %747 = vxpose.xlu0.b32.cont [7/16] 0.0, 128
        %748 = vxpose.xlu0.b32.cont [8/16] 0.0, 128
        %749 = vxpose.xlu0.b32.cont [9/16] 0.0, 128
        %750 = vxpose.xlu0.b32.cont [10/16] 0.0, 128
        %751 = vxpose.xlu0.b32.cont [11/16] 0.0, 128
        %752 = vxpose.xlu0.b32.cont [12/16] 0.0, 128
        %753 = vxpose.xlu0.b32.cont [13/16] 0.0, 128
        %754 = vxpose.xlu0.b32.cont [14/16] 0.0, 128
        %755 = vxpose.xlu0.b32.cont [15/16] 0.0, 128
        %756 = vxpose.xlu0.b32.end [16/16] 0.0, 128
        %v757 = vpop.trf.xlu0
        %v758 = vpop.trf.xlu0
        %v759 = vpop.trf.xlu0
        %v760 = vpop.trf.xlu0
        %v761 = vpop.trf.xlu0
        %v762 = vpop.trf.xlu0
        %v763 = vpop.trf.xlu0
        %v764 = vpop.trf.xlu0
        %v765 = vpop.trf.xlu0
        %v766 = vpop.trf.xlu0
        %v767 = vpop.trf.xlu0
        %v768 = vpop.trf.xlu0
        %v769 = vpop.trf.xlu0
        %v770 = vpop.trf.xlu0
        %v771 = vpop.trf.xlu0
        %v772 = vpop.trf.xlu0
        %773 = vxpose.xlu0.b32.start [1/16] %v253, 128
        %774 = vxpose.xlu0.b32.cont [2/16] 0.0, 128
        %775 = vxpose.xlu0.b32.cont [3/16] 0.0, 128
        %776 = vxpose.xlu0.b32.cont [4/16] 0.0, 128
        %777 = vxpose.xlu0.b32.cont [5/16] 0.0, 128
        %778 = vxpose.xlu0.b32.cont [6/16] 0.0, 128
        %779 = vxpose.xlu0.b32.cont [7/16] 0.0, 128
        %780 = vxpose.xlu0.b32.cont [8/16] 0.0, 128
        %781 = vxpose.xlu0.b32.cont [9/16] 0.0, 128
        %782 = vxpose.xlu0.b32.cont [10/16] 0.0, 128
        %783 = vxpose.xlu0.b32.cont [11/16] 0.0, 128
        %784 = vxpose.xlu0.b32.cont [12/16] 0.0, 128
        %785 = vxpose.xlu0.b32.cont [13/16] 0.0, 128
        %786 = vxpose.xlu0.b32.cont [14/16] 0.0, 128
        %787 = vxpose.xlu0.b32.cont [15/16] 0.0, 128
        %788 = vxpose.xlu0.b32.end [16/16] 0.0, 128
        %v789 = vpop.trf.xlu0
        %v790 = vpop.trf.xlu0
        %v791 = vpop.trf.xlu0
        %v792 = vpop.trf.xlu0
        %v793 = vpop.trf.xlu0
        %v794 = vpop.trf.xlu0
        %v795 = vpop.trf.xlu0
        %v796 = vpop.trf.xlu0
        %v797 = vpop.trf.xlu0
        %v798 = vpop.trf.xlu0
        %v799 = vpop.trf.xlu0
        %v800 = vpop.trf.xlu0
        %v801 = vpop.trf.xlu0
        %v802 = vpop.trf.xlu0
        %v803 = vpop.trf.xlu0
        %v804 = vpop.trf.xlu0
        %805 = vxpose.xlu0.b32.start [1/16] %v254, 128
        %806 = vxpose.xlu0.b32.cont [2/16] 0.0, 128
        %807 = vxpose.xlu0.b32.cont [3/16] 0.0, 128
        %808 = vxpose.xlu0.b32.cont [4/16] 0.0, 128
        %809 = vxpose.xlu0.b32.cont [5/16] 0.0, 128
        %810 = vxpose.xlu0.b32.cont [6/16] 0.0, 128
        %811 = vxpose.xlu0.b32.cont [7/16] 0.0, 128
        %812 = vxpose.xlu0.b32.cont [8/16] 0.0, 128
        %813 = vxpose.xlu0.b32.cont [9/16] 0.0, 128
        %814 = vxpose.xlu0.b32.cont [10/16] 0.0, 128
        %815 = vxpose.xlu0.b32.cont [11/16] 0.0, 128
        %816 = vxpose.xlu0.b32.cont [12/16] 0.0, 128
        %817 = vxpose.xlu0.b32.cont [13/16] 0.0, 128
        %818 = vxpose.xlu0.b32.cont [14/16] 0.0, 128
        %819 = vxpose.xlu0.b32.cont [15/16] 0.0, 128
        %820 = vxpose.xlu0.b32.end [16/16] 0.0, 128
        %v821 = vpop.trf.xlu0
        %v822 = vpop.trf.xlu0
        %v823 = vpop.trf.xlu0
        %v824 = vpop.trf.xlu0
        %v825 = vpop.trf.xlu0
        %v826 = vpop.trf.xlu0
        %v827 = vpop.trf.xlu0
        %v828 = vpop.trf.xlu0
        %v829 = vpop.trf.xlu0
        %v830 = vpop.trf.xlu0
        %v831 = vpop.trf.xlu0
        %v832 = vpop.trf.xlu0
        %v833 = vpop.trf.xlu0
        %v834 = vpop.trf.xlu0
        %v835 = vpop.trf.xlu0
        %v836 = vpop.trf.xlu0
        %837 = vxpose.xlu0.b32.start [1/16] %v255, 128
        %838 = vxpose.xlu0.b32.cont [2/16] 0.0, 128
        %839 = vxpose.xlu0.b32.cont [3/16] 0.0, 128
        %840 = vxpose.xlu0.b32.cont [4/16] 0.0, 128
        %841 = vxpose.xlu0.b32.cont [5/16] 0.0, 128
        %842 = vxpose.xlu0.b32.cont [6/16] 0.0, 128
        %843 = vxpose.xlu0.b32.cont [7/16] 0.0, 128
        %844 = vxpose.xlu0.b32.cont [8/16] 0.0, 128
        %845 = vxpose.xlu0.b32.cont [9/16] 0.0, 128
        %846 = vxpose.xlu0.b32.cont [10/16] 0.0, 128
        %847 = vxpose.xlu0.b32.cont [11/16] 0.0, 128
        %848 = vxpose.xlu0.b32.cont [12/16] 0.0, 128
        %849 = vxpose.xlu0.b32.cont [13/16] 0.0, 128
        %850 = vxpose.xlu0.b32.cont [14/16] 0.0, 128
        %851 = vxpose.xlu0.b32.cont [15/16] 0.0, 128
        %852 = vxpose.xlu0.b32.end [16/16] 0.0, 128
        %v853 = vpop.trf.xlu0
        %v854 = vpop.trf.xlu0
        %v855 = vpop.trf.xlu0
        %v856 = vpop.trf.xlu0
        %v857 = vpop.trf.xlu0
        %v858 = vpop.trf.xlu0
        %v859 = vpop.trf.xlu0
        %v860 = vpop.trf.xlu0
        %v861 = vpop.trf.xlu0
        %v862 = vpop.trf.xlu0
        %v863 = vpop.trf.xlu0
        %v864 = vpop.trf.xlu0
        %v865 = vpop.trf.xlu0
        %v866 = vpop.trf.xlu0
        %v867 = vpop.trf.xlu0
        %v868 = vpop.trf.xlu0
        %869 = vxpose.xlu0.b32.start [1/16] %v256, 128
        %870 = vxpose.xlu0.b32.cont [2/16] 0.0, 128
        %871 = vxpose.xlu0.b32.cont [3/16] 0.0, 128
        %872 = vxpose.xlu0.b32.cont [4/16] 0.0, 128
        %873 = vxpose.xlu0.b32.cont [5/16] 0.0, 128
        %874 = vxpose.xlu0.b32.cont [6/16] 0.0, 128
        %875 = vxpose.xlu0.b32.cont [7/16] 0.0, 128
        %876 = vxpose.xlu0.b32.cont [8/16] 0.0, 128
        %877 = vxpose.xlu0.b32.cont [9/16] 0.0, 128
        %878 = vxpose.xlu0.b32.cont [10/16] 0.0, 128
        %879 = vxpose.xlu0.b32.cont [11/16] 0.0, 128
        %880 = vxpose.xlu0.b32.cont [12/16] 0.0, 128
        %881 = vxpose.xlu0.b32.cont [13/16] 0.0, 128
        %882 = vxpose.xlu0.b32.cont [14/16] 0.0, 128
        %883 = vxpose.xlu0.b32.cont [15/16] 0.0, 128
        %884 = vxpose.xlu0.b32.end [16/16] 0.0, 128
        %v885 = vpop.trf.xlu0
        %v886 = vpop.trf.xlu0
        %v887 = vpop.trf.xlu0
        %v888 = vpop.trf.xlu0
        %v889 = vpop.trf.xlu0
        %v890 = vpop.trf.xlu0
        %v891 = vpop.trf.xlu0
        %v892 = vpop.trf.xlu0
        %v893 = vpop.trf.xlu0
        %v894 = vpop.trf.xlu0
        %v895 = vpop.trf.xlu0
        %v896 = vpop.trf.xlu0
        %v897 = vpop.trf.xlu0
        %v898 = vpop.trf.xlu0
        %v899 = vpop.trf.xlu0
        %v900 = vpop.trf.xlu0
        %901 = vxpose.xlu0.b32.start [1/16] %v257, 128
        %902 = vxpose.xlu0.b32.cont [2/16] 0.0, 128
        %903 = vxpose.xlu0.b32.cont [3/16] 0.0, 128
        %904 = vxpose.xlu0.b32.cont [4/16] 0.0, 128
        %905 = vxpose.xlu0.b32.cont [5/16] 0.0, 128
        %906 = vxpose.xlu0.b32.cont [6/16] 0.0, 128
        %907 = vxpose.xlu0.b32.cont [7/16] 0.0, 128
        %908 = vxpose.xlu0.b32.cont [8/16] 0.0, 128
        %909 = vxpose.xlu0.b32.cont [9/16] 0.0, 128
        %910 = vxpose.xlu0.b32.cont [10/16] 0.0, 128
        %911 = vxpose.xlu0.b32.cont [11/16] 0.0, 128
        %912 = vxpose.xlu0.b32.cont [12/16] 0.0, 128
        %913 = vxpose.xlu0.b32.cont [13/16] 0.0, 128
        %914 = vxpose.xlu0.b32.cont [14/16] 0.0, 128
        %915 = vxpose.xlu0.b32.cont [15/16] 0.0, 128
        %916 = vxpose.xlu0.b32.end [16/16] 0.0, 128
        %v917 = vpop.trf.xlu0
        %v918 = vpop.trf.xlu0
        %v919 = vpop.trf.xlu0
        %v920 = vpop.trf.xlu0
        %v921 = vpop.trf.xlu0
        %v922 = vpop.trf.xlu0
        %v923 = vpop.trf.xlu0
        %v924 = vpop.trf.xlu0
        %v925 = vpop.trf.xlu0
        %v926 = vpop.trf.xlu0
        %v927 = vpop.trf.xlu0
        %v928 = vpop.trf.xlu0
        %v929 = vpop.trf.xlu0
        %v930 = vpop.trf.xlu0
        %v931 = vpop.trf.xlu0
        %v932 = vpop.trf.xlu0
        %933 = vxpose.xlu0.b32.start [1/16] %v258, 128
        %934 = vxpose.xlu0.b32.cont [2/16] 0.0, 128
        %935 = vxpose.xlu0.b32.cont [3/16] 0.0, 128
        %936 = vxpose.xlu0.b32.cont [4/16] 0.0, 128
        %937 = vxpose.xlu0.b32.cont [5/16] 0.0, 128
        %938 = vxpose.xlu0.b32.cont [6/16] 0.0, 128
        %939 = vxpose.xlu0.b32.cont [7/16] 0.0, 128
        %940 = vxpose.xlu0.b32.cont [8/16] 0.0, 128
        %941 = vxpose.xlu0.b32.cont [9/16] 0.0, 128
        %942 = vxpose.xlu0.b32.cont [10/16] 0.0, 128
        %943 = vxpose.xlu0.b32.cont [11/16] 0.0, 128
        %944 = vxpose.xlu0.b32.cont [12/16] 0.0, 128
        %945 = vxpose.xlu0.b32.cont [13/16] 0.0, 128
        %946 = vxpose.xlu0.b32.cont [14/16] 0.0, 128
        %947 = vxpose.xlu0.b32.cont [15/16] 0.0, 128
        %948 = vxpose.xlu0.b32.end [16/16] 0.0, 128
        %v949 = vpop.trf.xlu0
        %v950 = vpop.trf.xlu0
        %v951 = vpop.trf.xlu0
        %v952 = vpop.trf.xlu0
        %v953 = vpop.trf.xlu0
        %v954 = vpop.trf.xlu0
        %v955 = vpop.trf.xlu0
        %v956 = vpop.trf.xlu0
        %v957 = vpop.trf.xlu0
        %v958 = vpop.trf.xlu0
        %v959 = vpop.trf.xlu0
        %v960 = vpop.trf.xlu0
        %v961 = vpop.trf.xlu0
        %v962 = vpop.trf.xlu0
        %v963 = vpop.trf.xlu0
        %v964 = vpop.trf.xlu0
        %965 = vxpose.xlu0.b32.start [1/16] %v259, 128
        %966 = vxpose.xlu0.b32.cont [2/16] 0.0, 128
        %967 = vxpose.xlu0.b32.cont [3/16] 0.0, 128
        %968 = vxpose.xlu0.b32.cont [4/16] 0.0, 128
        %969 = vxpose.xlu0.b32.cont [5/16] 0.0, 128
        %970 = vxpose.xlu0.b32.cont [6/16] 0.0, 128
        %971 = vxpose.xlu0.b32.cont [7/16] 0.0, 128
        %972 = vxpose.xlu0.b32.cont [8/16] 0.0, 128
        %973 = vxpose.xlu0.b32.cont [9/16] 0.0, 128
        %974 = vxpose.xlu0.b32.cont [10/16] 0.0, 128
        %975 = vxpose.xlu0.b32.cont [11/16] 0.0, 128
        %976 = vxpose.xlu0.b32.cont [12/16] 0.0, 128
        %977 = vxpose.xlu0.b32.cont [13/16] 0.0, 128
        %978 = vxpose.xlu0.b32.cont [14/16] 0.0, 128
        %979 = vxpose.xlu0.b32.cont [15/16] 0.0, 128
        %980 = vxpose.xlu0.b32.end [16/16] 0.0, 128
        %v981 = vpop.trf.xlu0
        %v982 = vpop.trf.xlu0
        %v983 = vpop.trf.xlu0
        %v984 = vpop.trf.xlu0
        %v985 = vpop.trf.xlu0
        %v986 = vpop.trf.xlu0
        %v987 = vpop.trf.xlu0
        %v988 = vpop.trf.xlu0
        %v989 = vpop.trf.xlu0
        %v990 = vpop.trf.xlu0
        %v991 = vpop.trf.xlu0
        %v992 = vpop.trf.xlu0
        %v993 = vpop.trf.xlu0
        %v994 = vpop.trf.xlu0
        %v995 = vpop.trf.xlu0
        %v996 = vpop.trf.xlu0
        %997 = vxpose.xlu0.b32.start [1/16] %v260, 128
        %998 = vxpose.xlu0.b32.cont [2/16] 0.0, 128
        %999 = vxpose.xlu0.b32.cont [3/16] 0.0, 128
        %1000 = vxpose.xlu0.b32.cont [4/16] 0.0, 128
        %1001 = vxpose.xlu0.b32.cont [5/16] 0.0, 128
        %1002 = vxpose.xlu0.b32.cont [6/16] 0.0, 128
        %1003 = vxpose.xlu0.b32.cont [7/16] 0.0, 128
        %1004 = vxpose.xlu0.b32.cont [8/16] 0.0, 128
        %1005 = vxpose.xlu0.b32.cont [9/16] 0.0, 128
        %1006 = vxpose.xlu0.b32.cont [10/16] 0.0, 128
        %1007 = vxpose.xlu0.b32.cont [11/16] 0.0, 128
        %1008 = vxpose.xlu0.b32.cont [12/16] 0.0, 128
        %1009 = vxpose.xlu0.b32.cont [13/16] 0.0, 128
        %1010 = vxpose.xlu0.b32.cont [14/16] 0.0, 128
        %1011 = vxpose.xlu0.b32.cont [15/16] 0.0, 128
        %1012 = vxpose.xlu0.b32.end [16/16] 0.0, 128
        %v1013 = vpop.trf.xlu0
        %v1014 = vpop.trf.xlu0
        %v1015 = vpop.trf.xlu0
        %v1016 = vpop.trf.xlu0
        %v1017 = vpop.trf.xlu0
        %v1018 = vpop.trf.xlu0
        %v1019 = vpop.trf.xlu0
        %v1020 = vpop.trf.xlu0
        %v1021 = vpop.trf.xlu0
        %v1022 = vpop.trf.xlu0
        %v1023 = vpop.trf.xlu0
        %v1024 = vpop.trf.xlu0
        %v1025 = vpop.trf.xlu0
        %v1026 = vpop.trf.xlu0
        %v1027 = vpop.trf.xlu0
        %v1028 = vpop.trf.xlu0
        %1029 = vxpose.xlu0.b32.start [1/16] %v277, 128
        %1030 = vxpose.xlu0.b32.cont [2/16] %v309, 128
        %1031 = vxpose.xlu0.b32.cont [3/16] %v341, 128
        %1032 = vxpose.xlu0.b32.cont [4/16] %v373, 128
        %1033 = vxpose.xlu0.b32.cont [5/16] %v405, 128
        %1034 = vxpose.xlu0.b32.cont [6/16] %v437, 128
        %1035 = vxpose.xlu0.b32.cont [7/16] %v469, 128
        %1036 = vxpose.xlu0.b32.cont [8/16] %v501, 128
        %1037 = vxpose.xlu0.b32.cont [9/16] %v533, 128
        %1038 = vxpose.xlu0.b32.cont [10/16] %v565, 128
        %1039 = vxpose.xlu0.b32.cont [11/16] %v597, 128
        %1040 = vxpose.xlu0.b32.cont [12/16] %v629, 128
        %1041 = vxpose.xlu0.b32.cont [13/16] %v661, 128
        %1042 = vxpose.xlu0.b32.cont [14/16] %v693, 128
        %1043 = vxpose.xlu0.b32.cont [15/16] %v725, 128
        %1044 = vxpose.xlu0.b32.end [16/16] %v757, 128
        %v1045 = vpop.trf.xlu0
        %v1046 = vpop.trf.xlu0
        %v1047 = vpop.trf.xlu0
        %v1048 = vpop.trf.xlu0
        %v1049 = vpop.trf.xlu0
        %v1050 = vpop.trf.xlu0
        %v1051 = vpop.trf.xlu0
        %v1052 = vpop.trf.xlu0
        %v1053 = vpop.trf.xlu0
        %v1054 = vpop.trf.xlu0
        %v1055 = vpop.trf.xlu0
        %v1056 = vpop.trf.xlu0
        %v1057 = vpop.trf.xlu0
        %v1058 = vpop.trf.xlu0
        %v1059 = vpop.trf.xlu0
        %v1060 = vpop.trf.xlu0
        %1061 = vxpose.xlu0.b32.start [1/16] %v789, 128
        %1062 = vxpose.xlu0.b32.cont [2/16] %v821, 128
        %1063 = vxpose.xlu0.b32.cont [3/16] %v853, 128
        %1064 = vxpose.xlu0.b32.cont [4/16] %v885, 128
        %1065 = vxpose.xlu0.b32.cont [5/16] %v917, 128
        %1066 = vxpose.xlu0.b32.cont [6/16] %v949, 128
        %1067 = vxpose.xlu0.b32.cont [7/16] %v981, 128
        %1068 = vxpose.xlu0.b32.cont [8/16] %v1013, 128
        %1069 = vxpose.xlu0.b32.cont [9/16] 0.0, 128
        %1070 = vxpose.xlu0.b32.cont [10/16] 0.0, 128
        %1071 = vxpose.xlu0.b32.cont [11/16] 0.0, 128
        %1072 = vxpose.xlu0.b32.cont [12/16] 0.0, 128
        %1073 = vxpose.xlu0.b32.cont [13/16] 0.0, 128
        %1074 = vxpose.xlu0.b32.cont [14/16] 0.0, 128
        %1075 = vxpose.xlu0.b32.cont [15/16] 0.0, 128
        %1076 = vxpose.xlu0.b32.end [16/16] 0.0, 128
        %v1077 = vpop.trf.xlu0
        %v1078 = vpop.trf.xlu0
        %v1079 = vpop.trf.xlu0
        %v1080 = vpop.trf.xlu0
        %v1081 = vpop.trf.xlu0
        %v1082 = vpop.trf.xlu0
        %v1083 = vpop.trf.xlu0
        %v1084 = vpop.trf.xlu0
        %v1085 = vpop.trf.xlu0
        %v1086 = vpop.trf.xlu0
        %v1087 = vpop.trf.xlu0
        %v1088 = vpop.trf.xlu0
        %v1089 = vpop.trf.xlu0
        %v1090 = vpop.trf.xlu0
        %v1091 = vpop.trf.xlu0
        %v1092 = vpop.trf.xlu0
        %1093 = vst [vmem:[#allocation2] sm:$0xff] %v1045
        %vm1094 = vcmask 523264
        %1095 = vst.msk [vmem:[#allocation2 + $0x8] sm:$0xff] %vm1094, %v1077
        %s1096 = scalar_lea.vmem %s204, 64 [#allocation3]
        %v1097 = vld [vmem:[%s1096] sm:$0xff]
        %v1098 = vld [vmem:[%s1096 + $0x8] sm:$0xff]
        %v1099 = vld [vmem:[%s1096 + $0x10] sm:$0xff]
        %v1100 = vld [vmem:[%s1096 + $0x18] sm:$0xff]
        %v1101 = vld [vmem:[%s1096 + $0x20] sm:$0xff]
        %v1102 = vld [vmem:[%s1096 + $0x28] sm:$0xff]
        %v1103 = vld [vmem:[%s1096 + $0x30] sm:$0xff]
        %v1104 = vld [vmem:[%s1096 + $0x38] sm:$0xff]
        %v1105 = vld [vmem:[%s1096 + $0x200] sm:$0xff]
        %v1106 = vld [vmem:[%s1096 + $0x208] sm:$0xff]
        %v1107 = vld [vmem:[%s1096 + $0x210] sm:$0xff]
        %v1108 = vld [vmem:[%s1096 + $0x218] sm:$0xff]
        %v1109 = vld [vmem:[%s1096 + $0x220] sm:$0xff]
        %v1110 = vld [vmem:[%s1096 + $0x228] sm:$0xff]
        %v1111 = vld [vmem:[%s1096 + $0x230] sm:$0xff]
        %v1112 = vld [vmem:[%s1096 + $0x238] sm:$0xff]
        %v1113 = vld [vmem:[%s1096 + $0x400] sm:$0xff]
        %v1114 = vld [vmem:[%s1096 + $0x408] sm:$0xff]
        %v1115 = vld [vmem:[%s1096 + $0x410] sm:$0xff]
        %v1116 = vld [vmem:[%s1096 + $0x418] sm:$0xff]
        %v1117 = vld [vmem:[%s1096 + $0x420] sm:$0xff]
        %v1118 = vld [vmem:[%s1096 + $0x428] sm:$0xff]
        %v1119 = vld [vmem:[%s1096 + $0x430] sm:$0xff]
        %v1120 = vld [vmem:[%s1096 + $0x438] sm:$0xff]
        %1121 = vxpose.xlu0.b32.start [1/16] %v1097, 128
        %1122 = vxpose.xlu0.b32.cont [2/16] 0.0, 128
        %1123 = vxpose.xlu0.b32.cont [3/16] 0.0, 128
        %1124 = vxpose.xlu0.b32.cont [4/16] 0.0, 128
        %1125 = vxpose.xlu0.b32.cont [5/16] 0.0, 128
        %1126 = vxpose.xlu0.b32.cont [6/16] 0.0, 128
        %1127 = vxpose.xlu0.b32.cont [7/16] 0.0, 128
        %1128 = vxpose.xlu0.b32.cont [8/16] 0.0, 128
        %1129 = vxpose.xlu0.b32.cont [9/16] 0.0, 128
        %1130 = vxpose.xlu0.b32.cont [10/16] 0.0, 128
        %1131 = vxpose.xlu0.b32.cont [11/16] 0.0, 128
        %1132 = vxpose.xlu0.b32.cont [12/16] 0.0, 128
        %1133 = vxpose.xlu0.b32.cont [13/16] 0.0, 128
        %1134 = vxpose.xlu0.b32.cont [14/16] 0.0, 128
        %1135 = vxpose.xlu0.b32.cont [15/16] 0.0, 128
        %1136 = vxpose.xlu0.b32.end [16/16] 0.0, 128
        %v1137 = vpop.trf.xlu0
        %v1138 = vpop.trf.xlu0
        %v1139 = vpop.trf.xlu0
        %v1140 = vpop.trf.xlu0
        %v1141 = vpop.trf.xlu0
        %v1142 = vpop.trf.xlu0
        %v1143 = vpop.trf.xlu0
        %v1144 = vpop.trf.xlu0
        %v1145 = vpop.trf.xlu0
        %v1146 = vpop.trf.xlu0
        %v1147 = vpop.trf.xlu0
        %v1148 = vpop.trf.xlu0
        %v1149 = vpop.trf.xlu0
        %v1150 = vpop.trf.xlu0
        %v1151 = vpop.trf.xlu0
        %v1152 = vpop.trf.xlu0
        %1153 = vxpose.xlu0.b32.start [1/16] %v1098, 128
        %1154 = vxpose.xlu0.b32.cont [2/16] 0.0, 128
        %1155 = vxpose.xlu0.b32.cont [3/16] 0.0, 128
        %1156 = vxpose.xlu0.b32.cont [4/16] 0.0, 128
        %1157 = vxpose.xlu0.b32.cont [5/16] 0.0, 128
        %1158 = vxpose.xlu0.b32.cont [6/16] 0.0, 128
        %1159 = vxpose.xlu0.b32.cont [7/16] 0.0, 128
        %1160 = vxpose.xlu0.b32.cont [8/16] 0.0, 128
        %1161 = vxpose.xlu0.b32.cont [9/16] 0.0, 128
        %1162 = vxpose.xlu0.b32.cont [10/16] 0.0, 128
        %1163 = vxpose.xlu0.b32.cont [11/16] 0.0, 128
        %1164 = vxpose.xlu0.b32.cont [12/16] 0.0, 128
        %1165 = vxpose.xlu0.b32.cont [13/16] 0.0, 128
        %1166 = vxpose.xlu0.b32.cont [14/16] 0.0, 128
        %1167 = vxpose.xlu0.b32.cont [15/16] 0.0, 128
        %1168 = vxpose.xlu0.b32.end [16/16] 0.0, 128
        %v1169 = vpop.trf.xlu0
        %v1170 = vpop.trf.xlu0
        %v1171 = vpop.trf.xlu0
        %v1172 = vpop.trf.xlu0
        %v1173 = vpop.trf.xlu0
        %v1174 = vpop.trf.xlu0
        %v1175 = vpop.trf.xlu0
        %v1176 = vpop.trf.xlu0
        %v1177 = vpop.trf.xlu0
        %v1178 = vpop.trf.xlu0
        %v1179 = vpop.trf.xlu0
        %v1180 = vpop.trf.xlu0
        %v1181 = vpop.trf.xlu0
        %v1182 = vpop.trf.xlu0
        %v1183 = vpop.trf.xlu0
        %v1184 = vpop.trf.xlu0
        %1185 = vxpose.xlu0.b32.start [1/16] %v1099, 128
        %1186 = vxpose.xlu0.b32.cont [2/16] 0.0, 128
        %1187 = vxpose.xlu0.b32.cont [3/16] 0.0, 128
        %1188 = vxpose.xlu0.b32.cont [4/16] 0.0, 128
        %1189 = vxpose.xlu0.b32.cont [5/16] 0.0, 128
        %1190 = vxpose.xlu0.b32.cont [6/16] 0.0, 128
        %1191 = vxpose.xlu0.b32.cont [7/16] 0.0, 128
        %1192 = vxpose.xlu0.b32.cont [8/16] 0.0, 128
        %1193 = vxpose.xlu0.b32.cont [9/16] 0.0, 128
        %1194 = vxpose.xlu0.b32.cont [10/16] 0.0, 128
        %1195 = vxpose.xlu0.b32.cont [11/16] 0.0, 128
        %1196 = vxpose.xlu0.b32.cont [12/16] 0.0, 128
        %1197 = vxpose.xlu0.b32.cont [13/16] 0.0, 128
        %1198 = vxpose.xlu0.b32.cont [14/16] 0.0, 128
        %1199 = vxpose.xlu0.b32.cont [15/16] 0.0, 128
        %1200 = vxpose.xlu0.b32.end [16/16] 0.0, 128
        %v1201 = vpop.trf.xlu0
        %v1202 = vpop.trf.xlu0
        %v1203 = vpop.trf.xlu0
        %v1204 = vpop.trf.xlu0
        %v1205 = vpop.trf.xlu0
        %v1206 = vpop.trf.xlu0
        %v1207 = vpop.trf.xlu0
        %v1208 = vpop.trf.xlu0
        %v1209 = vpop.trf.xlu0
        %v1210 = vpop.trf.xlu0
        %v1211 = vpop.trf.xlu0
        %v1212 = vpop.trf.xlu0
        %v1213 = vpop.trf.xlu0
        %v1214 = vpop.trf.xlu0
        %v1215 = vpop.trf.xlu0
        %v1216 = vpop.trf.xlu0
        %1217 = vxpose.xlu0.b32.start [1/16] %v1100, 128
        %1218 = vxpose.xlu0.b32.cont [2/16] 0.0, 128
        %1219 = vxpose.xlu0.b32.cont [3/16] 0.0, 128
        %1220 = vxpose.xlu0.b32.cont [4/16] 0.0, 128
        %1221 = vxpose.xlu0.b32.cont [5/16] 0.0, 128
        %1222 = vxpose.xlu0.b32.cont [6/16] 0.0, 128
        %1223 = vxpose.xlu0.b32.cont [7/16] 0.0, 128
        %1224 = vxpose.xlu0.b32.cont [8/16] 0.0, 128
        %1225 = vxpose.xlu0.b32.cont [9/16] 0.0, 128
        %1226 = vxpose.xlu0.b32.cont [10/16] 0.0, 128
        %1227 = vxpose.xlu0.b32.cont [11/16] 0.0, 128
        %1228 = vxpose.xlu0.b32.cont [12/16] 0.0, 128
        %1229 = vxpose.xlu0.b32.cont [13/16] 0.0, 128
        %1230 = vxpose.xlu0.b32.cont [14/16] 0.0, 128
        %1231 = vxpose.xlu0.b32.cont [15/16] 0.0, 128
        %1232 = vxpose.xlu0.b32.end [16/16] 0.0, 128
        %v1233 = vpop.trf.xlu0
        %v1234 = vpop.trf.xlu0
        %v1235 = vpop.trf.xlu0
        %v1236 = vpop.trf.xlu0
        %v1237 = vpop.trf.xlu0
        %v1238 = vpop.trf.xlu0
        %v1239 = vpop.trf.xlu0
        %v1240 = vpop.trf.xlu0
        %v1241 = vpop.trf.xlu0
        %v1242 = vpop.trf.xlu0
        %v1243 = vpop.trf.xlu0
        %v1244 = vpop.trf.xlu0
        %v1245 = vpop.trf.xlu0
        %v1246 = vpop.trf.xlu0
        %v1247 = vpop.trf.xlu0
        %v1248 = vpop.trf.xlu0
        %1249 = vxpose.xlu0.b32.start [1/16] %v1101, 128
        %1250 = vxpose.xlu0.b32.cont [2/16] 0.0, 128
        %1251 = vxpose.xlu0.b32.cont [3/16] 0.0, 128
        %1252 = vxpose.xlu0.b32.cont [4/16] 0.0, 128
        %1253 = vxpose.xlu0.b32.cont [5/16] 0.0, 128
        %1254 = vxpose.xlu0.b32.cont [6/16] 0.0, 128
        %1255 = vxpose.xlu0.b32.cont [7/16] 0.0, 128
        %1256 = vxpose.xlu0.b32.cont [8/16] 0.0, 128
        %1257 = vxpose.xlu0.b32.cont [9/16] 0.0, 128
        %1258 = vxpose.xlu0.b32.cont [10/16] 0.0, 128
        %1259 = vxpose.xlu0.b32.cont [11/16] 0.0, 128
        %1260 = vxpose.xlu0.b32.cont [12/16] 0.0, 128
        %1261 = vxpose.xlu0.b32.cont [13/16] 0.0, 128
        %1262 = vxpose.xlu0.b32.cont [14/16] 0.0, 128
        %1263 = vxpose.xlu0.b32.cont [15/16] 0.0, 128
        %1264 = vxpose.xlu0.b32.end [16/16] 0.0, 128
        %v1265 = vpop.trf.xlu0
        %v1266 = vpop.trf.xlu0
        %v1267 = vpop.trf.xlu0
        %v1268 = vpop.trf.xlu0
        %v1269 = vpop.trf.xlu0
        %v1270 = vpop.trf.xlu0
        %v1271 = vpop.trf.xlu0
        %v1272 = vpop.trf.xlu0
        %v1273 = vpop.trf.xlu0
        %v1274 = vpop.trf.xlu0
        %v1275 = vpop.trf.xlu0
        %v1276 = vpop.trf.xlu0
        %v1277 = vpop.trf.xlu0
        %v1278 = vpop.trf.xlu0
        %v1279 = vpop.trf.xlu0
        %v1280 = vpop.trf.xlu0
        %1281 = vxpose.xlu0.b32.start [1/16] %v1102, 128
        %1282 = vxpose.xlu0.b32.cont [2/16] 0.0, 128
        %1283 = vxpose.xlu0.b32.cont [3/16] 0.0, 128
        %1284 = vxpose.xlu0.b32.cont [4/16] 0.0, 128
        %1285 = vxpose.xlu0.b32.cont [5/16] 0.0, 128
        %1286 = vxpose.xlu0.b32.cont [6/16] 0.0, 128
        %1287 = vxpose.xlu0.b32.cont [7/16] 0.0, 128
        %1288 = vxpose.xlu0.b32.cont [8/16] 0.0, 128
        %1289 = vxpose.xlu0.b32.cont [9/16] 0.0, 128
        %1290 = vxpose.xlu0.b32.cont [10/16] 0.0, 128
        %1291 = vxpose.xlu0.b32.cont [11/16] 0.0, 128
        %1292 = vxpose.xlu0.b32.cont [12/16] 0.0, 128
        %1293 = vxpose.xlu0.b32.cont [13/16] 0.0, 128
        %1294 = vxpose.xlu0.b32.cont [14/16] 0.0, 128
        %1295 = vxpose.xlu0.b32.cont [15/16] 0.0, 128
        %1296 = vxpose.xlu0.b32.end [16/16] 0.0, 128
        %v1297 = vpop.trf.xlu0
        %v1298 = vpop.trf.xlu0
        %v1299 = vpop.trf.xlu0
        %v1300 = vpop.trf.xlu0
        %v1301 = vpop.trf.xlu0
        %v1302 = vpop.trf.xlu0
        %v1303 = vpop.trf.xlu0
        %v1304 = vpop.trf.xlu0
        %v1305 = vpop.trf.xlu0
        %v1306 = vpop.trf.xlu0
        %v1307 = vpop.trf.xlu0
        %v1308 = vpop.trf.xlu0
        %v1309 = vpop.trf.xlu0
        %v1310 = vpop.trf.xlu0
        %v1311 = vpop.trf.xlu0
        %v1312 = vpop.trf.xlu0
        %1313 = vxpose.xlu0.b32.start [1/16] %v1103, 128
        %1314 = vxpose.xlu0.b32.cont [2/16] 0.0, 128
        %1315 = vxpose.xlu0.b32.cont [3/16] 0.0, 128
        %1316 = vxpose.xlu0.b32.cont [4/16] 0.0, 128
        %1317 = vxpose.xlu0.b32.cont [5/16] 0.0, 128
        %1318 = vxpose.xlu0.b32.cont [6/16] 0.0, 128
        %1319 = vxpose.xlu0.b32.cont [7/16] 0.0, 128
        %1320 = vxpose.xlu0.b32.cont [8/16] 0.0, 128
        %1321 = vxpose.xlu0.b32.cont [9/16] 0.0, 128
        %1322 = vxpose.xlu0.b32.cont [10/16] 0.0, 128
        %1323 = vxpose.xlu0.b32.cont [11/16] 0.0, 128
        %1324 = vxpose.xlu0.b32.cont [12/16] 0.0, 128
        %1325 = vxpose.xlu0.b32.cont [13/16] 0.0, 128
        %1326 = vxpose.xlu0.b32.cont [14/16] 0.0, 128
        %1327 = vxpose.xlu0.b32.cont [15/16] 0.0, 128
        %1328 = vxpose.xlu0.b32.end [16/16] 0.0, 128
        %v1329 = vpop.trf.xlu0
        %v1330 = vpop.trf.xlu0
        %v1331 = vpop.trf.xlu0
        %v1332 = vpop.trf.xlu0
        %v1333 = vpop.trf.xlu0
        %v1334 = vpop.trf.xlu0
        %v1335 = vpop.trf.xlu0
        %v1336 = vpop.trf.xlu0
        %v1337 = vpop.trf.xlu0
        %v1338 = vpop.trf.xlu0
        %v1339 = vpop.trf.xlu0
        %v1340 = vpop.trf.xlu0
        %v1341 = vpop.trf.xlu0
        %v1342 = vpop.trf.xlu0
        %v1343 = vpop.trf.xlu0
        %v1344 = vpop.trf.xlu0
        %1345 = vxpose.xlu0.b32.start [1/16] %v1104, 128
        %1346 = vxpose.xlu0.b32.cont [2/16] 0.0, 128
        %1347 = vxpose.xlu0.b32.cont [3/16] 0.0, 128
        %1348 = vxpose.xlu0.b32.cont [4/16] 0.0, 128
        %1349 = vxpose.xlu0.b32.cont [5/16] 0.0, 128
        %1350 = vxpose.xlu0.b32.cont [6/16] 0.0, 128
        %1351 = vxpose.xlu0.b32.cont [7/16] 0.0, 128
        %1352 = vxpose.xlu0.b32.cont [8/16] 0.0, 128
        %1353 = vxpose.xlu0.b32.cont [9/16] 0.0, 128
        %1354 = vxpose.xlu0.b32.cont [10/16] 0.0, 128
        %1355 = vxpose.xlu0.b32.cont [11/16] 0.0, 128
        %1356 = vxpose.xlu0.b32.cont [12/16] 0.0, 128
        %1357 = vxpose.xlu0.b32.cont [13/16] 0.0, 128
        %1358 = vxpose.xlu0.b32.cont [14/16] 0.0, 128
        %1359 = vxpose.xlu0.b32.cont [15/16] 0.0, 128
        %1360 = vxpose.xlu0.b32.end [16/16] 0.0, 128
        %v1361 = vpop.trf.xlu0
        %v1362 = vpop.trf.xlu0
        %v1363 = vpop.trf.xlu0
        %v1364 = vpop.trf.xlu0
        %v1365 = vpop.trf.xlu0
        %v1366 = vpop.trf.xlu0
        %v1367 = vpop.trf.xlu0
        %v1368 = vpop.trf.xlu0
        %v1369 = vpop.trf.xlu0
        %v1370 = vpop.trf.xlu0
        %v1371 = vpop.trf.xlu0
        %v1372 = vpop.trf.xlu0
        %v1373 = vpop.trf.xlu0
        %v1374 = vpop.trf.xlu0
        %v1375 = vpop.trf.xlu0
        %v1376 = vpop.trf.xlu0
        %1377 = vxpose.xlu0.b32.start [1/16] %v1105, 128
        %1378 = vxpose.xlu0.b32.cont [2/16] 0.0, 128
        %1379 = vxpose.xlu0.b32.cont [3/16] 0.0, 128
        %1380 = vxpose.xlu0.b32.cont [4/16] 0.0, 128
        %1381 = vxpose.xlu0.b32.cont [5/16] 0.0, 128
        %1382 = vxpose.xlu0.b32.cont [6/16] 0.0, 128
        %1383 = vxpose.xlu0.b32.cont [7/16] 0.0, 128
        %1384 = vxpose.xlu0.b32.cont [8/16] 0.0, 128
        %1385 = vxpose.xlu0.b32.cont [9/16] 0.0, 128
        %1386 = vxpose.xlu0.b32.cont [10/16] 0.0, 128
        %1387 = vxpose.xlu0.b32.cont [11/16] 0.0, 128
        %1388 = vxpose.xlu0.b32.cont [12/16] 0.0, 128
        %1389 = vxpose.xlu0.b32.cont [13/16] 0.0, 128
        %1390 = vxpose.xlu0.b32.cont [14/16] 0.0, 128
        %1391 = vxpose.xlu0.b32.cont [15/16] 0.0, 128
        %1392 = vxpose.xlu0.b32.end [16/16] 0.0, 128
        %v1393 = vpop.trf.xlu0
        %v1394 = vpop.trf.xlu0
        %v1395 = vpop.trf.xlu0
        %v1396 = vpop.trf.xlu0
        %v1397 = vpop.trf.xlu0
        %v1398 = vpop.trf.xlu0
        %v1399 = vpop.trf.xlu0
        %v1400 = vpop.trf.xlu0
        %v1401 = vpop.trf.xlu0
        %v1402 = vpop.trf.xlu0
        %v1403 = vpop.trf.xlu0
        %v1404 = vpop.trf.xlu0
        %v1405 = vpop.trf.xlu0
        %v1406 = vpop.trf.xlu0
        %v1407 = vpop.trf.xlu0
        %v1408 = vpop.trf.xlu0
        %1409 = vxpose.xlu0.b32.start [1/16] %v1106, 128
        %1410 = vxpose.xlu0.b32.cont [2/16] 0.0, 128
        %1411 = vxpose.xlu0.b32.cont [3/16] 0.0, 128
        %1412 = vxpose.xlu0.b32.cont [4/16] 0.0, 128
        %1413 = vxpose.xlu0.b32.cont [5/16] 0.0, 128
        %1414 = vxpose.xlu0.b32.cont [6/16] 0.0, 128
        %1415 = vxpose.xlu0.b32.cont [7/16] 0.0, 128
        %1416 = vxpose.xlu0.b32.cont [8/16] 0.0, 128
        %1417 = vxpose.xlu0.b32.cont [9/16] 0.0, 128
        %1418 = vxpose.xlu0.b32.cont [10/16] 0.0, 128
        %1419 = vxpose.xlu0.b32.cont [11/16] 0.0, 128
        %1420 = vxpose.xlu0.b32.cont [12/16] 0.0, 128
        %1421 = vxpose.xlu0.b32.cont [13/16] 0.0, 128
        %1422 = vxpose.xlu0.b32.cont [14/16] 0.0, 128
        %1423 = vxpose.xlu0.b32.cont [15/16] 0.0, 128
        %1424 = vxpose.xlu0.b32.end [16/16] 0.0, 128
        %v1425 = vpop.trf.xlu0
        %v1426 = vpop.trf.xlu0
        %v1427 = vpop.trf.xlu0
        %v1428 = vpop.trf.xlu0
        %v1429 = vpop.trf.xlu0
        %v1430 = vpop.trf.xlu0
        %v1431 = vpop.trf.xlu0
        %v1432 = vpop.trf.xlu0
        %v1433 = vpop.trf.xlu0
        %v1434 = vpop.trf.xlu0
        %v1435 = vpop.trf.xlu0
        %v1436 = vpop.trf.xlu0
        %v1437 = vpop.trf.xlu0
        %v1438 = vpop.trf.xlu0
        %v1439 = vpop.trf.xlu0
        %v1440 = vpop.trf.xlu0
        %1441 = vxpose.xlu0.b32.start [1/16] %v1107, 128
        %1442 = vxpose.xlu0.b32.cont [2/16] 0.0, 128
        %1443 = vxpose.xlu0.b32.cont [3/16] 0.0, 128
        %1444 = vxpose.xlu0.b32.cont [4/16] 0.0, 128
        %1445 = vxpose.xlu0.b32.cont [5/16] 0.0, 128
        %1446 = vxpose.xlu0.b32.cont [6/16] 0.0, 128
        %1447 = vxpose.xlu0.b32.cont [7/16] 0.0, 128
        %1448 = vxpose.xlu0.b32.cont [8/16] 0.0, 128
        %1449 = vxpose.xlu0.b32.cont [9/16] 0.0, 128
        %1450 = vxpose.xlu0.b32.cont [10/16] 0.0, 128
        %1451 = vxpose.xlu0.b32.cont [11/16] 0.0, 128
        %1452 = vxpose.xlu0.b32.cont [12/16] 0.0, 128
        %1453 = vxpose.xlu0.b32.cont [13/16] 0.0, 128
        %1454 = vxpose.xlu0.b32.cont [14/16] 0.0, 128
        %1455 = vxpose.xlu0.b32.cont [15/16] 0.0, 128
        %1456 = vxpose.xlu0.b32.end [16/16] 0.0, 128
        %v1457 = vpop.trf.xlu0
        %v1458 = vpop.trf.xlu0
        %v1459 = vpop.trf.xlu0
        %v1460 = vpop.trf.xlu0
        %v1461 = vpop.trf.xlu0
        %v1462 = vpop.trf.xlu0
        %v1463 = vpop.trf.xlu0
        %v1464 = vpop.trf.xlu0
        %v1465 = vpop.trf.xlu0
        %v1466 = vpop.trf.xlu0
        %v1467 = vpop.trf.xlu0
        %v1468 = vpop.trf.xlu0
        %v1469 = vpop.trf.xlu0
        %v1470 = vpop.trf.xlu0
        %v1471 = vpop.trf.xlu0
        %v1472 = vpop.trf.xlu0
        %1473 = vxpose.xlu0.b32.start [1/16] %v1108, 128
        %1474 = vxpose.xlu0.b32.cont [2/16] 0.0, 128
        %1475 = vxpose.xlu0.b32.cont [3/16] 0.0, 128
        %1476 = vxpose.xlu0.b32.cont [4/16] 0.0, 128
        %1477 = vxpose.xlu0.b32.cont [5/16] 0.0, 128
        %1478 = vxpose.xlu0.b32.cont [6/16] 0.0, 128
        %1479 = vxpose.xlu0.b32.cont [7/16] 0.0, 128
        %1480 = vxpose.xlu0.b32.cont [8/16] 0.0, 128
        %1481 = vxpose.xlu0.b32.cont [9/16] 0.0, 128
        %1482 = vxpose.xlu0.b32.cont [10/16] 0.0, 128
        %1483 = vxpose.xlu0.b32.cont [11/16] 0.0, 128
        %1484 = vxpose.xlu0.b32.cont [12/16] 0.0, 128
        %1485 = vxpose.xlu0.b32.cont [13/16] 0.0, 128
        %1486 = vxpose.xlu0.b32.cont [14/16] 0.0, 128
        %1487 = vxpose.xlu0.b32.cont [15/16] 0.0, 128
        %1488 = vxpose.xlu0.b32.end [16/16] 0.0, 128
        %v1489 = vpop.trf.xlu0
        %v1490 = vpop.trf.xlu0
        %v1491 = vpop.trf.xlu0
        %v1492 = vpop.trf.xlu0
        %v1493 = vpop.trf.xlu0
        %v1494 = vpop.trf.xlu0
        %v1495 = vpop.trf.xlu0
        %v1496 = vpop.trf.xlu0
        %v1497 = vpop.trf.xlu0
        %v1498 = vpop.trf.xlu0
        %v1499 = vpop.trf.xlu0
        %v1500 = vpop.trf.xlu0
        %v1501 = vpop.trf.xlu0
        %v1502 = vpop.trf.xlu0
        %v1503 = vpop.trf.xlu0
        %v1504 = vpop.trf.xlu0
        %1505 = vxpose.xlu0.b32.start [1/16] %v1109, 128
        %1506 = vxpose.xlu0.b32.cont [2/16] 0.0, 128
        %1507 = vxpose.xlu0.b32.cont [3/16] 0.0, 128
        %1508 = vxpose.xlu0.b32.cont [4/16] 0.0, 128
        %1509 = vxpose.xlu0.b32.cont [5/16] 0.0, 128
        %1510 = vxpose.xlu0.b32.cont [6/16] 0.0, 128
        %1511 = vxpose.xlu0.b32.cont [7/16] 0.0, 128
        %1512 = vxpose.xlu0.b32.cont [8/16] 0.0, 128
        %1513 = vxpose.xlu0.b32.cont [9/16] 0.0, 128
        %1514 = vxpose.xlu0.b32.cont [10/16] 0.0, 128
        %1515 = vxpose.xlu0.b32.cont [11/16] 0.0, 128
        %1516 = vxpose.xlu0.b32.cont [12/16] 0.0, 128
        %1517 = vxpose.xlu0.b32.cont [13/16] 0.0, 128
        %1518 = vxpose.xlu0.b32.cont [14/16] 0.0, 128
        %1519 = vxpose.xlu0.b32.cont [15/16] 0.0, 128
        %1520 = vxpose.xlu0.b32.end [16/16] 0.0, 128
        %v1521 = vpop.trf.xlu0
        %v1522 = vpop.trf.xlu0
        %v1523 = vpop.trf.xlu0
        %v1524 = vpop.trf.xlu0
        %v1525 = vpop.trf.xlu0
        %v1526 = vpop.trf.xlu0
        %v1527 = vpop.trf.xlu0
        %v1528 = vpop.trf.xlu0
        %v1529 = vpop.trf.xlu0
        %v1530 = vpop.trf.xlu0
        %v1531 = vpop.trf.xlu0
        %v1532 = vpop.trf.xlu0
        %v1533 = vpop.trf.xlu0
        %v1534 = vpop.trf.xlu0
        %v1535 = vpop.trf.xlu0
        %v1536 = vpop.trf.xlu0
        %1537 = vxpose.xlu0.b32.start [1/16] %v1110, 128
        %1538 = vxpose.xlu0.b32.cont [2/16] 0.0, 128
        %1539 = vxpose.xlu0.b32.cont [3/16] 0.0, 128
        %1540 = vxpose.xlu0.b32.cont [4/16] 0.0, 128
        %1541 = vxpose.xlu0.b32.cont [5/16] 0.0, 128
        %1542 = vxpose.xlu0.b32.cont [6/16] 0.0, 128
        %1543 = vxpose.xlu0.b32.cont [7/16] 0.0, 128
        %1544 = vxpose.xlu0.b32.cont [8/16] 0.0, 128
        %1545 = vxpose.xlu0.b32.cont [9/16] 0.0, 128
        %1546 = vxpose.xlu0.b32.cont [10/16] 0.0, 128
        %1547 = vxpose.xlu0.b32.cont [11/16] 0.0, 128
        %1548 = vxpose.xlu0.b32.cont [12/16] 0.0, 128
        %1549 = vxpose.xlu0.b32.cont [13/16] 0.0, 128
        %1550 = vxpose.xlu0.b32.cont [14/16] 0.0, 128
        %1551 = vxpose.xlu0.b32.cont [15/16] 0.0, 128
        %1552 = vxpose.xlu0.b32.end [16/16] 0.0, 128
        %v1553 = vpop.trf.xlu0
        %v1554 = vpop.trf.xlu0
        %v1555 = vpop.trf.xlu0
        %v1556 = vpop.trf.xlu0
        %v1557 = vpop.trf.xlu0
        %v1558 = vpop.trf.xlu0
        %v1559 = vpop.trf.xlu0
        %v1560 = vpop.trf.xlu0
        %v1561 = vpop.trf.xlu0
        %v1562 = vpop.trf.xlu0
        %v1563 = vpop.trf.xlu0
        %v1564 = vpop.trf.xlu0
        %v1565 = vpop.trf.xlu0
        %v1566 = vpop.trf.xlu0
        %v1567 = vpop.trf.xlu0
        %v1568 = vpop.trf.xlu0
        %1569 = vxpose.xlu0.b32.start [1/16] %v1111, 128
        %1570 = vxpose.xlu0.b32.cont [2/16] 0.0, 128
        %1571 = vxpose.xlu0.b32.cont [3/16] 0.0, 128
        %1572 = vxpose.xlu0.b32.cont [4/16] 0.0, 128
        %1573 = vxpose.xlu0.b32.cont [5/16] 0.0, 128
        %1574 = vxpose.xlu0.b32.cont [6/16] 0.0, 128
        %1575 = vxpose.xlu0.b32.cont [7/16] 0.0, 128
        %1576 = vxpose.xlu0.b32.cont [8/16] 0.0, 128
        %1577 = vxpose.xlu0.b32.cont [9/16] 0.0, 128
        %1578 = vxpose.xlu0.b32.cont [10/16] 0.0, 128
        %1579 = vxpose.xlu0.b32.cont [11/16] 0.0, 128
        %1580 = vxpose.xlu0.b32.cont [12/16] 0.0, 128
        %1581 = vxpose.xlu0.b32.cont [13/16] 0.0, 128
        %1582 = vxpose.xlu0.b32.cont [14/16] 0.0, 128
        %1583 = vxpose.xlu0.b32.cont [15/16] 0.0, 128
        %1584 = vxpose.xlu0.b32.end [16/16] 0.0, 128
        %v1585 = vpop.trf.xlu0
        %v1586 = vpop.trf.xlu0
        %v1587 = vpop.trf.xlu0
        %v1588 = vpop.trf.xlu0
        %v1589 = vpop.trf.xlu0
        %v1590 = vpop.trf.xlu0
        %v1591 = vpop.trf.xlu0
        %v1592 = vpop.trf.xlu0
        %v1593 = vpop.trf.xlu0
        %v1594 = vpop.trf.xlu0
        %v1595 = vpop.trf.xlu0
        %v1596 = vpop.trf.xlu0
        %v1597 = vpop.trf.xlu0
        %v1598 = vpop.trf.xlu0
        %v1599 = vpop.trf.xlu0
        %v1600 = vpop.trf.xlu0
        %1601 = vxpose.xlu0.b32.start [1/16] %v1112, 128
        %1602 = vxpose.xlu0.b32.cont [2/16] 0.0, 128
        %1603 = vxpose.xlu0.b32.cont [3/16] 0.0, 128
        %1604 = vxpose.xlu0.b32.cont [4/16] 0.0, 128
        %1605 = vxpose.xlu0.b32.cont [5/16] 0.0, 128
        %1606 = vxpose.xlu0.b32.cont [6/16] 0.0, 128
        %1607 = vxpose.xlu0.b32.cont [7/16] 0.0, 128
        %1608 = vxpose.xlu0.b32.cont [8/16] 0.0, 128
        %1609 = vxpose.xlu0.b32.cont [9/16] 0.0, 128
        %1610 = vxpose.xlu0.b32.cont [10/16] 0.0, 128
        %1611 = vxpose.xlu0.b32.cont [11/16] 0.0, 128
        %1612 = vxpose.xlu0.b32.cont [12/16] 0.0, 128
        %1613 = vxpose.xlu0.b32.cont [13/16] 0.0, 128
        %1614 = vxpose.xlu0.b32.cont [14/16] 0.0, 128
        %1615 = vxpose.xlu0.b32.cont [15/16] 0.0, 128
        %1616 = vxpose.xlu0.b32.end [16/16] 0.0, 128
        %v1617 = vpop.trf.xlu0
        %v1618 = vpop.trf.xlu0
        %v1619 = vpop.trf.xlu0
        %v1620 = vpop.trf.xlu0
        %v1621 = vpop.trf.xlu0
        %v1622 = vpop.trf.xlu0
        %v1623 = vpop.trf.xlu0
        %v1624 = vpop.trf.xlu0
        %v1625 = vpop.trf.xlu0
        %v1626 = vpop.trf.xlu0
        %v1627 = vpop.trf.xlu0
        %v1628 = vpop.trf.xlu0
        %v1629 = vpop.trf.xlu0
        %v1630 = vpop.trf.xlu0
        %v1631 = vpop.trf.xlu0
        %v1632 = vpop.trf.xlu0
        %1633 = vxpose.xlu0.b32.start [1/16] %v1113, 128
        %1634 = vxpose.xlu0.b32.cont [2/16] 0.0, 128
        %1635 = vxpose.xlu0.b32.cont [3/16] 0.0, 128
        %1636 = vxpose.xlu0.b32.cont [4/16] 0.0, 128
        %1637 = vxpose.xlu0.b32.cont [5/16] 0.0, 128
        %1638 = vxpose.xlu0.b32.cont [6/16] 0.0, 128
        %1639 = vxpose.xlu0.b32.cont [7/16] 0.0, 128
        %1640 = vxpose.xlu0.b32.cont [8/16] 0.0, 128
        %1641 = vxpose.xlu0.b32.cont [9/16] 0.0, 128
        %1642 = vxpose.xlu0.b32.cont [10/16] 0.0, 128
        %1643 = vxpose.xlu0.b32.cont [11/16] 0.0, 128
        %1644 = vxpose.xlu0.b32.cont [12/16] 0.0, 128
        %1645 = vxpose.xlu0.b32.cont [13/16] 0.0, 128
        %1646 = vxpose.xlu0.b32.cont [14/16] 0.0, 128
        %1647 = vxpose.xlu0.b32.cont [15/16] 0.0, 128
        %1648 = vxpose.xlu0.b32.end [16/16] 0.0, 128
        %v1649 = vpop.trf.xlu0
        %v1650 = vpop.trf.xlu0
        %v1651 = vpop.trf.xlu0
        %v1652 = vpop.trf.xlu0
        %v1653 = vpop.trf.xlu0
        %v1654 = vpop.trf.xlu0
        %v1655 = vpop.trf.xlu0
        %v1656 = vpop.trf.xlu0
        %v1657 = vpop.trf.xlu0
        %v1658 = vpop.trf.xlu0
        %v1659 = vpop.trf.xlu0
        %v1660 = vpop.trf.xlu0
        %v1661 = vpop.trf.xlu0
        %v1662 = vpop.trf.xlu0
        %v1663 = vpop.trf.xlu0
        %v1664 = vpop.trf.xlu0
        %1665 = vxpose.xlu0.b32.start [1/16] %v1114, 128
        %1666 = vxpose.xlu0.b32.cont [2/16] 0.0, 128
        %1667 = vxpose.xlu0.b32.cont [3/16] 0.0, 128
        %1668 = vxpose.xlu0.b32.cont [4/16] 0.0, 128
        %1669 = vxpose.xlu0.b32.cont [5/16] 0.0, 128
        %1670 = vxpose.xlu0.b32.cont [6/16] 0.0, 128
        %1671 = vxpose.xlu0.b32.cont [7/16] 0.0, 128
        %1672 = vxpose.xlu0.b32.cont [8/16] 0.0, 128
        %1673 = vxpose.xlu0.b32.cont [9/16] 0.0, 128
        %1674 = vxpose.xlu0.b32.cont [10/16] 0.0, 128
        %1675 = vxpose.xlu0.b32.cont [11/16] 0.0, 128
        %1676 = vxpose.xlu0.b32.cont [12/16] 0.0, 128
        %1677 = vxpose.xlu0.b32.cont [13/16] 0.0, 128
        %1678 = vxpose.xlu0.b32.cont [14/16] 0.0, 128
        %1679 = vxpose.xlu0.b32.cont [15/16] 0.0, 128
        %1680 = vxpose.xlu0.b32.end [16/16] 0.0, 128
        %v1681 = vpop.trf.xlu0
        %v1682 = vpop.trf.xlu0
        %v1683 = vpop.trf.xlu0
        %v1684 = vpop.trf.xlu0
        %v1685 = vpop.trf.xlu0
        %v1686 = vpop.trf.xlu0
        %v1687 = vpop.trf.xlu0
        %v1688 = vpop.trf.xlu0
        %v1689 = vpop.trf.xlu0
        %v1690 = vpop.trf.xlu0
        %v1691 = vpop.trf.xlu0
        %v1692 = vpop.trf.xlu0
        %v1693 = vpop.trf.xlu0
        %v1694 = vpop.trf.xlu0
        %v1695 = vpop.trf.xlu0
        %v1696 = vpop.trf.xlu0
        %1697 = vxpose.xlu0.b32.start [1/16] %v1115, 128
        %1698 = vxpose.xlu0.b32.cont [2/16] 0.0, 128
        %1699 = vxpose.xlu0.b32.cont [3/16] 0.0, 128
        %1700 = vxpose.xlu0.b32.cont [4/16] 0.0, 128
        %1701 = vxpose.xlu0.b32.cont [5/16] 0.0, 128
        %1702 = vxpose.xlu0.b32.cont [6/16] 0.0, 128
        %1703 = vxpose.xlu0.b32.cont [7/16] 0.0, 128
        %1704 = vxpose.xlu0.b32.cont [8/16] 0.0, 128
        %1705 = vxpose.xlu0.b32.cont [9/16] 0.0, 128
        %1706 = vxpose.xlu0.b32.cont [10/16] 0.0, 128
        %1707 = vxpose.xlu0.b32.cont [11/16] 0.0, 128
        %1708 = vxpose.xlu0.b32.cont [12/16] 0.0, 128
        %1709 = vxpose.xlu0.b32.cont [13/16] 0.0, 128
        %1710 = vxpose.xlu0.b32.cont [14/16] 0.0, 128
        %1711 = vxpose.xlu0.b32.cont [15/16] 0.0, 128
        %1712 = vxpose.xlu0.b32.end [16/16] 0.0, 128
        %v1713 = vpop.trf.xlu0
        %v1714 = vpop.trf.xlu0
        %v1715 = vpop.trf.xlu0
        %v1716 = vpop.trf.xlu0
        %v1717 = vpop.trf.xlu0
        %v1718 = vpop.trf.xlu0
        %v1719 = vpop.trf.xlu0
        %v1720 = vpop.trf.xlu0
        %v1721 = vpop.trf.xlu0
        %v1722 = vpop.trf.xlu0
        %v1723 = vpop.trf.xlu0
        %v1724 = vpop.trf.xlu0
        %v1725 = vpop.trf.xlu0
        %v1726 = vpop.trf.xlu0
        %v1727 = vpop.trf.xlu0
        %v1728 = vpop.trf.xlu0
        %1729 = vxpose.xlu0.b32.start [1/16] %v1116, 128
        %1730 = vxpose.xlu0.b32.cont [2/16] 0.0, 128
        %1731 = vxpose.xlu0.b32.cont [3/16] 0.0, 128
        %1732 = vxpose.xlu0.b32.cont [4/16] 0.0, 128
        %1733 = vxpose.xlu0.b32.cont [5/16] 0.0, 128
        %1734 = vxpose.xlu0.b32.cont [6/16] 0.0, 128
        %1735 = vxpose.xlu0.b32.cont [7/16] 0.0, 128
        %1736 = vxpose.xlu0.b32.cont [8/16] 0.0, 128
        %1737 = vxpose.xlu0.b32.cont [9/16] 0.0, 128
        %1738 = vxpose.xlu0.b32.cont [10/16] 0.0, 128
        %1739 = vxpose.xlu0.b32.cont [11/16] 0.0, 128
        %1740 = vxpose.xlu0.b32.cont [12/16] 0.0, 128
        %1741 = vxpose.xlu0.b32.cont [13/16] 0.0, 128
        %1742 = vxpose.xlu0.b32.cont [14/16] 0.0, 128
        %1743 = vxpose.xlu0.b32.cont [15/16] 0.0, 128
        %1744 = vxpose.xlu0.b32.end [16/16] 0.0, 128
        %v1745 = vpop.trf.xlu0
        %v1746 = vpop.trf.xlu0
        %v1747 = vpop.trf.xlu0
        %v1748 = vpop.trf.xlu0
        %v1749 = vpop.trf.xlu0
        %v1750 = vpop.trf.xlu0
        %v1751 = vpop.trf.xlu0
        %v1752 = vpop.trf.xlu0
        %v1753 = vpop.trf.xlu0
        %v1754 = vpop.trf.xlu0
        %v1755 = vpop.trf.xlu0
        %v1756 = vpop.trf.xlu0
        %v1757 = vpop.trf.xlu0
        %v1758 = vpop.trf.xlu0
        %v1759 = vpop.trf.xlu0
        %v1760 = vpop.trf.xlu0
        %1761 = vxpose.xlu0.b32.start [1/16] %v1117, 128
        %1762 = vxpose.xlu0.b32.cont [2/16] 0.0, 128
        %1763 = vxpose.xlu0.b32.cont [3/16] 0.0, 128
        %1764 = vxpose.xlu0.b32.cont [4/16] 0.0, 128
        %1765 = vxpose.xlu0.b32.cont [5/16] 0.0, 128
        %1766 = vxpose.xlu0.b32.cont [6/16] 0.0, 128
        %1767 = vxpose.xlu0.b32.cont [7/16] 0.0, 128
        %1768 = vxpose.xlu0.b32.cont [8/16] 0.0, 128
        %1769 = vxpose.xlu0.b32.cont [9/16] 0.0, 128
        %1770 = vxpose.xlu0.b32.cont [10/16] 0.0, 128
        %1771 = vxpose.xlu0.b32.cont [11/16] 0.0, 128
        %1772 = vxpose.xlu0.b32.cont [12/16] 0.0, 128
        %1773 = vxpose.xlu0.b32.cont [13/16] 0.0, 128
        %1774 = vxpose.xlu0.b32.cont [14/16] 0.0, 128
        %1775 = vxpose.xlu0.b32.cont [15/16] 0.0, 128
        %1776 = vxpose.xlu0.b32.end [16/16] 0.0, 128
        %v1777 = vpop.trf.xlu0
        %v1778 = vpop.trf.xlu0
        %v1779 = vpop.trf.xlu0
        %v1780 = vpop.trf.xlu0
        %v1781 = vpop.trf.xlu0
        %v1782 = vpop.trf.xlu0
        %v1783 = vpop.trf.xlu0
        %v1784 = vpop.trf.xlu0
        %v1785 = vpop.trf.xlu0
        %v1786 = vpop.trf.xlu0
        %v1787 = vpop.trf.xlu0
        %v1788 = vpop.trf.xlu0
        %v1789 = vpop.trf.xlu0
        %v1790 = vpop.trf.xlu0
        %v1791 = vpop.trf.xlu0
        %v1792 = vpop.trf.xlu0
        %1793 = vxpose.xlu0.b32.start [1/16] %v1118, 128
        %1794 = vxpose.xlu0.b32.cont [2/16] 0.0, 128
        %1795 = vxpose.xlu0.b32.cont [3/16] 0.0, 128
        %1796 = vxpose.xlu0.b32.cont [4/16] 0.0, 128
        %1797 = vxpose.xlu0.b32.cont [5/16] 0.0, 128
        %1798 = vxpose.xlu0.b32.cont [6/16] 0.0, 128
        %1799 = vxpose.xlu0.b32.cont [7/16] 0.0, 128
        %1800 = vxpose.xlu0.b32.cont [8/16] 0.0, 128
        %1801 = vxpose.xlu0.b32.cont [9/16] 0.0, 128
        %1802 = vxpose.xlu0.b32.cont [10/16] 0.0, 128
        %1803 = vxpose.xlu0.b32.cont [11/16] 0.0, 128
        %1804 = vxpose.xlu0.b32.cont [12/16] 0.0, 128
        %1805 = vxpose.xlu0.b32.cont [13/16] 0.0, 128
        %1806 = vxpose.xlu0.b32.cont [14/16] 0.0, 128
        %1807 = vxpose.xlu0.b32.cont [15/16] 0.0, 128
        %1808 = vxpose.xlu0.b32.end [16/16] 0.0, 128
        %v1809 = vpop.trf.xlu0
        %v1810 = vpop.trf.xlu0
        %v1811 = vpop.trf.xlu0
        %v1812 = vpop.trf.xlu0
        %v1813 = vpop.trf.xlu0
        %v1814 = vpop.trf.xlu0
        %v1815 = vpop.trf.xlu0
        %v1816 = vpop.trf.xlu0
        %v1817 = vpop.trf.xlu0
        %v1818 = vpop.trf.xlu0
        %v1819 = vpop.trf.xlu0
        %v1820 = vpop.trf.xlu0
        %v1821 = vpop.trf.xlu0
        %v1822 = vpop.trf.xlu0
        %v1823 = vpop.trf.xlu0
        %v1824 = vpop.trf.xlu0
        %1825 = vxpose.xlu0.b32.start [1/16] %v1119, 128
        %1826 = vxpose.xlu0.b32.cont [2/16] 0.0, 128
        %1827 = vxpose.xlu0.b32.cont [3/16] 0.0, 128
        %1828 = vxpose.xlu0.b32.cont [4/16] 0.0, 128
        %1829 = vxpose.xlu0.b32.cont [5/16] 0.0, 128
        %1830 = vxpose.xlu0.b32.cont [6/16] 0.0, 128
        %1831 = vxpose.xlu0.b32.cont [7/16] 0.0, 128
        %1832 = vxpose.xlu0.b32.cont [8/16] 0.0, 128
        %1833 = vxpose.xlu0.b32.cont [9/16] 0.0, 128
        %1834 = vxpose.xlu0.b32.cont [10/16] 0.0, 128
        %1835 = vxpose.xlu0.b32.cont [11/16] 0.0, 128
        %1836 = vxpose.xlu0.b32.cont [12/16] 0.0, 128
        %1837 = vxpose.xlu0.b32.cont [13/16] 0.0, 128
        %1838 = vxpose.xlu0.b32.cont [14/16] 0.0, 128
        %1839 = vxpose.xlu0.b32.cont [15/16] 0.0, 128
        %1840 = vxpose.xlu0.b32.end [16/16] 0.0, 128
        %v1841 = vpop.trf.xlu0
        %v1842 = vpop.trf.xlu0
        %v1843 = vpop.trf.xlu0
        %v1844 = vpop.trf.xlu0
        %v1845 = vpop.trf.xlu0
        %v1846 = vpop.trf.xlu0
        %v1847 = vpop.trf.xlu0
        %v1848 = vpop.trf.xlu0
        %v1849 = vpop.trf.xlu0
        %v1850 = vpop.trf.xlu0
        %v1851 = vpop.trf.xlu0
        %v1852 = vpop.trf.xlu0
        %v1853 = vpop.trf.xlu0
        %v1854 = vpop.trf.xlu0
        %v1855 = vpop.trf.xlu0
        %v1856 = vpop.trf.xlu0
        %1857 = vxpose.xlu0.b32.start [1/16] %v1120, 128
        %1858 = vxpose.xlu0.b32.cont [2/16] 0.0, 128
        %1859 = vxpose.xlu0.b32.cont [3/16] 0.0, 128
        %1860 = vxpose.xlu0.b32.cont [4/16] 0.0, 128
        %1861 = vxpose.xlu0.b32.cont [5/16] 0.0, 128
        %1862 = vxpose.xlu0.b32.cont [6/16] 0.0, 128
        %1863 = vxpose.xlu0.b32.cont [7/16] 0.0, 128
        %1864 = vxpose.xlu0.b32.cont [8/16] 0.0, 128
        %1865 = vxpose.xlu0.b32.cont [9/16] 0.0, 128
        %1866 = vxpose.xlu0.b32.cont [10/16] 0.0, 128
        %1867 = vxpose.xlu0.b32.cont [11/16] 0.0, 128
        %1868 = vxpose.xlu0.b32.cont [12/16] 0.0, 128
        %1869 = vxpose.xlu0.b32.cont [13/16] 0.0, 128
        %1870 = vxpose.xlu0.b32.cont [14/16] 0.0, 128
        %1871 = vxpose.xlu0.b32.cont [15/16] 0.0, 128
        %1872 = vxpose.xlu0.b32.end [16/16] 0.0, 128
        %v1873 = vpop.trf.xlu0
        %v1874 = vpop.trf.xlu0
        %v1875 = vpop.trf.xlu0
        %v1876 = vpop.trf.xlu0
        %v1877 = vpop.trf.xlu0
        %v1878 = vpop.trf.xlu0
        %v1879 = vpop.trf.xlu0
        %v1880 = vpop.trf.xlu0
        %v1881 = vpop.trf.xlu0
        %v1882 = vpop.trf.xlu0
        %v1883 = vpop.trf.xlu0
        %v1884 = vpop.trf.xlu0
        %v1885 = vpop.trf.xlu0
        %v1886 = vpop.trf.xlu0
        %v1887 = vpop.trf.xlu0
        %v1888 = vpop.trf.xlu0
        %1889 = vxpose.xlu0.b32.start [1/16] %v1137, 128
        %1890 = vxpose.xlu0.b32.cont [2/16] %v1169, 128
        %1891 = vxpose.xlu0.b32.cont [3/16] %v1201, 128
        %1892 = vxpose.xlu0.b32.cont [4/16] %v1233, 128
        %1893 = vxpose.xlu0.b32.cont [5/16] %v1265, 128
        %1894 = vxpose.xlu0.b32.cont [6/16] %v1297, 128
        %1895 = vxpose.xlu0.b32.cont [7/16] %v1329, 128
        %1896 = vxpose.xlu0.b32.cont [8/16] %v1361, 128
        %1897 = vxpose.xlu0.b32.cont [9/16] %v1393, 128
        %1898 = vxpose.xlu0.b32.cont [10/16] %v1425, 128
        %1899 = vxpose.xlu0.b32.cont [11/16] %v1457, 128
        %1900 = vxpose.xlu0.b32.cont [12/16] %v1489, 128
        %1901 = vxpose.xlu0.b32.cont [13/16] %v1521, 128
        %1902 = vxpose.xlu0.b32.cont [14/16] %v1553, 128
        %1903 = vxpose.xlu0.b32.cont [15/16] %v1585, 128
        %1904 = vxpose.xlu0.b32.end [16/16] %v1617, 128
        %v1905 = vpop.trf.xlu0
        %v1906 = vpop.trf.xlu0
        %v1907 = vpop.trf.xlu0
        %v1908 = vpop.trf.xlu0
        %v1909 = vpop.trf.xlu0
        %v1910 = vpop.trf.xlu0
        %v1911 = vpop.trf.xlu0
        %v1912 = vpop.trf.xlu0
        %v1913 = vpop.trf.xlu0
        %v1914 = vpop.trf.xlu0
        %v1915 = vpop.trf.xlu0
        %v1916 = vpop.trf.xlu0
        %v1917 = vpop.trf.xlu0
        %v1918 = vpop.trf.xlu0
        %v1919 = vpop.trf.xlu0
        %v1920 = vpop.trf.xlu0
        %1921 = vxpose.xlu0.b32.start [1/16] %v1649, 128
        %1922 = vxpose.xlu0.b32.cont [2/16] %v1681, 128
        %1923 = vxpose.xlu0.b32.cont [3/16] %v1713, 128
        %1924 = vxpose.xlu0.b32.cont [4/16] %v1745, 128
        %1925 = vxpose.xlu0.b32.cont [5/16] %v1777, 128
        %1926 = vxpose.xlu0.b32.cont [6/16] %v1809, 128
        %1927 = vxpose.xlu0.b32.cont [7/16] %v1841, 128
        %1928 = vxpose.xlu0.b32.cont [8/16] %v1873, 128
        %1929 = vxpose.xlu0.b32.cont [9/16] 0.0, 128
        %1930 = vxpose.xlu0.b32.cont [10/16] 0.0, 128
        %1931 = vxpose.xlu0.b32.cont [11/16] 0.0, 128
        %1932 = vxpose.xlu0.b32.cont [12/16] 0.0, 128
        %1933 = vxpose.xlu0.b32.cont [13/16] 0.0, 128
        %1934 = vxpose.xlu0.b32.cont [14/16] 0.0, 128
        %1935 = vxpose.xlu0.b32.cont [15/16] 0.0, 128
        %1936 = vxpose.xlu0.b32.end [16/16] 0.0, 128
        %v1937 = vpop.trf.xlu0
        %v1938 = vpop.trf.xlu0
        %v1939 = vpop.trf.xlu0
        %v1940 = vpop.trf.xlu0
        %v1941 = vpop.trf.xlu0
        %v1942 = vpop.trf.xlu0
        %v1943 = vpop.trf.xlu0
        %v1944 = vpop.trf.xlu0
        %v1945 = vpop.trf.xlu0
        %v1946 = vpop.trf.xlu0
        %v1947 = vpop.trf.xlu0
        %v1948 = vpop.trf.xlu0
        %v1949 = vpop.trf.xlu0
        %v1950 = vpop.trf.xlu0
        %v1951 = vpop.trf.xlu0
        %v1952 = vpop.trf.xlu0
        %1953 = vst [vmem:[#allocation2 + $0x10] sm:$0xff] %v1905
        %1954 = vst.msk [vmem:[#allocation2 + $0x18] sm:$0xff] %vm1094, %v1937
        %s1955 = scalar_lea.vmem %s204, 128 [#allocation3]
        %v1956 = vld [vmem:[%s1955] sm:$0xff]
        %v1957 = vld [vmem:[%s1955 + $0x8] sm:$0xff]
        %v1958 = vld [vmem:[%s1955 + $0x10] sm:$0xff]
        %v1959 = vld [vmem:[%s1955 + $0x18] sm:$0xff]
        %v1960 = vld [vmem:[%s1955 + $0x20] sm:$0xff]
        %v1961 = vld [vmem:[%s1955 + $0x28] sm:$0xff]
        %v1962 = vld [vmem:[%s1955 + $0x30] sm:$0xff]
        %v1963 = vld [vmem:[%s1955 + $0x38] sm:$0xff]
        %v1964 = vld [vmem:[%s1955 + $0x200] sm:$0xff]
        %v1965 = vld [vmem:[%s1955 + $0x208] sm:$0xff]
        %v1966 = vld [vmem:[%s1955 + $0x210] sm:$0xff]
        %v1967 = vld [vmem:[%s1955 + $0x218] sm:$0xff]
        %v1968 = vld [vmem:[%s1955 + $0x220] sm:$0xff]
        %v1969 = vld [vmem:[%s1955 + $0x228] sm:$0xff]
        %v1970 = vld [vmem:[%s1955 + $0x230] sm:$0xff]
        %v1971 = vld [vmem:[%s1955 + $0x238] sm:$0xff]
        %v1972 = vld [vmem:[%s1955 + $0x400] sm:$0xff]
        %v1973 = vld [vmem:[%s1955 + $0x408] sm:$0xff]
        %v1974 = vld [vmem:[%s1955 + $0x410] sm:$0xff]
        %v1975 = vld [vmem:[%s1955 + $0x418] sm:$0xff]
        %v1976 = vld [vmem:[%s1955 + $0x420] sm:$0xff]
        %v1977 = vld [vmem:[%s1955 + $0x428] sm:$0xff]
        %v1978 = vld [vmem:[%s1955 + $0x430] sm:$0xff]
        %v1979 = vld [vmem:[%s1955 + $0x438] sm:$0xff]
        %1980 = vxpose.xlu0.b32.start [1/16] %v1956, 128
        %1981 = vxpose.xlu0.b32.cont [2/16] 0.0, 128
        %1982 = vxpose.xlu0.b32.cont [3/16] 0.0, 128
        %1983 = vxpose.xlu0.b32.cont [4/16] 0.0, 128
        %1984 = vxpose.xlu0.b32.cont [5/16] 0.0, 128
        %1985 = vxpose.xlu0.b32.cont [6/16] 0.0, 128
        %1986 = vxpose.xlu0.b32.cont [7/16] 0.0, 128
        %1987 = vxpose.xlu0.b32.cont [8/16] 0.0, 128
        %1988 = vxpose.xlu0.b32.cont [9/16] 0.0, 128
        %1989 = vxpose.xlu0.b32.cont [10/16] 0.0, 128
        %1990 = vxpose.xlu0.b32.cont [11/16] 0.0, 128
        %1991 = vxpose.xlu0.b32.cont [12/16] 0.0, 128
        %1992 = vxpose.xlu0.b32.cont [13/16] 0.0, 128
        %1993 = vxpose.xlu0.b32.cont [14/16] 0.0, 128
        %1994 = vxpose.xlu0.b32.cont [15/16] 0.0, 128
        %1995 = vxpose.xlu0.b32.end [16/16] 0.0, 128
        %v1996 = vpop.trf.xlu0
        %v1997 = vpop.trf.xlu0
        %v1998 = vpop.trf.xlu0
        %v1999 = vpop.trf.xlu0
        %v2000 = vpop.trf.xlu0
        %v2001 = vpop.trf.xlu0
        %v2002 = vpop.trf.xlu0
        %v2003 = vpop.trf.xlu0
        %v2004 = vpop.trf.xlu0
        %v2005 = vpop.trf.xlu0
        %v2006 = vpop.trf.xlu0
        %v2007 = vpop.trf.xlu0
        %v2008 = vpop.trf.xlu0
        %v2009 = vpop.trf.xlu0
        %v2010 = vpop.trf.xlu0
        %v2011 = vpop.trf.xlu0
        %2012 = vxpose.xlu0.b32.start [1/16] %v1957, 128
        %2013 = vxpose.xlu0.b32.cont [2/16] 0.0, 128
        %2014 = vxpose.xlu0.b32.cont [3/16] 0.0, 128
        %2015 = vxpose.xlu0.b32.cont [4/16] 0.0, 128
        %2016 = vxpose.xlu0.b32.cont [5/16] 0.0, 128
        %2017 = vxpose.xlu0.b32.cont [6/16] 0.0, 128
        %2018 = vxpose.xlu0.b32.cont [7/16] 0.0, 128
        %2019 = vxpose.xlu0.b32.cont [8/16] 0.0, 128
        %2020 = vxpose.xlu0.b32.cont [9/16] 0.0, 128
        %2021 = vxpose.xlu0.b32.cont [10/16] 0.0, 128
        %2022 = vxpose.xlu0.b32.cont [11/16] 0.0, 128
        %2023 = vxpose.xlu0.b32.cont [12/16] 0.0, 128
        %2024 = vxpose.xlu0.b32.cont [13/16] 0.0, 128
        %2025 = vxpose.xlu0.b32.cont [14/16] 0.0, 128
        %2026 = vxpose.xlu0.b32.cont [15/16] 0.0, 128
        %2027 = vxpose.xlu0.b32.end [16/16] 0.0, 128
        %v2028 = vpop.trf.xlu0
        %v2029 = vpop.trf.xlu0
        %v2030 = vpop.trf.xlu0
        %v2031 = vpop.trf.xlu0
        %v2032 = vpop.trf.xlu0
        %v2033 = vpop.trf.xlu0
        %v2034 = vpop.trf.xlu0
        %v2035 = vpop.trf.xlu0
        %v2036 = vpop.trf.xlu0
        %v2037 = vpop.trf.xlu0
        %v2038 = vpop.trf.xlu0
        %v2039 = vpop.trf.xlu0
        %v2040 = vpop.trf.xlu0
        %v2041 = vpop.trf.xlu0
        %v2042 = vpop.trf.xlu0
        %v2043 = vpop.trf.xlu0
        %2044 = vxpose.xlu0.b32.start [1/16] %v1958, 128
        %2045 = vxpose.xlu0.b32.cont [2/16] 0.0, 128
        %2046 = vxpose.xlu0.b32.cont [3/16] 0.0, 128
        %2047 = vxpose.xlu0.b32.cont [4/16] 0.0, 128
        %2048 = vxpose.xlu0.b32.cont [5/16] 0.0, 128
        %2049 = vxpose.xlu0.b32.cont [6/16] 0.0, 128
        %2050 = vxpose.xlu0.b32.cont [7/16] 0.0, 128
        %2051 = vxpose.xlu0.b32.cont [8/16] 0.0, 128
        %2052 = vxpose.xlu0.b32.cont [9/16] 0.0, 128
        %2053 = vxpose.xlu0.b32.cont [10/16] 0.0, 128
        %2054 = vxpose.xlu0.b32.cont [11/16] 0.0, 128
        %2055 = vxpose.xlu0.b32.cont [12/16] 0.0, 128
        %2056 = vxpose.xlu0.b32.cont [13/16] 0.0, 128
        %2057 = vxpose.xlu0.b32.cont [14/16] 0.0, 128
        %2058 = vxpose.xlu0.b32.cont [15/16] 0.0, 128
        %2059 = vxpose.xlu0.b32.end [16/16] 0.0, 128
        %v2060 = vpop.trf.xlu0
        %v2061 = vpop.trf.xlu0
        %v2062 = vpop.trf.xlu0
        %v2063 = vpop.trf.xlu0
        %v2064 = vpop.trf.xlu0
        %v2065 = vpop.trf.xlu0
        %v2066 = vpop.trf.xlu0
        %v2067 = vpop.trf.xlu0
        %v2068 = vpop.trf.xlu0
        %v2069 = vpop.trf.xlu0
        %v2070 = vpop.trf.xlu0
        %v2071 = vpop.trf.xlu0
        %v2072 = vpop.trf.xlu0
        %v2073 = vpop.trf.xlu0
        %v2074 = vpop.trf.xlu0
        %v2075 = vpop.trf.xlu0
        %2076 = vxpose.xlu0.b32.start [1/16] %v1959, 128
        %2077 = vxpose.xlu0.b32.cont [2/16] 0.0, 128
        %2078 = vxpose.xlu0.b32.cont [3/16] 0.0, 128
        %2079 = vxpose.xlu0.b32.cont [4/16] 0.0, 128
        %2080 = vxpose.xlu0.b32.cont [5/16] 0.0, 128
        %2081 = vxpose.xlu0.b32.cont [6/16] 0.0, 128
        %2082 = vxpose.xlu0.b32.cont [7/16] 0.0, 128
        %2083 = vxpose.xlu0.b32.cont [8/16] 0.0, 128
        %2084 = vxpose.xlu0.b32.cont [9/16] 0.0, 128
        %2085 = vxpose.xlu0.b32.cont [10/16] 0.0, 128
        %2086 = vxpose.xlu0.b32.cont [11/16] 0.0, 128
        %2087 = vxpose.xlu0.b32.cont [12/16] 0.0, 128
        %2088 = vxpose.xlu0.b32.cont [13/16] 0.0, 128
        %2089 = vxpose.xlu0.b32.cont [14/16] 0.0, 128
        %2090 = vxpose.xlu0.b32.cont [15/16] 0.0, 128
        %2091 = vxpose.xlu0.b32.end [16/16] 0.0, 128
        %v2092 = vpop.trf.xlu0
        %v2093 = vpop.trf.xlu0
        %v2094 = vpop.trf.xlu0
        %v2095 = vpop.trf.xlu0
        %v2096 = vpop.trf.xlu0
        %v2097 = vpop.trf.xlu0
        %v2098 = vpop.trf.xlu0
        %v2099 = vpop.trf.xlu0
        %v2100 = vpop.trf.xlu0
        %v2101 = vpop.trf.xlu0
        %v2102 = vpop.trf.xlu0
        %v2103 = vpop.trf.xlu0
        %v2104 = vpop.trf.xlu0
        %v2105 = vpop.trf.xlu0
        %v2106 = vpop.trf.xlu0
        %v2107 = vpop.trf.xlu0
        %2108 = vxpose.xlu0.b32.start [1/16] %v1960, 128
        %2109 = vxpose.xlu0.b32.cont [2/16] 0.0, 128
        %2110 = vxpose.xlu0.b32.cont [3/16] 0.0, 128
        %2111 = vxpose.xlu0.b32.cont [4/16] 0.0, 128
        %2112 = vxpose.xlu0.b32.cont [5/16] 0.0, 128
        %2113 = vxpose.xlu0.b32.cont [6/16] 0.0, 128
        %2114 = vxpose.xlu0.b32.cont [7/16] 0.0, 128
        %2115 = vxpose.xlu0.b32.cont [8/16] 0.0, 128
        %2116 = vxpose.xlu0.b32.cont [9/16] 0.0, 128
        %2117 = vxpose.xlu0.b32.cont [10/16] 0.0, 128
        %2118 = vxpose.xlu0.b32.cont [11/16] 0.0, 128
        %2119 = vxpose.xlu0.b32.cont [12/16] 0.0, 128
        %2120 = vxpose.xlu0.b32.cont [13/16] 0.0, 128
        %2121 = vxpose.xlu0.b32.cont [14/16] 0.0, 128
        %2122 = vxpose.xlu0.b32.cont [15/16] 0.0, 128
        %2123 = vxpose.xlu0.b32.end [16/16] 0.0, 128
        %v2124 = vpop.trf.xlu0
        %v2125 = vpop.trf.xlu0
        %v2126 = vpop.trf.xlu0
        %v2127 = vpop.trf.xlu0
        %v2128 = vpop.trf.xlu0
        %v2129 = vpop.trf.xlu0
        %v2130 = vpop.trf.xlu0
        %v2131 = vpop.trf.xlu0
        %v2132 = vpop.trf.xlu0
        %v2133 = vpop.trf.xlu0
        %v2134 = vpop.trf.xlu0
        %v2135 = vpop.trf.xlu0
        %v2136 = vpop.trf.xlu0
        %v2137 = vpop.trf.xlu0
        %v2138 = vpop.trf.xlu0
        %v2139 = vpop.trf.xlu0
        %2140 = vxpose.xlu0.b32.start [1/16] %v1961, 128
        %2141 = vxpose.xlu0.b32.cont [2/16] 0.0, 128
        %2142 = vxpose.xlu0.b32.cont [3/16] 0.0, 128
        %2143 = vxpose.xlu0.b32.cont [4/16] 0.0, 128
        %2144 = vxpose.xlu0.b32.cont [5/16] 0.0, 128
        %2145 = vxpose.xlu0.b32.cont [6/16] 0.0, 128
        %2146 = vxpose.xlu0.b32.cont [7/16] 0.0, 128
        %2147 = vxpose.xlu0.b32.cont [8/16] 0.0, 128
        %2148 = vxpose.xlu0.b32.cont [9/16] 0.0, 128
        %2149 = vxpose.xlu0.b32.cont [10/16] 0.0, 128
        %2150 = vxpose.xlu0.b32.cont [11/16] 0.0, 128
        %2151 = vxpose.xlu0.b32.cont [12/16] 0.0, 128
        %2152 = vxpose.xlu0.b32.cont [13/16] 0.0, 128
        %2153 = vxpose.xlu0.b32.cont [14/16] 0.0, 128
        %2154 = vxpose.xlu0.b32.cont [15/16] 0.0, 128
        %2155 = vxpose.xlu0.b32.end [16/16] 0.0, 128
        %v2156 = vpop.trf.xlu0
        %v2157 = vpop.trf.xlu0
        %v2158 = vpop.trf.xlu0
        %v2159 = vpop.trf.xlu0
        %v2160 = vpop.trf.xlu0
        %v2161 = vpop.trf.xlu0
        %v2162 = vpop.trf.xlu0
        %v2163 = vpop.trf.xlu0
        %v2164 = vpop.trf.xlu0
        %v2165 = vpop.trf.xlu0
        %v2166 = vpop.trf.xlu0
        %v2167 = vpop.trf.xlu0
        %v2168 = vpop.trf.xlu0
        %v2169 = vpop.trf.xlu0
        %v2170 = vpop.trf.xlu0
        %v2171 = vpop.trf.xlu0
        %2172 = vxpose.xlu0.b32.start [1/16] %v1962, 128
        %2173 = vxpose.xlu0.b32.cont [2/16] 0.0, 128
        %2174 = vxpose.xlu0.b32.cont [3/16] 0.0, 128
        %2175 = vxpose.xlu0.b32.cont [4/16] 0.0, 128
        %2176 = vxpose.xlu0.b32.cont [5/16] 0.0, 128
        %2177 = vxpose.xlu0.b32.cont [6/16] 0.0, 128
        %2178 = vxpose.xlu0.b32.cont [7/16] 0.0, 128
        %2179 = vxpose.xlu0.b32.cont [8/16] 0.0, 128
        %2180 = vxpose.xlu0.b32.cont [9/16] 0.0, 128
        %2181 = vxpose.xlu0.b32.cont [10/16] 0.0, 128
        %2182 = vxpose.xlu0.b32.cont [11/16] 0.0, 128
        %2183 = vxpose.xlu0.b32.cont [12/16] 0.0, 128
        %2184 = vxpose.xlu0.b32.cont [13/16] 0.0, 128
        %2185 = vxpose.xlu0.b32.cont [14/16] 0.0, 128
        %2186 = vxpose.xlu0.b32.cont [15/16] 0.0, 128
        %2187 = vxpose.xlu0.b32.end [16/16] 0.0, 128
        %v2188 = vpop.trf.xlu0
        %v2189 = vpop.trf.xlu0
        %v2190 = vpop.trf.xlu0
        %v2191 = vpop.trf.xlu0
        %v2192 = vpop.trf.xlu0
        %v2193 = vpop.trf.xlu0
        %v2194 = vpop.trf.xlu0
        %v2195 = vpop.trf.xlu0
        %v2196 = vpop.trf.xlu0
        %v2197 = vpop.trf.xlu0
        %v2198 = vpop.trf.xlu0
        %v2199 = vpop.trf.xlu0
        %v2200 = vpop.trf.xlu0
        %v2201 = vpop.trf.xlu0
        %v2202 = vpop.trf.xlu0
        %v2203 = vpop.trf.xlu0
        %2204 = vxpose.xlu0.b32.start [1/16] %v1963, 128
        %2205 = vxpose.xlu0.b32.cont [2/16] 0.0, 128
        %2206 = vxpose.xlu0.b32.cont [3/16] 0.0, 128
        %2207 = vxpose.xlu0.b32.cont [4/16] 0.0, 128
        %2208 = vxpose.xlu0.b32.cont [5/16] 0.0, 128
        %2209 = vxpose.xlu0.b32.cont [6/16] 0.0, 128
        %2210 = vxpose.xlu0.b32.cont [7/16] 0.0, 128
        %2211 = vxpose.xlu0.b32.cont [8/16] 0.0, 128
        %2212 = vxpose.xlu0.b32.cont [9/16] 0.0, 128
        %2213 = vxpose.xlu0.b32.cont [10/16] 0.0, 128
        %2214 = vxpose.xlu0.b32.cont [11/16] 0.0, 128
        %2215 = vxpose.xlu0.b32.cont [12/16] 0.0, 128
        %2216 = vxpose.xlu0.b32.cont [13/16] 0.0, 128
        %2217 = vxpose.xlu0.b32.cont [14/16] 0.0, 128
        %2218 = vxpose.xlu0.b32.cont [15/16] 0.0, 128
        %2219 = vxpose.xlu0.b32.end [16/16] 0.0, 128
        %v2220 = vpop.trf.xlu0
        %v2221 = vpop.trf.xlu0
        %v2222 = vpop.trf.xlu0
        %v2223 = vpop.trf.xlu0
        %v2224 = vpop.trf.xlu0
        %v2225 = vpop.trf.xlu0
        %v2226 = vpop.trf.xlu0
        %v2227 = vpop.trf.xlu0
        %v2228 = vpop.trf.xlu0
        %v2229 = vpop.trf.xlu0
        %v2230 = vpop.trf.xlu0
        %v2231 = vpop.trf.xlu0
        %v2232 = vpop.trf.xlu0
        %v2233 = vpop.trf.xlu0
        %v2234 = vpop.trf.xlu0
        %v2235 = vpop.trf.xlu0
        %2236 = vxpose.xlu0.b32.start [1/16] %v1964, 128
        %2237 = vxpose.xlu0.b32.cont [2/16] 0.0, 128
        %2238 = vxpose.xlu0.b32.cont [3/16] 0.0, 128
        %2239 = vxpose.xlu0.b32.cont [4/16] 0.0, 128
        %2240 = vxpose.xlu0.b32.cont [5/16] 0.0, 128
        %2241 = vxpose.xlu0.b32.cont [6/16] 0.0, 128
        %2242 = vxpose.xlu0.b32.cont [7/16] 0.0, 128
        %2243 = vxpose.xlu0.b32.cont [8/16] 0.0, 128
        %2244 = vxpose.xlu0.b32.cont [9/16] 0.0, 128
        %2245 = vxpose.xlu0.b32.cont [10/16] 0.0, 128
        %2246 = vxpose.xlu0.b32.cont [11/16] 0.0, 128
        %2247 = vxpose.xlu0.b32.cont [12/16] 0.0, 128
        %2248 = vxpose.xlu0.b32.cont [13/16] 0.0, 128
        %2249 = vxpose.xlu0.b32.cont [14/16] 0.0, 128
        %2250 = vxpose.xlu0.b32.cont [15/16] 0.0, 128
        %2251 = vxpose.xlu0.b32.end [16/16] 0.0, 128
        %v2252 = vpop.trf.xlu0
        %v2253 = vpop.trf.xlu0
        %v2254 = vpop.trf.xlu0
        %v2255 = vpop.trf.xlu0
        %v2256 = vpop.trf.xlu0
        %v2257 = vpop.trf.xlu0
        %v2258 = vpop.trf.xlu0
        %v2259 = vpop.trf.xlu0
        %v2260 = vpop.trf.xlu0
        %v2261 = vpop.trf.xlu0
        %v2262 = vpop.trf.xlu0
        %v2263 = vpop.trf.xlu0
        %v2264 = vpop.trf.xlu0
        %v2265 = vpop.trf.xlu0
        %v2266 = vpop.trf.xlu0
        %v2267 = vpop.trf.xlu0
        %2268 = vxpose.xlu0.b32.start [1/16] %v1965, 128
        %2269 = vxpose.xlu0.b32.cont [2/16] 0.0, 128
        %2270 = vxpose.xlu0.b32.cont [3/16] 0.0, 128
        %2271 = vxpose.xlu0.b32.cont [4/16] 0.0, 128
        %2272 = vxpose.xlu0.b32.cont [5/16] 0.0, 128
        %2273 = vxpose.xlu0.b32.cont [6/16] 0.0, 128
        %2274 = vxpose.xlu0.b32.cont [7/16] 0.0, 128
        %2275 = vxpose.xlu0.b32.cont [8/16] 0.0, 128
        %2276 = vxpose.xlu0.b32.cont [9/16] 0.0, 128
        %2277 = vxpose.xlu0.b32.cont [10/16] 0.0, 128
        %2278 = vxpose.xlu0.b32.cont [11/16] 0.0, 128
        %2279 = vxpose.xlu0.b32.cont [12/16] 0.0, 128
        %2280 = vxpose.xlu0.b32.cont [13/16] 0.0, 128
        %2281 = vxpose.xlu0.b32.cont [14/16] 0.0, 128
        %2282 = vxpose.xlu0.b32.cont [15/16] 0.0, 128
        %2283 = vxpose.xlu0.b32.end [16/16] 0.0, 128
        %v2284 = vpop.trf.xlu0
        %v2285 = vpop.trf.xlu0
        %v2286 = vpop.trf.xlu0
        %v2287 = vpop.trf.xlu0
        %v2288 = vpop.trf.xlu0
        %v2289 = vpop.trf.xlu0
        %v2290 = vpop.trf.xlu0
        %v2291 = vpop.trf.xlu0
        %v2292 = vpop.trf.xlu0
        %v2293 = vpop.trf.xlu0
        %v2294 = vpop.trf.xlu0
        %v2295 = vpop.trf.xlu0
        %v2296 = vpop.trf.xlu0
        %v2297 = vpop.trf.xlu0
        %v2298 = vpop.trf.xlu0
        %v2299 = vpop.trf.xlu0
        %2300 = vxpose.xlu0.b32.start [1/16] %v1966, 128
        %2301 = vxpose.xlu0.b32.cont [2/16] 0.0, 128
        %2302 = vxpose.xlu0.b32.cont [3/16] 0.0, 128
        %2303 = vxpose.xlu0.b32.cont [4/16] 0.0, 128
        %2304 = vxpose.xlu0.b32.cont [5/16] 0.0, 128
        %2305 = vxpose.xlu0.b32.cont [6/16] 0.0, 128
        %2306 = vxpose.xlu0.b32.cont [7/16] 0.0, 128
        %2307 = vxpose.xlu0.b32.cont [8/16] 0.0, 128
        %2308 = vxpose.xlu0.b32.cont [9/16] 0.0, 128
        %2309 = vxpose.xlu0.b32.cont [10/16] 0.0, 128
        %2310 = vxpose.xlu0.b32.cont [11/16] 0.0, 128
        %2311 = vxpose.xlu0.b32.cont [12/16] 0.0, 128
        %2312 = vxpose.xlu0.b32.cont [13/16] 0.0, 128
        %2313 = vxpose.xlu0.b32.cont [14/16] 0.0, 128
        %2314 = vxpose.xlu0.b32.cont [15/16] 0.0, 128
        %2315 = vxpose.xlu0.b32.end [16/16] 0.0, 128
        %v2316 = vpop.trf.xlu0
        %v2317 = vpop.trf.xlu0
        %v2318 = vpop.trf.xlu0
        %v2319 = vpop.trf.xlu0
        %v2320 = vpop.trf.xlu0
        %v2321 = vpop.trf.xlu0
        %v2322 = vpop.trf.xlu0
        %v2323 = vpop.trf.xlu0
        %v2324 = vpop.trf.xlu0
        %v2325 = vpop.trf.xlu0
        %v2326 = vpop.trf.xlu0
        %v2327 = vpop.trf.xlu0
        %v2328 = vpop.trf.xlu0
        %v2329 = vpop.trf.xlu0
        %v2330 = vpop.trf.xlu0
        %v2331 = vpop.trf.xlu0
        %2332 = vxpose.xlu0.b32.start [1/16] %v1967, 128
        %2333 = vxpose.xlu0.b32.cont [2/16] 0.0, 128
        %2334 = vxpose.xlu0.b32.cont [3/16] 0.0, 128
        %2335 = vxpose.xlu0.b32.cont [4/16] 0.0, 128
        %2336 = vxpose.xlu0.b32.cont [5/16] 0.0, 128
        %2337 = vxpose.xlu0.b32.cont [6/16] 0.0, 128
        %2338 = vxpose.xlu0.b32.cont [7/16] 0.0, 128
        %2339 = vxpose.xlu0.b32.cont [8/16] 0.0, 128
        %2340 = vxpose.xlu0.b32.cont [9/16] 0.0, 128
        %2341 = vxpose.xlu0.b32.cont [10/16] 0.0, 128
        %2342 = vxpose.xlu0.b32.cont [11/16] 0.0, 128
        %2343 = vxpose.xlu0.b32.cont [12/16] 0.0, 128
        %2344 = vxpose.xlu0.b32.cont [13/16] 0.0, 128
        %2345 = vxpose.xlu0.b32.cont [14/16] 0.0, 128
        %2346 = vxpose.xlu0.b32.cont [15/16] 0.0, 128
        %2347 = vxpose.xlu0.b32.end [16/16] 0.0, 128
        %v2348 = vpop.trf.xlu0
        %v2349 = vpop.trf.xlu0
        %v2350 = vpop.trf.xlu0
        %v2351 = vpop.trf.xlu0
        %v2352 = vpop.trf.xlu0
        %v2353 = vpop.trf.xlu0
        %v2354 = vpop.trf.xlu0
        %v2355 = vpop.trf.xlu0
        %v2356 = vpop.trf.xlu0
        %v2357 = vpop.trf.xlu0
        %v2358 = vpop.trf.xlu0
        %v2359 = vpop.trf.xlu0
        %v2360 = vpop.trf.xlu0
        %v2361 = vpop.trf.xlu0
        %v2362 = vpop.trf.xlu0
        %v2363 = vpop.trf.xlu0
        %2364 = vxpose.xlu0.b32.start [1/16] %v1968, 128
        %2365 = vxpose.xlu0.b32.cont [2/16] 0.0, 128
        %2366 = vxpose.xlu0.b32.cont [3/16] 0.0, 128
        %2367 = vxpose.xlu0.b32.cont [4/16] 0.0, 128
        %2368 = vxpose.xlu0.b32.cont [5/16] 0.0, 128
        %2369 = vxpose.xlu0.b32.cont [6/16] 0.0, 128
        %2370 = vxpose.xlu0.b32.cont [7/16] 0.0, 128
        %2371 = vxpose.xlu0.b32.cont [8/16] 0.0, 128
        %2372 = vxpose.xlu0.b32.cont [9/16] 0.0, 128
        %2373 = vxpose.xlu0.b32.cont [10/16] 0.0, 128
        %2374 = vxpose.xlu0.b32.cont [11/16] 0.0, 128
        %2375 = vxpose.xlu0.b32.cont [12/16] 0.0, 128
        %2376 = vxpose.xlu0.b32.cont [13/16] 0.0, 128
        %2377 = vxpose.xlu0.b32.cont [14/16] 0.0, 128
        %2378 = vxpose.xlu0.b32.cont [15/16] 0.0, 128
        %2379 = vxpose.xlu0.b32.end [16/16] 0.0, 128
        %v2380 = vpop.trf.xlu0
        %v2381 = vpop.trf.xlu0
        %v2382 = vpop.trf.xlu0
        %v2383 = vpop.trf.xlu0
        %v2384 = vpop.trf.xlu0
        %v2385 = vpop.trf.xlu0
        %v2386 = vpop.trf.xlu0
        %v2387 = vpop.trf.xlu0
        %v2388 = vpop.trf.xlu0
        %v2389 = vpop.trf.xlu0
        %v2390 = vpop.trf.xlu0
        %v2391 = vpop.trf.xlu0
        %v2392 = vpop.trf.xlu0
        %v2393 = vpop.trf.xlu0
        %v2394 = vpop.trf.xlu0
        %v2395 = vpop.trf.xlu0
        %2396 = vxpose.xlu0.b32.start [1/16] %v1969, 128
        %2397 = vxpose.xlu0.b32.cont [2/16] 0.0, 128
        %2398 = vxpose.xlu0.b32.cont [3/16] 0.0, 128
        %2399 = vxpose.xlu0.b32.cont [4/16] 0.0, 128
        %2400 = vxpose.xlu0.b32.cont [5/16] 0.0, 128
        %2401 = vxpose.xlu0.b32.cont [6/16] 0.0, 128
        %2402 = vxpose.xlu0.b32.cont [7/16] 0.0, 128
        %2403 = vxpose.xlu0.b32.cont [8/16] 0.0, 128
        %2404 = vxpose.xlu0.b32.cont [9/16] 0.0, 128
        %2405 = vxpose.xlu0.b32.cont [10/16] 0.0, 128
        %2406 = vxpose.xlu0.b32.cont [11/16] 0.0, 128
        %2407 = vxpose.xlu0.b32.cont [12/16] 0.0, 128
        %2408 = vxpose.xlu0.b32.cont [13/16] 0.0, 128
        %2409 = vxpose.xlu0.b32.cont [14/16] 0.0, 128
        %2410 = vxpose.xlu0.b32.cont [15/16] 0.0, 128
        %2411 = vxpose.xlu0.b32.end [16/16] 0.0, 128
        %v2412 = vpop.trf.xlu0
        %v2413 = vpop.trf.xlu0
        %v2414 = vpop.trf.xlu0
        %v2415 = vpop.trf.xlu0
        %v2416 = vpop.trf.xlu0
        %v2417 = vpop.trf.xlu0
        %v2418 = vpop.trf.xlu0
        %v2419 = vpop.trf.xlu0
        %v2420 = vpop.trf.xlu0
        %v2421 = vpop.trf.xlu0
        %v2422 = vpop.trf.xlu0
        %v2423 = vpop.trf.xlu0
        %v2424 = vpop.trf.xlu0
        %v2425 = vpop.trf.xlu0
        %v2426 = vpop.trf.xlu0
        %v2427 = vpop.trf.xlu0
        %2428 = vxpose.xlu0.b32.start [1/16] %v1970, 128
        %2429 = vxpose.xlu0.b32.cont [2/16] 0.0, 128
        %2430 = vxpose.xlu0.b32.cont [3/16] 0.0, 128
        %2431 = vxpose.xlu0.b32.cont [4/16] 0.0, 128
        %2432 = vxpose.xlu0.b32.cont [5/16] 0.0, 128
        %2433 = vxpose.xlu0.b32.cont [6/16] 0.0, 128
        %2434 = vxpose.xlu0.b32.cont [7/16] 0.0, 128
        %2435 = vxpose.xlu0.b32.cont [8/16] 0.0, 128
        %2436 = vxpose.xlu0.b32.cont [9/16] 0.0, 128
        %2437 = vxpose.xlu0.b32.cont [10/16] 0.0, 128
        %2438 = vxpose.xlu0.b32.cont [11/16] 0.0, 128
        %2439 = vxpose.xlu0.b32.cont [12/16] 0.0, 128
        %2440 = vxpose.xlu0.b32.cont [13/16] 0.0, 128
        %2441 = vxpose.xlu0.b32.cont [14/16] 0.0, 128
        %2442 = vxpose.xlu0.b32.cont [15/16] 0.0, 128
        %2443 = vxpose.xlu0.b32.end [16/16] 0.0, 128
        %v2444 = vpop.trf.xlu0
        %v2445 = vpop.trf.xlu0
        %v2446 = vpop.trf.xlu0
        %v2447 = vpop.trf.xlu0
        %v2448 = vpop.trf.xlu0
        %v2449 = vpop.trf.xlu0
        %v2450 = vpop.trf.xlu0
        %v2451 = vpop.trf.xlu0
        %v2452 = vpop.trf.xlu0
        %v2453 = vpop.trf.xlu0
        %v2454 = vpop.trf.xlu0
        %v2455 = vpop.trf.xlu0
        %v2456 = vpop.trf.xlu0
        %v2457 = vpop.trf.xlu0
        %v2458 = vpop.trf.xlu0
        %v2459 = vpop.trf.xlu0
        %2460 = vxpose.xlu0.b32.start [1/16] %v1971, 128
        %2461 = vxpose.xlu0.b32.cont [2/16] 0.0, 128
        %2462 = vxpose.xlu0.b32.cont [3/16] 0.0, 128
        %2463 = vxpose.xlu0.b32.cont [4/16] 0.0, 128
        %2464 = vxpose.xlu0.b32.cont [5/16] 0.0, 128
        %2465 = vxpose.xlu0.b32.cont [6/16] 0.0, 128
        %2466 = vxpose.xlu0.b32.cont [7/16] 0.0, 128
        %2467 = vxpose.xlu0.b32.cont [8/16] 0.0, 128
        %2468 = vxpose.xlu0.b32.cont [9/16] 0.0, 128
        %2469 = vxpose.xlu0.b32.cont [10/16] 0.0, 128
        %2470 = vxpose.xlu0.b32.cont [11/16] 0.0, 128
        %2471 = vxpose.xlu0.b32.cont [12/16] 0.0, 128
        %2472 = vxpose.xlu0.b32.cont [13/16] 0.0, 128
        %2473 = vxpose.xlu0.b32.cont [14/16] 0.0, 128
        %2474 = vxpose.xlu0.b32.cont [15/16] 0.0, 128
        %2475 = vxpose.xlu0.b32.end [16/16] 0.0, 128
        %v2476 = vpop.trf.xlu0
        %v2477 = vpop.trf.xlu0
        %v2478 = vpop.trf.xlu0
        %v2479 = vpop.trf.xlu0
        %v2480 = vpop.trf.xlu0
        %v2481 = vpop.trf.xlu0
        %v2482 = vpop.trf.xlu0
        %v2483 = vpop.trf.xlu0
        %v2484 = vpop.trf.xlu0
        %v2485 = vpop.trf.xlu0
        %v2486 = vpop.trf.xlu0
        %v2487 = vpop.trf.xlu0
        %v2488 = vpop.trf.xlu0
        %v2489 = vpop.trf.xlu0
        %v2490 = vpop.trf.xlu0
        %v2491 = vpop.trf.xlu0
        %2492 = vxpose.xlu0.b32.start [1/16] %v1972, 128
        %2493 = vxpose.xlu0.b32.cont [2/16] 0.0, 128
        %2494 = vxpose.xlu0.b32.cont [3/16] 0.0, 128
        %2495 = vxpose.xlu0.b32.cont [4/16] 0.0, 128
        %2496 = vxpose.xlu0.b32.cont [5/16] 0.0, 128
        %2497 = vxpose.xlu0.b32.cont [6/16] 0.0, 128
        %2498 = vxpose.xlu0.b32.cont [7/16] 0.0, 128
        %2499 = vxpose.xlu0.b32.cont [8/16] 0.0, 128
        %2500 = vxpose.xlu0.b32.cont [9/16] 0.0, 128
        %2501 = vxpose.xlu0.b32.cont [10/16] 0.0, 128
        %2502 = vxpose.xlu0.b32.cont [11/16] 0.0, 128
        %2503 = vxpose.xlu0.b32.cont [12/16] 0.0, 128
        %2504 = vxpose.xlu0.b32.cont [13/16] 0.0, 128
        %2505 = vxpose.xlu0.b32.cont [14/16] 0.0, 128
        %2506 = vxpose.xlu0.b32.cont [15/16] 0.0, 128
        %2507 = vxpose.xlu0.b32.end [16/16] 0.0, 128
        %v2508 = vpop.trf.xlu0
        %v2509 = vpop.trf.xlu0
        %v2510 = vpop.trf.xlu0
        %v2511 = vpop.trf.xlu0
        %v2512 = vpop.trf.xlu0
        %v2513 = vpop.trf.xlu0
        %v2514 = vpop.trf.xlu0
        %v2515 = vpop.trf.xlu0
        %v2516 = vpop.trf.xlu0
        %v2517 = vpop.trf.xlu0
        %v2518 = vpop.trf.xlu0
        %v2519 = vpop.trf.xlu0
        %v2520 = vpop.trf.xlu0
        %v2521 = vpop.trf.xlu0
        %v2522 = vpop.trf.xlu0
        %v2523 = vpop.trf.xlu0
        %2524 = vxpose.xlu0.b32.start [1/16] %v1973, 128
        %2525 = vxpose.xlu0.b32.cont [2/16] 0.0, 128
        %2526 = vxpose.xlu0.b32.cont [3/16] 0.0, 128
        %2527 = vxpose.xlu0.b32.cont [4/16] 0.0, 128
        %2528 = vxpose.xlu0.b32.cont [5/16] 0.0, 128
        %2529 = vxpose.xlu0.b32.cont [6/16] 0.0, 128
        %2530 = vxpose.xlu0.b32.cont [7/16] 0.0, 128
        %2531 = vxpose.xlu0.b32.cont [8/16] 0.0, 128
        %2532 = vxpose.xlu0.b32.cont [9/16] 0.0, 128
        %2533 = vxpose.xlu0.b32.cont [10/16] 0.0, 128
        %2534 = vxpose.xlu0.b32.cont [11/16] 0.0, 128
        %2535 = vxpose.xlu0.b32.cont [12/16] 0.0, 128
        %2536 = vxpose.xlu0.b32.cont [13/16] 0.0, 128
        %2537 = vxpose.xlu0.b32.cont [14/16] 0.0, 128
        %2538 = vxpose.xlu0.b32.cont [15/16] 0.0, 128
        %2539 = vxpose.xlu0.b32.end [16/16] 0.0, 128
        %v2540 = vpop.trf.xlu0
        %v2541 = vpop.trf.xlu0
        %v2542 = vpop.trf.xlu0
        %v2543 = vpop.trf.xlu0
        %v2544 = vpop.trf.xlu0
        %v2545 = vpop.trf.xlu0
        %v2546 = vpop.trf.xlu0
        %v2547 = vpop.trf.xlu0
        %v2548 = vpop.trf.xlu0
        %v2549 = vpop.trf.xlu0
        %v2550 = vpop.trf.xlu0
        %v2551 = vpop.trf.xlu0
        %v2552 = vpop.trf.xlu0
        %v2553 = vpop.trf.xlu0
        %v2554 = vpop.trf.xlu0
        %v2555 = vpop.trf.xlu0
        %2556 = vxpose.xlu0.b32.start [1/16] %v1974, 128
        %2557 = vxpose.xlu0.b32.cont [2/16] 0.0, 128
        %2558 = vxpose.xlu0.b32.cont [3/16] 0.0, 128
        %2559 = vxpose.xlu0.b32.cont [4/16] 0.0, 128
        %2560 = vxpose.xlu0.b32.cont [5/16] 0.0, 128
        %2561 = vxpose.xlu0.b32.cont [6/16] 0.0, 128
        %2562 = vxpose.xlu0.b32.cont [7/16] 0.0, 128
        %2563 = vxpose.xlu0.b32.cont [8/16] 0.0, 128
        %2564 = vxpose.xlu0.b32.cont [9/16] 0.0, 128
        %2565 = vxpose.xlu0.b32.cont [10/16] 0.0, 128
        %2566 = vxpose.xlu0.b32.cont [11/16] 0.0, 128
        %2567 = vxpose.xlu0.b32.cont [12/16] 0.0, 128
        %2568 = vxpose.xlu0.b32.cont [13/16] 0.0, 128
        %2569 = vxpose.xlu0.b32.cont [14/16] 0.0, 128
        %2570 = vxpose.xlu0.b32.cont [15/16] 0.0, 128
        %2571 = vxpose.xlu0.b32.end [16/16] 0.0, 128
        %v2572 = vpop.trf.xlu0
        %v2573 = vpop.trf.xlu0
        %v2574 = vpop.trf.xlu0
        %v2575 = vpop.trf.xlu0
        %v2576 = vpop.trf.xlu0
        %v2577 = vpop.trf.xlu0
        %v2578 = vpop.trf.xlu0
        %v2579 = vpop.trf.xlu0
        %v2580 = vpop.trf.xlu0
        %v2581 = vpop.trf.xlu0
        %v2582 = vpop.trf.xlu0
        %v2583 = vpop.trf.xlu0
        %v2584 = vpop.trf.xlu0
        %v2585 = vpop.trf.xlu0
        %v2586 = vpop.trf.xlu0
        %v2587 = vpop.trf.xlu0
        %2588 = vxpose.xlu0.b32.start [1/16] %v1975, 128
        %2589 = vxpose.xlu0.b32.cont [2/16] 0.0, 128
        %2590 = vxpose.xlu0.b32.cont [3/16] 0.0, 128
        %2591 = vxpose.xlu0.b32.cont [4/16] 0.0, 128
        %2592 = vxpose.xlu0.b32.cont [5/16] 0.0, 128
        %2593 = vxpose.xlu0.b32.cont [6/16] 0.0, 128
        %2594 = vxpose.xlu0.b32.cont [7/16] 0.0, 128
        %2595 = vxpose.xlu0.b32.cont [8/16] 0.0, 128
        %2596 = vxpose.xlu0.b32.cont [9/16] 0.0, 128
        %2597 = vxpose.xlu0.b32.cont [10/16] 0.0, 128
        %2598 = vxpose.xlu0.b32.cont [11/16] 0.0, 128
        %2599 = vxpose.xlu0.b32.cont [12/16] 0.0, 128
        %2600 = vxpose.xlu0.b32.cont [13/16] 0.0, 128
        %2601 = vxpose.xlu0.b32.cont [14/16] 0.0, 128
        %2602 = vxpose.xlu0.b32.cont [15/16] 0.0, 128
        %2603 = vxpose.xlu0.b32.end [16/16] 0.0, 128
        %v2604 = vpop.trf.xlu0
        %v2605 = vpop.trf.xlu0
        %v2606 = vpop.trf.xlu0
        %v2607 = vpop.trf.xlu0
        %v2608 = vpop.trf.xlu0
        %v2609 = vpop.trf.xlu0
        %v2610 = vpop.trf.xlu0
        %v2611 = vpop.trf.xlu0
        %v2612 = vpop.trf.xlu0
        %v2613 = vpop.trf.xlu0
        %v2614 = vpop.trf.xlu0
        %v2615 = vpop.trf.xlu0
        %v2616 = vpop.trf.xlu0
        %v2617 = vpop.trf.xlu0
        %v2618 = vpop.trf.xlu0
        %v2619 = vpop.trf.xlu0
        %2620 = vxpose.xlu0.b32.start [1/16] %v1976, 128
        %2621 = vxpose.xlu0.b32.cont [2/16] 0.0, 128
        %2622 = vxpose.xlu0.b32.cont [3/16] 0.0, 128
        %2623 = vxpose.xlu0.b32.cont [4/16] 0.0, 128
        %2624 = vxpose.xlu0.b32.cont [5/16] 0.0, 128
        %2625 = vxpose.xlu0.b32.cont [6/16] 0.0, 128
        %2626 = vxpose.xlu0.b32.cont [7/16] 0.0, 128
        %2627 = vxpose.xlu0.b32.cont [8/16] 0.0, 128
        %2628 = vxpose.xlu0.b32.cont [9/16] 0.0, 128
        %2629 = vxpose.xlu0.b32.cont [10/16] 0.0, 128
        %2630 = vxpose.xlu0.b32.cont [11/16] 0.0, 128
        %2631 = vxpose.xlu0.b32.cont [12/16] 0.0, 128
        %2632 = vxpose.xlu0.b32.cont [13/16] 0.0, 128
        %2633 = vxpose.xlu0.b32.cont [14/16] 0.0, 128
        %2634 = vxpose.xlu0.b32.cont [15/16] 0.0, 128
        %2635 = vxpose.xlu0.b32.end [16/16] 0.0, 128
        %v2636 = vpop.trf.xlu0
        %v2637 = vpop.trf.xlu0
        %v2638 = vpop.trf.xlu0
        %v2639 = vpop.trf.xlu0
        %v2640 = vpop.trf.xlu0
        %v2641 = vpop.trf.xlu0
        %v2642 = vpop.trf.xlu0
        %v2643 = vpop.trf.xlu0
        %v2644 = vpop.trf.xlu0
        %v2645 = vpop.trf.xlu0
        %v2646 = vpop.trf.xlu0
        %v2647 = vpop.trf.xlu0
        %v2648 = vpop.trf.xlu0
        %v2649 = vpop.trf.xlu0
        %v2650 = vpop.trf.xlu0
        %v2651 = vpop.trf.xlu0
        %2652 = vxpose.xlu0.b32.start [1/16] %v1977, 128
        %2653 = vxpose.xlu0.b32.cont [2/16] 0.0, 128
        %2654 = vxpose.xlu0.b32.cont [3/16] 0.0, 128
        %2655 = vxpose.xlu0.b32.cont [4/16] 0.0, 128
        %2656 = vxpose.xlu0.b32.cont [5/16] 0.0, 128
        %2657 = vxpose.xlu0.b32.cont [6/16] 0.0, 128
        %2658 = vxpose.xlu0.b32.cont [7/16] 0.0, 128
        %2659 = vxpose.xlu0.b32.cont [8/16] 0.0, 128
        %2660 = vxpose.xlu0.b32.cont [9/16] 0.0, 128
        %2661 = vxpose.xlu0.b32.cont [10/16] 0.0, 128
        %2662 = vxpose.xlu0.b32.cont [11/16] 0.0, 128
        %2663 = vxpose.xlu0.b32.cont [12/16] 0.0, 128
        %2664 = vxpose.xlu0.b32.cont [13/16] 0.0, 128
        %2665 = vxpose.xlu0.b32.cont [14/16] 0.0, 128
        %2666 = vxpose.xlu0.b32.cont [15/16] 0.0, 128
        %2667 = vxpose.xlu0.b32.end [16/16] 0.0, 128
        %v2668 = vpop.trf.xlu0
        %v2669 = vpop.trf.xlu0
        %v2670 = vpop.trf.xlu0
        %v2671 = vpop.trf.xlu0
        %v2672 = vpop.trf.xlu0
        %v2673 = vpop.trf.xlu0
        %v2674 = vpop.trf.xlu0
        %v2675 = vpop.trf.xlu0
        %v2676 = vpop.trf.xlu0
        %v2677 = vpop.trf.xlu0
        %v2678 = vpop.trf.xlu0
        %v2679 = vpop.trf.xlu0
        %v2680 = vpop.trf.xlu0
        %v2681 = vpop.trf.xlu0
        %v2682 = vpop.trf.xlu0
        %v2683 = vpop.trf.xlu0
        %2684 = vxpose.xlu0.b32.start [1/16] %v1978, 128
        %2685 = vxpose.xlu0.b32.cont [2/16] 0.0, 128
        %2686 = vxpose.xlu0.b32.cont [3/16] 0.0, 128
        %2687 = vxpose.xlu0.b32.cont [4/16] 0.0, 128
        %2688 = vxpose.xlu0.b32.cont [5/16] 0.0, 128
        %2689 = vxpose.xlu0.b32.cont [6/16] 0.0, 128
        %2690 = vxpose.xlu0.b32.cont [7/16] 0.0, 128
        %2691 = vxpose.xlu0.b32.cont [8/16] 0.0, 128
        %2692 = vxpose.xlu0.b32.cont [9/16] 0.0, 128
        %2693 = vxpose.xlu0.b32.cont [10/16] 0.0, 128
        %2694 = vxpose.xlu0.b32.cont [11/16] 0.0, 128
        %2695 = vxpose.xlu0.b32.cont [12/16] 0.0, 128
        %2696 = vxpose.xlu0.b32.cont [13/16] 0.0, 128
        %2697 = vxpose.xlu0.b32.cont [14/16] 0.0, 128
        %2698 = vxpose.xlu0.b32.cont [15/16] 0.0, 128
        %2699 = vxpose.xlu0.b32.end [16/16] 0.0, 128
        %v2700 = vpop.trf.xlu0
        %v2701 = vpop.trf.xlu0
        %v2702 = vpop.trf.xlu0
        %v2703 = vpop.trf.xlu0
        %v2704 = vpop.trf.xlu0
        %v2705 = vpop.trf.xlu0
        %v2706 = vpop.trf.xlu0
        %v2707 = vpop.trf.xlu0
        %v2708 = vpop.trf.xlu0
        %v2709 = vpop.trf.xlu0
        %v2710 = vpop.trf.xlu0
        %v2711 = vpop.trf.xlu0
        %v2712 = vpop.trf.xlu0
        %v2713 = vpop.trf.xlu0
        %v2714 = vpop.trf.xlu0
        %v2715 = vpop.trf.xlu0
        %2716 = vxpose.xlu0.b32.start [1/16] %v1979, 128
        %2717 = vxpose.xlu0.b32.cont [2/16] 0.0, 128
        %2718 = vxpose.xlu0.b32.cont [3/16] 0.0, 128
        %2719 = vxpose.xlu0.b32.cont [4/16] 0.0, 128
        %2720 = vxpose.xlu0.b32.cont [5/16] 0.0, 128
        %2721 = vxpose.xlu0.b32.cont [6/16] 0.0, 128
        %2722 = vxpose.xlu0.b32.cont [7/16] 0.0, 128
        %2723 = vxpose.xlu0.b32.cont [8/16] 0.0, 128
        %2724 = vxpose.xlu0.b32.cont [9/16] 0.0, 128
        %2725 = vxpose.xlu0.b32.cont [10/16] 0.0, 128
        %2726 = vxpose.xlu0.b32.cont [11/16] 0.0, 128
        %2727 = vxpose.xlu0.b32.cont [12/16] 0.0, 128
        %2728 = vxpose.xlu0.b32.cont [13/16] 0.0, 128
        %2729 = vxpose.xlu0.b32.cont [14/16] 0.0, 128
        %2730 = vxpose.xlu0.b32.cont [15/16] 0.0, 128
        %2731 = vxpose.xlu0.b32.end [16/16] 0.0, 128
        %v2732 = vpop.trf.xlu0
        %v2733 = vpop.trf.xlu0
        %v2734 = vpop.trf.xlu0
        %v2735 = vpop.trf.xlu0
        %v2736 = vpop.trf.xlu0
        %v2737 = vpop.trf.xlu0
        %v2738 = vpop.trf.xlu0
        %v2739 = vpop.trf.xlu0
        %v2740 = vpop.trf.xlu0
        %v2741 = vpop.trf.xlu0
        %v2742 = vpop.trf.xlu0
        %v2743 = vpop.trf.xlu0
        %v2744 = vpop.trf.xlu0
        %v2745 = vpop.trf.xlu0
        %v2746 = vpop.trf.xlu0
        %v2747 = vpop.trf.xlu0
        %2748 = vxpose.xlu0.b32.start [1/16] %v1996, 128
        %2749 = vxpose.xlu0.b32.cont [2/16] %v2028, 128
        %2750 = vxpose.xlu0.b32.cont [3/16] %v2060, 128
        %2751 = vxpose.xlu0.b32.cont [4/16] %v2092, 128
        %2752 = vxpose.xlu0.b32.cont [5/16] %v2124, 128
        %2753 = vxpose.xlu0.b32.cont [6/16] %v2156, 128
        %2754 = vxpose.xlu0.b32.cont [7/16] %v2188, 128
        %2755 = vxpose.xlu0.b32.cont [8/16] %v2220, 128
        %2756 = vxpose.xlu0.b32.cont [9/16] %v2252, 128
        %2757 = vxpose.xlu0.b32.cont [10/16] %v2284, 128
        %2758 = vxpose.xlu0.b32.cont [11/16] %v2316, 128
        %2759 = vxpose.xlu0.b32.cont [12/16] %v2348, 128
        %2760 = vxpose.xlu0.b32.cont [13/16] %v2380, 128
        %2761 = vxpose.xlu0.b32.cont [14/16] %v2412, 128
        %2762 = vxpose.xlu0.b32.cont [15/16] %v2444, 128
        %2763 = vxpose.xlu0.b32.end [16/16] %v2476, 128
        %v2764 = vpop.trf.xlu0
        %v2765 = vpop.trf.xlu0
        %v2766 = vpop.trf.xlu0
        %v2767 = vpop.trf.xlu0
        %v2768 = vpop.trf.xlu0
        %v2769 = vpop.trf.xlu0
        %v2770 = vpop.trf.xlu0
        %v2771 = vpop.trf.xlu0
        %v2772 = vpop.trf.xlu0
        %v2773 = vpop.trf.xlu0
        %v2774 = vpop.trf.xlu0
        %v2775 = vpop.trf.xlu0
        %v2776 = vpop.trf.xlu0
        %v2777 = vpop.trf.xlu0
        %v2778 = vpop.trf.xlu0
        %v2779 = vpop.trf.xlu0
        %2780 = vxpose.xlu0.b32.start [1/16] %v2508, 128
        %2781 = vxpose.xlu0.b32.cont [2/16] %v2540, 128
        %2782 = vxpose.xlu0.b32.cont [3/16] %v2572, 128
        %2783 = vxpose.xlu0.b32.cont [4/16] %v2604, 128
        %2784 = vxpose.xlu0.b32.cont [5/16] %v2636, 128
        %2785 = vxpose.xlu0.b32.cont [6/16] %v2668, 128
        %2786 = vxpose.xlu0.b32.cont [7/16] %v2700, 128
        %2787 = vxpose.xlu0.b32.cont [8/16] %v2732, 128
        %2788 = vxpose.xlu0.b32.cont [9/16] 0.0, 128
        %2789 = vxpose.xlu0.b32.cont [10/16] 0.0, 128
        %2790 = vxpose.xlu0.b32.cont [11/16] 0.0, 128
        %2791 = vxpose.xlu0.b32.cont [12/16] 0.0, 128
        %2792 = vxpose.xlu0.b32.cont [13/16] 0.0, 128
        %2793 = vxpose.xlu0.b32.cont [14/16] 0.0, 128
        %2794 = vxpose.xlu0.b32.cont [15/16] 0.0, 128
        %2795 = vxpose.xlu0.b32.end [16/16] 0.0, 128
        %v2796 = vpop.trf.xlu0
        %v2797 = vpop.trf.xlu0
        %v2798 = vpop.trf.xlu0
        %v2799 = vpop.trf.xlu0
        %v2800 = vpop.trf.xlu0
        %v2801 = vpop.trf.xlu0
        %v2802 = vpop.trf.xlu0
        %v2803 = vpop.trf.xlu0
        %v2804 = vpop.trf.xlu0
        %v2805 = vpop.trf.xlu0
        %v2806 = vpop.trf.xlu0
        %v2807 = vpop.trf.xlu0
        %v2808 = vpop.trf.xlu0
        %v2809 = vpop.trf.xlu0
        %v2810 = vpop.trf.xlu0
        %v2811 = vpop.trf.xlu0
        %2812 = vst [vmem:[#allocation2 + $0x20] sm:$0xff] %v2764
        %2813 = vst.msk [vmem:[#allocation2 + $0x28] sm:$0xff] %vm1094, %v2796
        %s2814 = scalar_lea.vmem %s204, 192 [#allocation3]
        %v2815 = vld [vmem:[%s2814] sm:$0xff]
        %v2816 = vld [vmem:[%s2814 + $0x8] sm:$0xff]
        %v2817 = vld [vmem:[%s2814 + $0x10] sm:$0xff]
        %v2818 = vld [vmem:[%s2814 + $0x18] sm:$0xff]
        %v2819 = vld [vmem:[%s2814 + $0x20] sm:$0xff]
        %v2820 = vld [vmem:[%s2814 + $0x28] sm:$0xff]
        %v2821 = vld [vmem:[%s2814 + $0x30] sm:$0xff]
        %v2822 = vld [vmem:[%s2814 + $0x38] sm:$0xff]
        %v2823 = vld [vmem:[%s2814 + $0x200] sm:$0xff]
        %v2824 = vld [vmem:[%s2814 + $0x208] sm:$0xff]
        %v2825 = vld [vmem:[%s2814 + $0x210] sm:$0xff]
        %v2826 = vld [vmem:[%s2814 + $0x218] sm:$0xff]
        %v2827 = vld [vmem:[%s2814 + $0x220] sm:$0xff]
        %v2828 = vld [vmem:[%s2814 + $0x228] sm:$0xff]
        %v2829 = vld [vmem:[%s2814 + $0x230] sm:$0xff]
        %v2830 = vld [vmem:[%s2814 + $0x238] sm:$0xff]
        %v2831 = vld [vmem:[%s2814 + $0x400] sm:$0xff]
        %v2832 = vld [vmem:[%s2814 + $0x408] sm:$0xff]
        %v2833 = vld [vmem:[%s2814 + $0x410] sm:$0xff]
        %v2834 = vld [vmem:[%s2814 + $0x418] sm:$0xff]
        %v2835 = vld [vmem:[%s2814 + $0x420] sm:$0xff]
        %v2836 = vld [vmem:[%s2814 + $0x428] sm:$0xff]
        %v2837 = vld [vmem:[%s2814 + $0x430] sm:$0xff]
        %v2838 = vld [vmem:[%s2814 + $0x438] sm:$0xff]
        %2839 = vxpose.xlu0.b32.start [1/16] %v2815, 128
        %2840 = vxpose.xlu0.b32.cont [2/16] 0.0, 128
        %2841 = vxpose.xlu0.b32.cont [3/16] 0.0, 128
        %2842 = vxpose.xlu0.b32.cont [4/16] 0.0, 128
        %2843 = vxpose.xlu0.b32.cont [5/16] 0.0, 128
        %2844 = vxpose.xlu0.b32.cont [6/16] 0.0, 128
        %2845 = vxpose.xlu0.b32.cont [7/16] 0.0, 128
        %2846 = vxpose.xlu0.b32.cont [8/16] 0.0, 128
        %2847 = vxpose.xlu0.b32.cont [9/16] 0.0, 128
        %2848 = vxpose.xlu0.b32.cont [10/16] 0.0, 128
        %2849 = vxpose.xlu0.b32.cont [11/16] 0.0, 128
        %2850 = vxpose.xlu0.b32.cont [12/16] 0.0, 128
        %2851 = vxpose.xlu0.b32.cont [13/16] 0.0, 128
        %2852 = vxpose.xlu0.b32.cont [14/16] 0.0, 128
        %2853 = vxpose.xlu0.b32.cont [15/16] 0.0, 128
        %2854 = vxpose.xlu0.b32.end [16/16] 0.0, 128
        %v2855 = vpop.trf.xlu0
        %v2856 = vpop.trf.xlu0
        %v2857 = vpop.trf.xlu0
        %v2858 = vpop.trf.xlu0
        %v2859 = vpop.trf.xlu0
        %v2860 = vpop.trf.xlu0
        %v2861 = vpop.trf.xlu0
        %v2862 = vpop.trf.xlu0
        %v2863 = vpop.trf.xlu0
        %v2864 = vpop.trf.xlu0
        %v2865 = vpop.trf.xlu0
        %v2866 = vpop.trf.xlu0
        %v2867 = vpop.trf.xlu0
        %v2868 = vpop.trf.xlu0
        %v2869 = vpop.trf.xlu0
        %v2870 = vpop.trf.xlu0
        %2871 = vxpose.xlu0.b32.start [1/16] %v2816, 128
        %2872 = vxpose.xlu0.b32.cont [2/16] 0.0, 128
        %2873 = vxpose.xlu0.b32.cont [3/16] 0.0, 128
        %2874 = vxpose.xlu0.b32.cont [4/16] 0.0, 128
        %2875 = vxpose.xlu0.b32.cont [5/16] 0.0, 128
        %2876 = vxpose.xlu0.b32.cont [6/16] 0.0, 128
        %2877 = vxpose.xlu0.b32.cont [7/16] 0.0, 128
        %2878 = vxpose.xlu0.b32.cont [8/16] 0.0, 128
        %2879 = vxpose.xlu0.b32.cont [9/16] 0.0, 128
        %2880 = vxpose.xlu0.b32.cont [10/16] 0.0, 128
        %2881 = vxpose.xlu0.b32.cont [11/16] 0.0, 128
        %2882 = vxpose.xlu0.b32.cont [12/16] 0.0, 128
        %2883 = vxpose.xlu0.b32.cont [13/16] 0.0, 128
        %2884 = vxpose.xlu0.b32.cont [14/16] 0.0, 128
        %2885 = vxpose.xlu0.b32.cont [15/16] 0.0, 128
        %2886 = vxpose.xlu0.b32.end [16/16] 0.0, 128
        %v2887 = vpop.trf.xlu0
        %v2888 = vpop.trf.xlu0
        %v2889 = vpop.trf.xlu0
        %v2890 = vpop.trf.xlu0
        %v2891 = vpop.trf.xlu0
        %v2892 = vpop.trf.xlu0
        %v2893 = vpop.trf.xlu0
        %v2894 = vpop.trf.xlu0
        %v2895 = vpop.trf.xlu0
        %v2896 = vpop.trf.xlu0
        %v2897 = vpop.trf.xlu0
        %v2898 = vpop.trf.xlu0
        %v2899 = vpop.trf.xlu0
        %v2900 = vpop.trf.xlu0
        %v2901 = vpop.trf.xlu0
        %v2902 = vpop.trf.xlu0
        %2903 = vxpose.xlu0.b32.start [1/16] %v2817, 128
        %2904 = vxpose.xlu0.b32.cont [2/16] 0.0, 128
        %2905 = vxpose.xlu0.b32.cont [3/16] 0.0, 128
        %2906 = vxpose.xlu0.b32.cont [4/16] 0.0, 128
        %2907 = vxpose.xlu0.b32.cont [5/16] 0.0, 128
        %2908 = vxpose.xlu0.b32.cont [6/16] 0.0, 128
        %2909 = vxpose.xlu0.b32.cont [7/16] 0.0, 128
        %2910 = vxpose.xlu0.b32.cont [8/16] 0.0, 128
        %2911 = vxpose.xlu0.b32.cont [9/16] 0.0, 128
        %2912 = vxpose.xlu0.b32.cont [10/16] 0.0, 128
        %2913 = vxpose.xlu0.b32.cont [11/16] 0.0, 128
        %2914 = vxpose.xlu0.b32.cont [12/16] 0.0, 128
        %2915 = vxpose.xlu0.b32.cont [13/16] 0.0, 128
        %2916 = vxpose.xlu0.b32.cont [14/16] 0.0, 128
        %2917 = vxpose.xlu0.b32.cont [15/16] 0.0, 128
        %2918 = vxpose.xlu0.b32.end [16/16] 0.0, 128
        %v2919 = vpop.trf.xlu0
        %v2920 = vpop.trf.xlu0
        %v2921 = vpop.trf.xlu0
        %v2922 = vpop.trf.xlu0
        %v2923 = vpop.trf.xlu0
        %v2924 = vpop.trf.xlu0
        %v2925 = vpop.trf.xlu0
        %v2926 = vpop.trf.xlu0
        %v2927 = vpop.trf.xlu0
        %v2928 = vpop.trf.xlu0
        %v2929 = vpop.trf.xlu0
        %v2930 = vpop.trf.xlu0
        %v2931 = vpop.trf.xlu0
        %v2932 = vpop.trf.xlu0
        %v2933 = vpop.trf.xlu0
        %v2934 = vpop.trf.xlu0
        %2935 = vxpose.xlu0.b32.start [1/16] %v2818, 128
        %2936 = vxpose.xlu0.b32.cont [2/16] 0.0, 128
        %2937 = vxpose.xlu0.b32.cont [3/16] 0.0, 128
        %2938 = vxpose.xlu0.b32.cont [4/16] 0.0, 128
        %2939 = vxpose.xlu0.b32.cont [5/16] 0.0, 128
        %2940 = vxpose.xlu0.b32.cont [6/16] 0.0, 128
        %2941 = vxpose.xlu0.b32.cont [7/16] 0.0, 128
        %2942 = vxpose.xlu0.b32.cont [8/16] 0.0, 128
        %2943 = vxpose.xlu0.b32.cont [9/16] 0.0, 128
        %2944 = vxpose.xlu0.b32.cont [10/16] 0.0, 128
        %2945 = vxpose.xlu0.b32.cont [11/16] 0.0, 128
        %2946 = vxpose.xlu0.b32.cont [12/16] 0.0, 128
        %2947 = vxpose.xlu0.b32.cont [13/16] 0.0, 128
        %2948 = vxpose.xlu0.b32.cont [14/16] 0.0, 128
        %2949 = vxpose.xlu0.b32.cont [15/16] 0.0, 128
        %2950 = vxpose.xlu0.b32.end [16/16] 0.0, 128
        %v2951 = vpop.trf.xlu0
        %v2952 = vpop.trf.xlu0
        %v2953 = vpop.trf.xlu0
        %v2954 = vpop.trf.xlu0
        %v2955 = vpop.trf.xlu0
        %v2956 = vpop.trf.xlu0
        %v2957 = vpop.trf.xlu0
        %v2958 = vpop.trf.xlu0
        %v2959 = vpop.trf.xlu0
        %v2960 = vpop.trf.xlu0
        %v2961 = vpop.trf.xlu0
        %v2962 = vpop.trf.xlu0
        %v2963 = vpop.trf.xlu0
        %v2964 = vpop.trf.xlu0
        %v2965 = vpop.trf.xlu0
        %v2966 = vpop.trf.xlu0
        %2967 = vxpose.xlu0.b32.start [1/16] %v2819, 128
        %2968 = vxpose.xlu0.b32.cont [2/16] 0.0, 128
        %2969 = vxpose.xlu0.b32.cont [3/16] 0.0, 128
        %2970 = vxpose.xlu0.b32.cont [4/16] 0.0, 128
        %2971 = vxpose.xlu0.b32.cont [5/16] 0.0, 128
        %2972 = vxpose.xlu0.b32.cont [6/16] 0.0, 128
        %2973 = vxpose.xlu0.b32.cont [7/16] 0.0, 128
        %2974 = vxpose.xlu0.b32.cont [8/16] 0.0, 128
        %2975 = vxpose.xlu0.b32.cont [9/16] 0.0, 128
        %2976 = vxpose.xlu0.b32.cont [10/16] 0.0, 128
        %2977 = vxpose.xlu0.b32.cont [11/16] 0.0, 128
        %2978 = vxpose.xlu0.b32.cont [12/16] 0.0, 128
        %2979 = vxpose.xlu0.b32.cont [13/16] 0.0, 128
        %2980 = vxpose.xlu0.b32.cont [14/16] 0.0, 128
        %2981 = vxpose.xlu0.b32.cont [15/16] 0.0, 128
        %2982 = vxpose.xlu0.b32.end [16/16] 0.0, 128
        %v2983 = vpop.trf.xlu0
        %v2984 = vpop.trf.xlu0
        %v2985 = vpop.trf.xlu0
        %v2986 = vpop.trf.xlu0
        %v2987 = vpop.trf.xlu0
        %v2988 = vpop.trf.xlu0
        %v2989 = vpop.trf.xlu0
        %v2990 = vpop.trf.xlu0
        %v2991 = vpop.trf.xlu0
        %v2992 = vpop.trf.xlu0
        %v2993 = vpop.trf.xlu0
        %v2994 = vpop.trf.xlu0
        %v2995 = vpop.trf.xlu0
        %v2996 = vpop.trf.xlu0
        %v2997 = vpop.trf.xlu0
        %v2998 = vpop.trf.xlu0
        %2999 = vxpose.xlu0.b32.start [1/16] %v2820, 128
        %3000 = vxpose.xlu0.b32.cont [2/16] 0.0, 128
        %3001 = vxpose.xlu0.b32.cont [3/16] 0.0, 128
        %3002 = vxpose.xlu0.b32.cont [4/16] 0.0, 128
        %3003 = vxpose.xlu0.b32.cont [5/16] 0.0, 128
        %3004 = vxpose.xlu0.b32.cont [6/16] 0.0, 128
        %3005 = vxpose.xlu0.b32.cont [7/16] 0.0, 128
        %3006 = vxpose.xlu0.b32.cont [8/16] 0.0, 128
        %3007 = vxpose.xlu0.b32.cont [9/16] 0.0, 128
        %3008 = vxpose.xlu0.b32.cont [10/16] 0.0, 128
        %3009 = vxpose.xlu0.b32.cont [11/16] 0.0, 128
        %3010 = vxpose.xlu0.b32.cont [12/16] 0.0, 128
        %3011 = vxpose.xlu0.b32.cont [13/16] 0.0, 128
        %3012 = vxpose.xlu0.b32.cont [14/16] 0.0, 128
        %3013 = vxpose.xlu0.b32.cont [15/16] 0.0, 128
        %3014 = vxpose.xlu0.b32.end [16/16] 0.0, 128
        %v3015 = vpop.trf.xlu0
        %v3016 = vpop.trf.xlu0
        %v3017 = vpop.trf.xlu0
        %v3018 = vpop.trf.xlu0
        %v3019 = vpop.trf.xlu0
        %v3020 = vpop.trf.xlu0
        %v3021 = vpop.trf.xlu0
        %v3022 = vpop.trf.xlu0
        %v3023 = vpop.trf.xlu0
        %v3024 = vpop.trf.xlu0
        %v3025 = vpop.trf.xlu0
        %v3026 = vpop.trf.xlu0
        %v3027 = vpop.trf.xlu0
        %v3028 = vpop.trf.xlu0
        %v3029 = vpop.trf.xlu0
        %v3030 = vpop.trf.xlu0
        %3031 = vxpose.xlu0.b32.start [1/16] %v2821, 128
        %3032 = vxpose.xlu0.b32.cont [2/16] 0.0, 128
        %3033 = vxpose.xlu0.b32.cont [3/16] 0.0, 128
        %3034 = vxpose.xlu0.b32.cont [4/16] 0.0, 128
        %3035 = vxpose.xlu0.b32.cont [5/16] 0.0, 128
        %3036 = vxpose.xlu0.b32.cont [6/16] 0.0, 128
        %3037 = vxpose.xlu0.b32.cont [7/16] 0.0, 128
        %3038 = vxpose.xlu0.b32.cont [8/16] 0.0, 128
        %3039 = vxpose.xlu0.b32.cont [9/16] 0.0, 128
        %3040 = vxpose.xlu0.b32.cont [10/16] 0.0, 128
        %3041 = vxpose.xlu0.b32.cont [11/16] 0.0, 128
        %3042 = vxpose.xlu0.b32.cont [12/16] 0.0, 128
        %3043 = vxpose.xlu0.b32.cont [13/16] 0.0, 128
        %3044 = vxpose.xlu0.b32.cont [14/16] 0.0, 128
        %3045 = vxpose.xlu0.b32.cont [15/16] 0.0, 128
        %3046 = vxpose.xlu0.b32.end [16/16] 0.0, 128
        %v3047 = vpop.trf.xlu0
        %v3048 = vpop.trf.xlu0
        %v3049 = vpop.trf.xlu0
        %v3050 = vpop.trf.xlu0
        %v3051 = vpop.trf.xlu0
        %v3052 = vpop.trf.xlu0
        %v3053 = vpop.trf.xlu0
        %v3054 = vpop.trf.xlu0
        %v3055 = vpop.trf.xlu0
        %v3056 = vpop.trf.xlu0
        %v3057 = vpop.trf.xlu0
        %v3058 = vpop.trf.xlu0
        %v3059 = vpop.trf.xlu0
        %v3060 = vpop.trf.xlu0
        %v3061 = vpop.trf.xlu0
        %v3062 = vpop.trf.xlu0
        %3063 = vxpose.xlu0.b32.start [1/16] %v2822, 128
        %3064 = vxpose.xlu0.b32.cont [2/16] 0.0, 128
        %3065 = vxpose.xlu0.b32.cont [3/16] 0.0, 128
        %3066 = vxpose.xlu0.b32.cont [4/16] 0.0, 128
        %3067 = vxpose.xlu0.b32.cont [5/16] 0.0, 128
        %3068 = vxpose.xlu0.b32.cont [6/16] 0.0, 128
        %3069 = vxpose.xlu0.b32.cont [7/16] 0.0, 128
        %3070 = vxpose.xlu0.b32.cont [8/16] 0.0, 128
        %3071 = vxpose.xlu0.b32.cont [9/16] 0.0, 128
        %3072 = vxpose.xlu0.b32.cont [10/16] 0.0, 128
        %3073 = vxpose.xlu0.b32.cont [11/16] 0.0, 128
        %3074 = vxpose.xlu0.b32.cont [12/16] 0.0, 128
        %3075 = vxpose.xlu0.b32.cont [13/16] 0.0, 128
        %3076 = vxpose.xlu0.b32.cont [14/16] 0.0, 128
        %3077 = vxpose.xlu0.b32.cont [15/16] 0.0, 128
        %3078 = vxpose.xlu0.b32.end [16/16] 0.0, 128
        %v3079 = vpop.trf.xlu0
        %v3080 = vpop.trf.xlu0
        %v3081 = vpop.trf.xlu0
        %v3082 = vpop.trf.xlu0
        %v3083 = vpop.trf.xlu0
        %v3084 = vpop.trf.xlu0
        %v3085 = vpop.trf.xlu0
        %v3086 = vpop.trf.xlu0
        %v3087 = vpop.trf.xlu0
        %v3088 = vpop.trf.xlu0
        %v3089 = vpop.trf.xlu0
        %v3090 = vpop.trf.xlu0
        %v3091 = vpop.trf.xlu0
        %v3092 = vpop.trf.xlu0
        %v3093 = vpop.trf.xlu0
        %v3094 = vpop.trf.xlu0
        %3095 = vxpose.xlu0.b32.start [1/16] %v2823, 128
        %3096 = vxpose.xlu0.b32.cont [2/16] 0.0, 128
        %3097 = vxpose.xlu0.b32.cont [3/16] 0.0, 128
        %3098 = vxpose.xlu0.b32.cont [4/16] 0.0, 128
        %3099 = vxpose.xlu0.b32.cont [5/16] 0.0, 128
        %3100 = vxpose.xlu0.b32.cont [6/16] 0.0, 128
        %3101 = vxpose.xlu0.b32.cont [7/16] 0.0, 128
        %3102 = vxpose.xlu0.b32.cont [8/16] 0.0, 128
        %3103 = vxpose.xlu0.b32.cont [9/16] 0.0, 128
        %3104 = vxpose.xlu0.b32.cont [10/16] 0.0, 128
        %3105 = vxpose.xlu0.b32.cont [11/16] 0.0, 128
        %3106 = vxpose.xlu0.b32.cont [12/16] 0.0, 128
        %3107 = vxpose.xlu0.b32.cont [13/16] 0.0, 128
        %3108 = vxpose.xlu0.b32.cont [14/16] 0.0, 128
        %3109 = vxpose.xlu0.b32.cont [15/16] 0.0, 128
        %3110 = vxpose.xlu0.b32.end [16/16] 0.0, 128
        %v3111 = vpop.trf.xlu0
        %v3112 = vpop.trf.xlu0
        %v3113 = vpop.trf.xlu0
        %v3114 = vpop.trf.xlu0
        %v3115 = vpop.trf.xlu0
        %v3116 = vpop.trf.xlu0
        %v3117 = vpop.trf.xlu0
        %v3118 = vpop.trf.xlu0
        %v3119 = vpop.trf.xlu0
        %v3120 = vpop.trf.xlu0
        %v3121 = vpop.trf.xlu0
        %v3122 = vpop.trf.xlu0
        %v3123 = vpop.trf.xlu0
        %v3124 = vpop.trf.xlu0
        %v3125 = vpop.trf.xlu0
        %v3126 = vpop.trf.xlu0
        %3127 = vxpose.xlu0.b32.start [1/16] %v2824, 128
        %3128 = vxpose.xlu0.b32.cont [2/16] 0.0, 128
        %3129 = vxpose.xlu0.b32.cont [3/16] 0.0, 128
        %3130 = vxpose.xlu0.b32.cont [4/16] 0.0, 128
        %3131 = vxpose.xlu0.b32.cont [5/16] 0.0, 128
        %3132 = vxpose.xlu0.b32.cont [6/16] 0.0, 128
        %3133 = vxpose.xlu0.b32.cont [7/16] 0.0, 128
        %3134 = vxpose.xlu0.b32.cont [8/16] 0.0, 128
        %3135 = vxpose.xlu0.b32.cont [9/16] 0.0, 128
        %3136 = vxpose.xlu0.b32.cont [10/16] 0.0, 128
        %3137 = vxpose.xlu0.b32.cont [11/16] 0.0, 128
        %3138 = vxpose.xlu0.b32.cont [12/16] 0.0, 128
        %3139 = vxpose.xlu0.b32.cont [13/16] 0.0, 128
        %3140 = vxpose.xlu0.b32.cont [14/16] 0.0, 128
        %3141 = vxpose.xlu0.b32.cont [15/16] 0.0, 128
        %3142 = vxpose.xlu0.b32.end [16/16] 0.0, 128
        %v3143 = vpop.trf.xlu0
        %v3144 = vpop.trf.xlu0
        %v3145 = vpop.trf.xlu0
        %v3146 = vpop.trf.xlu0
        %v3147 = vpop.trf.xlu0
        %v3148 = vpop.trf.xlu0
        %v3149 = vpop.trf.xlu0
        %v3150 = vpop.trf.xlu0
        %v3151 = vpop.trf.xlu0
        %v3152 = vpop.trf.xlu0
        %v3153 = vpop.trf.xlu0
        %v3154 = vpop.trf.xlu0
        %v3155 = vpop.trf.xlu0
        %v3156 = vpop.trf.xlu0
        %v3157 = vpop.trf.xlu0
        %v3158 = vpop.trf.xlu0
        %3159 = vxpose.xlu0.b32.start [1/16] %v2825, 128
        %3160 = vxpose.xlu0.b32.cont [2/16] 0.0, 128
        %3161 = vxpose.xlu0.b32.cont [3/16] 0.0, 128
        %3162 = vxpose.xlu0.b32.cont [4/16] 0.0, 128
        %3163 = vxpose.xlu0.b32.cont [5/16] 0.0, 128
        %3164 = vxpose.xlu0.b32.cont [6/16] 0.0, 128
        %3165 = vxpose.xlu0.b32.cont [7/16] 0.0, 128
        %3166 = vxpose.xlu0.b32.cont [8/16] 0.0, 128
        %3167 = vxpose.xlu0.b32.cont [9/16] 0.0, 128
        %3168 = vxpose.xlu0.b32.cont [10/16] 0.0, 128
        %3169 = vxpose.xlu0.b32.cont [11/16] 0.0, 128
        %3170 = vxpose.xlu0.b32.cont [12/16] 0.0, 128
        %3171 = vxpose.xlu0.b32.cont [13/16] 0.0, 128
        %3172 = vxpose.xlu0.b32.cont [14/16] 0.0, 128
        %3173 = vxpose.xlu0.b32.cont [15/16] 0.0, 128
        %3174 = vxpose.xlu0.b32.end [16/16] 0.0, 128
        %v3175 = vpop.trf.xlu0
        %v3176 = vpop.trf.xlu0
        %v3177 = vpop.trf.xlu0
        %v3178 = vpop.trf.xlu0
        %v3179 = vpop.trf.xlu0
        %v3180 = vpop.trf.xlu0
        %v3181 = vpop.trf.xlu0
        %v3182 = vpop.trf.xlu0
        %v3183 = vpop.trf.xlu0
        %v3184 = vpop.trf.xlu0
        %v3185 = vpop.trf.xlu0
        %v3186 = vpop.trf.xlu0
        %v3187 = vpop.trf.xlu0
        %v3188 = vpop.trf.xlu0
        %v3189 = vpop.trf.xlu0
        %v3190 = vpop.trf.xlu0
        %3191 = vxpose.xlu0.b32.start [1/16] %v2826, 128
        %3192 = vxpose.xlu0.b32.cont [2/16] 0.0, 128
        %3193 = vxpose.xlu0.b32.cont [3/16] 0.0, 128
        %3194 = vxpose.xlu0.b32.cont [4/16] 0.0, 128
        %3195 = vxpose.xlu0.b32.cont [5/16] 0.0, 128
        %3196 = vxpose.xlu0.b32.cont [6/16] 0.0, 128
        %3197 = vxpose.xlu0.b32.cont [7/16] 0.0, 128
        %3198 = vxpose.xlu0.b32.cont [8/16] 0.0, 128
        %3199 = vxpose.xlu0.b32.cont [9/16] 0.0, 128
        %3200 = vxpose.xlu0.b32.cont [10/16] 0.0, 128
        %3201 = vxpose.xlu0.b32.cont [11/16] 0.0, 128
        %3202 = vxpose.xlu0.b32.cont [12/16] 0.0, 128
        %3203 = vxpose.xlu0.b32.cont [13/16] 0.0, 128
        %3204 = vxpose.xlu0.b32.cont [14/16] 0.0, 128
        %3205 = vxpose.xlu0.b32.cont [15/16] 0.0, 128
        %3206 = vxpose.xlu0.b32.end [16/16] 0.0, 128
        %v3207 = vpop.trf.xlu0
        %v3208 = vpop.trf.xlu0
        %v3209 = vpop.trf.xlu0
        %v3210 = vpop.trf.xlu0
        %v3211 = vpop.trf.xlu0
        %v3212 = vpop.trf.xlu0
        %v3213 = vpop.trf.xlu0
        %v3214 = vpop.trf.xlu0
        %v3215 = vpop.trf.xlu0
        %v3216 = vpop.trf.xlu0
        %v3217 = vpop.trf.xlu0
        %v3218 = vpop.trf.xlu0
        %v3219 = vpop.trf.xlu0
        %v3220 = vpop.trf.xlu0
        %v3221 = vpop.trf.xlu0
        %v3222 = vpop.trf.xlu0
        %3223 = vxpose.xlu0.b32.start [1/16] %v2827, 128
        %3224 = vxpose.xlu0.b32.cont [2/16] 0.0, 128
        %3225 = vxpose.xlu0.b32.cont [3/16] 0.0, 128
        %3226 = vxpose.xlu0.b32.cont [4/16] 0.0, 128
        %3227 = vxpose.xlu0.b32.cont [5/16] 0.0, 128
        %3228 = vxpose.xlu0.b32.cont [6/16] 0.0, 128
        %3229 = vxpose.xlu0.b32.cont [7/16] 0.0, 128
        %3230 = vxpose.xlu0.b32.cont [8/16] 0.0, 128
        %3231 = vxpose.xlu0.b32.cont [9/16] 0.0, 128
        %3232 = vxpose.xlu0.b32.cont [10/16] 0.0, 128
        %3233 = vxpose.xlu0.b32.cont [11/16] 0.0, 128
        %3234 = vxpose.xlu0.b32.cont [12/16] 0.0, 128
        %3235 = vxpose.xlu0.b32.cont [13/16] 0.0, 128
        %3236 = vxpose.xlu0.b32.cont [14/16] 0.0, 128
        %3237 = vxpose.xlu0.b32.cont [15/16] 0.0, 128
        %3238 = vxpose.xlu0.b32.end [16/16] 0.0, 128
        %v3239 = vpop.trf.xlu0
        %v3240 = vpop.trf.xlu0
        %v3241 = vpop.trf.xlu0
        %v3242 = vpop.trf.xlu0
        %v3243 = vpop.trf.xlu0
        %v3244 = vpop.trf.xlu0
        %v3245 = vpop.trf.xlu0
        %v3246 = vpop.trf.xlu0
        %v3247 = vpop.trf.xlu0
        %v3248 = vpop.trf.xlu0
        %v3249 = vpop.trf.xlu0
        %v3250 = vpop.trf.xlu0
        %v3251 = vpop.trf.xlu0
        %v3252 = vpop.trf.xlu0
        %v3253 = vpop.trf.xlu0
        %v3254 = vpop.trf.xlu0
        %3255 = vxpose.xlu0.b32.start [1/16] %v2828, 128
        %3256 = vxpose.xlu0.b32.cont [2/16] 0.0, 128
        %3257 = vxpose.xlu0.b32.cont [3/16] 0.0, 128
        %3258 = vxpose.xlu0.b32.cont [4/16] 0.0, 128
        %3259 = vxpose.xlu0.b32.cont [5/16] 0.0, 128
        %3260 = vxpose.xlu0.b32.cont [6/16] 0.0, 128
        %3261 = vxpose.xlu0.b32.cont [7/16] 0.0, 128
        %3262 = vxpose.xlu0.b32.cont [8/16] 0.0, 128
        %3263 = vxpose.xlu0.b32.cont [9/16] 0.0, 128
        %3264 = vxpose.xlu0.b32.cont [10/16] 0.0, 128
        %3265 = vxpose.xlu0.b32.cont [11/16] 0.0, 128
        %3266 = vxpose.xlu0.b32.cont [12/16] 0.0, 128
        %3267 = vxpose.xlu0.b32.cont [13/16] 0.0, 128
        %3268 = vxpose.xlu0.b32.cont [14/16] 0.0, 128
        %3269 = vxpose.xlu0.b32.cont [15/16] 0.0, 128
        %3270 = vxpose.xlu0.b32.end [16/16] 0.0, 128
        %v3271 = vpop.trf.xlu0
        %v3272 = vpop.trf.xlu0
        %v3273 = vpop.trf.xlu0
        %v3274 = vpop.trf.xlu0
        %v3275 = vpop.trf.xlu0
        %v3276 = vpop.trf.xlu0
        %v3277 = vpop.trf.xlu0
        %v3278 = vpop.trf.xlu0
        %v3279 = vpop.trf.xlu0
        %v3280 = vpop.trf.xlu0
        %v3281 = vpop.trf.xlu0
        %v3282 = vpop.trf.xlu0
        %v3283 = vpop.trf.xlu0
        %v3284 = vpop.trf.xlu0
        %v3285 = vpop.trf.xlu0
        %v3286 = vpop.trf.xlu0
        %3287 = vxpose.xlu0.b32.start [1/16] %v2829, 128
        %3288 = vxpose.xlu0.b32.cont [2/16] 0.0, 128
        %3289 = vxpose.xlu0.b32.cont [3/16] 0.0, 128
        %3290 = vxpose.xlu0.b32.cont [4/16] 0.0, 128
        %3291 = vxpose.xlu0.b32.cont [5/16] 0.0, 128
        %3292 = vxpose.xlu0.b32.cont [6/16] 0.0, 128
        %3293 = vxpose.xlu0.b32.cont [7/16] 0.0, 128
        %3294 = vxpose.xlu0.b32.cont [8/16] 0.0, 128
        %3295 = vxpose.xlu0.b32.cont [9/16] 0.0, 128
        %3296 = vxpose.xlu0.b32.cont [10/16] 0.0, 128
        %3297 = vxpose.xlu0.b32.cont [11/16] 0.0, 128
        %3298 = vxpose.xlu0.b32.cont [12/16] 0.0, 128
        %3299 = vxpose.xlu0.b32.cont [13/16] 0.0, 128
        %3300 = vxpose.xlu0.b32.cont [14/16] 0.0, 128
        %3301 = vxpose.xlu0.b32.cont [15/16] 0.0, 128
        %3302 = vxpose.xlu0.b32.end [16/16] 0.0, 128
        %v3303 = vpop.trf.xlu0
        %v3304 = vpop.trf.xlu0
        %v3305 = vpop.trf.xlu0
        %v3306 = vpop.trf.xlu0
        %v3307 = vpop.trf.xlu0
        %v3308 = vpop.trf.xlu0
        %v3309 = vpop.trf.xlu0
        %v3310 = vpop.trf.xlu0
        %v3311 = vpop.trf.xlu0
        %v3312 = vpop.trf.xlu0
        %v3313 = vpop.trf.xlu0
        %v3314 = vpop.trf.xlu0
        %v3315 = vpop.trf.xlu0
        %v3316 = vpop.trf.xlu0
        %v3317 = vpop.trf.xlu0
        %v3318 = vpop.trf.xlu0
        %3319 = vxpose.xlu0.b32.start [1/16] %v2830, 128
        %3320 = vxpose.xlu0.b32.cont [2/16] 0.0, 128
        %3321 = vxpose.xlu0.b32.cont [3/16] 0.0, 128
        %3322 = vxpose.xlu0.b32.cont [4/16] 0.0, 128
        %3323 = vxpose.xlu0.b32.cont [5/16] 0.0, 128
        %3324 = vxpose.xlu0.b32.cont [6/16] 0.0, 128
        %3325 = vxpose.xlu0.b32.cont [7/16] 0.0, 128
        %3326 = vxpose.xlu0.b32.cont [8/16] 0.0, 128
        %3327 = vxpose.xlu0.b32.cont [9/16] 0.0, 128
        %3328 = vxpose.xlu0.b32.cont [10/16] 0.0, 128
        %3329 = vxpose.xlu0.b32.cont [11/16] 0.0, 128
        %3330 = vxpose.xlu0.b32.cont [12/16] 0.0, 128
        %3331 = vxpose.xlu0.b32.cont [13/16] 0.0, 128
        %3332 = vxpose.xlu0.b32.cont [14/16] 0.0, 128
        %3333 = vxpose.xlu0.b32.cont [15/16] 0.0, 128
        %3334 = vxpose.xlu0.b32.end [16/16] 0.0, 128
        %v3335 = vpop.trf.xlu0
        %v3336 = vpop.trf.xlu0
        %v3337 = vpop.trf.xlu0
        %v3338 = vpop.trf.xlu0
        %v3339 = vpop.trf.xlu0
        %v3340 = vpop.trf.xlu0
        %v3341 = vpop.trf.xlu0
        %v3342 = vpop.trf.xlu0
        %v3343 = vpop.trf.xlu0
        %v3344 = vpop.trf.xlu0
        %v3345 = vpop.trf.xlu0
        %v3346 = vpop.trf.xlu0
        %v3347 = vpop.trf.xlu0
        %v3348 = vpop.trf.xlu0
        %v3349 = vpop.trf.xlu0
        %v3350 = vpop.trf.xlu0
        %3351 = vxpose.xlu0.b32.start [1/16] %v2831, 128
        %3352 = vxpose.xlu0.b32.cont [2/16] 0.0, 128
        %3353 = vxpose.xlu0.b32.cont [3/16] 0.0, 128
        %3354 = vxpose.xlu0.b32.cont [4/16] 0.0, 128
        %3355 = vxpose.xlu0.b32.cont [5/16] 0.0, 128
        %3356 = vxpose.xlu0.b32.cont [6/16] 0.0, 128
        %3357 = vxpose.xlu0.b32.cont [7/16] 0.0, 128
        %3358 = vxpose.xlu0.b32.cont [8/16] 0.0, 128
        %3359 = vxpose.xlu0.b32.cont [9/16] 0.0, 128
        %3360 = vxpose.xlu0.b32.cont [10/16] 0.0, 128
        %3361 = vxpose.xlu0.b32.cont [11/16] 0.0, 128
        %3362 = vxpose.xlu0.b32.cont [12/16] 0.0, 128
        %3363 = vxpose.xlu0.b32.cont [13/16] 0.0, 128
        %3364 = vxpose.xlu0.b32.cont [14/16] 0.0, 128
        %3365 = vxpose.xlu0.b32.cont [15/16] 0.0, 128
        %3366 = vxpose.xlu0.b32.end [16/16] 0.0, 128
        %v3367 = vpop.trf.xlu0
        %v3368 = vpop.trf.xlu0
        %v3369 = vpop.trf.xlu0
        %v3370 = vpop.trf.xlu0
        %v3371 = vpop.trf.xlu0
        %v3372 = vpop.trf.xlu0
        %v3373 = vpop.trf.xlu0
        %v3374 = vpop.trf.xlu0
        %v3375 = vpop.trf.xlu0
        %v3376 = vpop.trf.xlu0
        %v3377 = vpop.trf.xlu0
        %v3378 = vpop.trf.xlu0
        %v3379 = vpop.trf.xlu0
        %v3380 = vpop.trf.xlu0
        %v3381 = vpop.trf.xlu0
        %v3382 = vpop.trf.xlu0
        %3383 = vxpose.xlu0.b32.start [1/16] %v2832, 128
        %3384 = vxpose.xlu0.b32.cont [2/16] 0.0, 128
        %3385 = vxpose.xlu0.b32.cont [3/16] 0.0, 128
        %3386 = vxpose.xlu0.b32.cont [4/16] 0.0, 128
        %3387 = vxpose.xlu0.b32.cont [5/16] 0.0, 128
        %3388 = vxpose.xlu0.b32.cont [6/16] 0.0, 128
        %3389 = vxpose.xlu0.b32.cont [7/16] 0.0, 128
        %3390 = vxpose.xlu0.b32.cont [8/16] 0.0, 128
        %3391 = vxpose.xlu0.b32.cont [9/16] 0.0, 128
        %3392 = vxpose.xlu0.b32.cont [10/16] 0.0, 128
        %3393 = vxpose.xlu0.b32.cont [11/16] 0.0, 128
        %3394 = vxpose.xlu0.b32.cont [12/16] 0.0, 128
        %3395 = vxpose.xlu0.b32.cont [13/16] 0.0, 128
        %3396 = vxpose.xlu0.b32.cont [14/16] 0.0, 128
        %3397 = vxpose.xlu0.b32.cont [15/16] 0.0, 128
        %3398 = vxpose.xlu0.b32.end [16/16] 0.0, 128
        %v3399 = vpop.trf.xlu0
        %v3400 = vpop.trf.xlu0
        %v3401 = vpop.trf.xlu0
        %v3402 = vpop.trf.xlu0
        %v3403 = vpop.trf.xlu0
        %v3404 = vpop.trf.xlu0
        %v3405 = vpop.trf.xlu0
        %v3406 = vpop.trf.xlu0
        %v3407 = vpop.trf.xlu0
        %v3408 = vpop.trf.xlu0
        %v3409 = vpop.trf.xlu0
        %v3410 = vpop.trf.xlu0
        %v3411 = vpop.trf.xlu0
        %v3412 = vpop.trf.xlu0
        %v3413 = vpop.trf.xlu0
        %v3414 = vpop.trf.xlu0
        %3415 = vxpose.xlu0.b32.start [1/16] %v2833, 128
        %3416 = vxpose.xlu0.b32.cont [2/16] 0.0, 128
        %3417 = vxpose.xlu0.b32.cont [3/16] 0.0, 128
        %3418 = vxpose.xlu0.b32.cont [4/16] 0.0, 128
        %3419 = vxpose.xlu0.b32.cont [5/16] 0.0, 128
        %3420 = vxpose.xlu0.b32.cont [6/16] 0.0, 128
        %3421 = vxpose.xlu0.b32.cont [7/16] 0.0, 128
        %3422 = vxpose.xlu0.b32.cont [8/16] 0.0, 128
        %3423 = vxpose.xlu0.b32.cont [9/16] 0.0, 128
        %3424 = vxpose.xlu0.b32.cont [10/16] 0.0, 128
        %3425 = vxpose.xlu0.b32.cont [11/16] 0.0, 128
        %3426 = vxpose.xlu0.b32.cont [12/16] 0.0, 128
        %3427 = vxpose.xlu0.b32.cont [13/16] 0.0, 128
        %3428 = vxpose.xlu0.b32.cont [14/16] 0.0, 128
        %3429 = vxpose.xlu0.b32.cont [15/16] 0.0, 128
        %3430 = vxpose.xlu0.b32.end [16/16] 0.0, 128
        %v3431 = vpop.trf.xlu0
        %v3432 = vpop.trf.xlu0
        %v3433 = vpop.trf.xlu0
        %v3434 = vpop.trf.xlu0
        %v3435 = vpop.trf.xlu0
        %v3436 = vpop.trf.xlu0
        %v3437 = vpop.trf.xlu0
        %v3438 = vpop.trf.xlu0
        %v3439 = vpop.trf.xlu0
        %v3440 = vpop.trf.xlu0
        %v3441 = vpop.trf.xlu0
        %v3442 = vpop.trf.xlu0
        %v3443 = vpop.trf.xlu0
        %v3444 = vpop.trf.xlu0
        %v3445 = vpop.trf.xlu0
        %v3446 = vpop.trf.xlu0
        %3447 = vxpose.xlu0.b32.start [1/16] %v2834, 128
        %3448 = vxpose.xlu0.b32.cont [2/16] 0.0, 128
        %3449 = vxpose.xlu0.b32.cont [3/16] 0.0, 128
        %3450 = vxpose.xlu0.b32.cont [4/16] 0.0, 128
        %3451 = vxpose.xlu0.b32.cont [5/16] 0.0, 128
        %3452 = vxpose.xlu0.b32.cont [6/16] 0.0, 128
        %3453 = vxpose.xlu0.b32.cont [7/16] 0.0, 128
        %3454 = vxpose.xlu0.b32.cont [8/16] 0.0, 128
        %3455 = vxpose.xlu0.b32.cont [9/16] 0.0, 128
        %3456 = vxpose.xlu0.b32.cont [10/16] 0.0, 128
        %3457 = vxpose.xlu0.b32.cont [11/16] 0.0, 128
        %3458 = vxpose.xlu0.b32.cont [12/16] 0.0, 128
        %3459 = vxpose.xlu0.b32.cont [13/16] 0.0, 128
        %3460 = vxpose.xlu0.b32.cont [14/16] 0.0, 128
        %3461 = vxpose.xlu0.b32.cont [15/16] 0.0, 128
        %3462 = vxpose.xlu0.b32.end [16/16] 0.0, 128
        %v3463 = vpop.trf.xlu0
        %v3464 = vpop.trf.xlu0
        %v3465 = vpop.trf.xlu0
        %v3466 = vpop.trf.xlu0
        %v3467 = vpop.trf.xlu0
        %v3468 = vpop.trf.xlu0
        %v3469 = vpop.trf.xlu0
        %v3470 = vpop.trf.xlu0
        %v3471 = vpop.trf.xlu0
        %v3472 = vpop.trf.xlu0
        %v3473 = vpop.trf.xlu0
        %v3474 = vpop.trf.xlu0
        %v3475 = vpop.trf.xlu0
        %v3476 = vpop.trf.xlu0
        %v3477 = vpop.trf.xlu0
        %v3478 = vpop.trf.xlu0
        %3479 = vxpose.xlu0.b32.start [1/16] %v2835, 128
        %3480 = vxpose.xlu0.b32.cont [2/16] 0.0, 128
        %3481 = vxpose.xlu0.b32.cont [3/16] 0.0, 128
        %3482 = vxpose.xlu0.b32.cont [4/16] 0.0, 128
        %3483 = vxpose.xlu0.b32.cont [5/16] 0.0, 128
        %3484 = vxpose.xlu0.b32.cont [6/16] 0.0, 128
        %3485 = vxpose.xlu0.b32.cont [7/16] 0.0, 128
        %3486 = vxpose.xlu0.b32.cont [8/16] 0.0, 128
        %3487 = vxpose.xlu0.b32.cont [9/16] 0.0, 128
        %3488 = vxpose.xlu0.b32.cont [10/16] 0.0, 128
        %3489 = vxpose.xlu0.b32.cont [11/16] 0.0, 128
        %3490 = vxpose.xlu0.b32.cont [12/16] 0.0, 128
        %3491 = vxpose.xlu0.b32.cont [13/16] 0.0, 128
        %3492 = vxpose.xlu0.b32.cont [14/16] 0.0, 128
        %3493 = vxpose.xlu0.b32.cont [15/16] 0.0, 128
        %3494 = vxpose.xlu0.b32.end [16/16] 0.0, 128
        %v3495 = vpop.trf.xlu0
        %v3496 = vpop.trf.xlu0
        %v3497 = vpop.trf.xlu0
        %v3498 = vpop.trf.xlu0
        %v3499 = vpop.trf.xlu0
        %v3500 = vpop.trf.xlu0
        %v3501 = vpop.trf.xlu0
        %v3502 = vpop.trf.xlu0
        %v3503 = vpop.trf.xlu0
        %v3504 = vpop.trf.xlu0
        %v3505 = vpop.trf.xlu0
        %v3506 = vpop.trf.xlu0
        %v3507 = vpop.trf.xlu0
        %v3508 = vpop.trf.xlu0
        %v3509 = vpop.trf.xlu0
        %v3510 = vpop.trf.xlu0
        %3511 = vxpose.xlu0.b32.start [1/16] %v2836, 128
        %3512 = vxpose.xlu0.b32.cont [2/16] 0.0, 128
        %3513 = vxpose.xlu0.b32.cont [3/16] 0.0, 128
        %3514 = vxpose.xlu0.b32.cont [4/16] 0.0, 128
        %3515 = vxpose.xlu0.b32.cont [5/16] 0.0, 128
        %3516 = vxpose.xlu0.b32.cont [6/16] 0.0, 128
        %3517 = vxpose.xlu0.b32.cont [7/16] 0.0, 128
        %3518 = vxpose.xlu0.b32.cont [8/16] 0.0, 128
        %3519 = vxpose.xlu0.b32.cont [9/16] 0.0, 128
        %3520 = vxpose.xlu0.b32.cont [10/16] 0.0, 128
        %3521 = vxpose.xlu0.b32.cont [11/16] 0.0, 128
        %3522 = vxpose.xlu0.b32.cont [12/16] 0.0, 128
        %3523 = vxpose.xlu0.b32.cont [13/16] 0.0, 128
        %3524 = vxpose.xlu0.b32.cont [14/16] 0.0, 128
        %3525 = vxpose.xlu0.b32.cont [15/16] 0.0, 128
        %3526 = vxpose.xlu0.b32.end [16/16] 0.0, 128
        %v3527 = vpop.trf.xlu0
        %v3528 = vpop.trf.xlu0
        %v3529 = vpop.trf.xlu0
        %v3530 = vpop.trf.xlu0
        %v3531 = vpop.trf.xlu0
        %v3532 = vpop.trf.xlu0
        %v3533 = vpop.trf.xlu0
        %v3534 = vpop.trf.xlu0
        %v3535 = vpop.trf.xlu0
        %v3536 = vpop.trf.xlu0
        %v3537 = vpop.trf.xlu0
        %v3538 = vpop.trf.xlu0
        %v3539 = vpop.trf.xlu0
        %v3540 = vpop.trf.xlu0
        %v3541 = vpop.trf.xlu0
        %v3542 = vpop.trf.xlu0
        %3543 = vxpose.xlu0.b32.start [1/16] %v2837, 128
        %3544 = vxpose.xlu0.b32.cont [2/16] 0.0, 128
        %3545 = vxpose.xlu0.b32.cont [3/16] 0.0, 128
        %3546 = vxpose.xlu0.b32.cont [4/16] 0.0, 128
        %3547 = vxpose.xlu0.b32.cont [5/16] 0.0, 128
        %3548 = vxpose.xlu0.b32.cont [6/16] 0.0, 128
        %3549 = vxpose.xlu0.b32.cont [7/16] 0.0, 128
        %3550 = vxpose.xlu0.b32.cont [8/16] 0.0, 128
        %3551 = vxpose.xlu0.b32.cont [9/16] 0.0, 128
        %3552 = vxpose.xlu0.b32.cont [10/16] 0.0, 128
        %3553 = vxpose.xlu0.b32.cont [11/16] 0.0, 128
        %3554 = vxpose.xlu0.b32.cont [12/16] 0.0, 128
        %3555 = vxpose.xlu0.b32.cont [13/16] 0.0, 128
        %3556 = vxpose.xlu0.b32.cont [14/16] 0.0, 128
        %3557 = vxpose.xlu0.b32.cont [15/16] 0.0, 128
        %3558 = vxpose.xlu0.b32.end [16/16] 0.0, 128
        %v3559 = vpop.trf.xlu0
        %v3560 = vpop.trf.xlu0
        %v3561 = vpop.trf.xlu0
        %v3562 = vpop.trf.xlu0
        %v3563 = vpop.trf.xlu0
        %v3564 = vpop.trf.xlu0
        %v3565 = vpop.trf.xlu0
        %v3566 = vpop.trf.xlu0
        %v3567 = vpop.trf.xlu0
        %v3568 = vpop.trf.xlu0
        %v3569 = vpop.trf.xlu0
        %v3570 = vpop.trf.xlu0
        %v3571 = vpop.trf.xlu0
        %v3572 = vpop.trf.xlu0
        %v3573 = vpop.trf.xlu0
        %v3574 = vpop.trf.xlu0
        %3575 = vxpose.xlu0.b32.start [1/16] %v2838, 128
        %3576 = vxpose.xlu0.b32.cont [2/16] 0.0, 128
        %3577 = vxpose.xlu0.b32.cont [3/16] 0.0, 128
        %3578 = vxpose.xlu0.b32.cont [4/16] 0.0, 128
        %3579 = vxpose.xlu0.b32.cont [5/16] 0.0, 128
        %3580 = vxpose.xlu0.b32.cont [6/16] 0.0, 128
        %3581 = vxpose.xlu0.b32.cont [7/16] 0.0, 128
        %3582 = vxpose.xlu0.b32.cont [8/16] 0.0, 128
        %3583 = vxpose.xlu0.b32.cont [9/16] 0.0, 128
        %3584 = vxpose.xlu0.b32.cont [10/16] 0.0, 128
        %3585 = vxpose.xlu0.b32.cont [11/16] 0.0, 128
        %3586 = vxpose.xlu0.b32.cont [12/16] 0.0, 128
        %3587 = vxpose.xlu0.b32.cont [13/16] 0.0, 128
        %3588 = vxpose.xlu0.b32.cont [14/16] 0.0, 128
        %3589 = vxpose.xlu0.b32.cont [15/16] 0.0, 128
        %3590 = vxpose.xlu0.b32.end [16/16] 0.0, 128
        %v3591 = vpop.trf.xlu0
        %v3592 = vpop.trf.xlu0
        %v3593 = vpop.trf.xlu0
        %v3594 = vpop.trf.xlu0
        %v3595 = vpop.trf.xlu0
        %v3596 = vpop.trf.xlu0
        %v3597 = vpop.trf.xlu0
        %v3598 = vpop.trf.xlu0
        %v3599 = vpop.trf.xlu0
        %v3600 = vpop.trf.xlu0
        %v3601 = vpop.trf.xlu0
        %v3602 = vpop.trf.xlu0
        %v3603 = vpop.trf.xlu0
        %v3604 = vpop.trf.xlu0
        %v3605 = vpop.trf.xlu0
        %v3606 = vpop.trf.xlu0
        %3607 = vxpose.xlu0.b32.start [1/16] %v2855, 128
        %3608 = vxpose.xlu0.b32.cont [2/16] %v2887, 128
        %3609 = vxpose.xlu0.b32.cont [3/16] %v2919, 128
        %3610 = vxpose.xlu0.b32.cont [4/16] %v2951, 128
        %3611 = vxpose.xlu0.b32.cont [5/16] %v2983, 128
        %3612 = vxpose.xlu0.b32.cont [6/16] %v3015, 128
        %3613 = vxpose.xlu0.b32.cont [7/16] %v3047, 128
        %3614 = vxpose.xlu0.b32.cont [8/16] %v3079, 128
        %3615 = vxpose.xlu0.b32.cont [9/16] %v3111, 128
        %3616 = vxpose.xlu0.b32.cont [10/16] %v3143, 128
        %3617 = vxpose.xlu0.b32.cont [11/16] %v3175, 128
        %3618 = vxpose.xlu0.b32.cont [12/16] %v3207, 128
        %3619 = vxpose.xlu0.b32.cont [13/16] %v3239, 128
        %3620 = vxpose.xlu0.b32.cont [14/16] %v3271, 128
        %3621 = vxpose.xlu0.b32.cont [15/16] %v3303, 128
        %3622 = vxpose.xlu0.b32.end [16/16] %v3335, 128
        %v3623 = vpop.trf.xlu0
        %v3624 = vpop.trf.xlu0
        %v3625 = vpop.trf.xlu0
        %v3626 = vpop.trf.xlu0
        %v3627 = vpop.trf.xlu0
        %v3628 = vpop.trf.xlu0
        %v3629 = vpop.trf.xlu0
        %v3630 = vpop.trf.xlu0
        %v3631 = vpop.trf.xlu0
        %v3632 = vpop.trf.xlu0
        %v3633 = vpop.trf.xlu0
        %v3634 = vpop.trf.xlu0
        %v3635 = vpop.trf.xlu0
        %v3636 = vpop.trf.xlu0
        %v3637 = vpop.trf.xlu0
        %v3638 = vpop.trf.xlu0
        %3639 = vxpose.xlu0.b32.start [1/16] %v3367, 128
        %3640 = vxpose.xlu0.b32.cont [2/16] %v3399, 128
        %3641 = vxpose.xlu0.b32.cont [3/16] %v3431, 128
        %3642 = vxpose.xlu0.b32.cont [4/16] %v3463, 128
        %3643 = vxpose.xlu0.b32.cont [5/16] %v3495, 128
        %3644 = vxpose.xlu0.b32.cont [6/16] %v3527, 128
        %3645 = vxpose.xlu0.b32.cont [7/16] %v3559, 128
        %3646 = vxpose.xlu0.b32.cont [8/16] %v3591, 128
        %3647 = vxpose.xlu0.b32.cont [9/16] 0.0, 128
        %3648 = vxpose.xlu0.b32.cont [10/16] 0.0, 128
        %3649 = vxpose.xlu0.b32.cont [11/16] 0.0, 128
        %3650 = vxpose.xlu0.b32.cont [12/16] 0.0, 128
        %3651 = vxpose.xlu0.b32.cont [13/16] 0.0, 128
        %3652 = vxpose.xlu0.b32.cont [14/16] 0.0, 128
        %3653 = vxpose.xlu0.b32.cont [15/16] 0.0, 128
        %3654 = vxpose.xlu0.b32.end [16/16] 0.0, 128
        %v3655 = vpop.trf.xlu0
        %v3656 = vpop.trf.xlu0
        %v3657 = vpop.trf.xlu0
        %v3658 = vpop.trf.xlu0
        %v3659 = vpop.trf.xlu0
        %v3660 = vpop.trf.xlu0
        %v3661 = vpop.trf.xlu0
        %v3662 = vpop.trf.xlu0
        %v3663 = vpop.trf.xlu0
        %v3664 = vpop.trf.xlu0
        %v3665 = vpop.trf.xlu0
        %v3666 = vpop.trf.xlu0
        %v3667 = vpop.trf.xlu0
        %v3668 = vpop.trf.xlu0
        %v3669 = vpop.trf.xlu0
        %v3670 = vpop.trf.xlu0
        %3671 = vst [vmem:[#allocation2 + $0x30] sm:$0xff] %v3623
        %3672 = vst.msk [vmem:[#allocation2 + $0x38] sm:$0xff] %vm1094, %v3655
        %s3673 = scalar_lea.vmem %s204, 256 [#allocation3]
        %v3674 = vld [vmem:[%s3673] sm:$0xff]
        %v3675 = vld [vmem:[%s3673 + $0x8] sm:$0xff]
        %v3676 = vld [vmem:[%s3673 + $0x10] sm:$0xff]
        %v3677 = vld [vmem:[%s3673 + $0x18] sm:$0xff]
        %v3678 = vld [vmem:[%s3673 + $0x20] sm:$0xff]
        %v3679 = vld [vmem:[%s3673 + $0x28] sm:$0xff]
        %v3680 = vld [vmem:[%s3673 + $0x30] sm:$0xff]
        %v3681 = vld [vmem:[%s3673 + $0x38] sm:$0xff]
        %v3682 = vld [vmem:[%s3673 + $0x200] sm:$0xff]
        %v3683 = vld [vmem:[%s3673 + $0x208] sm:$0xff]
        %v3684 = vld [vmem:[%s3673 + $0x210] sm:$0xff]
        %v3685 = vld [vmem:[%s3673 + $0x218] sm:$0xff]
        %v3686 = vld [vmem:[%s3673 + $0x220] sm:$0xff]
        %v3687 = vld [vmem:[%s3673 + $0x228] sm:$0xff]
        %v3688 = vld [vmem:[%s3673 + $0x230] sm:$0xff]
        %v3689 = vld [vmem:[%s3673 + $0x238] sm:$0xff]
        %v3690 = vld [vmem:[%s3673 + $0x400] sm:$0xff]
        %v3691 = vld [vmem:[%s3673 + $0x408] sm:$0xff]
        %v3692 = vld [vmem:[%s3673 + $0x410] sm:$0xff]
        %v3693 = vld [vmem:[%s3673 + $0x418] sm:$0xff]
        %v3694 = vld [vmem:[%s3673 + $0x420] sm:$0xff]
        %v3695 = vld [vmem:[%s3673 + $0x428] sm:$0xff]
        %v3696 = vld [vmem:[%s3673 + $0x430] sm:$0xff]
        %v3697 = vld [vmem:[%s3673 + $0x438] sm:$0xff]
        %3698 = vxpose.xlu0.b32.start [1/16] %v3674, 128
        %3699 = vxpose.xlu0.b32.cont [2/16] 0.0, 128
        %3700 = vxpose.xlu0.b32.cont [3/16] 0.0, 128
        %3701 = vxpose.xlu0.b32.cont [4/16] 0.0, 128
        %3702 = vxpose.xlu0.b32.cont [5/16] 0.0, 128
        %3703 = vxpose.xlu0.b32.cont [6/16] 0.0, 128
        %3704 = vxpose.xlu0.b32.cont [7/16] 0.0, 128
        %3705 = vxpose.xlu0.b32.cont [8/16] 0.0, 128
        %3706 = vxpose.xlu0.b32.cont [9/16] 0.0, 128
        %3707 = vxpose.xlu0.b32.cont [10/16] 0.0, 128
        %3708 = vxpose.xlu0.b32.cont [11/16] 0.0, 128
        %3709 = vxpose.xlu0.b32.cont [12/16] 0.0, 128
        %3710 = vxpose.xlu0.b32.cont [13/16] 0.0, 128
        %3711 = vxpose.xlu0.b32.cont [14/16] 0.0, 128
        %3712 = vxpose.xlu0.b32.cont [15/16] 0.0, 128
        %3713 = vxpose.xlu0.b32.end [16/16] 0.0, 128
        %v3714 = vpop.trf.xlu0
        %v3715 = vpop.trf.xlu0
        %v3716 = vpop.trf.xlu0
        %v3717 = vpop.trf.xlu0
        %v3718 = vpop.trf.xlu0
        %v3719 = vpop.trf.xlu0
        %v3720 = vpop.trf.xlu0
        %v3721 = vpop.trf.xlu0
        %v3722 = vpop.trf.xlu0
        %v3723 = vpop.trf.xlu0
        %v3724 = vpop.trf.xlu0
        %v3725 = vpop.trf.xlu0
        %v3726 = vpop.trf.xlu0
        %v3727 = vpop.trf.xlu0
        %v3728 = vpop.trf.xlu0
        %v3729 = vpop.trf.xlu0
        %3730 = vxpose.xlu0.b32.start [1/16] %v3675, 128
        %3731 = vxpose.xlu0.b32.cont [2/16] 0.0, 128
        %3732 = vxpose.xlu0.b32.cont [3/16] 0.0, 128
        %3733 = vxpose.xlu0.b32.cont [4/16] 0.0, 128
        %3734 = vxpose.xlu0.b32.cont [5/16] 0.0, 128
        %3735 = vxpose.xlu0.b32.cont [6/16] 0.0, 128
        %3736 = vxpose.xlu0.b32.cont [7/16] 0.0, 128
        %3737 = vxpose.xlu0.b32.cont [8/16] 0.0, 128
        %3738 = vxpose.xlu0.b32.cont [9/16] 0.0, 128
        %3739 = vxpose.xlu0.b32.cont [10/16] 0.0, 128
        %3740 = vxpose.xlu0.b32.cont [11/16] 0.0, 128
        %3741 = vxpose.xlu0.b32.cont [12/16] 0.0, 128
        %3742 = vxpose.xlu0.b32.cont [13/16] 0.0, 128
        %3743 = vxpose.xlu0.b32.cont [14/16] 0.0, 128
        %3744 = vxpose.xlu0.b32.cont [15/16] 0.0, 128
        %3745 = vxpose.xlu0.b32.end [16/16] 0.0, 128
        %v3746 = vpop.trf.xlu0
        %v3747 = vpop.trf.xlu0
        %v3748 = vpop.trf.xlu0
        %v3749 = vpop.trf.xlu0
        %v3750 = vpop.trf.xlu0
        %v3751 = vpop.trf.xlu0
        %v3752 = vpop.trf.xlu0
        %v3753 = vpop.trf.xlu0
        %v3754 = vpop.trf.xlu0
        %v3755 = vpop.trf.xlu0
        %v3756 = vpop.trf.xlu0
        %v3757 = vpop.trf.xlu0
        %v3758 = vpop.trf.xlu0
        %v3759 = vpop.trf.xlu0
        %v3760 = vpop.trf.xlu0
        %v3761 = vpop.trf.xlu0
        %3762 = vxpose.xlu0.b32.start [1/16] %v3676, 128
        %3763 = vxpose.xlu0.b32.cont [2/16] 0.0, 128
        %3764 = vxpose.xlu0.b32.cont [3/16] 0.0, 128
        %3765 = vxpose.xlu0.b32.cont [4/16] 0.0, 128
        %3766 = vxpose.xlu0.b32.cont [5/16] 0.0, 128
        %3767 = vxpose.xlu0.b32.cont [6/16] 0.0, 128
        %3768 = vxpose.xlu0.b32.cont [7/16] 0.0, 128
        %3769 = vxpose.xlu0.b32.cont [8/16] 0.0, 128
        %3770 = vxpose.xlu0.b32.cont [9/16] 0.0, 128
        %3771 = vxpose.xlu0.b32.cont [10/16] 0.0, 128
        %3772 = vxpose.xlu0.b32.cont [11/16] 0.0, 128
        %3773 = vxpose.xlu0.b32.cont [12/16] 0.0, 128
        %3774 = vxpose.xlu0.b32.cont [13/16] 0.0, 128
        %3775 = vxpose.xlu0.b32.cont [14/16] 0.0, 128
        %3776 = vxpose.xlu0.b32.cont [15/16] 0.0, 128
        %3777 = vxpose.xlu0.b32.end [16/16] 0.0, 128
        %v3778 = vpop.trf.xlu0
        %v3779 = vpop.trf.xlu0
        %v3780 = vpop.trf.xlu0
        %v3781 = vpop.trf.xlu0
        %v3782 = vpop.trf.xlu0
        %v3783 = vpop.trf.xlu0
        %v3784 = vpop.trf.xlu0
        %v3785 = vpop.trf.xlu0
        %v3786 = vpop.trf.xlu0
        %v3787 = vpop.trf.xlu0
        %v3788 = vpop.trf.xlu0
        %v3789 = vpop.trf.xlu0
        %v3790 = vpop.trf.xlu0
        %v3791 = vpop.trf.xlu0
        %v3792 = vpop.trf.xlu0
        %v3793 = vpop.trf.xlu0
        %3794 = vxpose.xlu0.b32.start [1/16] %v3677, 128
        %3795 = vxpose.xlu0.b32.cont [2/16] 0.0, 128
        %3796 = vxpose.xlu0.b32.cont [3/16] 0.0, 128
        %3797 = vxpose.xlu0.b32.cont [4/16] 0.0, 128
        %3798 = vxpose.xlu0.b32.cont [5/16] 0.0, 128
        %3799 = vxpose.xlu0.b32.cont [6/16] 0.0, 128
        %3800 = vxpose.xlu0.b32.cont [7/16] 0.0, 128
        %3801 = vxpose.xlu0.b32.cont [8/16] 0.0, 128
        %3802 = vxpose.xlu0.b32.cont [9/16] 0.0, 128
        %3803 = vxpose.xlu0.b32.cont [10/16] 0.0, 128
        %3804 = vxpose.xlu0.b32.cont [11/16] 0.0, 128
        %3805 = vxpose.xlu0.b32.cont [12/16] 0.0, 128
        %3806 = vxpose.xlu0.b32.cont [13/16] 0.0, 128
        %3807 = vxpose.xlu0.b32.cont [14/16] 0.0, 128
        %3808 = vxpose.xlu0.b32.cont [15/16] 0.0, 128
        %3809 = vxpose.xlu0.b32.end [16/16] 0.0, 128
        %v3810 = vpop.trf.xlu0
        %v3811 = vpop.trf.xlu0
        %v3812 = vpop.trf.xlu0
        %v3813 = vpop.trf.xlu0
        %v3814 = vpop.trf.xlu0
        %v3815 = vpop.trf.xlu0
        %v3816 = vpop.trf.xlu0
        %v3817 = vpop.trf.xlu0
        %v3818 = vpop.trf.xlu0
        %v3819 = vpop.trf.xlu0
        %v3820 = vpop.trf.xlu0
        %v3821 = vpop.trf.xlu0
        %v3822 = vpop.trf.xlu0
        %v3823 = vpop.trf.xlu0
        %v3824 = vpop.trf.xlu0
        %v3825 = vpop.trf.xlu0
        %3826 = vxpose.xlu0.b32.start [1/16] %v3678, 128
        %3827 = vxpose.xlu0.b32.cont [2/16] 0.0, 128
        %3828 = vxpose.xlu0.b32.cont [3/16] 0.0, 128
        %3829 = vxpose.xlu0.b32.cont [4/16] 0.0, 128
        %3830 = vxpose.xlu0.b32.cont [5/16] 0.0, 128
        %3831 = vxpose.xlu0.b32.cont [6/16] 0.0, 128
        %3832 = vxpose.xlu0.b32.cont [7/16] 0.0, 128
        %3833 = vxpose.xlu0.b32.cont [8/16] 0.0, 128
        %3834 = vxpose.xlu0.b32.cont [9/16] 0.0, 128
        %3835 = vxpose.xlu0.b32.cont [10/16] 0.0, 128
        %3836 = vxpose.xlu0.b32.cont [11/16] 0.0, 128
        %3837 = vxpose.xlu0.b32.cont [12/16] 0.0, 128
        %3838 = vxpose.xlu0.b32.cont [13/16] 0.0, 128
        %3839 = vxpose.xlu0.b32.cont [14/16] 0.0, 128
        %3840 = vxpose.xlu0.b32.cont [15/16] 0.0, 128
        %3841 = vxpose.xlu0.b32.end [16/16] 0.0, 128
        %v3842 = vpop.trf.xlu0
        %v3843 = vpop.trf.xlu0
        %v3844 = vpop.trf.xlu0
        %v3845 = vpop.trf.xlu0
        %v3846 = vpop.trf.xlu0
        %v3847 = vpop.trf.xlu0
        %v3848 = vpop.trf.xlu0
        %v3849 = vpop.trf.xlu0
        %v3850 = vpop.trf.xlu0
        %v3851 = vpop.trf.xlu0
        %v3852 = vpop.trf.xlu0
        %v3853 = vpop.trf.xlu0
        %v3854 = vpop.trf.xlu0
        %v3855 = vpop.trf.xlu0
        %v3856 = vpop.trf.xlu0
        %v3857 = vpop.trf.xlu0
        %3858 = vxpose.xlu0.b32.start [1/16] %v3679, 128
        %3859 = vxpose.xlu0.b32.cont [2/16] 0.0, 128
        %3860 = vxpose.xlu0.b32.cont [3/16] 0.0, 128
        %3861 = vxpose.xlu0.b32.cont [4/16] 0.0, 128
        %3862 = vxpose.xlu0.b32.cont [5/16] 0.0, 128
        %3863 = vxpose.xlu0.b32.cont [6/16] 0.0, 128
        %3864 = vxpose.xlu0.b32.cont [7/16] 0.0, 128
        %3865 = vxpose.xlu0.b32.cont [8/16] 0.0, 128
        %3866 = vxpose.xlu0.b32.cont [9/16] 0.0, 128
        %3867 = vxpose.xlu0.b32.cont [10/16] 0.0, 128
        %3868 = vxpose.xlu0.b32.cont [11/16] 0.0, 128
        %3869 = vxpose.xlu0.b32.cont [12/16] 0.0, 128
        %3870 = vxpose.xlu0.b32.cont [13/16] 0.0, 128
        %3871 = vxpose.xlu0.b32.cont [14/16] 0.0, 128
        %3872 = vxpose.xlu0.b32.cont [15/16] 0.0, 128
        %3873 = vxpose.xlu0.b32.end [16/16] 0.0, 128
        %v3874 = vpop.trf.xlu0
        %v3875 = vpop.trf.xlu0
        %v3876 = vpop.trf.xlu0
        %v3877 = vpop.trf.xlu0
        %v3878 = vpop.trf.xlu0
        %v3879 = vpop.trf.xlu0
        %v3880 = vpop.trf.xlu0
        %v3881 = vpop.trf.xlu0
        %v3882 = vpop.trf.xlu0
        %v3883 = vpop.trf.xlu0
        %v3884 = vpop.trf.xlu0
        %v3885 = vpop.trf.xlu0
        %v3886 = vpop.trf.xlu0
        %v3887 = vpop.trf.xlu0
        %v3888 = vpop.trf.xlu0
        %v3889 = vpop.trf.xlu0
        %3890 = vxpose.xlu0.b32.start [1/16] %v3680, 128
        %3891 = vxpose.xlu0.b32.cont [2/16] 0.0, 128
        %3892 = vxpose.xlu0.b32.cont [3/16] 0.0, 128
        %3893 = vxpose.xlu0.b32.cont [4/16] 0.0, 128
        %3894 = vxpose.xlu0.b32.cont [5/16] 0.0, 128
        %3895 = vxpose.xlu0.b32.cont [6/16] 0.0, 128
        %3896 = vxpose.xlu0.b32.cont [7/16] 0.0, 128
        %3897 = vxpose.xlu0.b32.cont [8/16] 0.0, 128
        %3898 = vxpose.xlu0.b32.cont [9/16] 0.0, 128
        %3899 = vxpose.xlu0.b32.cont [10/16] 0.0, 128
        %3900 = vxpose.xlu0.b32.cont [11/16] 0.0, 128
        %3901 = vxpose.xlu0.b32.cont [12/16] 0.0, 128
        %3902 = vxpose.xlu0.b32.cont [13/16] 0.0, 128
        %3903 = vxpose.xlu0.b32.cont [14/16] 0.0, 128
        %3904 = vxpose.xlu0.b32.cont [15/16] 0.0, 128
        %3905 = vxpose.xlu0.b32.end [16/16] 0.0, 128
        %v3906 = vpop.trf.xlu0
        %v3907 = vpop.trf.xlu0
        %v3908 = vpop.trf.xlu0
        %v3909 = vpop.trf.xlu0
        %v3910 = vpop.trf.xlu0
        %v3911 = vpop.trf.xlu0
        %v3912 = vpop.trf.xlu0
        %v3913 = vpop.trf.xlu0
        %v3914 = vpop.trf.xlu0
        %v3915 = vpop.trf.xlu0
        %v3916 = vpop.trf.xlu0
        %v3917 = vpop.trf.xlu0
        %v3918 = vpop.trf.xlu0
        %v3919 = vpop.trf.xlu0
        %v3920 = vpop.trf.xlu0
        %v3921 = vpop.trf.xlu0
        %3922 = vxpose.xlu0.b32.start [1/16] %v3681, 128
        %3923 = vxpose.xlu0.b32.cont [2/16] 0.0, 128
        %3924 = vxpose.xlu0.b32.cont [3/16] 0.0, 128
        %3925 = vxpose.xlu0.b32.cont [4/16] 0.0, 128
        %3926 = vxpose.xlu0.b32.cont [5/16] 0.0, 128
        %3927 = vxpose.xlu0.b32.cont [6/16] 0.0, 128
        %3928 = vxpose.xlu0.b32.cont [7/16] 0.0, 128
        %3929 = vxpose.xlu0.b32.cont [8/16] 0.0, 128
        %3930 = vxpose.xlu0.b32.cont [9/16] 0.0, 128
        %3931 = vxpose.xlu0.b32.cont [10/16] 0.0, 128
        %3932 = vxpose.xlu0.b32.cont [11/16] 0.0, 128
        %3933 = vxpose.xlu0.b32.cont [12/16] 0.0, 128
        %3934 = vxpose.xlu0.b32.cont [13/16] 0.0, 128
        %3935 = vxpose.xlu0.b32.cont [14/16] 0.0, 128
        %3936 = vxpose.xlu0.b32.cont [15/16] 0.0, 128
        %3937 = vxpose.xlu0.b32.end [16/16] 0.0, 128
        %v3938 = vpop.trf.xlu0
        %v3939 = vpop.trf.xlu0
        %v3940 = vpop.trf.xlu0
        %v3941 = vpop.trf.xlu0
        %v3942 = vpop.trf.xlu0
        %v3943 = vpop.trf.xlu0
        %v3944 = vpop.trf.xlu0
        %v3945 = vpop.trf.xlu0
        %v3946 = vpop.trf.xlu0
        %v3947 = vpop.trf.xlu0
        %v3948 = vpop.trf.xlu0
        %v3949 = vpop.trf.xlu0
        %v3950 = vpop.trf.xlu0
        %v3951 = vpop.trf.xlu0
        %v3952 = vpop.trf.xlu0
        %v3953 = vpop.trf.xlu0
        %3954 = vxpose.xlu0.b32.start [1/16] %v3682, 128
        %3955 = vxpose.xlu0.b32.cont [2/16] 0.0, 128
        %3956 = vxpose.xlu0.b32.cont [3/16] 0.0, 128
        %3957 = vxpose.xlu0.b32.cont [4/16] 0.0, 128
        %3958 = vxpose.xlu0.b32.cont [5/16] 0.0, 128
        %3959 = vxpose.xlu0.b32.cont [6/16] 0.0, 128
        %3960 = vxpose.xlu0.b32.cont [7/16] 0.0, 128
        %3961 = vxpose.xlu0.b32.cont [8/16] 0.0, 128
        %3962 = vxpose.xlu0.b32.cont [9/16] 0.0, 128
        %3963 = vxpose.xlu0.b32.cont [10/16] 0.0, 128
        %3964 = vxpose.xlu0.b32.cont [11/16] 0.0, 128
        %3965 = vxpose.xlu0.b32.cont [12/16] 0.0, 128
        %3966 = vxpose.xlu0.b32.cont [13/16] 0.0, 128
        %3967 = vxpose.xlu0.b32.cont [14/16] 0.0, 128
        %3968 = vxpose.xlu0.b32.cont [15/16] 0.0, 128
        %3969 = vxpose.xlu0.b32.end [16/16] 0.0, 128
        %v3970 = vpop.trf.xlu0
        %v3971 = vpop.trf.xlu0
        %v3972 = vpop.trf.xlu0
        %v3973 = vpop.trf.xlu0
        %v3974 = vpop.trf.xlu0
        %v3975 = vpop.trf.xlu0
        %v3976 = vpop.trf.xlu0
        %v3977 = vpop.trf.xlu0
        %v3978 = vpop.trf.xlu0
        %v3979 = vpop.trf.xlu0
        %v3980 = vpop.trf.xlu0
        %v3981 = vpop.trf.xlu0
        %v3982 = vpop.trf.xlu0
        %v3983 = vpop.trf.xlu0
        %v3984 = vpop.trf.xlu0
        %v3985 = vpop.trf.xlu0
        %3986 = vxpose.xlu0.b32.start [1/16] %v3683, 128
        %3987 = vxpose.xlu0.b32.cont [2/16] 0.0, 128
        %3988 = vxpose.xlu0.b32.cont [3/16] 0.0, 128
        %3989 = vxpose.xlu0.b32.cont [4/16] 0.0, 128
        %3990 = vxpose.xlu0.b32.cont [5/16] 0.0, 128
        %3991 = vxpose.xlu0.b32.cont [6/16] 0.0, 128
        %3992 = vxpose.xlu0.b32.cont [7/16] 0.0, 128
        %3993 = vxpose.xlu0.b32.cont [8/16] 0.0, 128
        %3994 = vxpose.xlu0.b32.cont [9/16] 0.0, 128
        %3995 = vxpose.xlu0.b32.cont [10/16] 0.0, 128
        %3996 = vxpose.xlu0.b32.cont [11/16] 0.0, 128
        %3997 = vxpose.xlu0.b32.cont [12/16] 0.0, 128
        %3998 = vxpose.xlu0.b32.cont [13/16] 0.0, 128
        %3999 = vxpose.xlu0.b32.cont [14/16] 0.0, 128
        %4000 = vxpose.xlu0.b32.cont [15/16] 0.0, 128
        %4001 = vxpose.xlu0.b32.end [16/16] 0.0, 128
        %v4002 = vpop.trf.xlu0
        %v4003 = vpop.trf.xlu0
        %v4004 = vpop.trf.xlu0
        %v4005 = vpop.trf.xlu0
        %v4006 = vpop.trf.xlu0
        %v4007 = vpop.trf.xlu0
        %v4008 = vpop.trf.xlu0
        %v4009 = vpop.trf.xlu0
        %v4010 = vpop.trf.xlu0
        %v4011 = vpop.trf.xlu0
        %v4012 = vpop.trf.xlu0
        %v4013 = vpop.trf.xlu0
        %v4014 = vpop.trf.xlu0
        %v4015 = vpop.trf.xlu0
        %v4016 = vpop.trf.xlu0
        %v4017 = vpop.trf.xlu0
        %4018 = vxpose.xlu0.b32.start [1/16] %v3684, 128
        %4019 = vxpose.xlu0.b32.cont [2/16] 0.0, 128
        %4020 = vxpose.xlu0.b32.cont [3/16] 0.0, 128
        %4021 = vxpose.xlu0.b32.cont [4/16] 0.0, 128
        %4022 = vxpose.xlu0.b32.cont [5/16] 0.0, 128
        %4023 = vxpose.xlu0.b32.cont [6/16] 0.0, 128
        %4024 = vxpose.xlu0.b32.cont [7/16] 0.0, 128
        %4025 = vxpose.xlu0.b32.cont [8/16] 0.0, 128
        %4026 = vxpose.xlu0.b32.cont [9/16] 0.0, 128
        %4027 = vxpose.xlu0.b32.cont [10/16] 0.0, 128
        %4028 = vxpose.xlu0.b32.cont [11/16] 0.0, 128
        %4029 = vxpose.xlu0.b32.cont [12/16] 0.0, 128
        %4030 = vxpose.xlu0.b32.cont [13/16] 0.0, 128
        %4031 = vxpose.xlu0.b32.cont [14/16] 0.0, 128
        %4032 = vxpose.xlu0.b32.cont [15/16] 0.0, 128
        %4033 = vxpose.xlu0.b32.end [16/16] 0.0, 128
        %v4034 = vpop.trf.xlu0
        %v4035 = vpop.trf.xlu0
        %v4036 = vpop.trf.xlu0
        %v4037 = vpop.trf.xlu0
        %v4038 = vpop.trf.xlu0
        %v4039 = vpop.trf.xlu0
        %v4040 = vpop.trf.xlu0
        %v4041 = vpop.trf.xlu0
        %v4042 = vpop.trf.xlu0
        %v4043 = vpop.trf.xlu0
        %v4044 = vpop.trf.xlu0
        %v4045 = vpop.trf.xlu0
        %v4046 = vpop.trf.xlu0
        %v4047 = vpop.trf.xlu0
        %v4048 = vpop.trf.xlu0
        %v4049 = vpop.trf.xlu0
        %4050 = vxpose.xlu0.b32.start [1/16] %v3685, 128
        %4051 = vxpose.xlu0.b32.cont [2/16] 0.0, 128
        %4052 = vxpose.xlu0.b32.cont [3/16] 0.0, 128
        %4053 = vxpose.xlu0.b32.cont [4/16] 0.0, 128
        %4054 = vxpose.xlu0.b32.cont [5/16] 0.0, 128
        %4055 = vxpose.xlu0.b32.cont [6/16] 0.0, 128
        %4056 = vxpose.xlu0.b32.cont [7/16] 0.0, 128
        %4057 = vxpose.xlu0.b32.cont [8/16] 0.0, 128
        %4058 = vxpose.xlu0.b32.cont [9/16] 0.0, 128
        %4059 = vxpose.xlu0.b32.cont [10/16] 0.0, 128
        %4060 = vxpose.xlu0.b32.cont [11/16] 0.0, 128
        %4061 = vxpose.xlu0.b32.cont [12/16] 0.0, 128
        %4062 = vxpose.xlu0.b32.cont [13/16] 0.0, 128
        %4063 = vxpose.xlu0.b32.cont [14/16] 0.0, 128
        %4064 = vxpose.xlu0.b32.cont [15/16] 0.0, 128
        %4065 = vxpose.xlu0.b32.end [16/16] 0.0, 128
        %v4066 = vpop.trf.xlu0
        %v4067 = vpop.trf.xlu0
        %v4068 = vpop.trf.xlu0
        %v4069 = vpop.trf.xlu0
        %v4070 = vpop.trf.xlu0
        %v4071 = vpop.trf.xlu0
        %v4072 = vpop.trf.xlu0
        %v4073 = vpop.trf.xlu0
        %v4074 = vpop.trf.xlu0
        %v4075 = vpop.trf.xlu0
        %v4076 = vpop.trf.xlu0
        %v4077 = vpop.trf.xlu0
        %v4078 = vpop.trf.xlu0
        %v4079 = vpop.trf.xlu0
        %v4080 = vpop.trf.xlu0
        %v4081 = vpop.trf.xlu0
        %4082 = vxpose.xlu0.b32.start [1/16] %v3686, 128
        %4083 = vxpose.xlu0.b32.cont [2/16] 0.0, 128
        %4084 = vxpose.xlu0.b32.cont [3/16] 0.0, 128
        %4085 = vxpose.xlu0.b32.cont [4/16] 0.0, 128
        %4086 = vxpose.xlu0.b32.cont [5/16] 0.0, 128
        %4087 = vxpose.xlu0.b32.cont [6/16] 0.0, 128
        %4088 = vxpose.xlu0.b32.cont [7/16] 0.0, 128
        %4089 = vxpose.xlu0.b32.cont [8/16] 0.0, 128
        %4090 = vxpose.xlu0.b32.cont [9/16] 0.0, 128
        %4091 = vxpose.xlu0.b32.cont [10/16] 0.0, 128
        %4092 = vxpose.xlu0.b32.cont [11/16] 0.0, 128
        %4093 = vxpose.xlu0.b32.cont [12/16] 0.0, 128
        %4094 = vxpose.xlu0.b32.cont [13/16] 0.0, 128
        %4095 = vxpose.xlu0.b32.cont [14/16] 0.0, 128
        %4096 = vxpose.xlu0.b32.cont [15/16] 0.0, 128
        %4097 = vxpose.xlu0.b32.end [16/16] 0.0, 128
        %v4098 = vpop.trf.xlu0
        %v4099 = vpop.trf.xlu0
        %v4100 = vpop.trf.xlu0
        %v4101 = vpop.trf.xlu0
        %v4102 = vpop.trf.xlu0
        %v4103 = vpop.trf.xlu0
        %v4104 = vpop.trf.xlu0
        %v4105 = vpop.trf.xlu0
        %v4106 = vpop.trf.xlu0
        %v4107 = vpop.trf.xlu0
        %v4108 = vpop.trf.xlu0
        %v4109 = vpop.trf.xlu0
        %v4110 = vpop.trf.xlu0
        %v4111 = vpop.trf.xlu0
        %v4112 = vpop.trf.xlu0
        %v4113 = vpop.trf.xlu0
        %4114 = vxpose.xlu0.b32.start [1/16] %v3687, 128
        %4115 = vxpose.xlu0.b32.cont [2/16] 0.0, 128
        %4116 = vxpose.xlu0.b32.cont [3/16] 0.0, 128
        %4117 = vxpose.xlu0.b32.cont [4/16] 0.0, 128
        %4118 = vxpose.xlu0.b32.cont [5/16] 0.0, 128
        %4119 = vxpose.xlu0.b32.cont [6/16] 0.0, 128
        %4120 = vxpose.xlu0.b32.cont [7/16] 0.0, 128
        %4121 = vxpose.xlu0.b32.cont [8/16] 0.0, 128
        %4122 = vxpose.xlu0.b32.cont [9/16] 0.0, 128
        %4123 = vxpose.xlu0.b32.cont [10/16] 0.0, 128
        %4124 = vxpose.xlu0.b32.cont [11/16] 0.0, 128
        %4125 = vxpose.xlu0.b32.cont [12/16] 0.0, 128
        %4126 = vxpose.xlu0.b32.cont [13/16] 0.0, 128
        %4127 = vxpose.xlu0.b32.cont [14/16] 0.0, 128
        %4128 = vxpose.xlu0.b32.cont [15/16] 0.0, 128
        %4129 = vxpose.xlu0.b32.end [16/16] 0.0, 128
        %v4130 = vpop.trf.xlu0
        %v4131 = vpop.trf.xlu0
        %v4132 = vpop.trf.xlu0
        %v4133 = vpop.trf.xlu0
        %v4134 = vpop.trf.xlu0
        %v4135 = vpop.trf.xlu0
        %v4136 = vpop.trf.xlu0
        %v4137 = vpop.trf.xlu0
        %v4138 = vpop.trf.xlu0
        %v4139 = vpop.trf.xlu0
        %v4140 = vpop.trf.xlu0
        %v4141 = vpop.trf.xlu0
        %v4142 = vpop.trf.xlu0
        %v4143 = vpop.trf.xlu0
        %v4144 = vpop.trf.xlu0
        %v4145 = vpop.trf.xlu0
        %4146 = vxpose.xlu0.b32.start [1/16] %v3688, 128
        %4147 = vxpose.xlu0.b32.cont [2/16] 0.0, 128
        %4148 = vxpose.xlu0.b32.cont [3/16] 0.0, 128
        %4149 = vxpose.xlu0.b32.cont [4/16] 0.0, 128
        %4150 = vxpose.xlu0.b32.cont [5/16] 0.0, 128
        %4151 = vxpose.xlu0.b32.cont [6/16] 0.0, 128
        %4152 = vxpose.xlu0.b32.cont [7/16] 0.0, 128
        %4153 = vxpose.xlu0.b32.cont [8/16] 0.0, 128
        %4154 = vxpose.xlu0.b32.cont [9/16] 0.0, 128
        %4155 = vxpose.xlu0.b32.cont [10/16] 0.0, 128
        %4156 = vxpose.xlu0.b32.cont [11/16] 0.0, 128
        %4157 = vxpose.xlu0.b32.cont [12/16] 0.0, 128
        %4158 = vxpose.xlu0.b32.cont [13/16] 0.0, 128
        %4159 = vxpose.xlu0.b32.cont [14/16] 0.0, 128
        %4160 = vxpose.xlu0.b32.cont [15/16] 0.0, 128
        %4161 = vxpose.xlu0.b32.end [16/16] 0.0, 128
        %v4162 = vpop.trf.xlu0
        %v4163 = vpop.trf.xlu0
        %v4164 = vpop.trf.xlu0
        %v4165 = vpop.trf.xlu0
        %v4166 = vpop.trf.xlu0
        %v4167 = vpop.trf.xlu0
        %v4168 = vpop.trf.xlu0
        %v4169 = vpop.trf.xlu0
        %v4170 = vpop.trf.xlu0
        %v4171 = vpop.trf.xlu0
        %v4172 = vpop.trf.xlu0
        %v4173 = vpop.trf.xlu0
        %v4174 = vpop.trf.xlu0
        %v4175 = vpop.trf.xlu0
        %v4176 = vpop.trf.xlu0
        %v4177 = vpop.trf.xlu0
        %4178 = vxpose.xlu0.b32.start [1/16] %v3689, 128
        %4179 = vxpose.xlu0.b32.cont [2/16] 0.0, 128
        %4180 = vxpose.xlu0.b32.cont [3/16] 0.0, 128
        %4181 = vxpose.xlu0.b32.cont [4/16] 0.0, 128
        %4182 = vxpose.xlu0.b32.cont [5/16] 0.0, 128
        %4183 = vxpose.xlu0.b32.cont [6/16] 0.0, 128
        %4184 = vxpose.xlu0.b32.cont [7/16] 0.0, 128
        %4185 = vxpose.xlu0.b32.cont [8/16] 0.0, 128
        %4186 = vxpose.xlu0.b32.cont [9/16] 0.0, 128
        %4187 = vxpose.xlu0.b32.cont [10/16] 0.0, 128
        %4188 = vxpose.xlu0.b32.cont [11/16] 0.0, 128
        %4189 = vxpose.xlu0.b32.cont [12/16] 0.0, 128
        %4190 = vxpose.xlu0.b32.cont [13/16] 0.0, 128
        %4191 = vxpose.xlu0.b32.cont [14/16] 0.0, 128
        %4192 = vxpose.xlu0.b32.cont [15/16] 0.0, 128
        %4193 = vxpose.xlu0.b32.end [16/16] 0.0, 128
        %v4194 = vpop.trf.xlu0
        %v4195 = vpop.trf.xlu0
        %v4196 = vpop.trf.xlu0
        %v4197 = vpop.trf.xlu0
        %v4198 = vpop.trf.xlu0
        %v4199 = vpop.trf.xlu0
        %v4200 = vpop.trf.xlu0
        %v4201 = vpop.trf.xlu0
        %v4202 = vpop.trf.xlu0
        %v4203 = vpop.trf.xlu0
        %v4204 = vpop.trf.xlu0
        %v4205 = vpop.trf.xlu0
        %v4206 = vpop.trf.xlu0
        %v4207 = vpop.trf.xlu0
        %v4208 = vpop.trf.xlu0
        %v4209 = vpop.trf.xlu0
        %4210 = vxpose.xlu0.b32.start [1/16] %v3690, 128
        %4211 = vxpose.xlu0.b32.cont [2/16] 0.0, 128
        %4212 = vxpose.xlu0.b32.cont [3/16] 0.0, 128
        %4213 = vxpose.xlu0.b32.cont [4/16] 0.0, 128
        %4214 = vxpose.xlu0.b32.cont [5/16] 0.0, 128
        %4215 = vxpose.xlu0.b32.cont [6/16] 0.0, 128
        %4216 = vxpose.xlu0.b32.cont [7/16] 0.0, 128
        %4217 = vxpose.xlu0.b32.cont [8/16] 0.0, 128
        %4218 = vxpose.xlu0.b32.cont [9/16] 0.0, 128
        %4219 = vxpose.xlu0.b32.cont [10/16] 0.0, 128
        %4220 = vxpose.xlu0.b32.cont [11/16] 0.0, 128
        %4221 = vxpose.xlu0.b32.cont [12/16] 0.0, 128
        %4222 = vxpose.xlu0.b32.cont [13/16] 0.0, 128
        %4223 = vxpose.xlu0.b32.cont [14/16] 0.0, 128
        %4224 = vxpose.xlu0.b32.cont [15/16] 0.0, 128
        %4225 = vxpose.xlu0.b32.end [16/16] 0.0, 128
        %v4226 = vpop.trf.xlu0
        %v4227 = vpop.trf.xlu0
        %v4228 = vpop.trf.xlu0
        %v4229 = vpop.trf.xlu0
        %v4230 = vpop.trf.xlu0
        %v4231 = vpop.trf.xlu0
        %v4232 = vpop.trf.xlu0
        %v4233 = vpop.trf.xlu0
        %v4234 = vpop.trf.xlu0
        %v4235 = vpop.trf.xlu0
        %v4236 = vpop.trf.xlu0
        %v4237 = vpop.trf.xlu0
        %v4238 = vpop.trf.xlu0
        %v4239 = vpop.trf.xlu0
        %v4240 = vpop.trf.xlu0
        %v4241 = vpop.trf.xlu0
        %4242 = vxpose.xlu0.b32.start [1/16] %v3691, 128
        %4243 = vxpose.xlu0.b32.cont [2/16] 0.0, 128
        %4244 = vxpose.xlu0.b32.cont [3/16] 0.0, 128
        %4245 = vxpose.xlu0.b32.cont [4/16] 0.0, 128
        %4246 = vxpose.xlu0.b32.cont [5/16] 0.0, 128
        %4247 = vxpose.xlu0.b32.cont [6/16] 0.0, 128
        %4248 = vxpose.xlu0.b32.cont [7/16] 0.0, 128
        %4249 = vxpose.xlu0.b32.cont [8/16] 0.0, 128
        %4250 = vxpose.xlu0.b32.cont [9/16] 0.0, 128
        %4251 = vxpose.xlu0.b32.cont [10/16] 0.0, 128
        %4252 = vxpose.xlu0.b32.cont [11/16] 0.0, 128
        %4253 = vxpose.xlu0.b32.cont [12/16] 0.0, 128
        %4254 = vxpose.xlu0.b32.cont [13/16] 0.0, 128
        %4255 = vxpose.xlu0.b32.cont [14/16] 0.0, 128
        %4256 = vxpose.xlu0.b32.cont [15/16] 0.0, 128
        %4257 = vxpose.xlu0.b32.end [16/16] 0.0, 128
        %v4258 = vpop.trf.xlu0
        %v4259 = vpop.trf.xlu0
        %v4260 = vpop.trf.xlu0
        %v4261 = vpop.trf.xlu0
        %v4262 = vpop.trf.xlu0
        %v4263 = vpop.trf.xlu0
        %v4264 = vpop.trf.xlu0
        %v4265 = vpop.trf.xlu0
        %v4266 = vpop.trf.xlu0
        %v4267 = vpop.trf.xlu0
        %v4268 = vpop.trf.xlu0
        %v4269 = vpop.trf.xlu0
        %v4270 = vpop.trf.xlu0
        %v4271 = vpop.trf.xlu0
        %v4272 = vpop.trf.xlu0
        %v4273 = vpop.trf.xlu0
        %4274 = vxpose.xlu0.b32.start [1/16] %v3692, 128
        %4275 = vxpose.xlu0.b32.cont [2/16] 0.0, 128
        %4276 = vxpose.xlu0.b32.cont [3/16] 0.0, 128
        %4277 = vxpose.xlu0.b32.cont [4/16] 0.0, 128
        %4278 = vxpose.xlu0.b32.cont [5/16] 0.0, 128
        %4279 = vxpose.xlu0.b32.cont [6/16] 0.0, 128
        %4280 = vxpose.xlu0.b32.cont [7/16] 0.0, 128
        %4281 = vxpose.xlu0.b32.cont [8/16] 0.0, 128
        %4282 = vxpose.xlu0.b32.cont [9/16] 0.0, 128
        %4283 = vxpose.xlu0.b32.cont [10/16] 0.0, 128
        %4284 = vxpose.xlu0.b32.cont [11/16] 0.0, 128
        %4285 = vxpose.xlu0.b32.cont [12/16] 0.0, 128
        %4286 = vxpose.xlu0.b32.cont [13/16] 0.0, 128
        %4287 = vxpose.xlu0.b32.cont [14/16] 0.0, 128
        %4288 = vxpose.xlu0.b32.cont [15/16] 0.0, 128
        %4289 = vxpose.xlu0.b32.end [16/16] 0.0, 128
        %v4290 = vpop.trf.xlu0
        %v4291 = vpop.trf.xlu0
        %v4292 = vpop.trf.xlu0
        %v4293 = vpop.trf.xlu0
        %v4294 = vpop.trf.xlu0
        %v4295 = vpop.trf.xlu0
        %v4296 = vpop.trf.xlu0
        %v4297 = vpop.trf.xlu0
        %v4298 = vpop.trf.xlu0
        %v4299 = vpop.trf.xlu0
        %v4300 = vpop.trf.xlu0
        %v4301 = vpop.trf.xlu0
        %v4302 = vpop.trf.xlu0
        %v4303 = vpop.trf.xlu0
        %v4304 = vpop.trf.xlu0
        %v4305 = vpop.trf.xlu0
        %4306 = vxpose.xlu0.b32.start [1/16] %v3693, 128
        %4307 = vxpose.xlu0.b32.cont [2/16] 0.0, 128
        %4308 = vxpose.xlu0.b32.cont [3/16] 0.0, 128
        %4309 = vxpose.xlu0.b32.cont [4/16] 0.0, 128
        %4310 = vxpose.xlu0.b32.cont [5/16] 0.0, 128
        %4311 = vxpose.xlu0.b32.cont [6/16] 0.0, 128
        %4312 = vxpose.xlu0.b32.cont [7/16] 0.0, 128
        %4313 = vxpose.xlu0.b32.cont [8/16] 0.0, 128
        %4314 = vxpose.xlu0.b32.cont [9/16] 0.0, 128
        %4315 = vxpose.xlu0.b32.cont [10/16] 0.0, 128
        %4316 = vxpose.xlu0.b32.cont [11/16] 0.0, 128
        %4317 = vxpose.xlu0.b32.cont [12/16] 0.0, 128
        %4318 = vxpose.xlu0.b32.cont [13/16] 0.0, 128
        %4319 = vxpose.xlu0.b32.cont [14/16] 0.0, 128
        %4320 = vxpose.xlu0.b32.cont [15/16] 0.0, 128
        %4321 = vxpose.xlu0.b32.end [16/16] 0.0, 128
        %v4322 = vpop.trf.xlu0
        %v4323 = vpop.trf.xlu0
        %v4324 = vpop.trf.xlu0
        %v4325 = vpop.trf.xlu0
        %v4326 = vpop.trf.xlu0
        %v4327 = vpop.trf.xlu0
        %v4328 = vpop.trf.xlu0
        %v4329 = vpop.trf.xlu0
        %v4330 = vpop.trf.xlu0
        %v4331 = vpop.trf.xlu0
        %v4332 = vpop.trf.xlu0
        %v4333 = vpop.trf.xlu0
        %v4334 = vpop.trf.xlu0
        %v4335 = vpop.trf.xlu0
        %v4336 = vpop.trf.xlu0
        %v4337 = vpop.trf.xlu0
        %4338 = vxpose.xlu0.b32.start [1/16] %v3694, 128
        %4339 = vxpose.xlu0.b32.cont [2/16] 0.0, 128
        %4340 = vxpose.xlu0.b32.cont [3/16] 0.0, 128
        %4341 = vxpose.xlu0.b32.cont [4/16] 0.0, 128
        %4342 = vxpose.xlu0.b32.cont [5/16] 0.0, 128
        %4343 = vxpose.xlu0.b32.cont [6/16] 0.0, 128
        %4344 = vxpose.xlu0.b32.cont [7/16] 0.0, 128
        %4345 = vxpose.xlu0.b32.cont [8/16] 0.0, 128
        %4346 = vxpose.xlu0.b32.cont [9/16] 0.0, 128
        %4347 = vxpose.xlu0.b32.cont [10/16] 0.0, 128
        %4348 = vxpose.xlu0.b32.cont [11/16] 0.0, 128
        %4349 = vxpose.xlu0.b32.cont [12/16] 0.0, 128
        %4350 = vxpose.xlu0.b32.cont [13/16] 0.0, 128
        %4351 = vxpose.xlu0.b32.cont [14/16] 0.0, 128
        %4352 = vxpose.xlu0.b32.cont [15/16] 0.0, 128
        %4353 = vxpose.xlu0.b32.end [16/16] 0.0, 128
        %v4354 = vpop.trf.xlu0
        %v4355 = vpop.trf.xlu0
        %v4356 = vpop.trf.xlu0
        %v4357 = vpop.trf.xlu0
        %v4358 = vpop.trf.xlu0
        %v4359 = vpop.trf.xlu0
        %v4360 = vpop.trf.xlu0
        %v4361 = vpop.trf.xlu0
        %v4362 = vpop.trf.xlu0
        %v4363 = vpop.trf.xlu0
        %v4364 = vpop.trf.xlu0
        %v4365 = vpop.trf.xlu0
        %v4366 = vpop.trf.xlu0
        %v4367 = vpop.trf.xlu0
        %v4368 = vpop.trf.xlu0
        %v4369 = vpop.trf.xlu0
        %4370 = vxpose.xlu0.b32.start [1/16] %v3695, 128
        %4371 = vxpose.xlu0.b32.cont [2/16] 0.0, 128
        %4372 = vxpose.xlu0.b32.cont [3/16] 0.0, 128
        %4373 = vxpose.xlu0.b32.cont [4/16] 0.0, 128
        %4374 = vxpose.xlu0.b32.cont [5/16] 0.0, 128
        %4375 = vxpose.xlu0.b32.cont [6/16] 0.0, 128
        %4376 = vxpose.xlu0.b32.cont [7/16] 0.0, 128
        %4377 = vxpose.xlu0.b32.cont [8/16] 0.0, 128
        %4378 = vxpose.xlu0.b32.cont [9/16] 0.0, 128
        %4379 = vxpose.xlu0.b32.cont [10/16] 0.0, 128
        %4380 = vxpose.xlu0.b32.cont [11/16] 0.0, 128
        %4381 = vxpose.xlu0.b32.cont [12/16] 0.0, 128
        %4382 = vxpose.xlu0.b32.cont [13/16] 0.0, 128
        %4383 = vxpose.xlu0.b32.cont [14/16] 0.0, 128
        %4384 = vxpose.xlu0.b32.cont [15/16] 0.0, 128
        %4385 = vxpose.xlu0.b32.end [16/16] 0.0, 128
        %v4386 = vpop.trf.xlu0
        %v4387 = vpop.trf.xlu0
        %v4388 = vpop.trf.xlu0
        %v4389 = vpop.trf.xlu0
        %v4390 = vpop.trf.xlu0
        %v4391 = vpop.trf.xlu0
        %v4392 = vpop.trf.xlu0
        %v4393 = vpop.trf.xlu0
        %v4394 = vpop.trf.xlu0
        %v4395 = vpop.trf.xlu0
        %v4396 = vpop.trf.xlu0
        %v4397 = vpop.trf.xlu0
        %v4398 = vpop.trf.xlu0
        %v4399 = vpop.trf.xlu0
        %v4400 = vpop.trf.xlu0
        %v4401 = vpop.trf.xlu0
        %4402 = vxpose.xlu0.b32.start [1/16] %v3696, 128
        %4403 = vxpose.xlu0.b32.cont [2/16] 0.0, 128
        %4404 = vxpose.xlu0.b32.cont [3/16] 0.0, 128
        %4405 = vxpose.xlu0.b32.cont [4/16] 0.0, 128
        %4406 = vxpose.xlu0.b32.cont [5/16] 0.0, 128
        %4407 = vxpose.xlu0.b32.cont [6/16] 0.0, 128
        %4408 = vxpose.xlu0.b32.cont [7/16] 0.0, 128
        %4409 = vxpose.xlu0.b32.cont [8/16] 0.0, 128
        %4410 = vxpose.xlu0.b32.cont [9/16] 0.0, 128
        %4411 = vxpose.xlu0.b32.cont [10/16] 0.0, 128
        %4412 = vxpose.xlu0.b32.cont [11/16] 0.0, 128
        %4413 = vxpose.xlu0.b32.cont [12/16] 0.0, 128
        %4414 = vxpose.xlu0.b32.cont [13/16] 0.0, 128
        %4415 = vxpose.xlu0.b32.cont [14/16] 0.0, 128
        %4416 = vxpose.xlu0.b32.cont [15/16] 0.0, 128
        %4417 = vxpose.xlu0.b32.end [16/16] 0.0, 128
        %v4418 = vpop.trf.xlu0
        %v4419 = vpop.trf.xlu0
        %v4420 = vpop.trf.xlu0
        %v4421 = vpop.trf.xlu0
        %v4422 = vpop.trf.xlu0
        %v4423 = vpop.trf.xlu0
        %v4424 = vpop.trf.xlu0
        %v4425 = vpop.trf.xlu0
        %v4426 = vpop.trf.xlu0
        %v4427 = vpop.trf.xlu0
        %v4428 = vpop.trf.xlu0
        %v4429 = vpop.trf.xlu0
        %v4430 = vpop.trf.xlu0
        %v4431 = vpop.trf.xlu0
        %v4432 = vpop.trf.xlu0
        %v4433 = vpop.trf.xlu0
        %4434 = vxpose.xlu0.b32.start [1/16] %v3697, 128
        %4435 = vxpose.xlu0.b32.cont [2/16] 0.0, 128
        %4436 = vxpose.xlu0.b32.cont [3/16] 0.0, 128
        %4437 = vxpose.xlu0.b32.cont [4/16] 0.0, 128
        %4438 = vxpose.xlu0.b32.cont [5/16] 0.0, 128
        %4439 = vxpose.xlu0.b32.cont [6/16] 0.0, 128
        %4440 = vxpose.xlu0.b32.cont [7/16] 0.0, 128
        %4441 = vxpose.xlu0.b32.cont [8/16] 0.0, 128
        %4442 = vxpose.xlu0.b32.cont [9/16] 0.0, 128
        %4443 = vxpose.xlu0.b32.cont [10/16] 0.0, 128
        %4444 = vxpose.xlu0.b32.cont [11/16] 0.0, 128
        %4445 = vxpose.xlu0.b32.cont [12/16] 0.0, 128
        %4446 = vxpose.xlu0.b32.cont [13/16] 0.0, 128
        %4447 = vxpose.xlu0.b32.cont [14/16] 0.0, 128
        %4448 = vxpose.xlu0.b32.cont [15/16] 0.0, 128
        %4449 = vxpose.xlu0.b32.end [16/16] 0.0, 128
        %v4450 = vpop.trf.xlu0
        %v4451 = vpop.trf.xlu0
        %v4452 = vpop.trf.xlu0
        %v4453 = vpop.trf.xlu0
        %v4454 = vpop.trf.xlu0
        %v4455 = vpop.trf.xlu0
        %v4456 = vpop.trf.xlu0
        %v4457 = vpop.trf.xlu0
        %v4458 = vpop.trf.xlu0
        %v4459 = vpop.trf.xlu0
        %v4460 = vpop.trf.xlu0
        %v4461 = vpop.trf.xlu0
        %v4462 = vpop.trf.xlu0
        %v4463 = vpop.trf.xlu0
        %v4464 = vpop.trf.xlu0
        %v4465 = vpop.trf.xlu0
        %4466 = vxpose.xlu0.b32.start [1/16] %v3714, 128
        %4467 = vxpose.xlu0.b32.cont [2/16] %v3746, 128
        %4468 = vxpose.xlu0.b32.cont [3/16] %v3778, 128
        %4469 = vxpose.xlu0.b32.cont [4/16] %v3810, 128
        %4470 = vxpose.xlu0.b32.cont [5/16] %v3842, 128
        %4471 = vxpose.xlu0.b32.cont [6/16] %v3874, 128
        %4472 = vxpose.xlu0.b32.cont [7/16] %v3906, 128
        %4473 = vxpose.xlu0.b32.cont [8/16] %v3938, 128
        %4474 = vxpose.xlu0.b32.cont [9/16] %v3970, 128
        %4475 = vxpose.xlu0.b32.cont [10/16] %v4002, 128
        %4476 = vxpose.xlu0.b32.cont [11/16] %v4034, 128
        %4477 = vxpose.xlu0.b32.cont [12/16] %v4066, 128
        %4478 = vxpose.xlu0.b32.cont [13/16] %v4098, 128
        %4479 = vxpose.xlu0.b32.cont [14/16] %v4130, 128
        %4480 = vxpose.xlu0.b32.cont [15/16] %v4162, 128
        %4481 = vxpose.xlu0.b32.end [16/16] %v4194, 128
        %v4482 = vpop.trf.xlu0
        %v4483 = vpop.trf.xlu0
        %v4484 = vpop.trf.xlu0
        %v4485 = vpop.trf.xlu0
        %v4486 = vpop.trf.xlu0
        %v4487 = vpop.trf.xlu0
        %v4488 = vpop.trf.xlu0
        %v4489 = vpop.trf.xlu0
        %v4490 = vpop.trf.xlu0
        %v4491 = vpop.trf.xlu0
        %v4492 = vpop.trf.xlu0
        %v4493 = vpop.trf.xlu0
        %v4494 = vpop.trf.xlu0
        %v4495 = vpop.trf.xlu0
        %v4496 = vpop.trf.xlu0
        %v4497 = vpop.trf.xlu0
        %4498 = vxpose.xlu0.b32.start [1/16] %v4226, 128
        %4499 = vxpose.xlu0.b32.cont [2/16] %v4258, 128
        %4500 = vxpose.xlu0.b32.cont [3/16] %v4290, 128
        %4501 = vxpose.xlu0.b32.cont [4/16] %v4322, 128
        %4502 = vxpose.xlu0.b32.cont [5/16] %v4354, 128
        %4503 = vxpose.xlu0.b32.cont [6/16] %v4386, 128
        %4504 = vxpose.xlu0.b32.cont [7/16] %v4418, 128
        %4505 = vxpose.xlu0.b32.cont [8/16] %v4450, 128
        %4506 = vxpose.xlu0.b32.cont [9/16] 0.0, 128
        %4507 = vxpose.xlu0.b32.cont [10/16] 0.0, 128
        %4508 = vxpose.xlu0.b32.cont [11/16] 0.0, 128
        %4509 = vxpose.xlu0.b32.cont [12/16] 0.0, 128
        %4510 = vxpose.xlu0.b32.cont [13/16] 0.0, 128
        %4511 = vxpose.xlu0.b32.cont [14/16] 0.0, 128
        %4512 = vxpose.xlu0.b32.cont [15/16] 0.0, 128
        %4513 = vxpose.xlu0.b32.end [16/16] 0.0, 128
        %v4514 = vpop.trf.xlu0
        %v4515 = vpop.trf.xlu0
        %v4516 = vpop.trf.xlu0
        %v4517 = vpop.trf.xlu0
        %v4518 = vpop.trf.xlu0
        %v4519 = vpop.trf.xlu0
        %v4520 = vpop.trf.xlu0
        %v4521 = vpop.trf.xlu0
        %v4522 = vpop.trf.xlu0
        %v4523 = vpop.trf.xlu0
        %v4524 = vpop.trf.xlu0
        %v4525 = vpop.trf.xlu0
        %v4526 = vpop.trf.xlu0
        %v4527 = vpop.trf.xlu0
        %v4528 = vpop.trf.xlu0
        %v4529 = vpop.trf.xlu0
        %4530 = vst [vmem:[#allocation2 + $0x40] sm:$0xff] %v4482
        %4531 = vst.msk [vmem:[#allocation2 + $0x48] sm:$0xff] %vm1094, %v4514
        %s4532 = scalar_lea.vmem %s204, 320 [#allocation3]
        %v4533 = vld [vmem:[%s4532] sm:$0xff]
        %v4534 = vld [vmem:[%s4532 + $0x8] sm:$0xff]
        %v4535 = vld [vmem:[%s4532 + $0x10] sm:$0xff]
        %v4536 = vld [vmem:[%s4532 + $0x18] sm:$0xff]
        %v4537 = vld [vmem:[%s4532 + $0x20] sm:$0xff]
        %v4538 = vld [vmem:[%s4532 + $0x28] sm:$0xff]
        %v4539 = vld [vmem:[%s4532 + $0x30] sm:$0xff]
        %v4540 = vld [vmem:[%s4532 + $0x38] sm:$0xff]
        %v4541 = vld [vmem:[%s4532 + $0x200] sm:$0xff]
        %v4542 = vld [vmem:[%s4532 + $0x208] sm:$0xff]
        %v4543 = vld [vmem:[%s4532 + $0x210] sm:$0xff]
        %v4544 = vld [vmem:[%s4532 + $0x218] sm:$0xff]
        %v4545 = vld [vmem:[%s4532 + $0x220] sm:$0xff]
        %v4546 = vld [vmem:[%s4532 + $0x228] sm:$0xff]
        %v4547 = vld [vmem:[%s4532 + $0x230] sm:$0xff]
        %v4548 = vld [vmem:[%s4532 + $0x238] sm:$0xff]
        %v4549 = vld [vmem:[%s4532 + $0x400] sm:$0xff]
        %v4550 = vld [vmem:[%s4532 + $0x408] sm:$0xff]
        %v4551 = vld [vmem:[%s4532 + $0x410] sm:$0xff]
        %v4552 = vld [vmem:[%s4532 + $0x418] sm:$0xff]
        %v4553 = vld [vmem:[%s4532 + $0x420] sm:$0xff]
        %v4554 = vld [vmem:[%s4532 + $0x428] sm:$0xff]
        %v4555 = vld [vmem:[%s4532 + $0x430] sm:$0xff]
        %v4556 = vld [vmem:[%s4532 + $0x438] sm:$0xff]
        %4557 = vxpose.xlu0.b32.start [1/16] %v4533, 128
        %4558 = vxpose.xlu0.b32.cont [2/16] 0.0, 128
        %4559 = vxpose.xlu0.b32.cont [3/16] 0.0, 128
        %4560 = vxpose.xlu0.b32.cont [4/16] 0.0, 128
        %4561 = vxpose.xlu0.b32.cont [5/16] 0.0, 128
        %4562 = vxpose.xlu0.b32.cont [6/16] 0.0, 128
        %4563 = vxpose.xlu0.b32.cont [7/16] 0.0, 128
        %4564 = vxpose.xlu0.b32.cont [8/16] 0.0, 128
        %4565 = vxpose.xlu0.b32.cont [9/16] 0.0, 128
        %4566 = vxpose.xlu0.b32.cont [10/16] 0.0, 128
        %4567 = vxpose.xlu0.b32.cont [11/16] 0.0, 128
        %4568 = vxpose.xlu0.b32.cont [12/16] 0.0, 128
        %4569 = vxpose.xlu0.b32.cont [13/16] 0.0, 128
        %4570 = vxpose.xlu0.b32.cont [14/16] 0.0, 128
        %4571 = vxpose.xlu0.b32.cont [15/16] 0.0, 128
        %4572 = vxpose.xlu0.b32.end [16/16] 0.0, 128
        %v4573 = vpop.trf.xlu0
        %v4574 = vpop.trf.xlu0
        %v4575 = vpop.trf.xlu0
        %v4576 = vpop.trf.xlu0
        %v4577 = vpop.trf.xlu0
        %v4578 = vpop.trf.xlu0
        %v4579 = vpop.trf.xlu0
        %v4580 = vpop.trf.xlu0
        %v4581 = vpop.trf.xlu0
        %v4582 = vpop.trf.xlu0
        %v4583 = vpop.trf.xlu0
        %v4584 = vpop.trf.xlu0
        %v4585 = vpop.trf.xlu0
        %v4586 = vpop.trf.xlu0
        %v4587 = vpop.trf.xlu0
        %v4588 = vpop.trf.xlu0
        %4589 = vxpose.xlu0.b32.start [1/16] %v4534, 128
        %4590 = vxpose.xlu0.b32.cont [2/16] 0.0, 128
        %4591 = vxpose.xlu0.b32.cont [3/16] 0.0, 128
        %4592 = vxpose.xlu0.b32.cont [4/16] 0.0, 128
        %4593 = vxpose.xlu0.b32.cont [5/16] 0.0, 128
        %4594 = vxpose.xlu0.b32.cont [6/16] 0.0, 128
        %4595 = vxpose.xlu0.b32.cont [7/16] 0.0, 128
        %4596 = vxpose.xlu0.b32.cont [8/16] 0.0, 128
        %4597 = vxpose.xlu0.b32.cont [9/16] 0.0, 128
        %4598 = vxpose.xlu0.b32.cont [10/16] 0.0, 128
        %4599 = vxpose.xlu0.b32.cont [11/16] 0.0, 128
        %4600 = vxpose.xlu0.b32.cont [12/16] 0.0, 128
        %4601 = vxpose.xlu0.b32.cont [13/16] 0.0, 128
        %4602 = vxpose.xlu0.b32.cont [14/16] 0.0, 128
        %4603 = vxpose.xlu0.b32.cont [15/16] 0.0, 128
        %4604 = vxpose.xlu0.b32.end [16/16] 0.0, 128
        %v4605 = vpop.trf.xlu0
        %v4606 = vpop.trf.xlu0
        %v4607 = vpop.trf.xlu0
        %v4608 = vpop.trf.xlu0
        %v4609 = vpop.trf.xlu0
        %v4610 = vpop.trf.xlu0
        %v4611 = vpop.trf.xlu0
        %v4612 = vpop.trf.xlu0
        %v4613 = vpop.trf.xlu0
        %v4614 = vpop.trf.xlu0
        %v4615 = vpop.trf.xlu0
        %v4616 = vpop.trf.xlu0
        %v4617 = vpop.trf.xlu0
        %v4618 = vpop.trf.xlu0
        %v4619 = vpop.trf.xlu0
        %v4620 = vpop.trf.xlu0
        %4621 = vxpose.xlu0.b32.start [1/16] %v4535, 128
        %4622 = vxpose.xlu0.b32.cont [2/16] 0.0, 128
        %4623 = vxpose.xlu0.b32.cont [3/16] 0.0, 128
        %4624 = vxpose.xlu0.b32.cont [4/16] 0.0, 128
        %4625 = vxpose.xlu0.b32.cont [5/16] 0.0, 128
        %4626 = vxpose.xlu0.b32.cont [6/16] 0.0, 128
        %4627 = vxpose.xlu0.b32.cont [7/16] 0.0, 128
        %4628 = vxpose.xlu0.b32.cont [8/16] 0.0, 128
        %4629 = vxpose.xlu0.b32.cont [9/16] 0.0, 128
        %4630 = vxpose.xlu0.b32.cont [10/16] 0.0, 128
        %4631 = vxpose.xlu0.b32.cont [11/16] 0.0, 128
        %4632 = vxpose.xlu0.b32.cont [12/16] 0.0, 128
        %4633 = vxpose.xlu0.b32.cont [13/16] 0.0, 128
        %4634 = vxpose.xlu0.b32.cont [14/16] 0.0, 128
        %4635 = vxpose.xlu0.b32.cont [15/16] 0.0, 128
        %4636 = vxpose.xlu0.b32.end [16/16] 0.0, 128
        %v4637 = vpop.trf.xlu0
        %v4638 = vpop.trf.xlu0
        %v4639 = vpop.trf.xlu0
        %v4640 = vpop.trf.xlu0
        %v4641 = vpop.trf.xlu0
        %v4642 = vpop.trf.xlu0
        %v4643 = vpop.trf.xlu0
        %v4644 = vpop.trf.xlu0
        %v4645 = vpop.trf.xlu0
        %v4646 = vpop.trf.xlu0
        %v4647 = vpop.trf.xlu0
        %v4648 = vpop.trf.xlu0
        %v4649 = vpop.trf.xlu0
        %v4650 = vpop.trf.xlu0
        %v4651 = vpop.trf.xlu0
        %v4652 = vpop.trf.xlu0
        %4653 = vxpose.xlu0.b32.start [1/16] %v4536, 128
        %4654 = vxpose.xlu0.b32.cont [2/16] 0.0, 128
        %4655 = vxpose.xlu0.b32.cont [3/16] 0.0, 128
        %4656 = vxpose.xlu0.b32.cont [4/16] 0.0, 128
        %4657 = vxpose.xlu0.b32.cont [5/16] 0.0, 128
        %4658 = vxpose.xlu0.b32.cont [6/16] 0.0, 128
        %4659 = vxpose.xlu0.b32.cont [7/16] 0.0, 128
        %4660 = vxpose.xlu0.b32.cont [8/16] 0.0, 128
        %4661 = vxpose.xlu0.b32.cont [9/16] 0.0, 128
        %4662 = vxpose.xlu0.b32.cont [10/16] 0.0, 128
        %4663 = vxpose.xlu0.b32.cont [11/16] 0.0, 128
        %4664 = vxpose.xlu0.b32.cont [12/16] 0.0, 128
        %4665 = vxpose.xlu0.b32.cont [13/16] 0.0, 128
        %4666 = vxpose.xlu0.b32.cont [14/16] 0.0, 128
        %4667 = vxpose.xlu0.b32.cont [15/16] 0.0, 128
        %4668 = vxpose.xlu0.b32.end [16/16] 0.0, 128
        %v4669 = vpop.trf.xlu0
        %v4670 = vpop.trf.xlu0
        %v4671 = vpop.trf.xlu0
        %v4672 = vpop.trf.xlu0
        %v4673 = vpop.trf.xlu0
        %v4674 = vpop.trf.xlu0
        %v4675 = vpop.trf.xlu0
        %v4676 = vpop.trf.xlu0
        %v4677 = vpop.trf.xlu0
        %v4678 = vpop.trf.xlu0
        %v4679 = vpop.trf.xlu0
        %v4680 = vpop.trf.xlu0
        %v4681 = vpop.trf.xlu0
        %v4682 = vpop.trf.xlu0
        %v4683 = vpop.trf.xlu0
        %v4684 = vpop.trf.xlu0
        %4685 = vxpose.xlu0.b32.start [1/16] %v4537, 128
        %4686 = vxpose.xlu0.b32.cont [2/16] 0.0, 128
        %4687 = vxpose.xlu0.b32.cont [3/16] 0.0, 128
        %4688 = vxpose.xlu0.b32.cont [4/16] 0.0, 128
        %4689 = vxpose.xlu0.b32.cont [5/16] 0.0, 128
        %4690 = vxpose.xlu0.b32.cont [6/16] 0.0, 128
        %4691 = vxpose.xlu0.b32.cont [7/16] 0.0, 128
        %4692 = vxpose.xlu0.b32.cont [8/16] 0.0, 128
        %4693 = vxpose.xlu0.b32.cont [9/16] 0.0, 128
        %4694 = vxpose.xlu0.b32.cont [10/16] 0.0, 128
        %4695 = vxpose.xlu0.b32.cont [11/16] 0.0, 128
        %4696 = vxpose.xlu0.b32.cont [12/16] 0.0, 128
        %4697 = vxpose.xlu0.b32.cont [13/16] 0.0, 128
        %4698 = vxpose.xlu0.b32.cont [14/16] 0.0, 128
        %4699 = vxpose.xlu0.b32.cont [15/16] 0.0, 128
        %4700 = vxpose.xlu0.b32.end [16/16] 0.0, 128
        %v4701 = vpop.trf.xlu0
        %v4702 = vpop.trf.xlu0
        %v4703 = vpop.trf.xlu0
        %v4704 = vpop.trf.xlu0
        %v4705 = vpop.trf.xlu0
        %v4706 = vpop.trf.xlu0
        %v4707 = vpop.trf.xlu0
        %v4708 = vpop.trf.xlu0
        %v4709 = vpop.trf.xlu0
        %v4710 = vpop.trf.xlu0
        %v4711 = vpop.trf.xlu0
        %v4712 = vpop.trf.xlu0
        %v4713 = vpop.trf.xlu0
        %v4714 = vpop.trf.xlu0
        %v4715 = vpop.trf.xlu0
        %v4716 = vpop.trf.xlu0
        %4717 = vxpose.xlu0.b32.start [1/16] %v4538, 128
        %4718 = vxpose.xlu0.b32.cont [2/16] 0.0, 128
        %4719 = vxpose.xlu0.b32.cont [3/16] 0.0, 128
        %4720 = vxpose.xlu0.b32.cont [4/16] 0.0, 128
        %4721 = vxpose.xlu0.b32.cont [5/16] 0.0, 128
        %4722 = vxpose.xlu0.b32.cont [6/16] 0.0, 128
        %4723 = vxpose.xlu0.b32.cont [7/16] 0.0, 128
        %4724 = vxpose.xlu0.b32.cont [8/16] 0.0, 128
        %4725 = vxpose.xlu0.b32.cont [9/16] 0.0, 128
        %4726 = vxpose.xlu0.b32.cont [10/16] 0.0, 128
        %4727 = vxpose.xlu0.b32.cont [11/16] 0.0, 128
        %4728 = vxpose.xlu0.b32.cont [12/16] 0.0, 128
        %4729 = vxpose.xlu0.b32.cont [13/16] 0.0, 128
        %4730 = vxpose.xlu0.b32.cont [14/16] 0.0, 128
        %4731 = vxpose.xlu0.b32.cont [15/16] 0.0, 128
        %4732 = vxpose.xlu0.b32.end [16/16] 0.0, 128
        %v4733 = vpop.trf.xlu0
        %v4734 = vpop.trf.xlu0
        %v4735 = vpop.trf.xlu0
        %v4736 = vpop.trf.xlu0
        %v4737 = vpop.trf.xlu0
        %v4738 = vpop.trf.xlu0
        %v4739 = vpop.trf.xlu0
        %v4740 = vpop.trf.xlu0
        %v4741 = vpop.trf.xlu0
        %v4742 = vpop.trf.xlu0
        %v4743 = vpop.trf.xlu0
        %v4744 = vpop.trf.xlu0
        %v4745 = vpop.trf.xlu0
        %v4746 = vpop.trf.xlu0
        %v4747 = vpop.trf.xlu0
        %v4748 = vpop.trf.xlu0
        %4749 = vxpose.xlu0.b32.start [1/16] %v4539, 128
        %4750 = vxpose.xlu0.b32.cont [2/16] 0.0, 128
        %4751 = vxpose.xlu0.b32.cont [3/16] 0.0, 128
        %4752 = vxpose.xlu0.b32.cont [4/16] 0.0, 128
        %4753 = vxpose.xlu0.b32.cont [5/16] 0.0, 128
        %4754 = vxpose.xlu0.b32.cont [6/16] 0.0, 128
        %4755 = vxpose.xlu0.b32.cont [7/16] 0.0, 128
        %4756 = vxpose.xlu0.b32.cont [8/16] 0.0, 128
        %4757 = vxpose.xlu0.b32.cont [9/16] 0.0, 128
        %4758 = vxpose.xlu0.b32.cont [10/16] 0.0, 128
        %4759 = vxpose.xlu0.b32.cont [11/16] 0.0, 128
        %4760 = vxpose.xlu0.b32.cont [12/16] 0.0, 128
        %4761 = vxpose.xlu0.b32.cont [13/16] 0.0, 128
        %4762 = vxpose.xlu0.b32.cont [14/16] 0.0, 128
        %4763 = vxpose.xlu0.b32.cont [15/16] 0.0, 128
        %4764 = vxpose.xlu0.b32.end [16/16] 0.0, 128
        %v4765 = vpop.trf.xlu0
        %v4766 = vpop.trf.xlu0
        %v4767 = vpop.trf.xlu0
        %v4768 = vpop.trf.xlu0
        %v4769 = vpop.trf.xlu0
        %v4770 = vpop.trf.xlu0
        %v4771 = vpop.trf.xlu0
        %v4772 = vpop.trf.xlu0
        %v4773 = vpop.trf.xlu0
        %v4774 = vpop.trf.xlu0
        %v4775 = vpop.trf.xlu0
        %v4776 = vpop.trf.xlu0
        %v4777 = vpop.trf.xlu0
        %v4778 = vpop.trf.xlu0
        %v4779 = vpop.trf.xlu0
        %v4780 = vpop.trf.xlu0
        %4781 = vxpose.xlu0.b32.start [1/16] %v4540, 128
        %4782 = vxpose.xlu0.b32.cont [2/16] 0.0, 128
        %4783 = vxpose.xlu0.b32.cont [3/16] 0.0, 128
        %4784 = vxpose.xlu0.b32.cont [4/16] 0.0, 128
        %4785 = vxpose.xlu0.b32.cont [5/16] 0.0, 128
        %4786 = vxpose.xlu0.b32.cont [6/16] 0.0, 128
        %4787 = vxpose.xlu0.b32.cont [7/16] 0.0, 128
        %4788 = vxpose.xlu0.b32.cont [8/16] 0.0, 128
        %4789 = vxpose.xlu0.b32.cont [9/16] 0.0, 128
        %4790 = vxpose.xlu0.b32.cont [10/16] 0.0, 128
        %4791 = vxpose.xlu0.b32.cont [11/16] 0.0, 128
        %4792 = vxpose.xlu0.b32.cont [12/16] 0.0, 128
        %4793 = vxpose.xlu0.b32.cont [13/16] 0.0, 128
        %4794 = vxpose.xlu0.b32.cont [14/16] 0.0, 128
        %4795 = vxpose.xlu0.b32.cont [15/16] 0.0, 128
        %4796 = vxpose.xlu0.b32.end [16/16] 0.0, 128
        %v4797 = vpop.trf.xlu0
        %v4798 = vpop.trf.xlu0
        %v4799 = vpop.trf.xlu0
        %v4800 = vpop.trf.xlu0
        %v4801 = vpop.trf.xlu0
        %v4802 = vpop.trf.xlu0
        %v4803 = vpop.trf.xlu0
        %v4804 = vpop.trf.xlu0
        %v4805 = vpop.trf.xlu0
        %v4806 = vpop.trf.xlu0
        %v4807 = vpop.trf.xlu0
        %v4808 = vpop.trf.xlu0
        %v4809 = vpop.trf.xlu0
        %v4810 = vpop.trf.xlu0
        %v4811 = vpop.trf.xlu0
        %v4812 = vpop.trf.xlu0
        %4813 = vxpose.xlu0.b32.start [1/16] %v4541, 128
        %4814 = vxpose.xlu0.b32.cont [2/16] 0.0, 128
        %4815 = vxpose.xlu0.b32.cont [3/16] 0.0, 128
        %4816 = vxpose.xlu0.b32.cont [4/16] 0.0, 128
        %4817 = vxpose.xlu0.b32.cont [5/16] 0.0, 128
        %4818 = vxpose.xlu0.b32.cont [6/16] 0.0, 128
        %4819 = vxpose.xlu0.b32.cont [7/16] 0.0, 128
        %4820 = vxpose.xlu0.b32.cont [8/16] 0.0, 128
        %4821 = vxpose.xlu0.b32.cont [9/16] 0.0, 128
        %4822 = vxpose.xlu0.b32.cont [10/16] 0.0, 128
        %4823 = vxpose.xlu0.b32.cont [11/16] 0.0, 128
        %4824 = vxpose.xlu0.b32.cont [12/16] 0.0, 128
        %4825 = vxpose.xlu0.b32.cont [13/16] 0.0, 128
        %4826 = vxpose.xlu0.b32.cont [14/16] 0.0, 128
        %4827 = vxpose.xlu0.b32.cont [15/16] 0.0, 128
        %4828 = vxpose.xlu0.b32.end [16/16] 0.0, 128
        %v4829 = vpop.trf.xlu0
        %v4830 = vpop.trf.xlu0
        %v4831 = vpop.trf.xlu0
        %v4832 = vpop.trf.xlu0
        %v4833 = vpop.trf.xlu0
        %v4834 = vpop.trf.xlu0
        %v4835 = vpop.trf.xlu0
        %v4836 = vpop.trf.xlu0
        %v4837 = vpop.trf.xlu0
        %v4838 = vpop.trf.xlu0
        %v4839 = vpop.trf.xlu0
        %v4840 = vpop.trf.xlu0
        %v4841 = vpop.trf.xlu0
        %v4842 = vpop.trf.xlu0
        %v4843 = vpop.trf.xlu0
        %v4844 = vpop.trf.xlu0
        %4845 = vxpose.xlu0.b32.start [1/16] %v4542, 128
        %4846 = vxpose.xlu0.b32.cont [2/16] 0.0, 128
        %4847 = vxpose.xlu0.b32.cont [3/16] 0.0, 128
        %4848 = vxpose.xlu0.b32.cont [4/16] 0.0, 128
        %4849 = vxpose.xlu0.b32.cont [5/16] 0.0, 128
        %4850 = vxpose.xlu0.b32.cont [6/16] 0.0, 128
        %4851 = vxpose.xlu0.b32.cont [7/16] 0.0, 128
        %4852 = vxpose.xlu0.b32.cont [8/16] 0.0, 128
        %4853 = vxpose.xlu0.b32.cont [9/16] 0.0, 128
        %4854 = vxpose.xlu0.b32.cont [10/16] 0.0, 128
        %4855 = vxpose.xlu0.b32.cont [11/16] 0.0, 128
        %4856 = vxpose.xlu0.b32.cont [12/16] 0.0, 128
        %4857 = vxpose.xlu0.b32.cont [13/16] 0.0, 128
        %4858 = vxpose.xlu0.b32.cont [14/16] 0.0, 128
        %4859 = vxpose.xlu0.b32.cont [15/16] 0.0, 128
        %4860 = vxpose.xlu0.b32.end [16/16] 0.0, 128
        %v4861 = vpop.trf.xlu0
        %v4862 = vpop.trf.xlu0
        %v4863 = vpop.trf.xlu0
        %v4864 = vpop.trf.xlu0
        %v4865 = vpop.trf.xlu0
        %v4866 = vpop.trf.xlu0
        %v4867 = vpop.trf.xlu0
        %v4868 = vpop.trf.xlu0
        %v4869 = vpop.trf.xlu0
        %v4870 = vpop.trf.xlu0
        %v4871 = vpop.trf.xlu0
        %v4872 = vpop.trf.xlu0
        %v4873 = vpop.trf.xlu0
        %v4874 = vpop.trf.xlu0
        %v4875 = vpop.trf.xlu0
        %v4876 = vpop.trf.xlu0
        %4877 = vxpose.xlu0.b32.start [1/16] %v4543, 128
        %4878 = vxpose.xlu0.b32.cont [2/16] 0.0, 128
        %4879 = vxpose.xlu0.b32.cont [3/16] 0.0, 128
        %4880 = vxpose.xlu0.b32.cont [4/16] 0.0, 128
        %4881 = vxpose.xlu0.b32.cont [5/16] 0.0, 128
        %4882 = vxpose.xlu0.b32.cont [6/16] 0.0, 128
        %4883 = vxpose.xlu0.b32.cont [7/16] 0.0, 128
        %4884 = vxpose.xlu0.b32.cont [8/16] 0.0, 128
        %4885 = vxpose.xlu0.b32.cont [9/16] 0.0, 128
        %4886 = vxpose.xlu0.b32.cont [10/16] 0.0, 128
        %4887 = vxpose.xlu0.b32.cont [11/16] 0.0, 128
        %4888 = vxpose.xlu0.b32.cont [12/16] 0.0, 128
        %4889 = vxpose.xlu0.b32.cont [13/16] 0.0, 128
        %4890 = vxpose.xlu0.b32.cont [14/16] 0.0, 128
        %4891 = vxpose.xlu0.b32.cont [15/16] 0.0, 128
        %4892 = vxpose.xlu0.b32.end [16/16] 0.0, 128
        %v4893 = vpop.trf.xlu0
        %v4894 = vpop.trf.xlu0
        %v4895 = vpop.trf.xlu0
        %v4896 = vpop.trf.xlu0
        %v4897 = vpop.trf.xlu0
        %v4898 = vpop.trf.xlu0
        %v4899 = vpop.trf.xlu0
        %v4900 = vpop.trf.xlu0
        %v4901 = vpop.trf.xlu0
        %v4902 = vpop.trf.xlu0
        %v4903 = vpop.trf.xlu0
        %v4904 = vpop.trf.xlu0
        %v4905 = vpop.trf.xlu0
        %v4906 = vpop.trf.xlu0
        %v4907 = vpop.trf.xlu0
        %v4908 = vpop.trf.xlu0
        %4909 = vxpose.xlu0.b32.start [1/16] %v4544, 128
        %4910 = vxpose.xlu0.b32.cont [2/16] 0.0, 128
        %4911 = vxpose.xlu0.b32.cont [3/16] 0.0, 128
        %4912 = vxpose.xlu0.b32.cont [4/16] 0.0, 128
        %4913 = vxpose.xlu0.b32.cont [5/16] 0.0, 128
        %4914 = vxpose.xlu0.b32.cont [6/16] 0.0, 128
        %4915 = vxpose.xlu0.b32.cont [7/16] 0.0, 128
        %4916 = vxpose.xlu0.b32.cont [8/16] 0.0, 128
        %4917 = vxpose.xlu0.b32.cont [9/16] 0.0, 128
        %4918 = vxpose.xlu0.b32.cont [10/16] 0.0, 128
        %4919 = vxpose.xlu0.b32.cont [11/16] 0.0, 128
        %4920 = vxpose.xlu0.b32.cont [12/16] 0.0, 128
        %4921 = vxpose.xlu0.b32.cont [13/16] 0.0, 128
        %4922 = vxpose.xlu0.b32.cont [14/16] 0.0, 128
        %4923 = vxpose.xlu0.b32.cont [15/16] 0.0, 128
        %4924 = vxpose.xlu0.b32.end [16/16] 0.0, 128
        %v4925 = vpop.trf.xlu0
        %v4926 = vpop.trf.xlu0
        %v4927 = vpop.trf.xlu0
        %v4928 = vpop.trf.xlu0
        %v4929 = vpop.trf.xlu0
        %v4930 = vpop.trf.xlu0
        %v4931 = vpop.trf.xlu0
        %v4932 = vpop.trf.xlu0
        %v4933 = vpop.trf.xlu0
        %v4934 = vpop.trf.xlu0
        %v4935 = vpop.trf.xlu0
        %v4936 = vpop.trf.xlu0
        %v4937 = vpop.trf.xlu0
        %v4938 = vpop.trf.xlu0
        %v4939 = vpop.trf.xlu0
        %v4940 = vpop.trf.xlu0
        %4941 = vxpose.xlu0.b32.start [1/16] %v4545, 128
        %4942 = vxpose.xlu0.b32.cont [2/16] 0.0, 128
        %4943 = vxpose.xlu0.b32.cont [3/16] 0.0, 128
        %4944 = vxpose.xlu0.b32.cont [4/16] 0.0, 128
        %4945 = vxpose.xlu0.b32.cont [5/16] 0.0, 128
        %4946 = vxpose.xlu0.b32.cont [6/16] 0.0, 128
        %4947 = vxpose.xlu0.b32.cont [7/16] 0.0, 128
        %4948 = vxpose.xlu0.b32.cont [8/16] 0.0, 128
        %4949 = vxpose.xlu0.b32.cont [9/16] 0.0, 128
        %4950 = vxpose.xlu0.b32.cont [10/16] 0.0, 128
        %4951 = vxpose.xlu0.b32.cont [11/16] 0.0, 128
        %4952 = vxpose.xlu0.b32.cont [12/16] 0.0, 128
        %4953 = vxpose.xlu0.b32.cont [13/16] 0.0, 128
        %4954 = vxpose.xlu0.b32.cont [14/16] 0.0, 128
        %4955 = vxpose.xlu0.b32.cont [15/16] 0.0, 128
        %4956 = vxpose.xlu0.b32.end [16/16] 0.0, 128
        %v4957 = vpop.trf.xlu0
        %v4958 = vpop.trf.xlu0
        %v4959 = vpop.trf.xlu0
        %v4960 = vpop.trf.xlu0
        %v4961 = vpop.trf.xlu0
        %v4962 = vpop.trf.xlu0
        %v4963 = vpop.trf.xlu0
        %v4964 = vpop.trf.xlu0
        %v4965 = vpop.trf.xlu0
        %v4966 = vpop.trf.xlu0
        %v4967 = vpop.trf.xlu0
        %v4968 = vpop.trf.xlu0
        %v4969 = vpop.trf.xlu0
        %v4970 = vpop.trf.xlu0
        %v4971 = vpop.trf.xlu0
        %v4972 = vpop.trf.xlu0
        %4973 = vxpose.xlu0.b32.start [1/16] %v4546, 128
        %4974 = vxpose.xlu0.b32.cont [2/16] 0.0, 128
        %4975 = vxpose.xlu0.b32.cont [3/16] 0.0, 128
        %4976 = vxpose.xlu0.b32.cont [4/16] 0.0, 128
        %4977 = vxpose.xlu0.b32.cont [5/16] 0.0, 128
        %4978 = vxpose.xlu0.b32.cont [6/16] 0.0, 128
        %4979 = vxpose.xlu0.b32.cont [7/16] 0.0, 128
        %4980 = vxpose.xlu0.b32.cont [8/16] 0.0, 128
        %4981 = vxpose.xlu0.b32.cont [9/16] 0.0, 128
        %4982 = vxpose.xlu0.b32.cont [10/16] 0.0, 128
        %4983 = vxpose.xlu0.b32.cont [11/16] 0.0, 128
        %4984 = vxpose.xlu0.b32.cont [12/16] 0.0, 128
        %4985 = vxpose.xlu0.b32.cont [13/16] 0.0, 128
        %4986 = vxpose.xlu0.b32.cont [14/16] 0.0, 128
        %4987 = vxpose.xlu0.b32.cont [15/16] 0.0, 128
        %4988 = vxpose.xlu0.b32.end [16/16] 0.0, 128
        %v4989 = vpop.trf.xlu0
        %v4990 = vpop.trf.xlu0
        %v4991 = vpop.trf.xlu0
        %v4992 = vpop.trf.xlu0
        %v4993 = vpop.trf.xlu0
        %v4994 = vpop.trf.xlu0
        %v4995 = vpop.trf.xlu0
        %v4996 = vpop.trf.xlu0
        %v4997 = vpop.trf.xlu0
        %v4998 = vpop.trf.xlu0
        %v4999 = vpop.trf.xlu0
        %v5000 = vpop.trf.xlu0
        %v5001 = vpop.trf.xlu0
        %v5002 = vpop.trf.xlu0
        %v5003 = vpop.trf.xlu0
        %v5004 = vpop.trf.xlu0
        %5005 = vxpose.xlu0.b32.start [1/16] %v4547, 128
        %5006 = vxpose.xlu0.b32.cont [2/16] 0.0, 128
        %5007 = vxpose.xlu0.b32.cont [3/16] 0.0, 128
        %5008 = vxpose.xlu0.b32.cont [4/16] 0.0, 128
        %5009 = vxpose.xlu0.b32.cont [5/16] 0.0, 128
        %5010 = vxpose.xlu0.b32.cont [6/16] 0.0, 128
        %5011 = vxpose.xlu0.b32.cont [7/16] 0.0, 128
        %5012 = vxpose.xlu0.b32.cont [8/16] 0.0, 128
        %5013 = vxpose.xlu0.b32.cont [9/16] 0.0, 128
        %5014 = vxpose.xlu0.b32.cont [10/16] 0.0, 128
        %5015 = vxpose.xlu0.b32.cont [11/16] 0.0, 128
        %5016 = vxpose.xlu0.b32.cont [12/16] 0.0, 128
        %5017 = vxpose.xlu0.b32.cont [13/16] 0.0, 128
        %5018 = vxpose.xlu0.b32.cont [14/16] 0.0, 128
        %5019 = vxpose.xlu0.b32.cont [15/16] 0.0, 128
        %5020 = vxpose.xlu0.b32.end [16/16] 0.0, 128
        %v5021 = vpop.trf.xlu0
        %v5022 = vpop.trf.xlu0
        %v5023 = vpop.trf.xlu0
        %v5024 = vpop.trf.xlu0
        %v5025 = vpop.trf.xlu0
        %v5026 = vpop.trf.xlu0
        %v5027 = vpop.trf.xlu0
        %v5028 = vpop.trf.xlu0
        %v5029 = vpop.trf.xlu0
        %v5030 = vpop.trf.xlu0
        %v5031 = vpop.trf.xlu0
        %v5032 = vpop.trf.xlu0
        %v5033 = vpop.trf.xlu0
        %v5034 = vpop.trf.xlu0
        %v5035 = vpop.trf.xlu0
        %v5036 = vpop.trf.xlu0
        %5037 = vxpose.xlu0.b32.start [1/16] %v4548, 128
        %5038 = vxpose.xlu0.b32.cont [2/16] 0.0, 128
        %5039 = vxpose.xlu0.b32.cont [3/16] 0.0, 128
        %5040 = vxpose.xlu0.b32.cont [4/16] 0.0, 128
        %5041 = vxpose.xlu0.b32.cont [5/16] 0.0, 128
        %5042 = vxpose.xlu0.b32.cont [6/16] 0.0, 128
        %5043 = vxpose.xlu0.b32.cont [7/16] 0.0, 128
        %5044 = vxpose.xlu0.b32.cont [8/16] 0.0, 128
        %5045 = vxpose.xlu0.b32.cont [9/16] 0.0, 128
        %5046 = vxpose.xlu0.b32.cont [10/16] 0.0, 128
        %5047 = vxpose.xlu0.b32.cont [11/16] 0.0, 128
        %5048 = vxpose.xlu0.b32.cont [12/16] 0.0, 128
        %5049 = vxpose.xlu0.b32.cont [13/16] 0.0, 128
        %5050 = vxpose.xlu0.b32.cont [14/16] 0.0, 128
        %5051 = vxpose.xlu0.b32.cont [15/16] 0.0, 128
        %5052 = vxpose.xlu0.b32.end [16/16] 0.0, 128
        %v5053 = vpop.trf.xlu0
        %v5054 = vpop.trf.xlu0
        %v5055 = vpop.trf.xlu0
        %v5056 = vpop.trf.xlu0
        %v5057 = vpop.trf.xlu0
        %v5058 = vpop.trf.xlu0
        %v5059 = vpop.trf.xlu0
        %v5060 = vpop.trf.xlu0
        %v5061 = vpop.trf.xlu0
        %v5062 = vpop.trf.xlu0
        %v5063 = vpop.trf.xlu0
        %v5064 = vpop.trf.xlu0
        %v5065 = vpop.trf.xlu0
        %v5066 = vpop.trf.xlu0
        %v5067 = vpop.trf.xlu0
        %v5068 = vpop.trf.xlu0
        %5069 = vxpose.xlu0.b32.start [1/16] %v4549, 128
        %5070 = vxpose.xlu0.b32.cont [2/16] 0.0, 128
        %5071 = vxpose.xlu0.b32.cont [3/16] 0.0, 128
        %5072 = vxpose.xlu0.b32.cont [4/16] 0.0, 128
        %5073 = vxpose.xlu0.b32.cont [5/16] 0.0, 128
        %5074 = vxpose.xlu0.b32.cont [6/16] 0.0, 128
        %5075 = vxpose.xlu0.b32.cont [7/16] 0.0, 128
        %5076 = vxpose.xlu0.b32.cont [8/16] 0.0, 128
        %5077 = vxpose.xlu0.b32.cont [9/16] 0.0, 128
        %5078 = vxpose.xlu0.b32.cont [10/16] 0.0, 128
        %5079 = vxpose.xlu0.b32.cont [11/16] 0.0, 128
        %5080 = vxpose.xlu0.b32.cont [12/16] 0.0, 128
        %5081 = vxpose.xlu0.b32.cont [13/16] 0.0, 128
        %5082 = vxpose.xlu0.b32.cont [14/16] 0.0, 128
        %5083 = vxpose.xlu0.b32.cont [15/16] 0.0, 128
        %5084 = vxpose.xlu0.b32.end [16/16] 0.0, 128
        %v5085 = vpop.trf.xlu0
        %v5086 = vpop.trf.xlu0
        %v5087 = vpop.trf.xlu0
        %v5088 = vpop.trf.xlu0
        %v5089 = vpop.trf.xlu0
        %v5090 = vpop.trf.xlu0
        %v5091 = vpop.trf.xlu0
        %v5092 = vpop.trf.xlu0
        %v5093 = vpop.trf.xlu0
        %v5094 = vpop.trf.xlu0
        %v5095 = vpop.trf.xlu0
        %v5096 = vpop.trf.xlu0
        %v5097 = vpop.trf.xlu0
        %v5098 = vpop.trf.xlu0
        %v5099 = vpop.trf.xlu0
        %v5100 = vpop.trf.xlu0
        %5101 = vxpose.xlu0.b32.start [1/16] %v4550, 128
        %5102 = vxpose.xlu0.b32.cont [2/16] 0.0, 128
        %5103 = vxpose.xlu0.b32.cont [3/16] 0.0, 128
        %5104 = vxpose.xlu0.b32.cont [4/16] 0.0, 128
        %5105 = vxpose.xlu0.b32.cont [5/16] 0.0, 128
        %5106 = vxpose.xlu0.b32.cont [6/16] 0.0, 128
        %5107 = vxpose.xlu0.b32.cont [7/16] 0.0, 128
        %5108 = vxpose.xlu0.b32.cont [8/16] 0.0, 128
        %5109 = vxpose.xlu0.b32.cont [9/16] 0.0, 128
        %5110 = vxpose.xlu0.b32.cont [10/16] 0.0, 128
        %5111 = vxpose.xlu0.b32.cont [11/16] 0.0, 128
        %5112 = vxpose.xlu0.b32.cont [12/16] 0.0, 128
        %5113 = vxpose.xlu0.b32.cont [13/16] 0.0, 128
        %5114 = vxpose.xlu0.b32.cont [14/16] 0.0, 128
        %5115 = vxpose.xlu0.b32.cont [15/16] 0.0, 128
        %5116 = vxpose.xlu0.b32.end [16/16] 0.0, 128
        %v5117 = vpop.trf.xlu0
        %v5118 = vpop.trf.xlu0
        %v5119 = vpop.trf.xlu0
        %v5120 = vpop.trf.xlu0
        %v5121 = vpop.trf.xlu0
        %v5122 = vpop.trf.xlu0
        %v5123 = vpop.trf.xlu0
        %v5124 = vpop.trf.xlu0
        %v5125 = vpop.trf.xlu0
        %v5126 = vpop.trf.xlu0
        %v5127 = vpop.trf.xlu0
        %v5128 = vpop.trf.xlu0
        %v5129 = vpop.trf.xlu0
        %v5130 = vpop.trf.xlu0
        %v5131 = vpop.trf.xlu0
        %v5132 = vpop.trf.xlu0
        %5133 = vxpose.xlu0.b32.start [1/16] %v4551, 128
        %5134 = vxpose.xlu0.b32.cont [2/16] 0.0, 128
        %5135 = vxpose.xlu0.b32.cont [3/16] 0.0, 128
        %5136 = vxpose.xlu0.b32.cont [4/16] 0.0, 128
        %5137 = vxpose.xlu0.b32.cont [5/16] 0.0, 128
        %5138 = vxpose.xlu0.b32.cont [6/16] 0.0, 128
        %5139 = vxpose.xlu0.b32.cont [7/16] 0.0, 128
        %5140 = vxpose.xlu0.b32.cont [8/16] 0.0, 128
        %5141 = vxpose.xlu0.b32.cont [9/16] 0.0, 128
        %5142 = vxpose.xlu0.b32.cont [10/16] 0.0, 128
        %5143 = vxpose.xlu0.b32.cont [11/16] 0.0, 128
        %5144 = vxpose.xlu0.b32.cont [12/16] 0.0, 128
        %5145 = vxpose.xlu0.b32.cont [13/16] 0.0, 128
        %5146 = vxpose.xlu0.b32.cont [14/16] 0.0, 128
        %5147 = vxpose.xlu0.b32.cont [15/16] 0.0, 128
        %5148 = vxpose.xlu0.b32.end [16/16] 0.0, 128
        %v5149 = vpop.trf.xlu0
        %v5150 = vpop.trf.xlu0
        %v5151 = vpop.trf.xlu0
        %v5152 = vpop.trf.xlu0
        %v5153 = vpop.trf.xlu0
        %v5154 = vpop.trf.xlu0
        %v5155 = vpop.trf.xlu0
        %v5156 = vpop.trf.xlu0
        %v5157 = vpop.trf.xlu0
        %v5158 = vpop.trf.xlu0
        %v5159 = vpop.trf.xlu0
        %v5160 = vpop.trf.xlu0
        %v5161 = vpop.trf.xlu0
        %v5162 = vpop.trf.xlu0
        %v5163 = vpop.trf.xlu0
        %v5164 = vpop.trf.xlu0
        %5165 = vxpose.xlu0.b32.start [1/16] %v4552, 128
        %5166 = vxpose.xlu0.b32.cont [2/16] 0.0, 128
        %5167 = vxpose.xlu0.b32.cont [3/16] 0.0, 128
        %5168 = vxpose.xlu0.b32.cont [4/16] 0.0, 128
        %5169 = vxpose.xlu0.b32.cont [5/16] 0.0, 128
        %5170 = vxpose.xlu0.b32.cont [6/16] 0.0, 128
        %5171 = vxpose.xlu0.b32.cont [7/16] 0.0, 128
        %5172 = vxpose.xlu0.b32.cont [8/16] 0.0, 128
        %5173 = vxpose.xlu0.b32.cont [9/16] 0.0, 128
        %5174 = vxpose.xlu0.b32.cont [10/16] 0.0, 128
        %5175 = vxpose.xlu0.b32.cont [11/16] 0.0, 128
        %5176 = vxpose.xlu0.b32.cont [12/16] 0.0, 128
        %5177 = vxpose.xlu0.b32.cont [13/16] 0.0, 128
        %5178 = vxpose.xlu0.b32.cont [14/16] 0.0, 128
        %5179 = vxpose.xlu0.b32.cont [15/16] 0.0, 128
        %5180 = vxpose.xlu0.b32.end [16/16] 0.0, 128
        %v5181 = vpop.trf.xlu0
        %v5182 = vpop.trf.xlu0
        %v5183 = vpop.trf.xlu0
        %v5184 = vpop.trf.xlu0
        %v5185 = vpop.trf.xlu0
        %v5186 = vpop.trf.xlu0
        %v5187 = vpop.trf.xlu0
        %v5188 = vpop.trf.xlu0
        %v5189 = vpop.trf.xlu0
        %v5190 = vpop.trf.xlu0
        %v5191 = vpop.trf.xlu0
        %v5192 = vpop.trf.xlu0
        %v5193 = vpop.trf.xlu0
        %v5194 = vpop.trf.xlu0
        %v5195 = vpop.trf.xlu0
        %v5196 = vpop.trf.xlu0
        %5197 = vxpose.xlu0.b32.start [1/16] %v4553, 128
        %5198 = vxpose.xlu0.b32.cont [2/16] 0.0, 128
        %5199 = vxpose.xlu0.b32.cont [3/16] 0.0, 128
        %5200 = vxpose.xlu0.b32.cont [4/16] 0.0, 128
        %5201 = vxpose.xlu0.b32.cont [5/16] 0.0, 128
        %5202 = vxpose.xlu0.b32.cont [6/16] 0.0, 128
        %5203 = vxpose.xlu0.b32.cont [7/16] 0.0, 128
        %5204 = vxpose.xlu0.b32.cont [8/16] 0.0, 128
        %5205 = vxpose.xlu0.b32.cont [9/16] 0.0, 128
        %5206 = vxpose.xlu0.b32.cont [10/16] 0.0, 128
        %5207 = vxpose.xlu0.b32.cont [11/16] 0.0, 128
        %5208 = vxpose.xlu0.b32.cont [12/16] 0.0, 128
        %5209 = vxpose.xlu0.b32.cont [13/16] 0.0, 128
        %5210 = vxpose.xlu0.b32.cont [14/16] 0.0, 128
        %5211 = vxpose.xlu0.b32.cont [15/16] 0.0, 128
        %5212 = vxpose.xlu0.b32.end [16/16] 0.0, 128
        %v5213 = vpop.trf.xlu0
        %v5214 = vpop.trf.xlu0
        %v5215 = vpop.trf.xlu0
        %v5216 = vpop.trf.xlu0
        %v5217 = vpop.trf.xlu0
        %v5218 = vpop.trf.xlu0
        %v5219 = vpop.trf.xlu0
        %v5220 = vpop.trf.xlu0
        %v5221 = vpop.trf.xlu0
        %v5222 = vpop.trf.xlu0
        %v5223 = vpop.trf.xlu0
        %v5224 = vpop.trf.xlu0
        %v5225 = vpop.trf.xlu0
        %v5226 = vpop.trf.xlu0
        %v5227 = vpop.trf.xlu0
        %v5228 = vpop.trf.xlu0
        %5229 = vxpose.xlu0.b32.start [1/16] %v4554, 128
        %5230 = vxpose.xlu0.b32.cont [2/16] 0.0, 128
        %5231 = vxpose.xlu0.b32.cont [3/16] 0.0, 128
        %5232 = vxpose.xlu0.b32.cont [4/16] 0.0, 128
        %5233 = vxpose.xlu0.b32.cont [5/16] 0.0, 128
        %5234 = vxpose.xlu0.b32.cont [6/16] 0.0, 128
        %5235 = vxpose.xlu0.b32.cont [7/16] 0.0, 128
        %5236 = vxpose.xlu0.b32.cont [8/16] 0.0, 128
        %5237 = vxpose.xlu0.b32.cont [9/16] 0.0, 128
        %5238 = vxpose.xlu0.b32.cont [10/16] 0.0, 128
        %5239 = vxpose.xlu0.b32.cont [11/16] 0.0, 128
        %5240 = vxpose.xlu0.b32.cont [12/16] 0.0, 128
        %5241 = vxpose.xlu0.b32.cont [13/16] 0.0, 128
        %5242 = vxpose.xlu0.b32.cont [14/16] 0.0, 128
        %5243 = vxpose.xlu0.b32.cont [15/16] 0.0, 128
        %5244 = vxpose.xlu0.b32.end [16/16] 0.0, 128
        %v5245 = vpop.trf.xlu0
        %v5246 = vpop.trf.xlu0
        %v5247 = vpop.trf.xlu0
        %v5248 = vpop.trf.xlu0
        %v5249 = vpop.trf.xlu0
        %v5250 = vpop.trf.xlu0
        %v5251 = vpop.trf.xlu0
        %v5252 = vpop.trf.xlu0
        %v5253 = vpop.trf.xlu0
        %v5254 = vpop.trf.xlu0
        %v5255 = vpop.trf.xlu0
        %v5256 = vpop.trf.xlu0
        %v5257 = vpop.trf.xlu0
        %v5258 = vpop.trf.xlu0
        %v5259 = vpop.trf.xlu0
        %v5260 = vpop.trf.xlu0
        %5261 = vxpose.xlu0.b32.start [1/16] %v4555, 128
        %5262 = vxpose.xlu0.b32.cont [2/16] 0.0, 128
        %5263 = vxpose.xlu0.b32.cont [3/16] 0.0, 128
        %5264 = vxpose.xlu0.b32.cont [4/16] 0.0, 128
        %5265 = vxpose.xlu0.b32.cont [5/16] 0.0, 128
        %5266 = vxpose.xlu0.b32.cont [6/16] 0.0, 128
        %5267 = vxpose.xlu0.b32.cont [7/16] 0.0, 128
        %5268 = vxpose.xlu0.b32.cont [8/16] 0.0, 128
        %5269 = vxpose.xlu0.b32.cont [9/16] 0.0, 128
        %5270 = vxpose.xlu0.b32.cont [10/16] 0.0, 128
        %5271 = vxpose.xlu0.b32.cont [11/16] 0.0, 128
        %5272 = vxpose.xlu0.b32.cont [12/16] 0.0, 128
        %5273 = vxpose.xlu0.b32.cont [13/16] 0.0, 128
        %5274 = vxpose.xlu0.b32.cont [14/16] 0.0, 128
        %5275 = vxpose.xlu0.b32.cont [15/16] 0.0, 128
        %5276 = vxpose.xlu0.b32.end [16/16] 0.0, 128
        %v5277 = vpop.trf.xlu0
        %v5278 = vpop.trf.xlu0
        %v5279 = vpop.trf.xlu0
        %v5280 = vpop.trf.xlu0
        %v5281 = vpop.trf.xlu0
        %v5282 = vpop.trf.xlu0
        %v5283 = vpop.trf.xlu0
        %v5284 = vpop.trf.xlu0
        %v5285 = vpop.trf.xlu0
        %v5286 = vpop.trf.xlu0
        %v5287 = vpop.trf.xlu0
        %v5288 = vpop.trf.xlu0
        %v5289 = vpop.trf.xlu0
        %v5290 = vpop.trf.xlu0
        %v5291 = vpop.trf.xlu0
        %v5292 = vpop.trf.xlu0
        %5293 = vxpose.xlu0.b32.start [1/16] %v4556, 128
        %5294 = vxpose.xlu0.b32.cont [2/16] 0.0, 128
        %5295 = vxpose.xlu0.b32.cont [3/16] 0.0, 128
        %5296 = vxpose.xlu0.b32.cont [4/16] 0.0, 128
        %5297 = vxpose.xlu0.b32.cont [5/16] 0.0, 128
        %5298 = vxpose.xlu0.b32.cont [6/16] 0.0, 128
        %5299 = vxpose.xlu0.b32.cont [7/16] 0.0, 128
        %5300 = vxpose.xlu0.b32.cont [8/16] 0.0, 128
        %5301 = vxpose.xlu0.b32.cont [9/16] 0.0, 128
        %5302 = vxpose.xlu0.b32.cont [10/16] 0.0, 128
        %5303 = vxpose.xlu0.b32.cont [11/16] 0.0, 128
        %5304 = vxpose.xlu0.b32.cont [12/16] 0.0, 128
        %5305 = vxpose.xlu0.b32.cont [13/16] 0.0, 128
        %5306 = vxpose.xlu0.b32.cont [14/16] 0.0, 128
        %5307 = vxpose.xlu0.b32.cont [15/16] 0.0, 128
        %5308 = vxpose.xlu0.b32.end [16/16] 0.0, 128
        %v5309 = vpop.trf.xlu0
        %v5310 = vpop.trf.xlu0
        %v5311 = vpop.trf.xlu0
        %v5312 = vpop.trf.xlu0
        %v5313 = vpop.trf.xlu0
        %v5314 = vpop.trf.xlu0
        %v5315 = vpop.trf.xlu0
        %v5316 = vpop.trf.xlu0
        %v5317 = vpop.trf.xlu0
        %v5318 = vpop.trf.xlu0
        %v5319 = vpop.trf.xlu0
        %v5320 = vpop.trf.xlu0
        %v5321 = vpop.trf.xlu0
        %v5322 = vpop.trf.xlu0
        %v5323 = vpop.trf.xlu0
        %v5324 = vpop.trf.xlu0
        %5325 = vxpose.xlu0.b32.start [1/16] %v4573, 128
        %5326 = vxpose.xlu0.b32.cont [2/16] %v4605, 128
        %5327 = vxpose.xlu0.b32.cont [3/16] %v4637, 128
        %5328 = vxpose.xlu0.b32.cont [4/16] %v4669, 128
        %5329 = vxpose.xlu0.b32.cont [5/16] %v4701, 128
        %5330 = vxpose.xlu0.b32.cont [6/16] %v4733, 128
        %5331 = vxpose.xlu0.b32.cont [7/16] %v4765, 128
        %5332 = vxpose.xlu0.b32.cont [8/16] %v4797, 128
        %5333 = vxpose.xlu0.b32.cont [9/16] %v4829, 128
        %5334 = vxpose.xlu0.b32.cont [10/16] %v4861, 128
        %5335 = vxpose.xlu0.b32.cont [11/16] %v4893, 128
        %5336 = vxpose.xlu0.b32.cont [12/16] %v4925, 128
        %5337 = vxpose.xlu0.b32.cont [13/16] %v4957, 128
        %5338 = vxpose.xlu0.b32.cont [14/16] %v4989, 128
        %5339 = vxpose.xlu0.b32.cont [15/16] %v5021, 128
        %5340 = vxpose.xlu0.b32.end [16/16] %v5053, 128
        %v5341 = vpop.trf.xlu0
        %v5342 = vpop.trf.xlu0
        %v5343 = vpop.trf.xlu0
        %v5344 = vpop.trf.xlu0
        %v5345 = vpop.trf.xlu0
        %v5346 = vpop.trf.xlu0
        %v5347 = vpop.trf.xlu0
        %v5348 = vpop.trf.xlu0
        %v5349 = vpop.trf.xlu0
        %v5350 = vpop.trf.xlu0
        %v5351 = vpop.trf.xlu0
        %v5352 = vpop.trf.xlu0
        %v5353 = vpop.trf.xlu0
        %v5354 = vpop.trf.xlu0
        %v5355 = vpop.trf.xlu0
        %v5356 = vpop.trf.xlu0
        %5357 = vxpose.xlu0.b32.start [1/16] %v5085, 128
        %5358 = vxpose.xlu0.b32.cont [2/16] %v5117, 128
        %5359 = vxpose.xlu0.b32.cont [3/16] %v5149, 128
        %5360 = vxpose.xlu0.b32.cont [4/16] %v5181, 128
        %5361 = vxpose.xlu0.b32.cont [5/16] %v5213, 128
        %5362 = vxpose.xlu0.b32.cont [6/16] %v5245, 128
        %5363 = vxpose.xlu0.b32.cont [7/16] %v5277, 128
        %5364 = vxpose.xlu0.b32.cont [8/16] %v5309, 128
        %5365 = vxpose.xlu0.b32.cont [9/16] 0.0, 128
        %5366 = vxpose.xlu0.b32.cont [10/16] 0.0, 128
        %5367 = vxpose.xlu0.b32.cont [11/16] 0.0, 128
        %5368 = vxpose.xlu0.b32.cont [12/16] 0.0, 128
        %5369 = vxpose.xlu0.b32.cont [13/16] 0.0, 128
        %5370 = vxpose.xlu0.b32.cont [14/16] 0.0, 128
        %5371 = vxpose.xlu0.b32.cont [15/16] 0.0, 128
        %5372 = vxpose.xlu0.b32.end [16/16] 0.0, 128
        %v5373 = vpop.trf.xlu0
        %v5374 = vpop.trf.xlu0
        %v5375 = vpop.trf.xlu0
        %v5376 = vpop.trf.xlu0
        %v5377 = vpop.trf.xlu0
        %v5378 = vpop.trf.xlu0
        %v5379 = vpop.trf.xlu0
        %v5380 = vpop.trf.xlu0
        %v5381 = vpop.trf.xlu0
        %v5382 = vpop.trf.xlu0
        %v5383 = vpop.trf.xlu0
        %v5384 = vpop.trf.xlu0
        %v5385 = vpop.trf.xlu0
        %v5386 = vpop.trf.xlu0
        %v5387 = vpop.trf.xlu0
        %v5388 = vpop.trf.xlu0
        %5389 = vst [vmem:[#allocation2 + $0x50] sm:$0xff] %v5341
        %5390 = vst.msk [vmem:[#allocation2 + $0x58] sm:$0xff] %vm1094, %v5373
        %s5391 = scalar_lea.vmem %s204, 384 [#allocation3]
        %v5392 = vld [vmem:[%s5391] sm:$0xff]
        %v5393 = vld [vmem:[%s5391 + $0x8] sm:$0xff]
        %v5394 = vld [vmem:[%s5391 + $0x10] sm:$0xff]
        %v5395 = vld [vmem:[%s5391 + $0x18] sm:$0xff]
        %v5396 = vld [vmem:[%s5391 + $0x20] sm:$0xff]
        %v5397 = vld [vmem:[%s5391 + $0x28] sm:$0xff]
        %v5398 = vld [vmem:[%s5391 + $0x30] sm:$0xff]
        %v5399 = vld [vmem:[%s5391 + $0x38] sm:$0xff]
        %v5400 = vld [vmem:[%s5391 + $0x200] sm:$0xff]
        %v5401 = vld [vmem:[%s5391 + $0x208] sm:$0xff]
        %v5402 = vld [vmem:[%s5391 + $0x210] sm:$0xff]
        %v5403 = vld [vmem:[%s5391 + $0x218] sm:$0xff]
        %v5404 = vld [vmem:[%s5391 + $0x220] sm:$0xff]
        %v5405 = vld [vmem:[%s5391 + $0x228] sm:$0xff]
        %v5406 = vld [vmem:[%s5391 + $0x230] sm:$0xff]
        %v5407 = vld [vmem:[%s5391 + $0x238] sm:$0xff]
        %v5408 = vld [vmem:[%s5391 + $0x400] sm:$0xff]
        %v5409 = vld [vmem:[%s5391 + $0x408] sm:$0xff]
        %v5410 = vld [vmem:[%s5391 + $0x410] sm:$0xff]
        %v5411 = vld [vmem:[%s5391 + $0x418] sm:$0xff]
        %v5412 = vld [vmem:[%s5391 + $0x420] sm:$0xff]
        %v5413 = vld [vmem:[%s5391 + $0x428] sm:$0xff]
        %v5414 = vld [vmem:[%s5391 + $0x430] sm:$0xff]
        %v5415 = vld [vmem:[%s5391 + $0x438] sm:$0xff]
        %5416 = vxpose.xlu0.b32.start [1/16] %v5392, 128
        %5417 = vxpose.xlu0.b32.cont [2/16] 0.0, 128
        %5418 = vxpose.xlu0.b32.cont [3/16] 0.0, 128
        %5419 = vxpose.xlu0.b32.cont [4/16] 0.0, 128
        %5420 = vxpose.xlu0.b32.cont [5/16] 0.0, 128
        %5421 = vxpose.xlu0.b32.cont [6/16] 0.0, 128
        %5422 = vxpose.xlu0.b32.cont [7/16] 0.0, 128
        %5423 = vxpose.xlu0.b32.cont [8/16] 0.0, 128
        %5424 = vxpose.xlu0.b32.cont [9/16] 0.0, 128
        %5425 = vxpose.xlu0.b32.cont [10/16] 0.0, 128
        %5426 = vxpose.xlu0.b32.cont [11/16] 0.0, 128
        %5427 = vxpose.xlu0.b32.cont [12/16] 0.0, 128
        %5428 = vxpose.xlu0.b32.cont [13/16] 0.0, 128
        %5429 = vxpose.xlu0.b32.cont [14/16] 0.0, 128
        %5430 = vxpose.xlu0.b32.cont [15/16] 0.0, 128
        %5431 = vxpose.xlu0.b32.end [16/16] 0.0, 128
        %v5432 = vpop.trf.xlu0
        %v5433 = vpop.trf.xlu0
        %v5434 = vpop.trf.xlu0
        %v5435 = vpop.trf.xlu0
        %v5436 = vpop.trf.xlu0
        %v5437 = vpop.trf.xlu0
        %v5438 = vpop.trf.xlu0
        %v5439 = vpop.trf.xlu0
        %v5440 = vpop.trf.xlu0
        %v5441 = vpop.trf.xlu0
        %v5442 = vpop.trf.xlu0
        %v5443 = vpop.trf.xlu0
        %v5444 = vpop.trf.xlu0
        %v5445 = vpop.trf.xlu0
        %v5446 = vpop.trf.xlu0
        %v5447 = vpop.trf.xlu0
        %5448 = vxpose.xlu0.b32.start [1/16] %v5393, 128
        %5449 = vxpose.xlu0.b32.cont [2/16] 0.0, 128
        %5450 = vxpose.xlu0.b32.cont [3/16] 0.0, 128
        %5451 = vxpose.xlu0.b32.cont [4/16] 0.0, 128
        %5452 = vxpose.xlu0.b32.cont [5/16] 0.0, 128
        %5453 = vxpose.xlu0.b32.cont [6/16] 0.0, 128
        %5454 = vxpose.xlu0.b32.cont [7/16] 0.0, 128
        %5455 = vxpose.xlu0.b32.cont [8/16] 0.0, 128
        %5456 = vxpose.xlu0.b32.cont [9/16] 0.0, 128
        %5457 = vxpose.xlu0.b32.cont [10/16] 0.0, 128
        %5458 = vxpose.xlu0.b32.cont [11/16] 0.0, 128
        %5459 = vxpose.xlu0.b32.cont [12/16] 0.0, 128
        %5460 = vxpose.xlu0.b32.cont [13/16] 0.0, 128
        %5461 = vxpose.xlu0.b32.cont [14/16] 0.0, 128
        %5462 = vxpose.xlu0.b32.cont [15/16] 0.0, 128
        %5463 = vxpose.xlu0.b32.end [16/16] 0.0, 128
        %v5464 = vpop.trf.xlu0
        %v5465 = vpop.trf.xlu0
        %v5466 = vpop.trf.xlu0
        %v5467 = vpop.trf.xlu0
        %v5468 = vpop.trf.xlu0
        %v5469 = vpop.trf.xlu0
        %v5470 = vpop.trf.xlu0
        %v5471 = vpop.trf.xlu0
        %v5472 = vpop.trf.xlu0
        %v5473 = vpop.trf.xlu0
        %v5474 = vpop.trf.xlu0
        %v5475 = vpop.trf.xlu0
        %v5476 = vpop.trf.xlu0
        %v5477 = vpop.trf.xlu0
        %v5478 = vpop.trf.xlu0
        %v5479 = vpop.trf.xlu0
        %5480 = vxpose.xlu0.b32.start [1/16] %v5394, 128
        %5481 = vxpose.xlu0.b32.cont [2/16] 0.0, 128
        %5482 = vxpose.xlu0.b32.cont [3/16] 0.0, 128
        %5483 = vxpose.xlu0.b32.cont [4/16] 0.0, 128
        %5484 = vxpose.xlu0.b32.cont [5/16] 0.0, 128
        %5485 = vxpose.xlu0.b32.cont [6/16] 0.0, 128
        %5486 = vxpose.xlu0.b32.cont [7/16] 0.0, 128
        %5487 = vxpose.xlu0.b32.cont [8/16] 0.0, 128
        %5488 = vxpose.xlu0.b32.cont [9/16] 0.0, 128
        %5489 = vxpose.xlu0.b32.cont [10/16] 0.0, 128
        %5490 = vxpose.xlu0.b32.cont [11/16] 0.0, 128
        %5491 = vxpose.xlu0.b32.cont [12/16] 0.0, 128
        %5492 = vxpose.xlu0.b32.cont [13/16] 0.0, 128
        %5493 = vxpose.xlu0.b32.cont [14/16] 0.0, 128
        %5494 = vxpose.xlu0.b32.cont [15/16] 0.0, 128
        %5495 = vxpose.xlu0.b32.end [16/16] 0.0, 128
        %v5496 = vpop.trf.xlu0
        %v5497 = vpop.trf.xlu0
        %v5498 = vpop.trf.xlu0
        %v5499 = vpop.trf.xlu0
        %v5500 = vpop.trf.xlu0
        %v5501 = vpop.trf.xlu0
        %v5502 = vpop.trf.xlu0
        %v5503 = vpop.trf.xlu0
        %v5504 = vpop.trf.xlu0
        %v5505 = vpop.trf.xlu0
        %v5506 = vpop.trf.xlu0
        %v5507 = vpop.trf.xlu0
        %v5508 = vpop.trf.xlu0
        %v5509 = vpop.trf.xlu0
        %v5510 = vpop.trf.xlu0
        %v5511 = vpop.trf.xlu0
        %5512 = vxpose.xlu0.b32.start [1/16] %v5395, 128
        %5513 = vxpose.xlu0.b32.cont [2/16] 0.0, 128
        %5514 = vxpose.xlu0.b32.cont [3/16] 0.0, 128
        %5515 = vxpose.xlu0.b32.cont [4/16] 0.0, 128
        %5516 = vxpose.xlu0.b32.cont [5/16] 0.0, 128
        %5517 = vxpose.xlu0.b32.cont [6/16] 0.0, 128
        %5518 = vxpose.xlu0.b32.cont [7/16] 0.0, 128
        %5519 = vxpose.xlu0.b32.cont [8/16] 0.0, 128
        %5520 = vxpose.xlu0.b32.cont [9/16] 0.0, 128
        %5521 = vxpose.xlu0.b32.cont [10/16] 0.0, 128
        %5522 = vxpose.xlu0.b32.cont [11/16] 0.0, 128
        %5523 = vxpose.xlu0.b32.cont [12/16] 0.0, 128
        %5524 = vxpose.xlu0.b32.cont [13/16] 0.0, 128
        %5525 = vxpose.xlu0.b32.cont [14/16] 0.0, 128
        %5526 = vxpose.xlu0.b32.cont [15/16] 0.0, 128
        %5527 = vxpose.xlu0.b32.end [16/16] 0.0, 128
        %v5528 = vpop.trf.xlu0
        %v5529 = vpop.trf.xlu0
        %v5530 = vpop.trf.xlu0
        %v5531 = vpop.trf.xlu0
        %v5532 = vpop.trf.xlu0
        %v5533 = vpop.trf.xlu0
        %v5534 = vpop.trf.xlu0
        %v5535 = vpop.trf.xlu0
        %v5536 = vpop.trf.xlu0
        %v5537 = vpop.trf.xlu0
        %v5538 = vpop.trf.xlu0
        %v5539 = vpop.trf.xlu0
        %v5540 = vpop.trf.xlu0
        %v5541 = vpop.trf.xlu0
        %v5542 = vpop.trf.xlu0
        %v5543 = vpop.trf.xlu0
        %5544 = vxpose.xlu0.b32.start [1/16] %v5396, 128
        %5545 = vxpose.xlu0.b32.cont [2/16] 0.0, 128
        %5546 = vxpose.xlu0.b32.cont [3/16] 0.0, 128
        %5547 = vxpose.xlu0.b32.cont [4/16] 0.0, 128
        %5548 = vxpose.xlu0.b32.cont [5/16] 0.0, 128
        %5549 = vxpose.xlu0.b32.cont [6/16] 0.0, 128
        %5550 = vxpose.xlu0.b32.cont [7/16] 0.0, 128
        %5551 = vxpose.xlu0.b32.cont [8/16] 0.0, 128
        %5552 = vxpose.xlu0.b32.cont [9/16] 0.0, 128
        %5553 = vxpose.xlu0.b32.cont [10/16] 0.0, 128
        %5554 = vxpose.xlu0.b32.cont [11/16] 0.0, 128
        %5555 = vxpose.xlu0.b32.cont [12/16] 0.0, 128
        %5556 = vxpose.xlu0.b32.cont [13/16] 0.0, 128
        %5557 = vxpose.xlu0.b32.cont [14/16] 0.0, 128
        %5558 = vxpose.xlu0.b32.cont [15/16] 0.0, 128
        %5559 = vxpose.xlu0.b32.end [16/16] 0.0, 128
        %v5560 = vpop.trf.xlu0
        %v5561 = vpop.trf.xlu0
        %v5562 = vpop.trf.xlu0
        %v5563 = vpop.trf.xlu0
        %v5564 = vpop.trf.xlu0
        %v5565 = vpop.trf.xlu0
        %v5566 = vpop.trf.xlu0
        %v5567 = vpop.trf.xlu0
        %v5568 = vpop.trf.xlu0
        %v5569 = vpop.trf.xlu0
        %v5570 = vpop.trf.xlu0
        %v5571 = vpop.trf.xlu0
        %v5572 = vpop.trf.xlu0
        %v5573 = vpop.trf.xlu0
        %v5574 = vpop.trf.xlu0
        %v5575 = vpop.trf.xlu0
        %5576 = vxpose.xlu0.b32.start [1/16] %v5397, 128
        %5577 = vxpose.xlu0.b32.cont [2/16] 0.0, 128
        %5578 = vxpose.xlu0.b32.cont [3/16] 0.0, 128
        %5579 = vxpose.xlu0.b32.cont [4/16] 0.0, 128
        %5580 = vxpose.xlu0.b32.cont [5/16] 0.0, 128
        %5581 = vxpose.xlu0.b32.cont [6/16] 0.0, 128
        %5582 = vxpose.xlu0.b32.cont [7/16] 0.0, 128
        %5583 = vxpose.xlu0.b32.cont [8/16] 0.0, 128
        %5584 = vxpose.xlu0.b32.cont [9/16] 0.0, 128
        %5585 = vxpose.xlu0.b32.cont [10/16] 0.0, 128
        %5586 = vxpose.xlu0.b32.cont [11/16] 0.0, 128
        %5587 = vxpose.xlu0.b32.cont [12/16] 0.0, 128
        %5588 = vxpose.xlu0.b32.cont [13/16] 0.0, 128
        %5589 = vxpose.xlu0.b32.cont [14/16] 0.0, 128
        %5590 = vxpose.xlu0.b32.cont [15/16] 0.0, 128
        %5591 = vxpose.xlu0.b32.end [16/16] 0.0, 128
        %v5592 = vpop.trf.xlu0
        %v5593 = vpop.trf.xlu0
        %v5594 = vpop.trf.xlu0
        %v5595 = vpop.trf.xlu0
        %v5596 = vpop.trf.xlu0
        %v5597 = vpop.trf.xlu0
        %v5598 = vpop.trf.xlu0
        %v5599 = vpop.trf.xlu0
        %v5600 = vpop.trf.xlu0
        %v5601 = vpop.trf.xlu0
        %v5602 = vpop.trf.xlu0
        %v5603 = vpop.trf.xlu0
        %v5604 = vpop.trf.xlu0
        %v5605 = vpop.trf.xlu0
        %v5606 = vpop.trf.xlu0
        %v5607 = vpop.trf.xlu0
        %5608 = vxpose.xlu0.b32.start [1/16] %v5398, 128
        %5609 = vxpose.xlu0.b32.cont [2/16] 0.0, 128
        %5610 = vxpose.xlu0.b32.cont [3/16] 0.0, 128
        %5611 = vxpose.xlu0.b32.cont [4/16] 0.0, 128
        %5612 = vxpose.xlu0.b32.cont [5/16] 0.0, 128
        %5613 = vxpose.xlu0.b32.cont [6/16] 0.0, 128
        %5614 = vxpose.xlu0.b32.cont [7/16] 0.0, 128
        %5615 = vxpose.xlu0.b32.cont [8/16] 0.0, 128
        %5616 = vxpose.xlu0.b32.cont [9/16] 0.0, 128
        %5617 = vxpose.xlu0.b32.cont [10/16] 0.0, 128
        %5618 = vxpose.xlu0.b32.cont [11/16] 0.0, 128
        %5619 = vxpose.xlu0.b32.cont [12/16] 0.0, 128
        %5620 = vxpose.xlu0.b32.cont [13/16] 0.0, 128
        %5621 = vxpose.xlu0.b32.cont [14/16] 0.0, 128
        %5622 = vxpose.xlu0.b32.cont [15/16] 0.0, 128
        %5623 = vxpose.xlu0.b32.end [16/16] 0.0, 128
        %v5624 = vpop.trf.xlu0
        %v5625 = vpop.trf.xlu0
        %v5626 = vpop.trf.xlu0
        %v5627 = vpop.trf.xlu0
        %v5628 = vpop.trf.xlu0
        %v5629 = vpop.trf.xlu0
        %v5630 = vpop.trf.xlu0
        %v5631 = vpop.trf.xlu0
        %v5632 = vpop.trf.xlu0
        %v5633 = vpop.trf.xlu0
        %v5634 = vpop.trf.xlu0
        %v5635 = vpop.trf.xlu0
        %v5636 = vpop.trf.xlu0
        %v5637 = vpop.trf.xlu0
        %v5638 = vpop.trf.xlu0
        %v5639 = vpop.trf.xlu0
        %5640 = vxpose.xlu0.b32.start [1/16] %v5399, 128
        %5641 = vxpose.xlu0.b32.cont [2/16] 0.0, 128
        %5642 = vxpose.xlu0.b32.cont [3/16] 0.0, 128
        %5643 = vxpose.xlu0.b32.cont [4/16] 0.0, 128
        %5644 = vxpose.xlu0.b32.cont [5/16] 0.0, 128
        %5645 = vxpose.xlu0.b32.cont [6/16] 0.0, 128
        %5646 = vxpose.xlu0.b32.cont [7/16] 0.0, 128
        %5647 = vxpose.xlu0.b32.cont [8/16] 0.0, 128
        %5648 = vxpose.xlu0.b32.cont [9/16] 0.0, 128
        %5649 = vxpose.xlu0.b32.cont [10/16] 0.0, 128
        %5650 = vxpose.xlu0.b32.cont [11/16] 0.0, 128
        %5651 = vxpose.xlu0.b32.cont [12/16] 0.0, 128
        %5652 = vxpose.xlu0.b32.cont [13/16] 0.0, 128
        %5653 = vxpose.xlu0.b32.cont [14/16] 0.0, 128
        %5654 = vxpose.xlu0.b32.cont [15/16] 0.0, 128
        %5655 = vxpose.xlu0.b32.end [16/16] 0.0, 128
        %v5656 = vpop.trf.xlu0
        %v5657 = vpop.trf.xlu0
        %v5658 = vpop.trf.xlu0
        %v5659 = vpop.trf.xlu0
        %v5660 = vpop.trf.xlu0
        %v5661 = vpop.trf.xlu0
        %v5662 = vpop.trf.xlu0
        %v5663 = vpop.trf.xlu0
        %v5664 = vpop.trf.xlu0
        %v5665 = vpop.trf.xlu0
        %v5666 = vpop.trf.xlu0
        %v5667 = vpop.trf.xlu0
        %v5668 = vpop.trf.xlu0
        %v5669 = vpop.trf.xlu0
        %v5670 = vpop.trf.xlu0
        %v5671 = vpop.trf.xlu0
        %5672 = vxpose.xlu0.b32.start [1/16] %v5400, 128
        %5673 = vxpose.xlu0.b32.cont [2/16] 0.0, 128
        %5674 = vxpose.xlu0.b32.cont [3/16] 0.0, 128
        %5675 = vxpose.xlu0.b32.cont [4/16] 0.0, 128
        %5676 = vxpose.xlu0.b32.cont [5/16] 0.0, 128
        %5677 = vxpose.xlu0.b32.cont [6/16] 0.0, 128
        %5678 = vxpose.xlu0.b32.cont [7/16] 0.0, 128
        %5679 = vxpose.xlu0.b32.cont [8/16] 0.0, 128
        %5680 = vxpose.xlu0.b32.cont [9/16] 0.0, 128
        %5681 = vxpose.xlu0.b32.cont [10/16] 0.0, 128
        %5682 = vxpose.xlu0.b32.cont [11/16] 0.0, 128
        %5683 = vxpose.xlu0.b32.cont [12/16] 0.0, 128
        %5684 = vxpose.xlu0.b32.cont [13/16] 0.0, 128
        %5685 = vxpose.xlu0.b32.cont [14/16] 0.0, 128
        %5686 = vxpose.xlu0.b32.cont [15/16] 0.0, 128
        %5687 = vxpose.xlu0.b32.end [16/16] 0.0, 128
        %v5688 = vpop.trf.xlu0
        %v5689 = vpop.trf.xlu0
        %v5690 = vpop.trf.xlu0
        %v5691 = vpop.trf.xlu0
        %v5692 = vpop.trf.xlu0
        %v5693 = vpop.trf.xlu0
        %v5694 = vpop.trf.xlu0
        %v5695 = vpop.trf.xlu0
        %v5696 = vpop.trf.xlu0
        %v5697 = vpop.trf.xlu0
        %v5698 = vpop.trf.xlu0
        %v5699 = vpop.trf.xlu0
        %v5700 = vpop.trf.xlu0
        %v5701 = vpop.trf.xlu0
        %v5702 = vpop.trf.xlu0
        %v5703 = vpop.trf.xlu0
        %5704 = vxpose.xlu0.b32.start [1/16] %v5401, 128
        %5705 = vxpose.xlu0.b32.cont [2/16] 0.0, 128
        %5706 = vxpose.xlu0.b32.cont [3/16] 0.0, 128
        %5707 = vxpose.xlu0.b32.cont [4/16] 0.0, 128
        %5708 = vxpose.xlu0.b32.cont [5/16] 0.0, 128
        %5709 = vxpose.xlu0.b32.cont [6/16] 0.0, 128
        %5710 = vxpose.xlu0.b32.cont [7/16] 0.0, 128
        %5711 = vxpose.xlu0.b32.cont [8/16] 0.0, 128
        %5712 = vxpose.xlu0.b32.cont [9/16] 0.0, 128
        %5713 = vxpose.xlu0.b32.cont [10/16] 0.0, 128
        %5714 = vxpose.xlu0.b32.cont [11/16] 0.0, 128
        %5715 = vxpose.xlu0.b32.cont [12/16] 0.0, 128
        %5716 = vxpose.xlu0.b32.cont [13/16] 0.0, 128
        %5717 = vxpose.xlu0.b32.cont [14/16] 0.0, 128
        %5718 = vxpose.xlu0.b32.cont [15/16] 0.0, 128
        %5719 = vxpose.xlu0.b32.end [16/16] 0.0, 128
        %v5720 = vpop.trf.xlu0
        %v5721 = vpop.trf.xlu0
        %v5722 = vpop.trf.xlu0
        %v5723 = vpop.trf.xlu0
        %v5724 = vpop.trf.xlu0
        %v5725 = vpop.trf.xlu0
        %v5726 = vpop.trf.xlu0
        %v5727 = vpop.trf.xlu0
        %v5728 = vpop.trf.xlu0
        %v5729 = vpop.trf.xlu0
        %v5730 = vpop.trf.xlu0
        %v5731 = vpop.trf.xlu0
        %v5732 = vpop.trf.xlu0
        %v5733 = vpop.trf.xlu0
        %v5734 = vpop.trf.xlu0
        %v5735 = vpop.trf.xlu0
        %5736 = vxpose.xlu0.b32.start [1/16] %v5402, 128
        %5737 = vxpose.xlu0.b32.cont [2/16] 0.0, 128
        %5738 = vxpose.xlu0.b32.cont [3/16] 0.0, 128
        %5739 = vxpose.xlu0.b32.cont [4/16] 0.0, 128
        %5740 = vxpose.xlu0.b32.cont [5/16] 0.0, 128
        %5741 = vxpose.xlu0.b32.cont [6/16] 0.0, 128
        %5742 = vxpose.xlu0.b32.cont [7/16] 0.0, 128
        %5743 = vxpose.xlu0.b32.cont [8/16] 0.0, 128
        %5744 = vxpose.xlu0.b32.cont [9/16] 0.0, 128
        %5745 = vxpose.xlu0.b32.cont [10/16] 0.0, 128
        %5746 = vxpose.xlu0.b32.cont [11/16] 0.0, 128
        %5747 = vxpose.xlu0.b32.cont [12/16] 0.0, 128
        %5748 = vxpose.xlu0.b32.cont [13/16] 0.0, 128
        %5749 = vxpose.xlu0.b32.cont [14/16] 0.0, 128
        %5750 = vxpose.xlu0.b32.cont [15/16] 0.0, 128
        %5751 = vxpose.xlu0.b32.end [16/16] 0.0, 128
        %v5752 = vpop.trf.xlu0
        %v5753 = vpop.trf.xlu0
        %v5754 = vpop.trf.xlu0
        %v5755 = vpop.trf.xlu0
        %v5756 = vpop.trf.xlu0
        %v5757 = vpop.trf.xlu0
        %v5758 = vpop.trf.xlu0
        %v5759 = vpop.trf.xlu0
        %v5760 = vpop.trf.xlu0
        %v5761 = vpop.trf.xlu0
        %v5762 = vpop.trf.xlu0
        %v5763 = vpop.trf.xlu0
        %v5764 = vpop.trf.xlu0
        %v5765 = vpop.trf.xlu0
        %v5766 = vpop.trf.xlu0
        %v5767 = vpop.trf.xlu0
        %5768 = vxpose.xlu0.b32.start [1/16] %v5403, 128
        %5769 = vxpose.xlu0.b32.cont [2/16] 0.0, 128
        %5770 = vxpose.xlu0.b32.cont [3/16] 0.0, 128
        %5771 = vxpose.xlu0.b32.cont [4/16] 0.0, 128
        %5772 = vxpose.xlu0.b32.cont [5/16] 0.0, 128
        %5773 = vxpose.xlu0.b32.cont [6/16] 0.0, 128
        %5774 = vxpose.xlu0.b32.cont [7/16] 0.0, 128
        %5775 = vxpose.xlu0.b32.cont [8/16] 0.0, 128
        %5776 = vxpose.xlu0.b32.cont [9/16] 0.0, 128
        %5777 = vxpose.xlu0.b32.cont [10/16] 0.0, 128
        %5778 = vxpose.xlu0.b32.cont [11/16] 0.0, 128
        %5779 = vxpose.xlu0.b32.cont [12/16] 0.0, 128
        %5780 = vxpose.xlu0.b32.cont [13/16] 0.0, 128
        %5781 = vxpose.xlu0.b32.cont [14/16] 0.0, 128
        %5782 = vxpose.xlu0.b32.cont [15/16] 0.0, 128
        %5783 = vxpose.xlu0.b32.end [16/16] 0.0, 128
        %v5784 = vpop.trf.xlu0
        %v5785 = vpop.trf.xlu0
        %v5786 = vpop.trf.xlu0
        %v5787 = vpop.trf.xlu0
        %v5788 = vpop.trf.xlu0
        %v5789 = vpop.trf.xlu0
        %v5790 = vpop.trf.xlu0
        %v5791 = vpop.trf.xlu0
        %v5792 = vpop.trf.xlu0
        %v5793 = vpop.trf.xlu0
        %v5794 = vpop.trf.xlu0
        %v5795 = vpop.trf.xlu0
        %v5796 = vpop.trf.xlu0
        %v5797 = vpop.trf.xlu0
        %v5798 = vpop.trf.xlu0
        %v5799 = vpop.trf.xlu0
        %5800 = vxpose.xlu0.b32.start [1/16] %v5404, 128
        %5801 = vxpose.xlu0.b32.cont [2/16] 0.0, 128
        %5802 = vxpose.xlu0.b32.cont [3/16] 0.0, 128
        %5803 = vxpose.xlu0.b32.cont [4/16] 0.0, 128
        %5804 = vxpose.xlu0.b32.cont [5/16] 0.0, 128
        %5805 = vxpose.xlu0.b32.cont [6/16] 0.0, 128
        %5806 = vxpose.xlu0.b32.cont [7/16] 0.0, 128
        %5807 = vxpose.xlu0.b32.cont [8/16] 0.0, 128
        %5808 = vxpose.xlu0.b32.cont [9/16] 0.0, 128
        %5809 = vxpose.xlu0.b32.cont [10/16] 0.0, 128
        %5810 = vxpose.xlu0.b32.cont [11/16] 0.0, 128
        %5811 = vxpose.xlu0.b32.cont [12/16] 0.0, 128
        %5812 = vxpose.xlu0.b32.cont [13/16] 0.0, 128
        %5813 = vxpose.xlu0.b32.cont [14/16] 0.0, 128
        %5814 = vxpose.xlu0.b32.cont [15/16] 0.0, 128
        %5815 = vxpose.xlu0.b32.end [16/16] 0.0, 128
        %v5816 = vpop.trf.xlu0
        %v5817 = vpop.trf.xlu0
        %v5818 = vpop.trf.xlu0
        %v5819 = vpop.trf.xlu0
        %v5820 = vpop.trf.xlu0
        %v5821 = vpop.trf.xlu0
        %v5822 = vpop.trf.xlu0
        %v5823 = vpop.trf.xlu0
        %v5824 = vpop.trf.xlu0
        %v5825 = vpop.trf.xlu0
        %v5826 = vpop.trf.xlu0
        %v5827 = vpop.trf.xlu0
        %v5828 = vpop.trf.xlu0
        %v5829 = vpop.trf.xlu0
        %v5830 = vpop.trf.xlu0
        %v5831 = vpop.trf.xlu0
        %5832 = vxpose.xlu0.b32.start [1/16] %v5405, 128
        %5833 = vxpose.xlu0.b32.cont [2/16] 0.0, 128
        %5834 = vxpose.xlu0.b32.cont [3/16] 0.0, 128
        %5835 = vxpose.xlu0.b32.cont [4/16] 0.0, 128
        %5836 = vxpose.xlu0.b32.cont [5/16] 0.0, 128
        %5837 = vxpose.xlu0.b32.cont [6/16] 0.0, 128
        %5838 = vxpose.xlu0.b32.cont [7/16] 0.0, 128
        %5839 = vxpose.xlu0.b32.cont [8/16] 0.0, 128
        %5840 = vxpose.xlu0.b32.cont [9/16] 0.0, 128
        %5841 = vxpose.xlu0.b32.cont [10/16] 0.0, 128
        %5842 = vxpose.xlu0.b32.cont [11/16] 0.0, 128
        %5843 = vxpose.xlu0.b32.cont [12/16] 0.0, 128
        %5844 = vxpose.xlu0.b32.cont [13/16] 0.0, 128
        %5845 = vxpose.xlu0.b32.cont [14/16] 0.0, 128
        %5846 = vxpose.xlu0.b32.cont [15/16] 0.0, 128
        %5847 = vxpose.xlu0.b32.end [16/16] 0.0, 128
        %v5848 = vpop.trf.xlu0
        %v5849 = vpop.trf.xlu0
        %v5850 = vpop.trf.xlu0
        %v5851 = vpop.trf.xlu0
        %v5852 = vpop.trf.xlu0
        %v5853 = vpop.trf.xlu0
        %v5854 = vpop.trf.xlu0
        %v5855 = vpop.trf.xlu0
        %v5856 = vpop.trf.xlu0
        %v5857 = vpop.trf.xlu0
        %v5858 = vpop.trf.xlu0
        %v5859 = vpop.trf.xlu0
        %v5860 = vpop.trf.xlu0
        %v5861 = vpop.trf.xlu0
        %v5862 = vpop.trf.xlu0
        %v5863 = vpop.trf.xlu0
        %5864 = vxpose.xlu0.b32.start [1/16] %v5406, 128
        %5865 = vxpose.xlu0.b32.cont [2/16] 0.0, 128
        %5866 = vxpose.xlu0.b32.cont [3/16] 0.0, 128
        %5867 = vxpose.xlu0.b32.cont [4/16] 0.0, 128
        %5868 = vxpose.xlu0.b32.cont [5/16] 0.0, 128
        %5869 = vxpose.xlu0.b32.cont [6/16] 0.0, 128
        %5870 = vxpose.xlu0.b32.cont [7/16] 0.0, 128
        %5871 = vxpose.xlu0.b32.cont [8/16] 0.0, 128
        %5872 = vxpose.xlu0.b32.cont [9/16] 0.0, 128
        %5873 = vxpose.xlu0.b32.cont [10/16] 0.0, 128
        %5874 = vxpose.xlu0.b32.cont [11/16] 0.0, 128
        %5875 = vxpose.xlu0.b32.cont [12/16] 0.0, 128
        %5876 = vxpose.xlu0.b32.cont [13/16] 0.0, 128
        %5877 = vxpose.xlu0.b32.cont [14/16] 0.0, 128
        %5878 = vxpose.xlu0.b32.cont [15/16] 0.0, 128
        %5879 = vxpose.xlu0.b32.end [16/16] 0.0, 128
        %v5880 = vpop.trf.xlu0
        %v5881 = vpop.trf.xlu0
        %v5882 = vpop.trf.xlu0
        %v5883 = vpop.trf.xlu0
        %v5884 = vpop.trf.xlu0
        %v5885 = vpop.trf.xlu0
        %v5886 = vpop.trf.xlu0
        %v5887 = vpop.trf.xlu0
        %v5888 = vpop.trf.xlu0
        %v5889 = vpop.trf.xlu0
        %v5890 = vpop.trf.xlu0
        %v5891 = vpop.trf.xlu0
        %v5892 = vpop.trf.xlu0
        %v5893 = vpop.trf.xlu0
        %v5894 = vpop.trf.xlu0
        %v5895 = vpop.trf.xlu0
        %5896 = vxpose.xlu0.b32.start [1/16] %v5407, 128
        %5897 = vxpose.xlu0.b32.cont [2/16] 0.0, 128
        %5898 = vxpose.xlu0.b32.cont [3/16] 0.0, 128
        %5899 = vxpose.xlu0.b32.cont [4/16] 0.0, 128
        %5900 = vxpose.xlu0.b32.cont [5/16] 0.0, 128
        %5901 = vxpose.xlu0.b32.cont [6/16] 0.0, 128
        %5902 = vxpose.xlu0.b32.cont [7/16] 0.0, 128
        %5903 = vxpose.xlu0.b32.cont [8/16] 0.0, 128
        %5904 = vxpose.xlu0.b32.cont [9/16] 0.0, 128
        %5905 = vxpose.xlu0.b32.cont [10/16] 0.0, 128
        %5906 = vxpose.xlu0.b32.cont [11/16] 0.0, 128
        %5907 = vxpose.xlu0.b32.cont [12/16] 0.0, 128
        %5908 = vxpose.xlu0.b32.cont [13/16] 0.0, 128
        %5909 = vxpose.xlu0.b32.cont [14/16] 0.0, 128
        %5910 = vxpose.xlu0.b32.cont [15/16] 0.0, 128
        %5911 = vxpose.xlu0.b32.end [16/16] 0.0, 128
        %v5912 = vpop.trf.xlu0
        %v5913 = vpop.trf.xlu0
        %v5914 = vpop.trf.xlu0
        %v5915 = vpop.trf.xlu0
        %v5916 = vpop.trf.xlu0
        %v5917 = vpop.trf.xlu0
        %v5918 = vpop.trf.xlu0
        %v5919 = vpop.trf.xlu0
        %v5920 = vpop.trf.xlu0
        %v5921 = vpop.trf.xlu0
        %v5922 = vpop.trf.xlu0
        %v5923 = vpop.trf.xlu0
        %v5924 = vpop.trf.xlu0
        %v5925 = vpop.trf.xlu0
        %v5926 = vpop.trf.xlu0
        %v5927 = vpop.trf.xlu0
        %5928 = vxpose.xlu0.b32.start [1/16] %v5408, 128
        %5929 = vxpose.xlu0.b32.cont [2/16] 0.0, 128
        %5930 = vxpose.xlu0.b32.cont [3/16] 0.0, 128
        %5931 = vxpose.xlu0.b32.cont [4/16] 0.0, 128
        %5932 = vxpose.xlu0.b32.cont [5/16] 0.0, 128
        %5933 = vxpose.xlu0.b32.cont [6/16] 0.0, 128
        %5934 = vxpose.xlu0.b32.cont [7/16] 0.0, 128
        %5935 = vxpose.xlu0.b32.cont [8/16] 0.0, 128
        %5936 = vxpose.xlu0.b32.cont [9/16] 0.0, 128
        %5937 = vxpose.xlu0.b32.cont [10/16] 0.0, 128
        %5938 = vxpose.xlu0.b32.cont [11/16] 0.0, 128
        %5939 = vxpose.xlu0.b32.cont [12/16] 0.0, 128
        %5940 = vxpose.xlu0.b32.cont [13/16] 0.0, 128
        %5941 = vxpose.xlu0.b32.cont [14/16] 0.0, 128
        %5942 = vxpose.xlu0.b32.cont [15/16] 0.0, 128
        %5943 = vxpose.xlu0.b32.end [16/16] 0.0, 128
        %v5944 = vpop.trf.xlu0
        %v5945 = vpop.trf.xlu0
        %v5946 = vpop.trf.xlu0
        %v5947 = vpop.trf.xlu0
        %v5948 = vpop.trf.xlu0
        %v5949 = vpop.trf.xlu0
        %v5950 = vpop.trf.xlu0
        %v5951 = vpop.trf.xlu0
        %v5952 = vpop.trf.xlu0
        %v5953 = vpop.trf.xlu0
        %v5954 = vpop.trf.xlu0
        %v5955 = vpop.trf.xlu0
        %v5956 = vpop.trf.xlu0
        %v5957 = vpop.trf.xlu0
        %v5958 = vpop.trf.xlu0
        %v5959 = vpop.trf.xlu0
        %5960 = vxpose.xlu0.b32.start [1/16] %v5409, 128
        %5961 = vxpose.xlu0.b32.cont [2/16] 0.0, 128
        %5962 = vxpose.xlu0.b32.cont [3/16] 0.0, 128
        %5963 = vxpose.xlu0.b32.cont [4/16] 0.0, 128
        %5964 = vxpose.xlu0.b32.cont [5/16] 0.0, 128
        %5965 = vxpose.xlu0.b32.cont [6/16] 0.0, 128
        %5966 = vxpose.xlu0.b32.cont [7/16] 0.0, 128
        %5967 = vxpose.xlu0.b32.cont [8/16] 0.0, 128
        %5968 = vxpose.xlu0.b32.cont [9/16] 0.0, 128
        %5969 = vxpose.xlu0.b32.cont [10/16] 0.0, 128
        %5970 = vxpose.xlu0.b32.cont [11/16] 0.0, 128
        %5971 = vxpose.xlu0.b32.cont [12/16] 0.0, 128
        %5972 = vxpose.xlu0.b32.cont [13/16] 0.0, 128
        %5973 = vxpose.xlu0.b32.cont [14/16] 0.0, 128
        %5974 = vxpose.xlu0.b32.cont [15/16] 0.0, 128
        %5975 = vxpose.xlu0.b32.end [16/16] 0.0, 128
        %v5976 = vpop.trf.xlu0
        %v5977 = vpop.trf.xlu0
        %v5978 = vpop.trf.xlu0
        %v5979 = vpop.trf.xlu0
        %v5980 = vpop.trf.xlu0
        %v5981 = vpop.trf.xlu0
        %v5982 = vpop.trf.xlu0
        %v5983 = vpop.trf.xlu0
        %v5984 = vpop.trf.xlu0
        %v5985 = vpop.trf.xlu0
        %v5986 = vpop.trf.xlu0
        %v5987 = vpop.trf.xlu0
        %v5988 = vpop.trf.xlu0
        %v5989 = vpop.trf.xlu0
        %v5990 = vpop.trf.xlu0
        %v5991 = vpop.trf.xlu0
        %5992 = vxpose.xlu0.b32.start [1/16] %v5410, 128
        %5993 = vxpose.xlu0.b32.cont [2/16] 0.0, 128
        %5994 = vxpose.xlu0.b32.cont [3/16] 0.0, 128
        %5995 = vxpose.xlu0.b32.cont [4/16] 0.0, 128
        %5996 = vxpose.xlu0.b32.cont [5/16] 0.0, 128
        %5997 = vxpose.xlu0.b32.cont [6/16] 0.0, 128
        %5998 = vxpose.xlu0.b32.cont [7/16] 0.0, 128
        %5999 = vxpose.xlu0.b32.cont [8/16] 0.0, 128
        %6000 = vxpose.xlu0.b32.cont [9/16] 0.0, 128
        %6001 = vxpose.xlu0.b32.cont [10/16] 0.0, 128
        %6002 = vxpose.xlu0.b32.cont [11/16] 0.0, 128
        %6003 = vxpose.xlu0.b32.cont [12/16] 0.0, 128
        %6004 = vxpose.xlu0.b32.cont [13/16] 0.0, 128
        %6005 = vxpose.xlu0.b32.cont [14/16] 0.0, 128
        %6006 = vxpose.xlu0.b32.cont [15/16] 0.0, 128
        %6007 = vxpose.xlu0.b32.end [16/16] 0.0, 128
        %v6008 = vpop.trf.xlu0
        %v6009 = vpop.trf.xlu0
        %v6010 = vpop.trf.xlu0
        %v6011 = vpop.trf.xlu0
        %v6012 = vpop.trf.xlu0
        %v6013 = vpop.trf.xlu0
        %v6014 = vpop.trf.xlu0
        %v6015 = vpop.trf.xlu0
        %v6016 = vpop.trf.xlu0
        %v6017 = vpop.trf.xlu0
        %v6018 = vpop.trf.xlu0
        %v6019 = vpop.trf.xlu0
        %v6020 = vpop.trf.xlu0
        %v6021 = vpop.trf.xlu0
        %v6022 = vpop.trf.xlu0
        %v6023 = vpop.trf.xlu0
        %6024 = vxpose.xlu0.b32.start [1/16] %v5411, 128
        %6025 = vxpose.xlu0.b32.cont [2/16] 0.0, 128
        %6026 = vxpose.xlu0.b32.cont [3/16] 0.0, 128
        %6027 = vxpose.xlu0.b32.cont [4/16] 0.0, 128
        %6028 = vxpose.xlu0.b32.cont [5/16] 0.0, 128
        %6029 = vxpose.xlu0.b32.cont [6/16] 0.0, 128
        %6030 = vxpose.xlu0.b32.cont [7/16] 0.0, 128
        %6031 = vxpose.xlu0.b32.cont [8/16] 0.0, 128
        %6032 = vxpose.xlu0.b32.cont [9/16] 0.0, 128
        %6033 = vxpose.xlu0.b32.cont [10/16] 0.0, 128
        %6034 = vxpose.xlu0.b32.cont [11/16] 0.0, 128
        %6035 = vxpose.xlu0.b32.cont [12/16] 0.0, 128
        %6036 = vxpose.xlu0.b32.cont [13/16] 0.0, 128
        %6037 = vxpose.xlu0.b32.cont [14/16] 0.0, 128
        %6038 = vxpose.xlu0.b32.cont [15/16] 0.0, 128
        %6039 = vxpose.xlu0.b32.end [16/16] 0.0, 128
        %v6040 = vpop.trf.xlu0
        %v6041 = vpop.trf.xlu0
        %v6042 = vpop.trf.xlu0
        %v6043 = vpop.trf.xlu0
        %v6044 = vpop.trf.xlu0
        %v6045 = vpop.trf.xlu0
        %v6046 = vpop.trf.xlu0
        %v6047 = vpop.trf.xlu0
        %v6048 = vpop.trf.xlu0
        %v6049 = vpop.trf.xlu0
        %v6050 = vpop.trf.xlu0
        %v6051 = vpop.trf.xlu0
        %v6052 = vpop.trf.xlu0
        %v6053 = vpop.trf.xlu0
        %v6054 = vpop.trf.xlu0
        %v6055 = vpop.trf.xlu0
        %6056 = vxpose.xlu0.b32.start [1/16] %v5412, 128
        %6057 = vxpose.xlu0.b32.cont [2/16] 0.0, 128
        %6058 = vxpose.xlu0.b32.cont [3/16] 0.0, 128
        %6059 = vxpose.xlu0.b32.cont [4/16] 0.0, 128
        %6060 = vxpose.xlu0.b32.cont [5/16] 0.0, 128
        %6061 = vxpose.xlu0.b32.cont [6/16] 0.0, 128
        %6062 = vxpose.xlu0.b32.cont [7/16] 0.0, 128
        %6063 = vxpose.xlu0.b32.cont [8/16] 0.0, 128
        %6064 = vxpose.xlu0.b32.cont [9/16] 0.0, 128
        %6065 = vxpose.xlu0.b32.cont [10/16] 0.0, 128
        %6066 = vxpose.xlu0.b32.cont [11/16] 0.0, 128
        %6067 = vxpose.xlu0.b32.cont [12/16] 0.0, 128
        %6068 = vxpose.xlu0.b32.cont [13/16] 0.0, 128
        %6069 = vxpose.xlu0.b32.cont [14/16] 0.0, 128
        %6070 = vxpose.xlu0.b32.cont [15/16] 0.0, 128
        %6071 = vxpose.xlu0.b32.end [16/16] 0.0, 128
        %v6072 = vpop.trf.xlu0
        %v6073 = vpop.trf.xlu0
        %v6074 = vpop.trf.xlu0
        %v6075 = vpop.trf.xlu0
        %v6076 = vpop.trf.xlu0
        %v6077 = vpop.trf.xlu0
        %v6078 = vpop.trf.xlu0
        %v6079 = vpop.trf.xlu0
        %v6080 = vpop.trf.xlu0
        %v6081 = vpop.trf.xlu0
        %v6082 = vpop.trf.xlu0
        %v6083 = vpop.trf.xlu0
        %v6084 = vpop.trf.xlu0
        %v6085 = vpop.trf.xlu0
        %v6086 = vpop.trf.xlu0
        %v6087 = vpop.trf.xlu0
        %6088 = vxpose.xlu0.b32.start [1/16] %v5413, 128
        %6089 = vxpose.xlu0.b32.cont [2/16] 0.0, 128
        %6090 = vxpose.xlu0.b32.cont [3/16] 0.0, 128
        %6091 = vxpose.xlu0.b32.cont [4/16] 0.0, 128
        %6092 = vxpose.xlu0.b32.cont [5/16] 0.0, 128
        %6093 = vxpose.xlu0.b32.cont [6/16] 0.0, 128
        %6094 = vxpose.xlu0.b32.cont [7/16] 0.0, 128
        %6095 = vxpose.xlu0.b32.cont [8/16] 0.0, 128
        %6096 = vxpose.xlu0.b32.cont [9/16] 0.0, 128
        %6097 = vxpose.xlu0.b32.cont [10/16] 0.0, 128
        %6098 = vxpose.xlu0.b32.cont [11/16] 0.0, 128
        %6099 = vxpose.xlu0.b32.cont [12/16] 0.0, 128
        %6100 = vxpose.xlu0.b32.cont [13/16] 0.0, 128
        %6101 = vxpose.xlu0.b32.cont [14/16] 0.0, 128
        %6102 = vxpose.xlu0.b32.cont [15/16] 0.0, 128
        %6103 = vxpose.xlu0.b32.end [16/16] 0.0, 128
        %v6104 = vpop.trf.xlu0
        %v6105 = vpop.trf.xlu0
        %v6106 = vpop.trf.xlu0
        %v6107 = vpop.trf.xlu0
        %v6108 = vpop.trf.xlu0
        %v6109 = vpop.trf.xlu0
        %v6110 = vpop.trf.xlu0
        %v6111 = vpop.trf.xlu0
        %v6112 = vpop.trf.xlu0
        %v6113 = vpop.trf.xlu0
        %v6114 = vpop.trf.xlu0
        %v6115 = vpop.trf.xlu0
        %v6116 = vpop.trf.xlu0
        %v6117 = vpop.trf.xlu0
        %v6118 = vpop.trf.xlu0
        %v6119 = vpop.trf.xlu0
        %6120 = vxpose.xlu0.b32.start [1/16] %v5414, 128
        %6121 = vxpose.xlu0.b32.cont [2/16] 0.0, 128
        %6122 = vxpose.xlu0.b32.cont [3/16] 0.0, 128
        %6123 = vxpose.xlu0.b32.cont [4/16] 0.0, 128
        %6124 = vxpose.xlu0.b32.cont [5/16] 0.0, 128
        %6125 = vxpose.xlu0.b32.cont [6/16] 0.0, 128
        %6126 = vxpose.xlu0.b32.cont [7/16] 0.0, 128
        %6127 = vxpose.xlu0.b32.cont [8/16] 0.0, 128
        %6128 = vxpose.xlu0.b32.cont [9/16] 0.0, 128
        %6129 = vxpose.xlu0.b32.cont [10/16] 0.0, 128
        %6130 = vxpose.xlu0.b32.cont [11/16] 0.0, 128
        %6131 = vxpose.xlu0.b32.cont [12/16] 0.0, 128
        %6132 = vxpose.xlu0.b32.cont [13/16] 0.0, 128
        %6133 = vxpose.xlu0.b32.cont [14/16] 0.0, 128
        %6134 = vxpose.xlu0.b32.cont [15/16] 0.0, 128
        %6135 = vxpose.xlu0.b32.end [16/16] 0.0, 128
        %v6136 = vpop.trf.xlu0
        %v6137 = vpop.trf.xlu0
        %v6138 = vpop.trf.xlu0
        %v6139 = vpop.trf.xlu0
        %v6140 = vpop.trf.xlu0
        %v6141 = vpop.trf.xlu0
        %v6142 = vpop.trf.xlu0
        %v6143 = vpop.trf.xlu0
        %v6144 = vpop.trf.xlu0
        %v6145 = vpop.trf.xlu0
        %v6146 = vpop.trf.xlu0
        %v6147 = vpop.trf.xlu0
        %v6148 = vpop.trf.xlu0
        %v6149 = vpop.trf.xlu0
        %v6150 = vpop.trf.xlu0
        %v6151 = vpop.trf.xlu0
        %6152 = vxpose.xlu0.b32.start [1/16] %v5415, 128
        %6153 = vxpose.xlu0.b32.cont [2/16] 0.0, 128
        %6154 = vxpose.xlu0.b32.cont [3/16] 0.0, 128
        %6155 = vxpose.xlu0.b32.cont [4/16] 0.0, 128
        %6156 = vxpose.xlu0.b32.cont [5/16] 0.0, 128
        %6157 = vxpose.xlu0.b32.cont [6/16] 0.0, 128
        %6158 = vxpose.xlu0.b32.cont [7/16] 0.0, 128
        %6159 = vxpose.xlu0.b32.cont [8/16] 0.0, 128
        %6160 = vxpose.xlu0.b32.cont [9/16] 0.0, 128
        %6161 = vxpose.xlu0.b32.cont [10/16] 0.0, 128
        %6162 = vxpose.xlu0.b32.cont [11/16] 0.0, 128
        %6163 = vxpose.xlu0.b32.cont [12/16] 0.0, 128
        %6164 = vxpose.xlu0.b32.cont [13/16] 0.0, 128
        %6165 = vxpose.xlu0.b32.cont [14/16] 0.0, 128
        %6166 = vxpose.xlu0.b32.cont [15/16] 0.0, 128
        %6167 = vxpose.xlu0.b32.end [16/16] 0.0, 128
        %v6168 = vpop.trf.xlu0
        %v6169 = vpop.trf.xlu0
        %v6170 = vpop.trf.xlu0
        %v6171 = vpop.trf.xlu0
        %v6172 = vpop.trf.xlu0
        %v6173 = vpop.trf.xlu0
        %v6174 = vpop.trf.xlu0
        %v6175 = vpop.trf.xlu0
        %v6176 = vpop.trf.xlu0
        %v6177 = vpop.trf.xlu0
        %v6178 = vpop.trf.xlu0
        %v6179 = vpop.trf.xlu0
        %v6180 = vpop.trf.xlu0
        %v6181 = vpop.trf.xlu0
        %v6182 = vpop.trf.xlu0
        %v6183 = vpop.trf.xlu0
        %6184 = vxpose.xlu0.b32.start [1/16] %v5432, 128
        %6185 = vxpose.xlu0.b32.cont [2/16] %v5464, 128
        %6186 = vxpose.xlu0.b32.cont [3/16] %v5496, 128
        %6187 = vxpose.xlu0.b32.cont [4/16] %v5528, 128
        %6188 = vxpose.xlu0.b32.cont [5/16] %v5560, 128
        %6189 = vxpose.xlu0.b32.cont [6/16] %v5592, 128
        %6190 = vxpose.xlu0.b32.cont [7/16] %v5624, 128
        %6191 = vxpose.xlu0.b32.cont [8/16] %v5656, 128
        %6192 = vxpose.xlu0.b32.cont [9/16] %v5688, 128
        %6193 = vxpose.xlu0.b32.cont [10/16] %v5720, 128
        %6194 = vxpose.xlu0.b32.cont [11/16] %v5752, 128
        %6195 = vxpose.xlu0.b32.cont [12/16] %v5784, 128
        %6196 = vxpose.xlu0.b32.cont [13/16] %v5816, 128
        %6197 = vxpose.xlu0.b32.cont [14/16] %v5848, 128
        %6198 = vxpose.xlu0.b32.cont [15/16] %v5880, 128
        %6199 = vxpose.xlu0.b32.end [16/16] %v5912, 128
        %v6200 = vpop.trf.xlu0
        %v6201 = vpop.trf.xlu0
        %v6202 = vpop.trf.xlu0
        %v6203 = vpop.trf.xlu0
        %v6204 = vpop.trf.xlu0
        %v6205 = vpop.trf.xlu0
        %v6206 = vpop.trf.xlu0
        %v6207 = vpop.trf.xlu0
        %v6208 = vpop.trf.xlu0
        %v6209 = vpop.trf.xlu0
        %v6210 = vpop.trf.xlu0
        %v6211 = vpop.trf.xlu0
        %v6212 = vpop.trf.xlu0
        %v6213 = vpop.trf.xlu0
        %v6214 = vpop.trf.xlu0
        %v6215 = vpop.trf.xlu0
        %6216 = vxpose.xlu0.b32.start [1/16] %v5944, 128
        %6217 = vxpose.xlu0.b32.cont [2/16] %v5976, 128
        %6218 = vxpose.xlu0.b32.cont [3/16] %v6008, 128
        %6219 = vxpose.xlu0.b32.cont [4/16] %v6040, 128
        %6220 = vxpose.xlu0.b32.cont [5/16] %v6072, 128
        %6221 = vxpose.xlu0.b32.cont [6/16] %v6104, 128
        %6222 = vxpose.xlu0.b32.cont [7/16] %v6136, 128
        %6223 = vxpose.xlu0.b32.cont [8/16] %v6168, 128
        %6224 = vxpose.xlu0.b32.cont [9/16] 0.0, 128
        %6225 = vxpose.xlu0.b32.cont [10/16] 0.0, 128
        %6226 = vxpose.xlu0.b32.cont [11/16] 0.0, 128
        %6227 = vxpose.xlu0.b32.cont [12/16] 0.0, 128
        %6228 = vxpose.xlu0.b32.cont [13/16] 0.0, 128
        %6229 = vxpose.xlu0.b32.cont [14/16] 0.0, 128
        %6230 = vxpose.xlu0.b32.cont [15/16] 0.0, 128
        %6231 = vxpose.xlu0.b32.end [16/16] 0.0, 128
        %v6232 = vpop.trf.xlu0
        %v6233 = vpop.trf.xlu0
        %v6234 = vpop.trf.xlu0
        %v6235 = vpop.trf.xlu0
        %v6236 = vpop.trf.xlu0
        %v6237 = vpop.trf.xlu0
        %v6238 = vpop.trf.xlu0
        %v6239 = vpop.trf.xlu0
        %v6240 = vpop.trf.xlu0
        %v6241 = vpop.trf.xlu0
        %v6242 = vpop.trf.xlu0
        %v6243 = vpop.trf.xlu0
        %v6244 = vpop.trf.xlu0
        %v6245 = vpop.trf.xlu0
        %v6246 = vpop.trf.xlu0
        %v6247 = vpop.trf.xlu0
        %6248 = vst [vmem:[#allocation2 + $0x60] sm:$0xff] %v6200
        %6249 = vst.msk [vmem:[#allocation2 + $0x68] sm:$0xff] %vm1094, %v6232
        %s6250 = scalar_lea.vmem %s204, 448 [#allocation3]
        %v6251 = vld [vmem:[%s6250] sm:$0xff]
        %v6252 = vld [vmem:[%s6250 + $0x8] sm:$0xff]
        %v6253 = vld [vmem:[%s6250 + $0x10] sm:$0xff]
        %v6254 = vld [vmem:[%s6250 + $0x18] sm:$0xff]
        %v6255 = vld [vmem:[%s6250 + $0x20] sm:$0xff]
        %v6256 = vld [vmem:[%s6250 + $0x28] sm:$0xff]
        %v6257 = vld [vmem:[%s6250 + $0x30] sm:$0xff]
        %v6258 = vld [vmem:[%s6250 + $0x38] sm:$0xff]
        %v6259 = vld [vmem:[%s6250 + $0x200] sm:$0xff]
        %v6260 = vld [vmem:[%s6250 + $0x208] sm:$0xff]
        %v6261 = vld [vmem:[%s6250 + $0x210] sm:$0xff]
        %v6262 = vld [vmem:[%s6250 + $0x218] sm:$0xff]
        %v6263 = vld [vmem:[%s6250 + $0x220] sm:$0xff]
        %v6264 = vld [vmem:[%s6250 + $0x228] sm:$0xff]
        %v6265 = vld [vmem:[%s6250 + $0x230] sm:$0xff]
        %v6266 = vld [vmem:[%s6250 + $0x238] sm:$0xff]
        %v6267 = vld [vmem:[%s6250 + $0x400] sm:$0xff]
        %v6268 = vld [vmem:[%s6250 + $0x408] sm:$0xff]
        %v6269 = vld [vmem:[%s6250 + $0x410] sm:$0xff]
        %v6270 = vld [vmem:[%s6250 + $0x418] sm:$0xff]
        %v6271 = vld [vmem:[%s6250 + $0x420] sm:$0xff]
        %v6272 = vld [vmem:[%s6250 + $0x428] sm:$0xff]
        %v6273 = vld [vmem:[%s6250 + $0x430] sm:$0xff]
        %v6274 = vld [vmem:[%s6250 + $0x438] sm:$0xff]
        %6275 = vxpose.xlu0.b32.start [1/16] %v6251, 128
        %6276 = vxpose.xlu0.b32.cont [2/16] 0.0, 128
        %6277 = vxpose.xlu0.b32.cont [3/16] 0.0, 128
        %6278 = vxpose.xlu0.b32.cont [4/16] 0.0, 128
        %6279 = vxpose.xlu0.b32.cont [5/16] 0.0, 128
        %6280 = vxpose.xlu0.b32.cont [6/16] 0.0, 128
        %6281 = vxpose.xlu0.b32.cont [7/16] 0.0, 128
        %6282 = vxpose.xlu0.b32.cont [8/16] 0.0, 128
        %6283 = vxpose.xlu0.b32.cont [9/16] 0.0, 128
        %6284 = vxpose.xlu0.b32.cont [10/16] 0.0, 128
        %6285 = vxpose.xlu0.b32.cont [11/16] 0.0, 128
        %6286 = vxpose.xlu0.b32.cont [12/16] 0.0, 128
        %6287 = vxpose.xlu0.b32.cont [13/16] 0.0, 128
        %6288 = vxpose.xlu0.b32.cont [14/16] 0.0, 128
        %6289 = vxpose.xlu0.b32.cont [15/16] 0.0, 128
        %6290 = vxpose.xlu0.b32.end [16/16] 0.0, 128
        %v6291 = vpop.trf.xlu0
        %v6292 = vpop.trf.xlu0
        %v6293 = vpop.trf.xlu0
        %v6294 = vpop.trf.xlu0
        %v6295 = vpop.trf.xlu0
        %v6296 = vpop.trf.xlu0
        %v6297 = vpop.trf.xlu0
        %v6298 = vpop.trf.xlu0
        %v6299 = vpop.trf.xlu0
        %v6300 = vpop.trf.xlu0
        %v6301 = vpop.trf.xlu0
        %v6302 = vpop.trf.xlu0
        %v6303 = vpop.trf.xlu0
        %v6304 = vpop.trf.xlu0
        %v6305 = vpop.trf.xlu0
        %v6306 = vpop.trf.xlu0
        %6307 = vxpose.xlu0.b32.start [1/16] %v6252, 128
        %6308 = vxpose.xlu0.b32.cont [2/16] 0.0, 128
        %6309 = vxpose.xlu0.b32.cont [3/16] 0.0, 128
        %6310 = vxpose.xlu0.b32.cont [4/16] 0.0, 128
        %6311 = vxpose.xlu0.b32.cont [5/16] 0.0, 128
        %6312 = vxpose.xlu0.b32.cont [6/16] 0.0, 128
        %6313 = vxpose.xlu0.b32.cont [7/16] 0.0, 128
        %6314 = vxpose.xlu0.b32.cont [8/16] 0.0, 128
        %6315 = vxpose.xlu0.b32.cont [9/16] 0.0, 128
        %6316 = vxpose.xlu0.b32.cont [10/16] 0.0, 128
        %6317 = vxpose.xlu0.b32.cont [11/16] 0.0, 128
        %6318 = vxpose.xlu0.b32.cont [12/16] 0.0, 128
        %6319 = vxpose.xlu0.b32.cont [13/16] 0.0, 128
        %6320 = vxpose.xlu0.b32.cont [14/16] 0.0, 128
        %6321 = vxpose.xlu0.b32.cont [15/16] 0.0, 128
        %6322 = vxpose.xlu0.b32.end [16/16] 0.0, 128
        %v6323 = vpop.trf.xlu0
        %v6324 = vpop.trf.xlu0
        %v6325 = vpop.trf.xlu0
        %v6326 = vpop.trf.xlu0
        %v6327 = vpop.trf.xlu0
        %v6328 = vpop.trf.xlu0
        %v6329 = vpop.trf.xlu0
        %v6330 = vpop.trf.xlu0
        %v6331 = vpop.trf.xlu0
        %v6332 = vpop.trf.xlu0
        %v6333 = vpop.trf.xlu0
        %v6334 = vpop.trf.xlu0
        %v6335 = vpop.trf.xlu0
        %v6336 = vpop.trf.xlu0
        %v6337 = vpop.trf.xlu0
        %v6338 = vpop.trf.xlu0
        %6339 = vxpose.xlu0.b32.start [1/16] %v6253, 128
        %6340 = vxpose.xlu0.b32.cont [2/16] 0.0, 128
        %6341 = vxpose.xlu0.b32.cont [3/16] 0.0, 128
        %6342 = vxpose.xlu0.b32.cont [4/16] 0.0, 128
        %6343 = vxpose.xlu0.b32.cont [5/16] 0.0, 128
        %6344 = vxpose.xlu0.b32.cont [6/16] 0.0, 128
        %6345 = vxpose.xlu0.b32.cont [7/16] 0.0, 128
        %6346 = vxpose.xlu0.b32.cont [8/16] 0.0, 128
        %6347 = vxpose.xlu0.b32.cont [9/16] 0.0, 128
        %6348 = vxpose.xlu0.b32.cont [10/16] 0.0, 128
        %6349 = vxpose.xlu0.b32.cont [11/16] 0.0, 128
        %6350 = vxpose.xlu0.b32.cont [12/16] 0.0, 128
        %6351 = vxpose.xlu0.b32.cont [13/16] 0.0, 128
        %6352 = vxpose.xlu0.b32.cont [14/16] 0.0, 128
        %6353 = vxpose.xlu0.b32.cont [15/16] 0.0, 128
        %6354 = vxpose.xlu0.b32.end [16/16] 0.0, 128
        %v6355 = vpop.trf.xlu0
        %v6356 = vpop.trf.xlu0
        %v6357 = vpop.trf.xlu0
        %v6358 = vpop.trf.xlu0
        %v6359 = vpop.trf.xlu0
        %v6360 = vpop.trf.xlu0
        %v6361 = vpop.trf.xlu0
        %v6362 = vpop.trf.xlu0
        %v6363 = vpop.trf.xlu0
        %v6364 = vpop.trf.xlu0
        %v6365 = vpop.trf.xlu0
        %v6366 = vpop.trf.xlu0
        %v6367 = vpop.trf.xlu0
        %v6368 = vpop.trf.xlu0
        %v6369 = vpop.trf.xlu0
        %v6370 = vpop.trf.xlu0
        %6371 = vxpose.xlu0.b32.start [1/16] %v6254, 128
        %6372 = vxpose.xlu0.b32.cont [2/16] 0.0, 128
        %6373 = vxpose.xlu0.b32.cont [3/16] 0.0, 128
        %6374 = vxpose.xlu0.b32.cont [4/16] 0.0, 128
        %6375 = vxpose.xlu0.b32.cont [5/16] 0.0, 128
        %6376 = vxpose.xlu0.b32.cont [6/16] 0.0, 128
        %6377 = vxpose.xlu0.b32.cont [7/16] 0.0, 128
        %6378 = vxpose.xlu0.b32.cont [8/16] 0.0, 128
        %6379 = vxpose.xlu0.b32.cont [9/16] 0.0, 128
        %6380 = vxpose.xlu0.b32.cont [10/16] 0.0, 128
        %6381 = vxpose.xlu0.b32.cont [11/16] 0.0, 128
        %6382 = vxpose.xlu0.b32.cont [12/16] 0.0, 128
        %6383 = vxpose.xlu0.b32.cont [13/16] 0.0, 128
        %6384 = vxpose.xlu0.b32.cont [14/16] 0.0, 128
        %6385 = vxpose.xlu0.b32.cont [15/16] 0.0, 128
        %6386 = vxpose.xlu0.b32.end [16/16] 0.0, 128
        %v6387 = vpop.trf.xlu0
        %v6388 = vpop.trf.xlu0
        %v6389 = vpop.trf.xlu0
        %v6390 = vpop.trf.xlu0
        %v6391 = vpop.trf.xlu0
        %v6392 = vpop.trf.xlu0
        %v6393 = vpop.trf.xlu0
        %v6394 = vpop.trf.xlu0
        %v6395 = vpop.trf.xlu0
        %v6396 = vpop.trf.xlu0
        %v6397 = vpop.trf.xlu0
        %v6398 = vpop.trf.xlu0
        %v6399 = vpop.trf.xlu0
        %v6400 = vpop.trf.xlu0
        %v6401 = vpop.trf.xlu0
        %v6402 = vpop.trf.xlu0
        %6403 = vxpose.xlu0.b32.start [1/16] %v6255, 128
        %6404 = vxpose.xlu0.b32.cont [2/16] 0.0, 128
        %6405 = vxpose.xlu0.b32.cont [3/16] 0.0, 128
        %6406 = vxpose.xlu0.b32.cont [4/16] 0.0, 128
        %6407 = vxpose.xlu0.b32.cont [5/16] 0.0, 128
        %6408 = vxpose.xlu0.b32.cont [6/16] 0.0, 128
        %6409 = vxpose.xlu0.b32.cont [7/16] 0.0, 128
        %6410 = vxpose.xlu0.b32.cont [8/16] 0.0, 128
        %6411 = vxpose.xlu0.b32.cont [9/16] 0.0, 128
        %6412 = vxpose.xlu0.b32.cont [10/16] 0.0, 128
        %6413 = vxpose.xlu0.b32.cont [11/16] 0.0, 128
        %6414 = vxpose.xlu0.b32.cont [12/16] 0.0, 128
        %6415 = vxpose.xlu0.b32.cont [13/16] 0.0, 128
        %6416 = vxpose.xlu0.b32.cont [14/16] 0.0, 128
        %6417 = vxpose.xlu0.b32.cont [15/16] 0.0, 128
        %6418 = vxpose.xlu0.b32.end [16/16] 0.0, 128
        %v6419 = vpop.trf.xlu0
        %v6420 = vpop.trf.xlu0
        %v6421 = vpop.trf.xlu0
        %v6422 = vpop.trf.xlu0
        %v6423 = vpop.trf.xlu0
        %v6424 = vpop.trf.xlu0
        %v6425 = vpop.trf.xlu0
        %v6426 = vpop.trf.xlu0
        %v6427 = vpop.trf.xlu0
        %v6428 = vpop.trf.xlu0
        %v6429 = vpop.trf.xlu0
        %v6430 = vpop.trf.xlu0
        %v6431 = vpop.trf.xlu0
        %v6432 = vpop.trf.xlu0
        %v6433 = vpop.trf.xlu0
        %v6434 = vpop.trf.xlu0
        %6435 = vxpose.xlu0.b32.start [1/16] %v6256, 128
        %6436 = vxpose.xlu0.b32.cont [2/16] 0.0, 128
        %6437 = vxpose.xlu0.b32.cont [3/16] 0.0, 128
        %6438 = vxpose.xlu0.b32.cont [4/16] 0.0, 128
        %6439 = vxpose.xlu0.b32.cont [5/16] 0.0, 128
        %6440 = vxpose.xlu0.b32.cont [6/16] 0.0, 128
        %6441 = vxpose.xlu0.b32.cont [7/16] 0.0, 128
        %6442 = vxpose.xlu0.b32.cont [8/16] 0.0, 128
        %6443 = vxpose.xlu0.b32.cont [9/16] 0.0, 128
        %6444 = vxpose.xlu0.b32.cont [10/16] 0.0, 128
        %6445 = vxpose.xlu0.b32.cont [11/16] 0.0, 128
        %6446 = vxpose.xlu0.b32.cont [12/16] 0.0, 128
        %6447 = vxpose.xlu0.b32.cont [13/16] 0.0, 128
        %6448 = vxpose.xlu0.b32.cont [14/16] 0.0, 128
        %6449 = vxpose.xlu0.b32.cont [15/16] 0.0, 128
        %6450 = vxpose.xlu0.b32.end [16/16] 0.0, 128
        %v6451 = vpop.trf.xlu0
        %v6452 = vpop.trf.xlu0
        %v6453 = vpop.trf.xlu0
        %v6454 = vpop.trf.xlu0
        %v6455 = vpop.trf.xlu0
        %v6456 = vpop.trf.xlu0
        %v6457 = vpop.trf.xlu0
        %v6458 = vpop.trf.xlu0
        %v6459 = vpop.trf.xlu0
        %v6460 = vpop.trf.xlu0
        %v6461 = vpop.trf.xlu0
        %v6462 = vpop.trf.xlu0
        %v6463 = vpop.trf.xlu0
        %v6464 = vpop.trf.xlu0
        %v6465 = vpop.trf.xlu0
        %v6466 = vpop.trf.xlu0
        %6467 = vxpose.xlu0.b32.start [1/16] %v6257, 128
        %6468 = vxpose.xlu0.b32.cont [2/16] 0.0, 128
        %6469 = vxpose.xlu0.b32.cont [3/16] 0.0, 128
        %6470 = vxpose.xlu0.b32.cont [4/16] 0.0, 128
        %6471 = vxpose.xlu0.b32.cont [5/16] 0.0, 128
        %6472 = vxpose.xlu0.b32.cont [6/16] 0.0, 128
        %6473 = vxpose.xlu0.b32.cont [7/16] 0.0, 128
        %6474 = vxpose.xlu0.b32.cont [8/16] 0.0, 128
        %6475 = vxpose.xlu0.b32.cont [9/16] 0.0, 128
        %6476 = vxpose.xlu0.b32.cont [10/16] 0.0, 128
        %6477 = vxpose.xlu0.b32.cont [11/16] 0.0, 128
        %6478 = vxpose.xlu0.b32.cont [12/16] 0.0, 128
        %6479 = vxpose.xlu0.b32.cont [13/16] 0.0, 128
        %6480 = vxpose.xlu0.b32.cont [14/16] 0.0, 128
        %6481 = vxpose.xlu0.b32.cont [15/16] 0.0, 128
        %6482 = vxpose.xlu0.b32.end [16/16] 0.0, 128
        %v6483 = vpop.trf.xlu0
        %v6484 = vpop.trf.xlu0
        %v6485 = vpop.trf.xlu0
        %v6486 = vpop.trf.xlu0
        %v6487 = vpop.trf.xlu0
        %v6488 = vpop.trf.xlu0
        %v6489 = vpop.trf.xlu0
        %v6490 = vpop.trf.xlu0
        %v6491 = vpop.trf.xlu0
        %v6492 = vpop.trf.xlu0
        %v6493 = vpop.trf.xlu0
        %v6494 = vpop.trf.xlu0
        %v6495 = vpop.trf.xlu0
        %v6496 = vpop.trf.xlu0
        %v6497 = vpop.trf.xlu0
        %v6498 = vpop.trf.xlu0
        %6499 = vxpose.xlu0.b32.start [1/16] %v6258, 128
        %6500 = vxpose.xlu0.b32.cont [2/16] 0.0, 128
        %6501 = vxpose.xlu0.b32.cont [3/16] 0.0, 128
        %6502 = vxpose.xlu0.b32.cont [4/16] 0.0, 128
        %6503 = vxpose.xlu0.b32.cont [5/16] 0.0, 128
        %6504 = vxpose.xlu0.b32.cont [6/16] 0.0, 128
        %6505 = vxpose.xlu0.b32.cont [7/16] 0.0, 128
        %6506 = vxpose.xlu0.b32.cont [8/16] 0.0, 128
        %6507 = vxpose.xlu0.b32.cont [9/16] 0.0, 128
        %6508 = vxpose.xlu0.b32.cont [10/16] 0.0, 128
        %6509 = vxpose.xlu0.b32.cont [11/16] 0.0, 128
        %6510 = vxpose.xlu0.b32.cont [12/16] 0.0, 128
        %6511 = vxpose.xlu0.b32.cont [13/16] 0.0, 128
        %6512 = vxpose.xlu0.b32.cont [14/16] 0.0, 128
        %6513 = vxpose.xlu0.b32.cont [15/16] 0.0, 128
        %6514 = vxpose.xlu0.b32.end [16/16] 0.0, 128
        %v6515 = vpop.trf.xlu0
        %v6516 = vpop.trf.xlu0
        %v6517 = vpop.trf.xlu0
        %v6518 = vpop.trf.xlu0
        %v6519 = vpop.trf.xlu0
        %v6520 = vpop.trf.xlu0
        %v6521 = vpop.trf.xlu0
        %v6522 = vpop.trf.xlu0
        %v6523 = vpop.trf.xlu0
        %v6524 = vpop.trf.xlu0
        %v6525 = vpop.trf.xlu0
        %v6526 = vpop.trf.xlu0
        %v6527 = vpop.trf.xlu0
        %v6528 = vpop.trf.xlu0
        %v6529 = vpop.trf.xlu0
        %v6530 = vpop.trf.xlu0
        %6531 = vxpose.xlu0.b32.start [1/16] %v6259, 128
        %6532 = vxpose.xlu0.b32.cont [2/16] 0.0, 128
        %6533 = vxpose.xlu0.b32.cont [3/16] 0.0, 128
        %6534 = vxpose.xlu0.b32.cont [4/16] 0.0, 128
        %6535 = vxpose.xlu0.b32.cont [5/16] 0.0, 128
        %6536 = vxpose.xlu0.b32.cont [6/16] 0.0, 128
        %6537 = vxpose.xlu0.b32.cont [7/16] 0.0, 128
        %6538 = vxpose.xlu0.b32.cont [8/16] 0.0, 128
        %6539 = vxpose.xlu0.b32.cont [9/16] 0.0, 128
        %6540 = vxpose.xlu0.b32.cont [10/16] 0.0, 128
        %6541 = vxpose.xlu0.b32.cont [11/16] 0.0, 128
        %6542 = vxpose.xlu0.b32.cont [12/16] 0.0, 128
        %6543 = vxpose.xlu0.b32.cont [13/16] 0.0, 128
        %6544 = vxpose.xlu0.b32.cont [14/16] 0.0, 128
        %6545 = vxpose.xlu0.b32.cont [15/16] 0.0, 128
        %6546 = vxpose.xlu0.b32.end [16/16] 0.0, 128
        %v6547 = vpop.trf.xlu0
        %v6548 = vpop.trf.xlu0
        %v6549 = vpop.trf.xlu0
        %v6550 = vpop.trf.xlu0
        %v6551 = vpop.trf.xlu0
        %v6552 = vpop.trf.xlu0
        %v6553 = vpop.trf.xlu0
        %v6554 = vpop.trf.xlu0
        %v6555 = vpop.trf.xlu0
        %v6556 = vpop.trf.xlu0
        %v6557 = vpop.trf.xlu0
        %v6558 = vpop.trf.xlu0
        %v6559 = vpop.trf.xlu0
        %v6560 = vpop.trf.xlu0
        %v6561 = vpop.trf.xlu0
        %v6562 = vpop.trf.xlu0
        %6563 = vxpose.xlu0.b32.start [1/16] %v6260, 128
        %6564 = vxpose.xlu0.b32.cont [2/16] 0.0, 128
        %6565 = vxpose.xlu0.b32.cont [3/16] 0.0, 128
        %6566 = vxpose.xlu0.b32.cont [4/16] 0.0, 128
        %6567 = vxpose.xlu0.b32.cont [5/16] 0.0, 128
        %6568 = vxpose.xlu0.b32.cont [6/16] 0.0, 128
        %6569 = vxpose.xlu0.b32.cont [7/16] 0.0, 128
        %6570 = vxpose.xlu0.b32.cont [8/16] 0.0, 128
        %6571 = vxpose.xlu0.b32.cont [9/16] 0.0, 128
        %6572 = vxpose.xlu0.b32.cont [10/16] 0.0, 128
        %6573 = vxpose.xlu0.b32.cont [11/16] 0.0, 128
        %6574 = vxpose.xlu0.b32.cont [12/16] 0.0, 128
        %6575 = vxpose.xlu0.b32.cont [13/16] 0.0, 128
        %6576 = vxpose.xlu0.b32.cont [14/16] 0.0, 128
        %6577 = vxpose.xlu0.b32.cont [15/16] 0.0, 128
        %6578 = vxpose.xlu0.b32.end [16/16] 0.0, 128
        %v6579 = vpop.trf.xlu0
        %v6580 = vpop.trf.xlu0
        %v6581 = vpop.trf.xlu0
        %v6582 = vpop.trf.xlu0
        %v6583 = vpop.trf.xlu0
        %v6584 = vpop.trf.xlu0
        %v6585 = vpop.trf.xlu0
        %v6586 = vpop.trf.xlu0
        %v6587 = vpop.trf.xlu0
        %v6588 = vpop.trf.xlu0
        %v6589 = vpop.trf.xlu0
        %v6590 = vpop.trf.xlu0
        %v6591 = vpop.trf.xlu0
        %v6592 = vpop.trf.xlu0
        %v6593 = vpop.trf.xlu0
        %v6594 = vpop.trf.xlu0
        %6595 = vxpose.xlu0.b32.start [1/16] %v6261, 128
        %6596 = vxpose.xlu0.b32.cont [2/16] 0.0, 128
        %6597 = vxpose.xlu0.b32.cont [3/16] 0.0, 128
        %6598 = vxpose.xlu0.b32.cont [4/16] 0.0, 128
        %6599 = vxpose.xlu0.b32.cont [5/16] 0.0, 128
        %6600 = vxpose.xlu0.b32.cont [6/16] 0.0, 128
        %6601 = vxpose.xlu0.b32.cont [7/16] 0.0, 128
        %6602 = vxpose.xlu0.b32.cont [8/16] 0.0, 128
        %6603 = vxpose.xlu0.b32.cont [9/16] 0.0, 128
        %6604 = vxpose.xlu0.b32.cont [10/16] 0.0, 128
        %6605 = vxpose.xlu0.b32.cont [11/16] 0.0, 128
        %6606 = vxpose.xlu0.b32.cont [12/16] 0.0, 128
        %6607 = vxpose.xlu0.b32.cont [13/16] 0.0, 128
        %6608 = vxpose.xlu0.b32.cont [14/16] 0.0, 128
        %6609 = vxpose.xlu0.b32.cont [15/16] 0.0, 128
        %6610 = vxpose.xlu0.b32.end [16/16] 0.0, 128
        %v6611 = vpop.trf.xlu0
        %v6612 = vpop.trf.xlu0
        %v6613 = vpop.trf.xlu0
        %v6614 = vpop.trf.xlu0
        %v6615 = vpop.trf.xlu0
        %v6616 = vpop.trf.xlu0
        %v6617 = vpop.trf.xlu0
        %v6618 = vpop.trf.xlu0
        %v6619 = vpop.trf.xlu0
        %v6620 = vpop.trf.xlu0
        %v6621 = vpop.trf.xlu0
        %v6622 = vpop.trf.xlu0
        %v6623 = vpop.trf.xlu0
        %v6624 = vpop.trf.xlu0
        %v6625 = vpop.trf.xlu0
        %v6626 = vpop.trf.xlu0
        %6627 = vxpose.xlu0.b32.start [1/16] %v6262, 128
        %6628 = vxpose.xlu0.b32.cont [2/16] 0.0, 128
        %6629 = vxpose.xlu0.b32.cont [3/16] 0.0, 128
        %6630 = vxpose.xlu0.b32.cont [4/16] 0.0, 128
        %6631 = vxpose.xlu0.b32.cont [5/16] 0.0, 128
        %6632 = vxpose.xlu0.b32.cont [6/16] 0.0, 128
        %6633 = vxpose.xlu0.b32.cont [7/16] 0.0, 128
        %6634 = vxpose.xlu0.b32.cont [8/16] 0.0, 128
        %6635 = vxpose.xlu0.b32.cont [9/16] 0.0, 128
        %6636 = vxpose.xlu0.b32.cont [10/16] 0.0, 128
        %6637 = vxpose.xlu0.b32.cont [11/16] 0.0, 128
        %6638 = vxpose.xlu0.b32.cont [12/16] 0.0, 128
        %6639 = vxpose.xlu0.b32.cont [13/16] 0.0, 128
        %6640 = vxpose.xlu0.b32.cont [14/16] 0.0, 128
        %6641 = vxpose.xlu0.b32.cont [15/16] 0.0, 128
        %6642 = vxpose.xlu0.b32.end [16/16] 0.0, 128
        %v6643 = vpop.trf.xlu0
        %v6644 = vpop.trf.xlu0
        %v6645 = vpop.trf.xlu0
        %v6646 = vpop.trf.xlu0
        %v6647 = vpop.trf.xlu0
        %v6648 = vpop.trf.xlu0
        %v6649 = vpop.trf.xlu0
        %v6650 = vpop.trf.xlu0
        %v6651 = vpop.trf.xlu0
        %v6652 = vpop.trf.xlu0
        %v6653 = vpop.trf.xlu0
        %v6654 = vpop.trf.xlu0
        %v6655 = vpop.trf.xlu0
        %v6656 = vpop.trf.xlu0
        %v6657 = vpop.trf.xlu0
        %v6658 = vpop.trf.xlu0
        %6659 = vxpose.xlu0.b32.start [1/16] %v6263, 128
        %6660 = vxpose.xlu0.b32.cont [2/16] 0.0, 128
        %6661 = vxpose.xlu0.b32.cont [3/16] 0.0, 128
        %6662 = vxpose.xlu0.b32.cont [4/16] 0.0, 128
        %6663 = vxpose.xlu0.b32.cont [5/16] 0.0, 128
        %6664 = vxpose.xlu0.b32.cont [6/16] 0.0, 128
        %6665 = vxpose.xlu0.b32.cont [7/16] 0.0, 128
        %6666 = vxpose.xlu0.b32.cont [8/16] 0.0, 128
        %6667 = vxpose.xlu0.b32.cont [9/16] 0.0, 128
        %6668 = vxpose.xlu0.b32.cont [10/16] 0.0, 128
        %6669 = vxpose.xlu0.b32.cont [11/16] 0.0, 128
        %6670 = vxpose.xlu0.b32.cont [12/16] 0.0, 128
        %6671 = vxpose.xlu0.b32.cont [13/16] 0.0, 128
        %6672 = vxpose.xlu0.b32.cont [14/16] 0.0, 128
        %6673 = vxpose.xlu0.b32.cont [15/16] 0.0, 128
        %6674 = vxpose.xlu0.b32.end [16/16] 0.0, 128
        %v6675 = vpop.trf.xlu0
        %v6676 = vpop.trf.xlu0
        %v6677 = vpop.trf.xlu0
        %v6678 = vpop.trf.xlu0
        %v6679 = vpop.trf.xlu0
        %v6680 = vpop.trf.xlu0
        %v6681 = vpop.trf.xlu0
        %v6682 = vpop.trf.xlu0
        %v6683 = vpop.trf.xlu0
        %v6684 = vpop.trf.xlu0
        %v6685 = vpop.trf.xlu0
        %v6686 = vpop.trf.xlu0
        %v6687 = vpop.trf.xlu0
        %v6688 = vpop.trf.xlu0
        %v6689 = vpop.trf.xlu0
        %v6690 = vpop.trf.xlu0
        %6691 = vxpose.xlu0.b32.start [1/16] %v6264, 128
        %6692 = vxpose.xlu0.b32.cont [2/16] 0.0, 128
        %6693 = vxpose.xlu0.b32.cont [3/16] 0.0, 128
        %6694 = vxpose.xlu0.b32.cont [4/16] 0.0, 128
        %6695 = vxpose.xlu0.b32.cont [5/16] 0.0, 128
        %6696 = vxpose.xlu0.b32.cont [6/16] 0.0, 128
        %6697 = vxpose.xlu0.b32.cont [7/16] 0.0, 128
        %6698 = vxpose.xlu0.b32.cont [8/16] 0.0, 128
        %6699 = vxpose.xlu0.b32.cont [9/16] 0.0, 128
        %6700 = vxpose.xlu0.b32.cont [10/16] 0.0, 128
        %6701 = vxpose.xlu0.b32.cont [11/16] 0.0, 128
        %6702 = vxpose.xlu0.b32.cont [12/16] 0.0, 128
        %6703 = vxpose.xlu0.b32.cont [13/16] 0.0, 128
        %6704 = vxpose.xlu0.b32.cont [14/16] 0.0, 128
        %6705 = vxpose.xlu0.b32.cont [15/16] 0.0, 128
        %6706 = vxpose.xlu0.b32.end [16/16] 0.0, 128
        %v6707 = vpop.trf.xlu0
        %v6708 = vpop.trf.xlu0
        %v6709 = vpop.trf.xlu0
        %v6710 = vpop.trf.xlu0
        %v6711 = vpop.trf.xlu0
        %v6712 = vpop.trf.xlu0
        %v6713 = vpop.trf.xlu0
        %v6714 = vpop.trf.xlu0
        %v6715 = vpop.trf.xlu0
        %v6716 = vpop.trf.xlu0
        %v6717 = vpop.trf.xlu0
        %v6718 = vpop.trf.xlu0
        %v6719 = vpop.trf.xlu0
        %v6720 = vpop.trf.xlu0
        %v6721 = vpop.trf.xlu0
        %v6722 = vpop.trf.xlu0
        %6723 = vxpose.xlu0.b32.start [1/16] %v6265, 128
        %6724 = vxpose.xlu0.b32.cont [2/16] 0.0, 128
        %6725 = vxpose.xlu0.b32.cont [3/16] 0.0, 128
        %6726 = vxpose.xlu0.b32.cont [4/16] 0.0, 128
        %6727 = vxpose.xlu0.b32.cont [5/16] 0.0, 128
        %6728 = vxpose.xlu0.b32.cont [6/16] 0.0, 128
        %6729 = vxpose.xlu0.b32.cont [7/16] 0.0, 128
        %6730 = vxpose.xlu0.b32.cont [8/16] 0.0, 128
        %6731 = vxpose.xlu0.b32.cont [9/16] 0.0, 128
        %6732 = vxpose.xlu0.b32.cont [10/16] 0.0, 128
        %6733 = vxpose.xlu0.b32.cont [11/16] 0.0, 128
        %6734 = vxpose.xlu0.b32.cont [12/16] 0.0, 128
        %6735 = vxpose.xlu0.b32.cont [13/16] 0.0, 128
        %6736 = vxpose.xlu0.b32.cont [14/16] 0.0, 128
        %6737 = vxpose.xlu0.b32.cont [15/16] 0.0, 128
        %6738 = vxpose.xlu0.b32.end [16/16] 0.0, 128
        %v6739 = vpop.trf.xlu0
        %v6740 = vpop.trf.xlu0
        %v6741 = vpop.trf.xlu0
        %v6742 = vpop.trf.xlu0
        %v6743 = vpop.trf.xlu0
        %v6744 = vpop.trf.xlu0
        %v6745 = vpop.trf.xlu0
        %v6746 = vpop.trf.xlu0
        %v6747 = vpop.trf.xlu0
        %v6748 = vpop.trf.xlu0
        %v6749 = vpop.trf.xlu0
        %v6750 = vpop.trf.xlu0
        %v6751 = vpop.trf.xlu0
        %v6752 = vpop.trf.xlu0
        %v6753 = vpop.trf.xlu0
        %v6754 = vpop.trf.xlu0
        %6755 = vxpose.xlu0.b32.start [1/16] %v6266, 128
        %6756 = vxpose.xlu0.b32.cont [2/16] 0.0, 128
        %6757 = vxpose.xlu0.b32.cont [3/16] 0.0, 128
        %6758 = vxpose.xlu0.b32.cont [4/16] 0.0, 128
        %6759 = vxpose.xlu0.b32.cont [5/16] 0.0, 128
        %6760 = vxpose.xlu0.b32.cont [6/16] 0.0, 128
        %6761 = vxpose.xlu0.b32.cont [7/16] 0.0, 128
        %6762 = vxpose.xlu0.b32.cont [8/16] 0.0, 128
        %6763 = vxpose.xlu0.b32.cont [9/16] 0.0, 128
        %6764 = vxpose.xlu0.b32.cont [10/16] 0.0, 128
        %6765 = vxpose.xlu0.b32.cont [11/16] 0.0, 128
        %6766 = vxpose.xlu0.b32.cont [12/16] 0.0, 128
        %6767 = vxpose.xlu0.b32.cont [13/16] 0.0, 128
        %6768 = vxpose.xlu0.b32.cont [14/16] 0.0, 128
        %6769 = vxpose.xlu0.b32.cont [15/16] 0.0, 128
        %6770 = vxpose.xlu0.b32.end [16/16] 0.0, 128
        %v6771 = vpop.trf.xlu0
        %v6772 = vpop.trf.xlu0
        %v6773 = vpop.trf.xlu0
        %v6774 = vpop.trf.xlu0
        %v6775 = vpop.trf.xlu0
        %v6776 = vpop.trf.xlu0
        %v6777 = vpop.trf.xlu0
        %v6778 = vpop.trf.xlu0
        %v6779 = vpop.trf.xlu0
        %v6780 = vpop.trf.xlu0
        %v6781 = vpop.trf.xlu0
        %v6782 = vpop.trf.xlu0
        %v6783 = vpop.trf.xlu0
        %v6784 = vpop.trf.xlu0
        %v6785 = vpop.trf.xlu0
        %v6786 = vpop.trf.xlu0
        %6787 = vxpose.xlu0.b32.start [1/16] %v6267, 128
        %6788 = vxpose.xlu0.b32.cont [2/16] 0.0, 128
        %6789 = vxpose.xlu0.b32.cont [3/16] 0.0, 128
        %6790 = vxpose.xlu0.b32.cont [4/16] 0.0, 128
        %6791 = vxpose.xlu0.b32.cont [5/16] 0.0, 128
        %6792 = vxpose.xlu0.b32.cont [6/16] 0.0, 128
        %6793 = vxpose.xlu0.b32.cont [7/16] 0.0, 128
        %6794 = vxpose.xlu0.b32.cont [8/16] 0.0, 128
        %6795 = vxpose.xlu0.b32.cont [9/16] 0.0, 128
        %6796 = vxpose.xlu0.b32.cont [10/16] 0.0, 128
        %6797 = vxpose.xlu0.b32.cont [11/16] 0.0, 128
        %6798 = vxpose.xlu0.b32.cont [12/16] 0.0, 128
        %6799 = vxpose.xlu0.b32.cont [13/16] 0.0, 128
        %6800 = vxpose.xlu0.b32.cont [14/16] 0.0, 128
        %6801 = vxpose.xlu0.b32.cont [15/16] 0.0, 128
        %6802 = vxpose.xlu0.b32.end [16/16] 0.0, 128
        %v6803 = vpop.trf.xlu0
        %v6804 = vpop.trf.xlu0
        %v6805 = vpop.trf.xlu0
        %v6806 = vpop.trf.xlu0
        %v6807 = vpop.trf.xlu0
        %v6808 = vpop.trf.xlu0
        %v6809 = vpop.trf.xlu0
        %v6810 = vpop.trf.xlu0
        %v6811 = vpop.trf.xlu0
        %v6812 = vpop.trf.xlu0
        %v6813 = vpop.trf.xlu0
        %v6814 = vpop.trf.xlu0
        %v6815 = vpop.trf.xlu0
        %v6816 = vpop.trf.xlu0
        %v6817 = vpop.trf.xlu0
        %v6818 = vpop.trf.xlu0
        %6819 = vxpose.xlu0.b32.start [1/16] %v6268, 128
        %6820 = vxpose.xlu0.b32.cont [2/16] 0.0, 128
        %6821 = vxpose.xlu0.b32.cont [3/16] 0.0, 128
        %6822 = vxpose.xlu0.b32.cont [4/16] 0.0, 128
        %6823 = vxpose.xlu0.b32.cont [5/16] 0.0, 128
        %6824 = vxpose.xlu0.b32.cont [6/16] 0.0, 128
        %6825 = vxpose.xlu0.b32.cont [7/16] 0.0, 128
        %6826 = vxpose.xlu0.b32.cont [8/16] 0.0, 128
        %6827 = vxpose.xlu0.b32.cont [9/16] 0.0, 128
        %6828 = vxpose.xlu0.b32.cont [10/16] 0.0, 128
        %6829 = vxpose.xlu0.b32.cont [11/16] 0.0, 128
        %6830 = vxpose.xlu0.b32.cont [12/16] 0.0, 128
        %6831 = vxpose.xlu0.b32.cont [13/16] 0.0, 128
        %6832 = vxpose.xlu0.b32.cont [14/16] 0.0, 128
        %6833 = vxpose.xlu0.b32.cont [15/16] 0.0, 128
        %6834 = vxpose.xlu0.b32.end [16/16] 0.0, 128
        %v6835 = vpop.trf.xlu0
        %v6836 = vpop.trf.xlu0
        %v6837 = vpop.trf.xlu0
        %v6838 = vpop.trf.xlu0
        %v6839 = vpop.trf.xlu0
        %v6840 = vpop.trf.xlu0
        %v6841 = vpop.trf.xlu0
        %v6842 = vpop.trf.xlu0
        %v6843 = vpop.trf.xlu0
        %v6844 = vpop.trf.xlu0
        %v6845 = vpop.trf.xlu0
        %v6846 = vpop.trf.xlu0
        %v6847 = vpop.trf.xlu0
        %v6848 = vpop.trf.xlu0
        %v6849 = vpop.trf.xlu0
        %v6850 = vpop.trf.xlu0
        %6851 = vxpose.xlu0.b32.start [1/16] %v6269, 128
        %6852 = vxpose.xlu0.b32.cont [2/16] 0.0, 128
        %6853 = vxpose.xlu0.b32.cont [3/16] 0.0, 128
        %6854 = vxpose.xlu0.b32.cont [4/16] 0.0, 128
        %6855 = vxpose.xlu0.b32.cont [5/16] 0.0, 128
        %6856 = vxpose.xlu0.b32.cont [6/16] 0.0, 128
        %6857 = vxpose.xlu0.b32.cont [7/16] 0.0, 128
        %6858 = vxpose.xlu0.b32.cont [8/16] 0.0, 128
        %6859 = vxpose.xlu0.b32.cont [9/16] 0.0, 128
        %6860 = vxpose.xlu0.b32.cont [10/16] 0.0, 128
        %6861 = vxpose.xlu0.b32.cont [11/16] 0.0, 128
        %6862 = vxpose.xlu0.b32.cont [12/16] 0.0, 128
        %6863 = vxpose.xlu0.b32.cont [13/16] 0.0, 128
        %6864 = vxpose.xlu0.b32.cont [14/16] 0.0, 128
        %6865 = vxpose.xlu0.b32.cont [15/16] 0.0, 128
        %6866 = vxpose.xlu0.b32.end [16/16] 0.0, 128
        %v6867 = vpop.trf.xlu0
        %v6868 = vpop.trf.xlu0
        %v6869 = vpop.trf.xlu0
        %v6870 = vpop.trf.xlu0
        %v6871 = vpop.trf.xlu0
        %v6872 = vpop.trf.xlu0
        %v6873 = vpop.trf.xlu0
        %v6874 = vpop.trf.xlu0
        %v6875 = vpop.trf.xlu0
        %v6876 = vpop.trf.xlu0
        %v6877 = vpop.trf.xlu0
        %v6878 = vpop.trf.xlu0
        %v6879 = vpop.trf.xlu0
        %v6880 = vpop.trf.xlu0
        %v6881 = vpop.trf.xlu0
        %v6882 = vpop.trf.xlu0
        %6883 = vxpose.xlu0.b32.start [1/16] %v6270, 128
        %6884 = vxpose.xlu0.b32.cont [2/16] 0.0, 128
        %6885 = vxpose.xlu0.b32.cont [3/16] 0.0, 128
        %6886 = vxpose.xlu0.b32.cont [4/16] 0.0, 128
        %6887 = vxpose.xlu0.b32.cont [5/16] 0.0, 128
        %6888 = vxpose.xlu0.b32.cont [6/16] 0.0, 128
        %6889 = vxpose.xlu0.b32.cont [7/16] 0.0, 128
        %6890 = vxpose.xlu0.b32.cont [8/16] 0.0, 128
        %6891 = vxpose.xlu0.b32.cont [9/16] 0.0, 128
        %6892 = vxpose.xlu0.b32.cont [10/16] 0.0, 128
        %6893 = vxpose.xlu0.b32.cont [11/16] 0.0, 128
        %6894 = vxpose.xlu0.b32.cont [12/16] 0.0, 128
        %6895 = vxpose.xlu0.b32.cont [13/16] 0.0, 128
        %6896 = vxpose.xlu0.b32.cont [14/16] 0.0, 128
        %6897 = vxpose.xlu0.b32.cont [15/16] 0.0, 128
        %6898 = vxpose.xlu0.b32.end [16/16] 0.0, 128
        %v6899 = vpop.trf.xlu0
        %v6900 = vpop.trf.xlu0
        %v6901 = vpop.trf.xlu0
        %v6902 = vpop.trf.xlu0
        %v6903 = vpop.trf.xlu0
        %v6904 = vpop.trf.xlu0
        %v6905 = vpop.trf.xlu0
        %v6906 = vpop.trf.xlu0
        %v6907 = vpop.trf.xlu0
        %v6908 = vpop.trf.xlu0
        %v6909 = vpop.trf.xlu0
        %v6910 = vpop.trf.xlu0
        %v6911 = vpop.trf.xlu0
        %v6912 = vpop.trf.xlu0
        %v6913 = vpop.trf.xlu0
        %v6914 = vpop.trf.xlu0
        %6915 = vxpose.xlu0.b32.start [1/16] %v6271, 128
        %6916 = vxpose.xlu0.b32.cont [2/16] 0.0, 128
        %6917 = vxpose.xlu0.b32.cont [3/16] 0.0, 128
        %6918 = vxpose.xlu0.b32.cont [4/16] 0.0, 128
        %6919 = vxpose.xlu0.b32.cont [5/16] 0.0, 128
        %6920 = vxpose.xlu0.b32.cont [6/16] 0.0, 128
        %6921 = vxpose.xlu0.b32.cont [7/16] 0.0, 128
        %6922 = vxpose.xlu0.b32.cont [8/16] 0.0, 128
        %6923 = vxpose.xlu0.b32.cont [9/16] 0.0, 128
        %6924 = vxpose.xlu0.b32.cont [10/16] 0.0, 128
        %6925 = vxpose.xlu0.b32.cont [11/16] 0.0, 128
        %6926 = vxpose.xlu0.b32.cont [12/16] 0.0, 128
        %6927 = vxpose.xlu0.b32.cont [13/16] 0.0, 128
        %6928 = vxpose.xlu0.b32.cont [14/16] 0.0, 128
        %6929 = vxpose.xlu0.b32.cont [15/16] 0.0, 128
        %6930 = vxpose.xlu0.b32.end [16/16] 0.0, 128
        %v6931 = vpop.trf.xlu0
        %v6932 = vpop.trf.xlu0
        %v6933 = vpop.trf.xlu0
        %v6934 = vpop.trf.xlu0
        %v6935 = vpop.trf.xlu0
        %v6936 = vpop.trf.xlu0
        %v6937 = vpop.trf.xlu0
        %v6938 = vpop.trf.xlu0
        %v6939 = vpop.trf.xlu0
        %v6940 = vpop.trf.xlu0
        %v6941 = vpop.trf.xlu0
        %v6942 = vpop.trf.xlu0
        %v6943 = vpop.trf.xlu0
        %v6944 = vpop.trf.xlu0
        %v6945 = vpop.trf.xlu0
        %v6946 = vpop.trf.xlu0
        %6947 = vxpose.xlu0.b32.start [1/16] %v6272, 128
        %6948 = vxpose.xlu0.b32.cont [2/16] 0.0, 128
        %6949 = vxpose.xlu0.b32.cont [3/16] 0.0, 128
        %6950 = vxpose.xlu0.b32.cont [4/16] 0.0, 128
        %6951 = vxpose.xlu0.b32.cont [5/16] 0.0, 128
        %6952 = vxpose.xlu0.b32.cont [6/16] 0.0, 128
        %6953 = vxpose.xlu0.b32.cont [7/16] 0.0, 128
        %6954 = vxpose.xlu0.b32.cont [8/16] 0.0, 128
        %6955 = vxpose.xlu0.b32.cont [9/16] 0.0, 128
        %6956 = vxpose.xlu0.b32.cont [10/16] 0.0, 128
        %6957 = vxpose.xlu0.b32.cont [11/16] 0.0, 128
        %6958 = vxpose.xlu0.b32.cont [12/16] 0.0, 128
        %6959 = vxpose.xlu0.b32.cont [13/16] 0.0, 128
        %6960 = vxpose.xlu0.b32.cont [14/16] 0.0, 128
        %6961 = vxpose.xlu0.b32.cont [15/16] 0.0, 128
        %6962 = vxpose.xlu0.b32.end [16/16] 0.0, 128
        %v6963 = vpop.trf.xlu0
        %v6964 = vpop.trf.xlu0
        %v6965 = vpop.trf.xlu0
        %v6966 = vpop.trf.xlu0
        %v6967 = vpop.trf.xlu0
        %v6968 = vpop.trf.xlu0
        %v6969 = vpop.trf.xlu0
        %v6970 = vpop.trf.xlu0
        %v6971 = vpop.trf.xlu0
        %v6972 = vpop.trf.xlu0
        %v6973 = vpop.trf.xlu0
        %v6974 = vpop.trf.xlu0
        %v6975 = vpop.trf.xlu0
        %v6976 = vpop.trf.xlu0
        %v6977 = vpop.trf.xlu0
        %v6978 = vpop.trf.xlu0
        %6979 = vxpose.xlu0.b32.start [1/16] %v6273, 128
        %6980 = vxpose.xlu0.b32.cont [2/16] 0.0, 128
        %6981 = vxpose.xlu0.b32.cont [3/16] 0.0, 128
        %6982 = vxpose.xlu0.b32.cont [4/16] 0.0, 128
        %6983 = vxpose.xlu0.b32.cont [5/16] 0.0, 128
        %6984 = vxpose.xlu0.b32.cont [6/16] 0.0, 128
        %6985 = vxpose.xlu0.b32.cont [7/16] 0.0, 128
        %6986 = vxpose.xlu0.b32.cont [8/16] 0.0, 128
        %6987 = vxpose.xlu0.b32.cont [9/16] 0.0, 128
        %6988 = vxpose.xlu0.b32.cont [10/16] 0.0, 128
        %6989 = vxpose.xlu0.b32.cont [11/16] 0.0, 128
        %6990 = vxpose.xlu0.b32.cont [12/16] 0.0, 128
        %6991 = vxpose.xlu0.b32.cont [13/16] 0.0, 128
        %6992 = vxpose.xlu0.b32.cont [14/16] 0.0, 128
        %6993 = vxpose.xlu0.b32.cont [15/16] 0.0, 128
        %6994 = vxpose.xlu0.b32.end [16/16] 0.0, 128
        %v6995 = vpop.trf.xlu0
        %v6996 = vpop.trf.xlu0
        %v6997 = vpop.trf.xlu0
        %v6998 = vpop.trf.xlu0
        %v6999 = vpop.trf.xlu0
        %v7000 = vpop.trf.xlu0
        %v7001 = vpop.trf.xlu0
        %v7002 = vpop.trf.xlu0
        %v7003 = vpop.trf.xlu0
        %v7004 = vpop.trf.xlu0
        %v7005 = vpop.trf.xlu0
        %v7006 = vpop.trf.xlu0
        %v7007 = vpop.trf.xlu0
        %v7008 = vpop.trf.xlu0
        %v7009 = vpop.trf.xlu0
        %v7010 = vpop.trf.xlu0
        %7011 = vxpose.xlu0.b32.start [1/16] %v6274, 128
        %7012 = vxpose.xlu0.b32.cont [2/16] 0.0, 128
        %7013 = vxpose.xlu0.b32.cont [3/16] 0.0, 128
        %7014 = vxpose.xlu0.b32.cont [4/16] 0.0, 128
        %7015 = vxpose.xlu0.b32.cont [5/16] 0.0, 128
        %7016 = vxpose.xlu0.b32.cont [6/16] 0.0, 128
        %7017 = vxpose.xlu0.b32.cont [7/16] 0.0, 128
        %7018 = vxpose.xlu0.b32.cont [8/16] 0.0, 128
        %7019 = vxpose.xlu0.b32.cont [9/16] 0.0, 128
        %7020 = vxpose.xlu0.b32.cont [10/16] 0.0, 128
        %7021 = vxpose.xlu0.b32.cont [11/16] 0.0, 128
        %7022 = vxpose.xlu0.b32.cont [12/16] 0.0, 128
        %7023 = vxpose.xlu0.b32.cont [13/16] 0.0, 128
        %7024 = vxpose.xlu0.b32.cont [14/16] 0.0, 128
        %7025 = vxpose.xlu0.b32.cont [15/16] 0.0, 128
        %7026 = vxpose.xlu0.b32.end [16/16] 0.0, 128
        %v7027 = vpop.trf.xlu0
        %v7028 = vpop.trf.xlu0
        %v7029 = vpop.trf.xlu0
        %v7030 = vpop.trf.xlu0
        %v7031 = vpop.trf.xlu0
        %v7032 = vpop.trf.xlu0
        %v7033 = vpop.trf.xlu0
        %v7034 = vpop.trf.xlu0
        %v7035 = vpop.trf.xlu0
        %v7036 = vpop.trf.xlu0
        %v7037 = vpop.trf.xlu0
        %v7038 = vpop.trf.xlu0
        %v7039 = vpop.trf.xlu0
        %v7040 = vpop.trf.xlu0
        %v7041 = vpop.trf.xlu0
        %v7042 = vpop.trf.xlu0
        %7043 = vxpose.xlu0.b32.start [1/16] %v6291, 128
        %7044 = vxpose.xlu0.b32.cont [2/16] %v6323, 128
        %7045 = vxpose.xlu0.b32.cont [3/16] %v6355, 128
        %7046 = vxpose.xlu0.b32.cont [4/16] %v6387, 128
        %7047 = vxpose.xlu0.b32.cont [5/16] %v6419, 128
        %7048 = vxpose.xlu0.b32.cont [6/16] %v6451, 128
        %7049 = vxpose.xlu0.b32.cont [7/16] %v6483, 128
        %7050 = vxpose.xlu0.b32.cont [8/16] %v6515, 128
        %7051 = vxpose.xlu0.b32.cont [9/16] %v6547, 128
        %7052 = vxpose.xlu0.b32.cont [10/16] %v6579, 128
        %7053 = vxpose.xlu0.b32.cont [11/16] %v6611, 128
        %7054 = vxpose.xlu0.b32.cont [12/16] %v6643, 128
        %7055 = vxpose.xlu0.b32.cont [13/16] %v6675, 128
        %7056 = vxpose.xlu0.b32.cont [14/16] %v6707, 128
        %7057 = vxpose.xlu0.b32.cont [15/16] %v6739, 128
        %7058 = vxpose.xlu0.b32.end [16/16] %v6771, 128
        %v7059 = vpop.trf.xlu0
        %v7060 = vpop.trf.xlu0
        %v7061 = vpop.trf.xlu0
        %v7062 = vpop.trf.xlu0
        %v7063 = vpop.trf.xlu0
        %v7064 = vpop.trf.xlu0
        %v7065 = vpop.trf.xlu0
        %v7066 = vpop.trf.xlu0
        %v7067 = vpop.trf.xlu0
        %v7068 = vpop.trf.xlu0
        %v7069 = vpop.trf.xlu0
        %v7070 = vpop.trf.xlu0
        %v7071 = vpop.trf.xlu0
        %v7072 = vpop.trf.xlu0
        %v7073 = vpop.trf.xlu0
        %v7074 = vpop.trf.xlu0
        %7075 = vxpose.xlu0.b32.start [1/16] %v6803, 128
        %7076 = vxpose.xlu0.b32.cont [2/16] %v6835, 128
        %7077 = vxpose.xlu0.b32.cont [3/16] %v6867, 128
        %7078 = vxpose.xlu0.b32.cont [4/16] %v6899, 128
        %7079 = vxpose.xlu0.b32.cont [5/16] %v6931, 128
        %7080 = vxpose.xlu0.b32.cont [6/16] %v6963, 128
        %7081 = vxpose.xlu0.b32.cont [7/16] %v6995, 128
        %7082 = vxpose.xlu0.b32.cont [8/16] %v7027, 128
        %7083 = vxpose.xlu0.b32.cont [9/16] 0.0, 128
        %7084 = vxpose.xlu0.b32.cont [10/16] 0.0, 128
        %7085 = vxpose.xlu0.b32.cont [11/16] 0.0, 128
        %7086 = vxpose.xlu0.b32.cont [12/16] 0.0, 128
        %7087 = vxpose.xlu0.b32.cont [13/16] 0.0, 128
        %7088 = vxpose.xlu0.b32.cont [14/16] 0.0, 128
        %7089 = vxpose.xlu0.b32.cont [15/16] 0.0, 128
        %7090 = vxpose.xlu0.b32.end [16/16] 0.0, 128
        %v7091 = vpop.trf.xlu0
        %v7092 = vpop.trf.xlu0
        %v7093 = vpop.trf.xlu0
        %v7094 = vpop.trf.xlu0
        %v7095 = vpop.trf.xlu0
        %v7096 = vpop.trf.xlu0
        %v7097 = vpop.trf.xlu0
        %v7098 = vpop.trf.xlu0
        %v7099 = vpop.trf.xlu0
        %v7100 = vpop.trf.xlu0
        %v7101 = vpop.trf.xlu0
        %v7102 = vpop.trf.xlu0
        %v7103 = vpop.trf.xlu0
        %v7104 = vpop.trf.xlu0
        %v7105 = vpop.trf.xlu0
        %v7106 = vpop.trf.xlu0
        %7107 = vst [vmem:[#allocation2 + $0x70] sm:$0xff] %v7059
        %7108 = vst.msk [vmem:[#allocation2 + $0x78] sm:$0xff] %vm1094, %v7091
        %v7109 = vld [vmem:[#allocation2] sm:$0xff]
        %v7110 = vld [vmem:[#allocation2 + $0x8] sm:$0xff]
        %v7111 = vld [vmem:[#allocation2 + $0x10] sm:$0xff]
        %v7112 = vld [vmem:[#allocation2 + $0x18] sm:$0xff]
        %v7113 = vld [vmem:[#allocation2 + $0x20] sm:$0xff]
        %v7114 = vld [vmem:[#allocation2 + $0x28] sm:$0xff]
        %v7115 = vld [vmem:[#allocation2 + $0x30] sm:$0xff]
        %v7116 = vld [vmem:[#allocation2 + $0x38] sm:$0xff]
        %v7117 = vld [vmem:[#allocation2 + $0x40] sm:$0xff]
        %v7118 = vld [vmem:[#allocation2 + $0x48] sm:$0xff]
        %v7119 = vld [vmem:[#allocation2 + $0x50] sm:$0xff]
        %v7120 = vld [vmem:[#allocation2 + $0x58] sm:$0xff]
        %v7121 = vld [vmem:[#allocation2 + $0x60] sm:$0xff]
        %v7122 = vld [vmem:[#allocation2 + $0x68] sm:$0xff]
        %v7123 = vld [vmem:[#allocation2 + $0x70] sm:$0xff]
        %v7124 = vld [vmem:[#allocation2 + $0x78] sm:$0xff]
        %v7125 = vld [vmem:[#allocation6] sm:$0xff]
        %v7126 = vld [vmem:[#allocation6 + $0x8] sm:$0xff]
        %v7127 = vld [vmem:[#allocation6 + $0x10] sm:$0xff]
        %v7128 = vld [vmem:[#allocation6 + $0x18] sm:$0xff]
        %v7129 = vld [vmem:[#allocation6 + $0x20] sm:$0xff]
        %v7130 = vld [vmem:[#allocation6 + $0x28] sm:$0xff]
        %v7131 = vld [vmem:[#allocation6 + $0x30] sm:$0xff]
        %v7132 = vld [vmem:[#allocation6 + $0x38] sm:$0xff]
        %v7133 = vld [vmem:[#allocation6 + $0x40] sm:$0xff]
        %v7134 = vld [vmem:[#allocation6 + $0x48] sm:$0xff]
        %v7135 = vld [vmem:[#allocation6 + $0x50] sm:$0xff]
        %v7136 = vld [vmem:[#allocation6 + $0x58] sm:$0xff]
        %v7137 = vld [vmem:[#allocation6 + $0x60] sm:$0xff]
        %v7138 = vld [vmem:[#allocation6 + $0x68] sm:$0xff]
        %v7139 = vld [vmem:[#allocation6 + $0x70] sm:$0xff]
        %v7140 = vld [vmem:[#allocation6 + $0x78] sm:$0xff]
        %v7141 = vld [vmem:[#allocation6 + $0x80] sm:$0xff]
        %v7142 = vld [vmem:[#allocation6 + $0x88] sm:$0xff]
        %v7143 = vld [vmem:[#allocation6 + $0x90] sm:$0xff]
        %v7144 = vld [vmem:[#allocation6 + $0x98] sm:$0xff]
        %v7145 = vld [vmem:[#allocation6 + $0xa0] sm:$0xff]
        %v7146 = vld [vmem:[#allocation6 + $0xa8] sm:$0xff]
        %v7147 = vld [vmem:[#allocation6 + $0xb0] sm:$0xff]
        %v7148 = vld [vmem:[#allocation6 + $0xb8] sm:$0xff]
        %v7149 = vld [vmem:[#allocation6 + $0xc0] sm:$0xff]
        %v7150 = vld [vmem:[#allocation6 + $0xc8] sm:$0xff]
        %v7151 = vld [vmem:[#allocation6 + $0xd0] sm:$0xff]
        %v7152 = vld [vmem:[#allocation6 + $0xd8] sm:$0xff]
        %v7153 = vld [vmem:[#allocation6 + $0xe0] sm:$0xff]
        %v7154 = vld [vmem:[#allocation6 + $0xe8] sm:$0xff]
        %v7155 = vld [vmem:[#allocation6 + $0xf0] sm:$0xff]
        %v7156 = vld [vmem:[#allocation6 + $0xf8] sm:$0xff]
        %v7157 = vld [vmem:[#allocation6 + $0x100] sm:$0xff]
        %v7158 = vld [vmem:[#allocation6 + $0x108] sm:$0xff]
        %v7159 = vld [vmem:[#allocation6 + $0x110] sm:$0xff]
        %v7160 = vld [vmem:[#allocation6 + $0x118] sm:$0xff]
        %v7161 = vld [vmem:[#allocation6 + $0x120] sm:$0xff]
        %v7162 = vld [vmem:[#allocation6 + $0x128] sm:$0xff]
        %v7163 = vld [vmem:[#allocation6 + $0x130] sm:$0xff]
        %v7164 = vld [vmem:[#allocation6 + $0x138] sm:$0xff]
        %v7165 = vld [vmem:[#allocation6 + $0x140] sm:$0xff]
        %v7166 = vld [vmem:[#allocation6 + $0x148] sm:$0xff]
        %v7167 = vld [vmem:[#allocation6 + $0x150] sm:$0xff]
        %v7168 = vld [vmem:[#allocation6 + $0x158] sm:$0xff]
        %v7169 = vld [vmem:[#allocation6 + $0x160] sm:$0xff]
        %v7170 = vld [vmem:[#allocation6 + $0x168] sm:$0xff]
        %v7171 = vld [vmem:[#allocation6 + $0x170] sm:$0xff]
        %v7172 = vld [vmem:[#allocation6 + $0x178] sm:$0xff]
        %v7173 = vld [vmem:[#allocation8] sm:$0x3]
        %v7175 = vlaneseq
        %v7176 = vshrl.u32 %v7175, 7
        %v7177 = vsub.s32 0, %v7176
        %v7178 = vrot.slane %v7173, %v7177
        %v7179 = vlaneseq
        %v7180 = vshrl.u32 %v7179, 7
        %v7181 = vsub.s32 1, %v7180
        %v7182 = vrot.slane %v7173, %v7181
        %v7186 = vsel %vm1094, %v7110, 0
        %v7189 = vsel %vm1094, %v7112, 0
        %v7192 = vsel %vm1094, %v7114, 0
        %v7195 = vsel %vm1094, %v7116, 0
        %v7198 = vsel %vm1094, %v7118, 0
        %v7201 = vsel %vm1094, %v7120, 0
        %v7204 = vsel %vm1094, %v7122, 0
        %v7207 = vsel %vm1094, %v7124, 0
        %7209 = vmatprep.subr.mxu0 %v7126
        %7210 = vmatpush1.msra.mxu0 %v7125
        %7211 = vmatprep.subr.mxu0 %v7128
        %7212 = vmatpush1.msra.mxu0 %v7127
        %7213 = vmatprep.subr.mxu0 %v7130
        %7214 = vmatpush1.msra.mxu0 %v7129
        %7215 = vmatprep.subr.mxu0 %v7132
        %7216 = vmatpush1.msra.mxu0 %v7131
        %7217 = vmatprep.subr.mxu0 %v7134
        %7218 = vmatpush1.msra.mxu0 %v7133
        %7219 = vmatprep.subr.mxu0 %v7136
        %7220 = vmatpush1.msra.mxu0 %v7135
        %7221 = vmatprep.subr.mxu0 %v7138
        %7222 = vmatpush1.msra.mxu0 %v7137
        %7223 = vmatprep.subr.mxu0 %v7140
        %7224 = vmatpush1.msra.mxu0 %v7139
        %7225 = vmatprep.subr.mxu0 %v7142
        %7226 = vmatpush1.msra.mxu0 %v7141
        %7227 = vmatprep.subr.mxu0 %v7144
        %7228 = vmatpush1.msra.mxu0 %v7143
        %7229 = vmatprep.subr.mxu0 %v7146
        %7230 = vmatpush1.msra.mxu0 %v7145
        %7231 = vmatprep.subr.mxu0 %v7148
        %7232 = vmatpush1.msra.mxu0 %v7147
        %7233 = vmatprep.subr.mxu0 %v7150
        %7234 = vmatpush1.msra.mxu0 %v7149
        %7235 = vmatprep.subr.mxu0 %v7152
        %7236 = vmatpush1.msra.mxu0 %v7151
        %7237 = vmatprep.subr.mxu0 %v7154
        %7238 = vmatpush1.msra.mxu0 %v7153
        %7239 = vmatprep.subr.mxu0 %v7156
        %7240 = vmatpush1.msra.mxu0 %v7155
        %7241 = vmatprep.subr.mxu0 %v7158
        %7242 = vmatpush1.msra.mxu0 %v7157
        %7243 = vmatprep.subr.mxu0 %v7160
        %7244 = vmatpush1.msra.mxu0 %v7159
        %7245 = vmatprep.subr.mxu0 %v7162
        %7246 = vmatpush1.msra.mxu0 %v7161
        %7247 = vmatprep.subr.mxu0 %v7164
        %7248 = vmatpush1.msra.mxu0 %v7163
        %7249 = vmatprep.subr.mxu0 %v7166
        %7250 = vmatpush1.msra.mxu0 %v7165
        %7251 = vmatprep.subr.mxu0 %v7168
        %7252 = vmatpush1.msra.mxu0 %v7167
        %7253 = vmatprep.subr.mxu0 %v7170
        %7254 = vmatpush1.msra.mxu0 %v7169
        %7255 = vmatprep.subr.mxu0 %v7172
        %7256 = vmatpush1.msra.mxu0 %v7171
        %7257 = vmatprep.subr.mxu0 0.0
        %7258 = vmatpush1.msra.mxu0 0.0
        %7259 = vmatprep.subr.mxu0 0.0
        %7260 = vmatpush1.msra.mxu0 0.0
        %7261 = vmatprep.subr.mxu0 0.0
        %7262 = vmatpush1.msra.mxu0 0.0
        %7263 = vmatprep.subr.mxu0 0.0
        %7264 = vmatpush1.msra.mxu0 0.0
        %7265 = vmatprep.subr.mxu0 0.0
        %7266 = vmatpush1.msra.mxu0 0.0
        %7267 = vmatprep.subr.mxu0 0.0
        %7268 = vmatpush1.msra.mxu0 0.0
        %7269 = vmatprep.subr.mxu0 0.0
        %7270 = vmatpush1.msra.mxu0 0.0
        %7271 = vmatprep.subr.mxu0 0.0
        %7272 = vmatpush1.msra.mxu0 0.0
        %7273 = vmatprep.mubr.f32.mxu0 %v7186
        %7274 = vmatmul.mubr.f32.gmra.mrb[0].mxu0 %v7109
        %v7275 = vpop.f32.mrb[0].mxu0
        %v7276 = vadd.f32 %v7178, %v7275
        %v7277 = vpop.f32.mrb[0].mxu0
        %v7278 = vadd.f32 %v7182, %v7277
        %7279 = vmatprep.mubr.f32.mxu0 %v7189
        %7280 = vmatmul.mubr.f32.gmra.mrb[0].mxu0 %v7111
        %v7281 = vpop.f32.mrb[0].mxu0
        %v7282 = vadd.f32 %v7178, %v7281
        %v7283 = vpop.f32.mrb[0].mxu0
        %v7284 = vadd.f32 %v7182, %v7283
        %7285 = vmatprep.mubr.f32.mxu0 %v7192
        %7286 = vmatmul.mubr.f32.gmra.mrb[0].mxu0 %v7113
        %v7287 = vpop.f32.mrb[0].mxu0
        %v7288 = vadd.f32 %v7178, %v7287
        %v7289 = vpop.f32.mrb[0].mxu0
        %v7290 = vadd.f32 %v7182, %v7289
        %7291 = vmatprep.mubr.f32.mxu0 %v7195
        %7292 = vmatmul.mubr.f32.gmra.mrb[0].mxu0 %v7115
        %v7293 = vpop.f32.mrb[0].mxu0
        %v7294 = vadd.f32 %v7178, %v7293
        %v7295 = vpop.f32.mrb[0].mxu0
        %v7296 = vadd.f32 %v7182, %v7295
        %7297 = vmatprep.mubr.f32.mxu0 %v7198
        %7298 = vmatmul.mubr.f32.gmra.mrb[0].mxu0 %v7117
        %v7299 = vpop.f32.mrb[0].mxu0
        %v7300 = vadd.f32 %v7178, %v7299
        %v7301 = vpop.f32.mrb[0].mxu0
        %v7302 = vadd.f32 %v7182, %v7301
        %7303 = vmatprep.mubr.f32.mxu0 %v7201
        %7304 = vmatmul.mubr.f32.gmra.mrb[0].mxu0 %v7119
        %v7305 = vpop.f32.mrb[0].mxu0
        %v7306 = vadd.f32 %v7178, %v7305
        %v7307 = vpop.f32.mrb[0].mxu0
        %v7308 = vadd.f32 %v7182, %v7307
        %7309 = vmatprep.mubr.f32.mxu0 %v7204
        %7310 = vmatmul.mubr.f32.gmra.mrb[0].mxu0 %v7121
        %v7311 = vpop.f32.mrb[0].mxu0
        %v7312 = vadd.f32 %v7178, %v7311
        %v7313 = vpop.f32.mrb[0].mxu0
        %v7314 = vadd.f32 %v7182, %v7313
        %7315 = vmatprep.mubr.f32.mxu0 %v7207
        %7316 = vmatmul.mubr.f32.gmra.mrb[0].mxu0 %v7123
        %v7317 = vpop.f32.mrb[0].mxu0
        %v7318 = vadd.f32 %v7178, %v7317
        %v7319 = vpop.f32.mrb[0].mxu0
        %v7320 = vadd.f32 %v7182, %v7319
        %7321 = vdwg.mxu0
        %7322 = vst [vmem:[%s234] sm:$0xff] %v7276
        %7323 = vst [vmem:[%s234 + $0x8] sm:$0xff] %v7278
        %7324 = vst [vmem:[%s234 + $0x10] sm:$0xff] %v7282
        %7325 = vst [vmem:[%s234 + $0x18] sm:$0xff] %v7284
        %7326 = vst [vmem:[%s234 + $0x20] sm:$0xff] %v7288
        %7327 = vst [vmem:[%s234 + $0x28] sm:$0xff] %v7290
        %7328 = vst [vmem:[%s234 + $0x30] sm:$0xff] %v7294
        %7329 = vst [vmem:[%s234 + $0x38] sm:$0xff] %v7296
        %7330 = vst [vmem:[%s234 + $0x40] sm:$0xff] %v7300
        %7331 = vst [vmem:[%s234 + $0x48] sm:$0xff] %v7302
        %7332 = vst [vmem:[%s234 + $0x50] sm:$0xff] %v7306
        %7333 = vst [vmem:[%s234 + $0x58] sm:$0xff] %v7308
        %7334 = vst [vmem:[%s234 + $0x60] sm:$0xff] %v7312
        %7335 = vst [vmem:[%s234 + $0x68] sm:$0xff] %v7314
        %7336 = vst [vmem:[%s234 + $0x70] sm:$0xff] %v7318
        %7337 = vst [vmem:[%s234 + $0x78] sm:$0xff] %v7320
        %s7338 = sand.u32 %s113, 1
        %s7339 = scalar_lea.sflag [#allocation5], %s7338
        %s7340 = sand.u32 %s113, 1
        %s7341 = smul.addr %s7340, 128
        %s7342 = scalar_lea.vmem [#allocation9], %s7341
        // Predicated region
        $region45: #{tpu_custom_call.1} parent=31 // pred_check
          %p7343 = pneg %p123
        $region46: #{tpu_custom_call.1} parent=31 // pred_check_branch
          %7345 = sbr.rel (%p7343) target = $region48
        $region47: #{tpu_custom_call.1} parent=31 // pred_region
          %s7346 = smul.u32 8, %s26
          %s7348 = ssub.s32 2048, 2048
          %7349 = vsyncadd %s7339, %s7348
          %s7350 = smul.addr %s7346, 2
          %s7351 = smul.addr %s25, 16
          %s7352 = sadd.s32 %s7350, %s7351
          %s7353 = smul.addr %s7352, 128
          %s7354 = scalar_lea.hbm %s3, %s7353
          %s7355 = sshll.u32 %s7342, 4
          %s7356 = int_to_ptr.vmem [resolvable:$true] %s7355
          %7361 = dma.vmem_to_hbm [thread:$0]  %s7356, 2048, %s7354, %s7339, 256, 256, 16
        $region48: #{tpu_custom_call.1} parent=31 // pred_fallthru
          _
      $region32: #{tpu_custom_call.1} parent=5 // pred_fallthru
        _
      %p7362 = scmp.le.s32.totalorder 2, %s16
      // Predicated region
      $region49: #{tpu_custom_call.1} parent=5 // pred_check
        %p7363 = pneg %p7362
      $region50: #{tpu_custom_call.1} parent=5 // pred_check_branch
        %7365 = sbr.rel (%p7363) target = $region52
      $region51: #{tpu_custom_call.1} parent=5 // pred_region
        %s7366 = ssub.s32 %s16, 2
        // Predicated region
        $region53: #{tpu_custom_call.1} parent=51 // pred_check
          %p7367 = pneg %p129
        $region54: #{tpu_custom_call.1} parent=51 // pred_check_branch
          %7369 = sbr.rel (%p7367) target = $region56
        $region55: #{tpu_custom_call.1} parent=51 // pred_region
          %s7370 = sand.u32 %s114, 1
          %s7371 = scalar_lea.sflag [#allocation5], %s7370
          %s7372 = sand.u32 %s114, 1
          %s7373 = smul.addr %s7372, 128
          %s7374 = scalar_lea.vmem [#allocation9], %s7373
          %7375 = dma.done %s7371, 2048
        $region56: #{tpu_custom_call.1} parent=51 // pred_fallthru
          _
      $region52: #{tpu_custom_call.1} parent=5 // pred_fallthru
        _
    $region6: #{tpu_custom_call.1} parent=1 // loop_footer
      %s20 = sadd.s32 1, %s16
    $region7: #{tpu_custom_call.1} parent=1 // loop_footer_branch
      %15 = sbr.rel target = $region3
    $region8: #{tpu_custom_call.1} parent=1 // loop_exit
      _
    %7376 = vsyncpa [#allocation4], 1
    %s7377 = scalar_lea.sflag [#allocation4], 1
    %7378 = vsyncpa %s7377, 1
    %7379 = vsyncpa [#allocation7], 1
    %7380 = vsyncpa [#allocation5], 1
    %s7381 = scalar_lea.sflag [#allocation5], 1
    %7382 = vsyncpa %s7381, 1

</llo_original>
